<compile_context>
chip_gen: v7x
topology: tpu7x:2x2x1
jax: 0.10.0
libtpu: 0.0.40
codegen_flags: <defaults>
</compile_context>

<pallas_src>
import functools

import jax
import jax.numpy as jnp
from jax.experimental import pallas as pl
from jax.experimental.pallas import tpu as pltpu

INPUT_SIZE = 4        # stacked frames
HIDDEN = 512
ACTION_SIZE = 6

# Actual per-call VMEM use is a few MiB; 32 MiB fits every generation
# (v7x physical VMEM is 64 MiB per TensorCore; v5e/v6e have 128 MiB).
_VMEM_LIMIT = 32 * 1024 * 1024


def _round_up(x, m):
    return ((x + m - 1) // m) * m


def _pick_lane_block(n):
    """Lane (N) tile for the conv GEMMs: multiple of 128, >=512 lanes per step
    when available, and >=2 grid steps (megacore / v7x dual-TC) when possible."""
    n128 = _round_up(n, 128)
    for tn in (2048, 1024, 512):
        if n128 >= 2 * tn:
            return tn
    return min(n128, 512)


def _pick_batch_block(b):
    """fc/heads batch (M) block: as large as possible for MXU M-rows while
    keeping >=2 grid steps once the batch allows it."""
    for bb in (256, 128, 64, 32, 16, 8):
        if b >= 2 * bb:
            return bb
    return 8


# ----------------------------------------------------------------------------
# Pallas kernels
# ----------------------------------------------------------------------------
def _conv_gemm_kernel(p_ref, w_ref, b_ref, o_ref):
    """Lane-batched conv GEMM block: out(Cout, TN) = relu(W(Cout,K) @ P(K,TN) + b).

    TN lanes carry (batch, oy, ox) jointly, so the result is already channel-major
    (Cout, B, oh, ow); accumulate in f32, store bf16."""
    acc = jnp.dot(w_ref[...], p_ref[...], preferred_element_type=jnp.float32)
    acc = jnp.maximum(acc + b_ref[...], 0.0)     # bias (Cout, 1) broadcasts over lanes
    o_ref[...] = acc.astype(o_ref.dtype)


def conv_gemm(patches, w, b):
    """patches (K, N=B*S) bf16, w (Cout, K) bf16, b (Cout, 1) f32 -> (Cout, N) bf16."""
    K, N = patches.shape
    Cout = w.shape[0]
    tn = _pick_lane_block(N)
    cost = pl.CostEstimate(
        flops=2 * Cout * K * N,
        transcendentals=0,
        bytes_accessed=(patches.size * 2 + w.size * 2 + b.size * 4 + Cout * N * 2),
    )
    return pl.pallas_call(
        _conv_gemm_kernel,
        out_shape=jax.ShapeDtypeStruct((Cout, N), jnp.bfloat16),
        grid_spec=pltpu.PrefetchScalarGridSpec(
            num_scalar_prefetch=0,
            grid=(pl.cdiv(N, tn),),
            in_specs=[
                pl.BlockSpec((K, tn), lambda i: (0, i)),
                pl.BlockSpec((Cout, K), lambda i: (0, 0)),   # weights resident across grid
                pl.BlockSpec((Cout, 1), lambda i: (0, 0)),
            ],
            out_specs=pl.BlockSpec((Cout, tn), lambda i: (0, i)),
        ),
        compiler_params=pltpu.CompilerParams(
            dimension_semantics=("parallel",),
            vmem_limit_bytes=_VMEM_LIMIT,
        ),
        cost_estimate=cost,
    )(patches, w, b)


def _fc_heads_kernel(x_ref, wf_ref, bf_ref, wh_ref, bh_ref, probs_ref, value_ref,
                     *, n_actions):
    """Fused: features = relu(x @ Wfc + bfc); [logits | value] = features @ Whead + bhead;
    probs = softmax(logits).  One merged bf16 head matmul; f32 bias/softmax."""
    f = jnp.dot(x_ref[...], wf_ref[...], preferred_element_type=jnp.float32)
    f = jnp.maximum(f + bf_ref[...], 0.0)                                   # (BB, H) f32
    h = jnp.dot(f.astype(jnp.bfloat16), wh_ref[...],
                preferred_element_type=jnp.float32) + bh_ref[...]           # (BB, A+1)
    logits = h[:, :n_actions]
    m = jnp.max(logits, axis=-1, keepdims=True)
    e = jnp.exp(logits - m)
    denom = jnp.sum(e, axis=-1, keepdims=True)
    probs_ref[...] = (e * pl.reciprocal(denom, approx=True)).astype(probs_ref.dtype)
    value_ref[...] = h[:, n_actions:n_actions + 1].astype(value_ref.dtype)


def fc_actor_critic(flat, wf, bf, wh, bh, *, n_actions):
    """flat (B, 3136) bf16 -> (probs (B, A) f32, value (B, 1) f32).

    Ragged last batch block handled by the cdiv grid (masked writeback), no pad copy."""
    B, K = flat.shape
    H = wf.shape[1]
    A1 = wh.shape[1]
    bb = _pick_batch_block(B)
    cost = pl.CostEstimate(
        flops=2 * B * K * H + 2 * B * H * A1,
        transcendentals=B * (n_actions + 1),
        bytes_accessed=(B * K * 2 + K * H * 2 + H * 4 + H * A1 * 2 + A1 * 4
                        + B * A1 * 4 + B * 4),
    )
    kernel = functools.partial(_fc_heads_kernel, n_actions=n_actions)
    probs, value = pl.pallas_call(
        kernel,
        out_shape=(
            jax.ShapeDtypeStruct((B, n_actions), jnp.float32),
            jax.ShapeDtypeStruct((B, 1), jnp.float32),
        ),
        grid_spec=pltpu.PrefetchScalarGridSpec(
            num_scalar_prefetch=0,
            grid=(pl.cdiv(B, bb),),
            in_specs=[
                pl.BlockSpec((bb, K), lambda i: (i, 0)),
                pl.BlockSpec((K, H), lambda i: (0, 0)),      # 3.2 MiB bf16, stays resident
                pl.BlockSpec((1, H), lambda i: (0, 0)),
                pl.BlockSpec((H, A1), lambda i: (0, 0)),
                pl.BlockSpec((1, A1), lambda i: (0, 0)),
            ],
            out_specs=(
                pl.BlockSpec((bb, n_actions), lambda i: (i, 0)),
                pl.BlockSpec((bb, 1), lambda i: (i, 0)),
            ),
        ),
        compiler_params=pltpu.CompilerParams(
            dimension_semantics=("parallel",),
            vmem_limit_bytes=_VMEM_LIMIT,
        ),
        cost_estimate=cost,
    )(flat, wf, bf, wh, bh)
    return probs, value


# ----------------------------------------------------------------------------
# Plain-JAX glue: channel-major im2col (pure slicing/stack/reshape, no math)
# ----------------------------------------------------------------------------
def im2col_cm(x, kh, kw, stride):
    """x (C, B, H, W) -> patches (C*kh*kw, B*oh*ow).

    K order is (c, ki, kj) so it matches W.reshape(Cout, C*kh*kw); the lane order
    is (b, oy, ox) so the GEMM output is channel-major (Cout, B, oh, ow)."""
    C, B, H, W = x.shape
    oh = (H - kh) // stride + 1
    ow = (W - kw) // stride + 1
    cols = []
    for i in range(kh):
        for j in range(kw):
            cols.append(x[:, :, i:i + stride * oh:stride, j:j + stride * ow:stride])
    p = jnp.stack(cols, axis=1)                      # (C, kh*kw, B, oh, ow)
    return p.reshape(C * kh * kw, B * oh * ow), oh, ow


# ----------------------------------------------------------------------------
# Parameters
# ----------------------------------------------------------------------------
def init_params(key, hidden=HIDDEN, action_size=ACTION_SIZE):
    """Parameters in native torch layouts (nn.Conv2d / nn.Linear shapes)."""
    ks = jax.random.split(key, 12)
    s = 0.05
    return {
        "c1_w": jax.random.normal(ks[0], (32, INPUT_SIZE, 8, 8), jnp.float32) * s,
        "c1_b": jax.random.normal(ks[1], (32,), jnp.float32) * s,
        "c2_w": jax.random.normal(ks[2], (64, 32, 4, 4), jnp.float32) * s,
        "c2_b": jax.random.normal(ks[3], (64,), jnp.float32) * s,
        "c3_w": jax.random.normal(ks[4], (64, 64, 3, 3), jnp.float32) * s,
        "c3_b": jax.random.normal(ks[5], (64,), jnp.float32) * s,
        "fc_w": jax.random.normal(ks[6], (64 * 7 * 7, hidden), jnp.float32) * 0.01,
        "fc_b": jax.random.normal(ks[7], (hidden,), jnp.float32) * s,
        "cr_w": jax.random.normal(ks[8], (hidden, 1), jnp.float32) * 0.01,
        "cr_b": jax.random.normal(ks[9], (1,), jnp.float32) * s,
        "ac_w": jax.random.normal(ks[10], (hidden, action_size), jnp.float32) * 0.01,
        "ac_b": jax.random.normal(ks[11], (action_size,), jnp.float32) * s,
    }


def prepare_params(p):
    """One-time conversion to kernel-friendly layouts/dtypes.

    * 1/255 input scale folded into conv1 weights (bias untouched).
    * Conv weights reshaped to (Cout, Cin*KH*KW) GEMM form, cast to bf16.
    * Actor + critic merged into one (H, A+1) bf16 head matmul.
    NOTE: bf16 weights give small (benign) numerical differences vs. f32 PyTorch;
    keep f32 here if strict bit-matching is required.
    """
    def conv_w(w, scale=None):
        w2 = w.reshape(w.shape[0], -1)
        if scale is not None:
            w2 = w2 * scale
        return w2.astype(jnp.bfloat16)

    return {
        "w1": conv_w(p["c1_w"], 1.0 / 255.0),
        "b1": p["c1_b"].reshape(-1, 1).astype(jnp.float32),
        "w2": conv_w(p["c2_w"]),
        "b2": p["c2_b"].reshape(-1, 1).astype(jnp.float32),
        "w3": conv_w(p["c3_w"]),
        "b3": p["c3_b"].reshape(-1, 1).astype(jnp.float32),
        "wf": p["fc_w"].astype(jnp.bfloat16),
        "bf": p["fc_b"].reshape(1, -1).astype(jnp.float32),
        "wh": jnp.concatenate([p["ac_w"], p["cr_w"]], axis=1).astype(jnp.bfloat16),
        "bh": jnp.concatenate([p["ac_b"], p["cr_b"]]).reshape(1, -1).astype(jnp.float32),
    }


# ----------------------------------------------------------------------------
# NatureCNN forward
# ----------------------------------------------------------------------------
@jax.jit
def nature_cnn_forward(x, kp):
    # x.view(-1, 4, 84, 84).mul(1/255): the 1/255 is folded into kp["w1"].
    # Pixel values 0..255 are exact in bf16.
    x = x.reshape(-1, INPUT_SIZE, 84, 84).astype(jnp.bfloat16)
    B = x.shape[0]
    xcm = jnp.transpose(x, (1, 0, 2, 3))                         # channel-major (C,B,H,W)

    p1, oh, ow = im2col_cm(xcm, 8, 8, 4)                         # (256, B*400)
    h = conv_gemm(p1, kp["w1"], kp["b1"]).reshape(32, B, oh, ow) # (32, B, 20, 20)
    p2, oh, ow = im2col_cm(h, 4, 4, 2)                           # (512, B*81)
    h = conv_gemm(p2, kp["w2"], kp["b2"]).reshape(64, B, oh, ow) # (64, B, 9, 9)
    p3, oh, ow = im2col_cm(h, 3, 3, 1)                           # (576, B*49)
    h = conv_gemm(p3, kp["w3"], kp["b3"]).reshape(64, B, oh * ow)

    # Channel-major -> per-image flatten identical to torch .view(B, -1) on NCHW.
    # Only ~6 KiB per image of layout glue left after the convs.
    flat = jnp.transpose(h, (1, 0, 2)).reshape(B, -1)            # (B, 3136) bf16

    # TODO(synk): distributions.ActionDistribution is a sampler object; the categorical
    # "mass" is represented here by softmax probabilities of the actor logits
    # (use_probs=False => logits parameterization).
    n_actions = kp["wh"].shape[1] - 1
    mass, value = fc_actor_critic(flat, kp["wf"], kp["bf"], kp["wh"], kp["bh"],
                                  n_actions=n_actions)
    return mass, value


if __name__ == "__main__":
    key = jax.random.PRNGKey(0)
    k_param, k_x = jax.random.split(key)
    params = prepare_params(init_params(k_param))
    # batch=2 stacks of 4 frames at 84x84 (the architecture requires 84x84),
    # values in [0, 255) like raw Atari pixels.
    x = jax.random.uniform(k_x, (2, INPUT_SIZE, 84, 84), jnp.float32, 0.0, 255.0)
    mass, value = nature_cnn_forward(x, params)
    jax.block_until_ready((mass, value))
    assert mass.shape == (2, ACTION_SIZE) and value.shape == (2, 1)
    assert bool(jnp.all(jnp.isfinite(mass))) and bool(jnp.all(jnp.isfinite(value)))
    # approx-reciprocal softmax: per-row probability sums are 1 to ~1e-3.
    assert bool(jnp.allclose(jnp.sum(mass, axis=-1), 1.0, atol=5e-3))
    print("KERNEL_OK")
</pallas_src>

<mosaic_0001>
module attributes {stable_mosaic.version = 11 : i64} {
  func.func @_conv_gemm_kernel(%arg0: i32, %arg1: memref<256x512xbf16, #tpu.memory_space<vmem>>, %arg2: memref<32x256xbf16, #tpu.memory_space<vmem>>, %arg3: memref<32x1xf32, #tpu.memory_space<vmem>>, %arg4: memref<32x512xbf16, #tpu.memory_space<vmem>>) attributes {dimension_semantics = [#tpu.dimension_semantics<parallel>], iteration_bounds = array<i64: 2>, scalar_prefetch = 0 : i64, scratch_operands = 0 : i64, tpu.core_type = #tpu.core_type<tc>, window_params = [{transform_indices = @transform_0, window_bounds = array<i64: 256, 512>}, {pipeline_mode = #tpu.pipeline_mode<synchronous>, transform_indices = @transform_1, window_bounds = array<i64: 32, 256>}, {pipeline_mode = #tpu.pipeline_mode<synchronous>, transform_indices = @transform_2, window_bounds = array<i64: 32, 1>}, {transform_indices = @transform_3, window_bounds = array<i64: 32, 512>}]} {
    %c0 = arith.constant 0 : index
    %c0_0 = arith.constant 0 : index
    %0 = vector.load %arg2[%c0, %c0_0] : memref<32x256xbf16, #tpu.memory_space<vmem>>, vector<32x256xbf16>
    %c0_1 = arith.constant 0 : index
    %c0_2 = arith.constant 0 : index
    %1 = vector.load %arg1[%c0_1, %c0_2] : memref<256x512xbf16, #tpu.memory_space<vmem>>, vector<256x512xbf16>
    %cst = arith.constant dense<0.000000e+00> : vector<32x512xf32>
    %2 = tpu.matmul %0, %1, %cst {dimension_numbers = #tpu.dot_dimension_numbers<[1], [0], [0], [1], [0, 0, 1, 1], [], []>} : vector<32x256xbf16>, vector<256x512xbf16>, vector<32x512xf32> -> vector<32x512xf32>
    %c0_3 = arith.constant 0 : index
    %c0_4 = arith.constant 0 : index
    %3 = vector.load %arg3[%c0_3, %c0_4] : memref<32x1xf32, #tpu.memory_space<vmem>>, vector<32x1xf32>
    %4 = vector.broadcast %3 : vector<32x1xf32> to vector<32x512xf32>
    %5 = arith.addf %2, %4 : vector<32x512xf32>
    %cst_5 = arith.constant 0.000000e+00 : f32
    %6 = vector.broadcast %cst_5 : f32 to vector<32x512xf32>
    %7 = arith.maximumf %5, %6 : vector<32x512xf32>
    %8 = arith.truncf %7 : vector<32x512xf32> to vector<32x512xbf16>
    %c0_6 = arith.constant 0 : index
    %c0_7 = arith.constant 0 : index
    %9 = vector.load %arg4[%c0_6, %c0_7] : memref<32x512xbf16, #tpu.memory_space<vmem>>, vector<32x512xbf16>
    tpu.vector_store %arg4[%c0_6, %c0_7], %8 {strides = array<i32>} : memref<32x512xbf16, #tpu.memory_space<vmem>>, vector<32x512xbf16>,
    return
  }
  func.func @transform_0(%arg0: i32) -> (i32, i32) {
    %c0_i32 = arith.constant 0 : i32
    %c0_i32_0 = arith.constant 0 : i32
    return %c0_i32, %arg0 : i32, i32
  }
  func.func @transform_1(%arg0: i32) -> (i32, i32) {
    %c0_i32 = arith.constant 0 : i32
    %c0_i32_0 = arith.constant 0 : i32
    %c0_i32_1 = arith.constant 0 : i32
    return %c0_i32, %c0_i32_0 : i32, i32
  }
  func.func @transform_2(%arg0: i32) -> (i32, i32) {
    %c0_i32 = arith.constant 0 : i32
    %c0_i32_0 = arith.constant 0 : i32
    %c0_i32_1 = arith.constant 0 : i32
    return %c0_i32, %c0_i32_0 : i32, i32
  }
  func.func @transform_3(%arg0: i32) -> (i32, i32) {
    %c0_i32 = arith.constant 0 : i32
    %c0_i32_0 = arith.constant 0 : i32
    return %c0_i32, %arg0 : i32, i32
  }
}

module attributes {stable_mosaic.version = 11 : i64} {
  func.func @_conv_gemm_kernel(%arg0: i32, %arg1: memref<512x256xbf16, #tpu.memory_space<vmem>>, %arg2: memref<64x512xbf16, #tpu.memory_space<vmem>>, %arg3: memref<64x1xf32, #tpu.memory_space<vmem>>, %arg4: memref<64x256xbf16, #tpu.memory_space<vmem>>) attributes {dimension_semantics = [#tpu.dimension_semantics<parallel>], iteration_bounds = array<i64: 1>, scalar_prefetch = 0 : i64, scratch_operands = 0 : i64, tpu.core_type = #tpu.core_type<tc>, window_params = [{transform_indices = @transform_0, window_bounds = array<i64: 512, 256>}, {pipeline_mode = #tpu.pipeline_mode<synchronous>, transform_indices = @transform_1, window_bounds = array<i64: 64, 512>}, {pipeline_mode = #tpu.pipeline_mode<synchronous>, transform_indices = @transform_2, window_bounds = array<i64: 64, 1>}, {transform_indices = @transform_3, window_bounds = array<i64: 64, 256>}]} {
    %c0 = arith.constant 0 : index
    %c0_0 = arith.constant 0 : index
    %0 = vector.load %arg2[%c0, %c0_0] : memref<64x512xbf16, #tpu.memory_space<vmem>>, vector<64x512xbf16>
    %c0_1 = arith.constant 0 : index
    %c0_2 = arith.constant 0 : index
    %1 = vector.load %arg1[%c0_1, %c0_2] : memref<512x256xbf16, #tpu.memory_space<vmem>>, vector<512x256xbf16>
    %cst = arith.constant dense<0.000000e+00> : vector<64x256xf32>
    %2 = tpu.matmul %0, %1, %cst {dimension_numbers = #tpu.dot_dimension_numbers<[1], [0], [0], [1], [0, 0, 1, 1], [], []>} : vector<64x512xbf16>, vector<512x256xbf16>, vector<64x256xf32> -> vector<64x256xf32>
    %c0_3 = arith.constant 0 : index
    %c0_4 = arith.constant 0 : index
    %3 = vector.load %arg3[%c0_3, %c0_4] : memref<64x1xf32, #tpu.memory_space<vmem>>, vector<64x1xf32>
    %4 = vector.broadcast %3 : vector<64x1xf32> to vector<64x256xf32>
    %5 = arith.addf %2, %4 : vector<64x256xf32>
    %cst_5 = arith.constant 0.000000e+00 : f32
    %6 = vector.broadcast %cst_5 : f32 to vector<64x256xf32>
    %7 = arith.maximumf %5, %6 : vector<64x256xf32>
    %8 = arith.truncf %7 : vector<64x256xf32> to vector<64x256xbf16>
    %c0_6 = arith.constant 0 : index
    %c0_7 = arith.constant 0 : index
    %9 = vector.load %arg4[%c0_6, %c0_7] : memref<64x256xbf16, #tpu.memory_space<vmem>>, vector<64x256xbf16>
    tpu.vector_store %arg4[%c0_6, %c0_7], %8 {strides = array<i32>} : memref<64x256xbf16, #tpu.memory_space<vmem>>, vector<64x256xbf16>,
    return
  }
  func.func @transform_0(%arg0: i32) -> (i32, i32) {
    %c0_i32 = arith.constant 0 : i32
    %c0_i32_0 = arith.constant 0 : i32
    return %c0_i32, %arg0 : i32, i32
  }
  func.func @transform_1(%arg0: i32) -> (i32, i32) {
    %c0_i32 = arith.constant 0 : i32
    %c0_i32_0 = arith.constant 0 : i32
    %c0_i32_1 = arith.constant 0 : i32
    return %c0_i32, %c0_i32_0 : i32, i32
  }
  func.func @transform_2(%arg0: i32) -> (i32, i32) {
    %c0_i32 = arith.constant 0 : i32
    %c0_i32_0 = arith.constant 0 : i32
    %c0_i32_1 = arith.constant 0 : i32
    return %c0_i32, %c0_i32_0 : i32, i32
  }
  func.func @transform_3(%arg0: i32) -> (i32, i32) {
    %c0_i32 = arith.constant 0 : i32
    %c0_i32_0 = arith.constant 0 : i32
    return %c0_i32, %arg0 : i32, i32
  }
}

module attributes {stable_mosaic.version = 11 : i64} {
  func.func @_conv_gemm_kernel(%arg0: i32, %arg1: memref<576x128xbf16, #tpu.memory_space<vmem>>, %arg2: memref<64x576xbf16, #tpu.memory_space<vmem>>, %arg3: memref<64x1xf32, #tpu.memory_space<vmem>>, %arg4: memref<64x128xbf16, #tpu.memory_space<vmem>>) attributes {dimension_semantics = [#tpu.dimension_semantics<parallel>], iteration_bounds = array<i64: 1>, scalar_prefetch = 0 : i64, scratch_operands = 0 : i64, tpu.core_type = #tpu.core_type<tc>, window_params = [{transform_indices = @transform_0, window_bounds = array<i64: 576, 128>}, {pipeline_mode = #tpu.pipeline_mode<synchronous>, transform_indices = @transform_1, window_bounds = array<i64: 64, 576>}, {pipeline_mode = #tpu.pipeline_mode<synchronous>, transform_indices = @transform_2, window_bounds = array<i64: 64, 1>}, {transform_indices = @transform_3, window_bounds = array<i64: 64, 128>}]} {
    %c0 = arith.constant 0 : index
    %c0_0 = arith.constant 0 : index
    %0 = vector.load %arg2[%c0, %c0_0] : memref<64x576xbf16, #tpu.memory_space<vmem>>, vector<64x576xbf16>
    %c0_1 = arith.constant 0 : index
    %c0_2 = arith.constant 0 : index
    %1 = vector.load %arg1[%c0_1, %c0_2] : memref<576x128xbf16, #tpu.memory_space<vmem>>, vector<576x128xbf16>
    %cst = arith.constant dense<0.000000e+00> : vector<64x128xf32>
    %2 = tpu.matmul %0, %1, %cst {dimension_numbers = #tpu.dot_dimension_numbers<[1], [0], [0], [1], [0, 0, 1, 1], [], []>} : vector<64x576xbf16>, vector<576x128xbf16>, vector<64x128xf32> -> vector<64x128xf32>
    %c0_3 = arith.constant 0 : index
    %c0_4 = arith.constant 0 : index
    %3 = vector.load %arg3[%c0_3, %c0_4] : memref<64x1xf32, #tpu.memory_space<vmem>>, vector<64x1xf32>
    %4 = vector.broadcast %3 : vector<64x1xf32> to vector<64x128xf32>
    %5 = arith.addf %2, %4 : vector<64x128xf32>
    %cst_5 = arith.constant 0.000000e+00 : f32
    %6 = vector.broadcast %cst_5 : f32 to vector<64x128xf32>
    %7 = arith.maximumf %5, %6 : vector<64x128xf32>
    %8 = arith.truncf %7 : vector<64x128xf32> to vector<64x128xbf16>
    %c0_6 = arith.constant 0 : index
    %c0_7 = arith.constant 0 : index
    %9 = vector.load %arg4[%c0_6, %c0_7] : memref<64x128xbf16, #tpu.memory_space<vmem>>, vector<64x128xbf16>
    tpu.vector_store %arg4[%c0_6, %c0_7], %8 {strides = array<i32>} : memref<64x128xbf16, #tpu.memory_space<vmem>>, vector<64x128xbf16>,
    return
  }
  func.func @transform_0(%arg0: i32) -> (i32, i32) {
    %c0_i32 = arith.constant 0 : i32
    %c0_i32_0 = arith.constant 0 : i32
    return %c0_i32, %arg0 : i32, i32
  }
  func.func @transform_1(%arg0: i32) -> (i32, i32) {
    %c0_i32 = arith.constant 0 : i32
    %c0_i32_0 = arith.constant 0 : i32
    %c0_i32_1 = arith.constant 0 : i32
    return %c0_i32, %c0_i32_0 : i32, i32
  }
  func.func @transform_2(%arg0: i32) -> (i32, i32) {
    %c0_i32 = arith.constant 0 : i32
    %c0_i32_0 = arith.constant 0 : i32
    %c0_i32_1 = arith.constant 0 : i32
    return %c0_i32, %c0_i32_0 : i32, i32
  }
  func.func @transform_3(%arg0: i32) -> (i32, i32) {
    %c0_i32 = arith.constant 0 : i32
    %c0_i32_0 = arith.constant 0 : i32
    return %c0_i32, %arg0 : i32, i32
  }
}

module attributes {stable_mosaic.version = 11 : i64} {
  func.func @_fc_heads_kernel(%arg0: i32, %arg1: memref<8x3136xbf16, #tpu.memory_space<vmem>>, %arg2: memref<3136x512xbf16, #tpu.memory_space<vmem>>, %arg3: memref<1x512xf32, #tpu.memory_space<vmem>>, %arg4: memref<512x7xbf16, #tpu.memory_space<vmem>>, %arg5: memref<1x7xf32, #tpu.memory_space<vmem>>, %arg6: memref<8x6xf32, #tpu.memory_space<vmem>>, %arg7: memref<8x1xf32, #tpu.memory_space<vmem>>) attributes {dimension_semantics = [#tpu.dimension_semantics<parallel>], iteration_bounds = array<i64: 1>, scalar_prefetch = 0 : i64, scratch_operands = 0 : i64, tpu.core_type = #tpu.core_type<tc>, window_params = [{transform_indices = @transform_0, window_bounds = array<i64: 8, 3136>}, {pipeline_mode = #tpu.pipeline_mode<synchronous>, transform_indices = @transform_1, window_bounds = array<i64: 3136, 512>}, {pipeline_mode = #tpu.pipeline_mode<synchronous>, transform_indices = @transform_2, window_bounds = array<i64: 1, 512>}, {pipeline_mode = #tpu.pipeline_mode<synchronous>, transform_indices = @transform_3, window_bounds = array<i64: 512, 7>}, {pipeline_mode = #tpu.pipeline_mode<synchronous>, transform_indices = @transform_4, window_bounds = array<i64: 1, 7>}, {transform_indices = @transform_5, window_bounds = array<i64: 8, 6>}, {transform_indices = @transform_6, window_bounds = array<i64: 8, 1>}]} {
    %c0 = arith.constant 0 : index
    %c0_0 = arith.constant 0 : index
    %0 = vector.load %arg1[%c0, %c0_0] : memref<8x3136xbf16, #tpu.memory_space<vmem>>, vector<8x3136xbf16>
    %c0_1 = arith.constant 0 : index
    %c0_2 = arith.constant 0 : index
    %1 = vector.load %arg2[%c0_1, %c0_2] : memref<3136x512xbf16, #tpu.memory_space<vmem>>, vector<3136x512xbf16>
    %cst = arith.constant dense<0.000000e+00> : vector<8x512xf32>
    %2 = tpu.matmul %0, %1, %cst {dimension_numbers = #tpu.dot_dimension_numbers<[1], [0], [0], [1], [0, 0, 1, 1], [], []>} : vector<8x3136xbf16>, vector<3136x512xbf16>, vector<8x512xf32> -> vector<8x512xf32>
    %c0_3 = arith.constant 0 : index
    %c0_4 = arith.constant 0 : index
    %3 = vector.load %arg3[%c0_3, %c0_4] : memref<1x512xf32, #tpu.memory_space<vmem>>, vector<1x512xf32>
    %4 = vector.broadcast %3 : vector<1x512xf32> to vector<8x512xf32>
    %5 = arith.addf %2, %4 : vector<8x512xf32>
    %cst_5 = arith.constant 0.000000e+00 : f32
    %6 = vector.broadcast %cst_5 : f32 to vector<8x512xf32>
    %7 = arith.maximumf %5, %6 : vector<8x512xf32>
    %8 = arith.truncf %7 : vector<8x512xf32> to vector<8x512xbf16>
    %c0_6 = arith.constant 0 : index
    %c0_7 = arith.constant 0 : index
    %9 = vector.load %arg4[%c0_6, %c0_7] : memref<512x7xbf16, #tpu.memory_space<vmem>>, vector<512x7xbf16>
    %cst_8 = arith.constant dense<0.000000e+00> : vector<8x7xf32>
    %10 = tpu.matmul %8, %9, %cst_8 {dimension_numbers = #tpu.dot_dimension_numbers<[1], [0], [0], [1], [0, 0, 1, 1], [], []>} : vector<8x512xbf16>, vector<512x7xbf16>, vector<8x7xf32> -> vector<8x7xf32>
    %c0_9 = arith.constant 0 : index
    %c0_10 = arith.constant 0 : index
    %11 = vector.load %arg5[%c0_9, %c0_10] : memref<1x7xf32, #tpu.memory_space<vmem>>, vector<1x7xf32>
    %12 = vector.broadcast %11 : vector<1x7xf32> to vector<8x7xf32>
    %13 = arith.addf %10, %12 : vector<8x7xf32>
    %14 = vector.extract_strided_slice %13 {offsets = [0, 0], sizes = [8, 6], strides = [1, 1]} : vector<8x7xf32> to vector<8x6xf32>
    %cst_11 = arith.constant dense<0xFF800000> : vector<8xf32>
    %15 = vector.multi_reduction <maximumf>, %14, %cst_11 [1] : vector<8x6xf32> to vector<8xf32>
    %16 = vector.shape_cast %15 : vector<8xf32> to vector<8x1xf32>
    %17 = vector.broadcast %16 : vector<8x1xf32> to vector<8x6xf32>
    %18 = arith.subf %14, %17 : vector<8x6xf32>
    %19 = math.exp %18 : vector<8x6xf32>
    %cst_12 = arith.constant dense<0.000000e+00> : vector<8xf32>
    %20 = vector.multi_reduction <add>, %19, %cst_12 [1] : vector<8x6xf32> to vector<8xf32>
    %21 = vector.shape_cast %20 : vector<8xf32> to vector<8x1xf32>
    %22 = tpu.reciprocal %21 {approx = true} : vector<8x1xf32> -> vector<8x1xf32>
    %23 = vector.broadcast %22 : vector<8x1xf32> to vector<8x6xf32>
    %24 = arith.mulf %19, %23 : vector<8x6xf32>
    %c0_13 = arith.constant 0 : index
    %c0_14 = arith.constant 0 : index
    %25 = vector.load %arg6[%c0_13, %c0_14] : memref<8x6xf32, #tpu.memory_space<vmem>>, vector<8x6xf32>
    tpu.vector_store %arg6[%c0_13, %c0_14], %24 {strides = array<i32>} : memref<8x6xf32, #tpu.memory_space<vmem>>, vector<8x6xf32>,
    %26 = vector.extract_strided_slice %13 {offsets = [0, 6], sizes = [8, 1], strides = [1, 1]} : vector<8x7xf32> to vector<8x1xf32>
    %c0_15 = arith.constant 0 : index
    %c0_16 = arith.constant 0 : index
    %27 = vector.load %arg7[%c0_15, %c0_16] : memref<8x1xf32, #tpu.memory_space<vmem>>, vector<8x1xf32>
    tpu.vector_store %arg7[%c0_15, %c0_16], %26 {strides = array<i32>} : memref<8x1xf32, #tpu.memory_space<vmem>>, vector<8x1xf32>,
    return
  }
  func.func @transform_0(%arg0: i32) -> (i32, i32) {
    %c0_i32 = arith.constant 0 : i32
    %c0_i32_0 = arith.constant 0 : i32
    return %arg0, %c0_i32 : i32, i32
  }
  func.func @transform_1(%arg0: i32) -> (i32, i32) {
    %c0_i32 = arith.constant 0 : i32
    %c0_i32_0 = arith.constant 0 : i32
    %c0_i32_1 = arith.constant 0 : i32
    return %c0_i32, %c0_i32_0 : i32, i32
  }
  func.func @transform_2(%arg0: i32) -> (i32, i32) {
    %c0_i32 = arith.constant 0 : i32
    %c0_i32_0 = arith.constant 0 : i32
    %c0_i32_1 = arith.constant 0 : i32
    return %c0_i32, %c0_i32_0 : i32, i32
  }
  func.func @transform_3(%arg0: i32) -> (i32, i32) {
    %c0_i32 = arith.constant 0 : i32
    %c0_i32_0 = arith.constant 0 : i32
    %c0_i32_1 = arith.constant 0 : i32
    return %c0_i32, %c0_i32_0 : i32, i32
  }
  func.func @transform_4(%arg0: i32) -> (i32, i32) {
    %c0_i32 = arith.constant 0 : i32
    %c0_i32_0 = arith.constant 0 : i32
    %c0_i32_1 = arith.constant 0 : i32
    return %c0_i32, %c0_i32_0 : i32, i32
  }
  func.func @transform_5(%arg0: i32) -> (i32, i32) {
    %c0_i32 = arith.constant 0 : i32
    %c0_i32_0 = arith.constant 0 : i32
    return %arg0, %c0_i32 : i32, i32
  }
  func.func @transform_6(%arg0: i32) -> (i32, i32) {
    %c0_i32 = arith.constant 0 : i32
    %c0_i32_0 = arith.constant 0 : i32
    return %arg0, %c0_i32 : i32, i32
  }
}

</mosaic_0001>

<llo_original>
// kernel: nature_cnn_forward.4
$region0: #{nature_cnn_forward.4}
  #allocation0 [shape = 'u32[]', space=smem, size = 0x4, offset = 0x4, fixed_abs, tag = 'smem constant byte address 0x4 - core index']
  #allocation1 [shape = 'u32[144,128]{1,0:T(1,128)}', space=vmem, size = 0x12000, scoped, tag = 'internal scratch']
  %s0 = inlined_call_operand.vmem [shape: bf16[256,800], index: 0, kind: input, shape index: {}]
  %s1 = inlined_call_operand.vmem [shape: bf16[32,256], index: 1, kind: input, shape index: {}]
  %s2 = inlined_call_operand.vmem [shape: f32[32,1], index: 2, kind: input, shape index: {}]
  %s3 = inlined_call_operand.vmem [shape: bf16[32,800], index: 3, kind: output, shape index: {}]
  %s4 = sld [smem:[#allocation0]]
  $region173: #{nature_cnn_forward.4} parent=0
    _
  %s6 = ssub.s32 1, %s4
  %s7 = scalar_select 0, %s6, %s4
  $region1: #{nature_cnn_forward.4} parent=0
    #allocation2 [shape = 'u8[524288]{0}', space=vmem, size = 0x80000, scoped, tag = 'input window, operand 0']
    #allocation3 [shape = 'u8[65536]{0}', space=vmem, size = 0x10000, scoped, tag = 'output window, operand 0']
    loop: start=0, step=1, limit=4
    $region2: #{nature_cnn_forward.4} parent=1 // loop_pre_header
      _
    $region3: #{nature_cnn_forward.4} parent=1 // loop_header
      %s9 = sphi 0, %s13
      %p10 = scmp.ge.s32.totalorder %s9, 4
      %s19 = sphi 0, %s21
      %s22 = sphi 0, %s19
      %s23 = sphi 0, %s22
      %s39 = sphi 0, %s23
      %s43 = sphi 0, %s43
      %s45 = sphi 0, %s43
      %s46 = sphi 0, %s45
      %s60 = sphi 0, %s46
      %s64 = sphi 0, %s64
      %s66 = sphi 0, %s64
      %s67 = sphi 0, %s66
      %s81 = sphi 0, %s67
      %s87 = sphi 0, %s89
      %s90 = sphi 0, %s87
      %s91 = sphi 0, %s90
      %s107 = sphi 0, %s91
    $region4: #{nature_cnn_forward.4} parent=1 // loop_header_branch
      %12 = sbr.rel (%p10) target = $region8
    $region5: #{nature_cnn_forward.4} parent=1 // loop_body
      %s14 = ssub.s32 %s9, 1
      %s15 = ssub.s32 %s9, 2
      %s16 = sadd.s32 %s9, 1
      %s17 = ssub.s32 %s9, %s16
      %p18 = scmp.eq.s32.totalorder %s17, 0
      %s20 = sadd.s32 %s19, 1
      %s21 = scalar_select %p18, %s19, %s20
      %p24 = pneg %p18
      %p25 = scmp.eq.s32.totalorder %s9, 1
      %p26 = por %p24, %p25
      %p27 = scmp.ne.s32.totalorder %s19, %s22
      %p28 = scmp.eq.s32.totalorder %s9, 0
      %p29 = por %p27, %p28
      %p30 = scmp.ne.s32.totalorder %s19, %s22
      %p31 = scmp.eq.s32.totalorder %s14, 1
      %p32 = por %p30, %p31
      %p33 = scmp.ne.s32.totalorder %s22, %s23
      %p34 = scmp.eq.s32.totalorder %s14, 0
      %p35 = por %p33, %p34
      %p36 = scmp.ne.s32.totalorder %s22, %s23
      %p37 = scmp.eq.s32.totalorder %s15, 1
      %p38 = por %p36, %p37
      %p40 = scmp.ne.s32.totalorder %s23, %s39
      %p41 = scmp.eq.s32.totalorder %s15, 0
      %p42 = por %p40, %p41
      %s44 = sadd.s32 %s43, 1
      %p47 = scmp.eq.s32.totalorder %s9, 1
      %p48 = scmp.ne.s32.totalorder %s43, %s45
      %p49 = scmp.eq.s32.totalorder %s9, 0
      %p50 = por %p48, %p49
      %p51 = scmp.ne.s32.totalorder %s43, %s45
      %p52 = scmp.eq.s32.totalorder %s14, 1
      %p53 = por %p51, %p52
      %p54 = scmp.ne.s32.totalorder %s45, %s46
      %p55 = scmp.eq.s32.totalorder %s14, 0
      %p56 = por %p54, %p55
      %p57 = scmp.ne.s32.totalorder %s45, %s46
      %p58 = scmp.eq.s32.totalorder %s15, 1
      %p59 = por %p57, %p58
      %p61 = scmp.ne.s32.totalorder %s46, %s60
      %p62 = scmp.eq.s32.totalorder %s15, 0
      %p63 = por %p61, %p62
      %s65 = sadd.s32 %s64, 1
      %p68 = scmp.eq.s32.totalorder %s9, 1
      %p69 = scmp.ne.s32.totalorder %s64, %s66
      %p70 = scmp.eq.s32.totalorder %s9, 0
      %p71 = por %p69, %p70
      %p72 = scmp.ne.s32.totalorder %s64, %s66
      %p73 = scmp.eq.s32.totalorder %s14, 1
      %p74 = por %p72, %p73
      %p75 = scmp.ne.s32.totalorder %s66, %s67
      %p76 = scmp.eq.s32.totalorder %s14, 0
      %p77 = por %p75, %p76
      %p78 = scmp.ne.s32.totalorder %s66, %s67
      %p79 = scmp.eq.s32.totalorder %s15, 1
      %p80 = por %p78, %p79
      %p82 = scmp.ne.s32.totalorder %s67, %s81
      %p83 = scmp.eq.s32.totalorder %s15, 0
      %p84 = por %p82, %p83
      %s85 = ssub.s32 %s9, %s16
      %p86 = scmp.eq.s32.totalorder %s85, 0
      %s88 = sadd.s32 %s87, 1
      %s89 = scalar_select %p86, %s87, %s88
      %p92 = pneg %p86
      %p93 = scmp.eq.s32.totalorder %s9, 1
      %p94 = por %p92, %p93
      %p95 = scmp.ne.s32.totalorder %s87, %s90
      %p96 = scmp.eq.s32.totalorder %s9, 0
      %p97 = por %p95, %p96
      %p98 = scmp.ne.s32.totalorder %s87, %s90
      %p99 = scmp.eq.s32.totalorder %s14, 1
      %p100 = por %p98, %p99
      %p101 = scmp.ne.s32.totalorder %s90, %s91
      %p102 = scmp.eq.s32.totalorder %s14, 0
      %p103 = por %p101, %p102
      %p104 = scmp.ne.s32.totalorder %s90, %s91
      %p105 = scmp.eq.s32.totalorder %s15, 1
      %p106 = por %p104, %p105
      %p108 = scmp.ne.s32.totalorder %s91, %s107
      %p109 = scmp.eq.s32.totalorder %s15, 0
      %p110 = por %p108, %p109
      %p111 = scmp.le.s32.totalorder 1, %s9
      %p112 = scmp.lt.s32.totalorder %s9, 3
      %p113 = pnand %p111, %p112
      %p114 = pneg %p113
      // Predicated region
      $region9: #{nature_cnn_forward.4} parent=5 // pred_check
        _
      $region10: #{nature_cnn_forward.4} parent=5 // pred_check_branch
        %116 = sbr.rel (%p113) target = $region12
      $region11: #{nature_cnn_forward.4} parent=5 // pred_region
        %s117 = ssub.s32 %s9, 1
        // Predicated region
        $region13: #{nature_cnn_forward.4} parent=11 // pred_check
          %p118 = pneg %p56
        $region14: #{nature_cnn_forward.4} parent=11 // pred_check_branch
          %120 = sbr.rel (%p118) target = $region16
        $region15: #{nature_cnn_forward.4} parent=11 // pred_region
          _
        $region16: #{nature_cnn_forward.4} parent=11 // pred_fallthru
          _
        // Predicated region
        $region17: #{nature_cnn_forward.4} parent=11 // pred_check
          %p121 = pneg %p77
        $region18: #{nature_cnn_forward.4} parent=11 // pred_check_branch
          %123 = sbr.rel (%p121) target = $region20
        $region19: #{nature_cnn_forward.4} parent=11 // pred_region
          _
        $region20: #{nature_cnn_forward.4} parent=11 // pred_fallthru
          _
      $region12: #{nature_cnn_forward.4} parent=5 // pred_fallthru
        _
      %p124 = scmp.lt.s32.totalorder %s9, 2
      // Predicated region
      $region21: #{nature_cnn_forward.4} parent=5 // pred_check
        %p125 = pneg %p124
      $region22: #{nature_cnn_forward.4} parent=5 // pred_check_branch
        %127 = sbr.rel (%p125) target = $region24
      $region23: #{nature_cnn_forward.4} parent=5 // pred_region
        // Predicated region
        $region25: #{nature_cnn_forward.4} parent=23 // pred_check
          %p128 = pneg %p29
        $region26: #{nature_cnn_forward.4} parent=23 // pred_check_branch
          %130 = sbr.rel (%p128) target = $region28
        $region27: #{nature_cnn_forward.4} parent=23 // pred_region
          %s131 = sand.u32 %s19, 1
          %s132 = sand.u32 %s19, 1
          %s133 = smul.addr %s132, 512
          %s134 = scalar_lea.vmem [#allocation2], %s133
          %s135 = smul.u32 4, %s9
          %s136 = ssub.s32 7, %s135
          %p137 = scmp.lt.s32.totalorder %s136, 4
          %s138 = scalar_select %p137, %s136, 4
          %s139 = smul.u32 2048, %s138
          %p140 = scmp.ne.s32.totalorder 0, %s139
          %s141 = smul.addr %s135, 4
          %s142 = scalar_lea.vmem %s0, %s141
          %s143 = smul.u32 %s138, 4
          // Predicated region
          $region29: #{nature_cnn_forward.4} parent=27 // pred_check
            %p144 = pneg %p140
          $region30: #{nature_cnn_forward.4} parent=27 // pred_check_branch
            %146 = sbr.rel (%p144) target = $region32
          $region31: #{nature_cnn_forward.4} parent=27 // pred_region
            %p147 = scmp.lt.u32.totalorder %s143, 8
            %p148 = pneg %p147
            // Predicated region
            $region33: #{nature_cnn_forward.4} parent=31 // pred_check
              _
            $region34: #{nature_cnn_forward.4} parent=31 // pred_check_branch
              %150 = sbr.rel (%p147) target = $region36
            $region35: #{nature_cnn_forward.4} parent=31 // pred_region
              %s227 = sand.u32 %s143, 7
              %p228 = scmp.eq.s32.totalorder %s227, 0
              // Predicated region
              $region48: #{nature_cnn_forward.4} parent=35 // pred_check
                %p229 = pneg %p228
              $region49: #{nature_cnn_forward.4} parent=35 // pred_check_branch
                %231 = sbr.rel (%p229) target = $region51
              $region50: #{nature_cnn_forward.4} parent=35 // pred_region
                %s232 = sshrl.u32 %s143, 3
                %s233 = sshrl.u32 %s232, 1
                // While loop
                $region52: #{nature_cnn_forward.4} parent=50 // loop_pre_header
                  _
                $region53: #{nature_cnn_forward.4} parent=50 // loop_header
                  %s237 = sphi 0, %s239
                  %p238 = scmp.ge.s32.totalorder %s237, %s233
                  %s242 = sphi 0, %s375
                  %s243 = sphi %s142, %s378
                  %s244 = sphi %s134, %s379
                $region54: #{nature_cnn_forward.4} parent=50 // loop_header_branch
                  %241 = sbr.rel (%p238) target = $region58
                $region55: #{nature_cnn_forward.4} parent=50 // loop_body
                  %v245 = vld [vmem:[%s243] sm:$0xff]
                  %246 = vst [vmem:[%s244] sm:$0xff] %v245
                  %v247 = vld [vmem:[%s243 + $0x8] sm:$0xff]
                  %248 = vst [vmem:[%s244 + $0x8] sm:$0xff] %v247
                  %v249 = vld [vmem:[%s243 + $0x1c] sm:$0xff]
                  %250 = vst [vmem:[%s244 + $0x10] sm:$0xff] %v249
                  %v251 = vld [vmem:[%s243 + $0x24] sm:$0xff]
                  %252 = vst [vmem:[%s244 + $0x18] sm:$0xff] %v251
                  %v253 = vld [vmem:[%s243 + $0x38] sm:$0xff]
                  %254 = vst [vmem:[%s244 + $0x20] sm:$0xff] %v253
                  %v255 = vld [vmem:[%s243 + $0x40] sm:$0xff]
                  %256 = vst [vmem:[%s244 + $0x28] sm:$0xff] %v255
                  %v257 = vld [vmem:[%s243 + $0x54] sm:$0xff]
                  %258 = vst [vmem:[%s244 + $0x30] sm:$0xff] %v257
                  %v259 = vld [vmem:[%s243 + $0x5c] sm:$0xff]
                  %260 = vst [vmem:[%s244 + $0x38] sm:$0xff] %v259
                  %v261 = vld [vmem:[%s243 + $0x70] sm:$0xff]
                  %262 = vst [vmem:[%s244 + $0x40] sm:$0xff] %v261
                  %v263 = vld [vmem:[%s243 + $0x78] sm:$0xff]
                  %264 = vst [vmem:[%s244 + $0x48] sm:$0xff] %v263
                  %v265 = vld [vmem:[%s243 + $0x8c] sm:$0xff]
                  %266 = vst [vmem:[%s244 + $0x50] sm:$0xff] %v265
                  %v267 = vld [vmem:[%s243 + $0x94] sm:$0xff]
                  %268 = vst [vmem:[%s244 + $0x58] sm:$0xff] %v267
                  %v269 = vld [vmem:[%s243 + $0xa8] sm:$0xff]
                  %270 = vst [vmem:[%s244 + $0x60] sm:$0xff] %v269
                  %v271 = vld [vmem:[%s243 + $0xb0] sm:$0xff]
                  %272 = vst [vmem:[%s244 + $0x68] sm:$0xff] %v271
                  %v273 = vld [vmem:[%s243 + $0xc4] sm:$0xff]
                  %274 = vst [vmem:[%s244 + $0x70] sm:$0xff] %v273
                  %v275 = vld [vmem:[%s243 + $0xcc] sm:$0xff]
                  %276 = vst [vmem:[%s244 + $0x78] sm:$0xff] %v275
                  %v277 = vld [vmem:[%s243 + $0xe0] sm:$0xff]
                  %278 = vst [vmem:[%s244 + $0x80] sm:$0xff] %v277
                  %v279 = vld [vmem:[%s243 + $0xe8] sm:$0xff]
                  %280 = vst [vmem:[%s244 + $0x88] sm:$0xff] %v279
                  %v281 = vld [vmem:[%s243 + $0xfc] sm:$0xff]
                  %282 = vst [vmem:[%s244 + $0x90] sm:$0xff] %v281
                  %v283 = vld [vmem:[%s243 + $0x104] sm:$0xff]
                  %284 = vst [vmem:[%s244 + $0x98] sm:$0xff] %v283
                  %v285 = vld [vmem:[%s243 + $0x118] sm:$0xff]
                  %286 = vst [vmem:[%s244 + $0xa0] sm:$0xff] %v285
                  %v287 = vld [vmem:[%s243 + $0x120] sm:$0xff]
                  %288 = vst [vmem:[%s244 + $0xa8] sm:$0xff] %v287
                  %v289 = vld [vmem:[%s243 + $0x134] sm:$0xff]
                  %290 = vst [vmem:[%s244 + $0xb0] sm:$0xff] %v289
                  %v291 = vld [vmem:[%s243 + $0x13c] sm:$0xff]
                  %292 = vst [vmem:[%s244 + $0xb8] sm:$0xff] %v291
                  %v293 = vld [vmem:[%s243 + $0x150] sm:$0xff]
                  %294 = vst [vmem:[%s244 + $0xc0] sm:$0xff] %v293
                  %v295 = vld [vmem:[%s243 + $0x158] sm:$0xff]
                  %296 = vst [vmem:[%s244 + $0xc8] sm:$0xff] %v295
                  %v297 = vld [vmem:[%s243 + $0x16c] sm:$0xff]
                  %298 = vst [vmem:[%s244 + $0xd0] sm:$0xff] %v297
                  %v299 = vld [vmem:[%s243 + $0x174] sm:$0xff]
                  %300 = vst [vmem:[%s244 + $0xd8] sm:$0xff] %v299
                  %v301 = vld [vmem:[%s243 + $0x188] sm:$0xff]
                  %302 = vst [vmem:[%s244 + $0xe0] sm:$0xff] %v301
                  %v303 = vld [vmem:[%s243 + $0x190] sm:$0xff]
                  %304 = vst [vmem:[%s244 + $0xe8] sm:$0xff] %v303
                  %v305 = vld [vmem:[%s243 + $0x1a4] sm:$0xff]
                  %306 = vst [vmem:[%s244 + $0xf0] sm:$0xff] %v305
                  %v307 = vld [vmem:[%s243 + $0x1ac] sm:$0xff]
                  %308 = vst [vmem:[%s244 + $0xf8] sm:$0xff] %v307
                  %v309 = vld [vmem:[%s243 + $0x1c0] sm:$0xff]
                  %310 = vst [vmem:[%s244 + $0x100] sm:$0xff] %v309
                  %v311 = vld [vmem:[%s243 + $0x1c8] sm:$0xff]
                  %312 = vst [vmem:[%s244 + $0x108] sm:$0xff] %v311
                  %v313 = vld [vmem:[%s243 + $0x1dc] sm:$0xff]
                  %314 = vst [vmem:[%s244 + $0x110] sm:$0xff] %v313
                  %v315 = vld [vmem:[%s243 + $0x1e4] sm:$0xff]
                  %316 = vst [vmem:[%s244 + $0x118] sm:$0xff] %v315
                  %v317 = vld [vmem:[%s243 + $0x1f8] sm:$0xff]
                  %318 = vst [vmem:[%s244 + $0x120] sm:$0xff] %v317
                  %v319 = vld [vmem:[%s243 + $0x200] sm:$0xff]
                  %320 = vst [vmem:[%s244 + $0x128] sm:$0xff] %v319
                  %v321 = vld [vmem:[%s243 + $0x214] sm:$0xff]
                  %322 = vst [vmem:[%s244 + $0x130] sm:$0xff] %v321
                  %v323 = vld [vmem:[%s243 + $0x21c] sm:$0xff]
                  %324 = vst [vmem:[%s244 + $0x138] sm:$0xff] %v323
                  %v325 = vld [vmem:[%s243 + $0x230] sm:$0xff]
                  %326 = vst [vmem:[%s244 + $0x140] sm:$0xff] %v325
                  %v327 = vld [vmem:[%s243 + $0x238] sm:$0xff]
                  %328 = vst [vmem:[%s244 + $0x148] sm:$0xff] %v327
                  %v329 = vld [vmem:[%s243 + $0x24c] sm:$0xff]
                  %330 = vst [vmem:[%s244 + $0x150] sm:$0xff] %v329
                  %v331 = vld [vmem:[%s243 + $0x254] sm:$0xff]
                  %332 = vst [vmem:[%s244 + $0x158] sm:$0xff] %v331
                  %v333 = vld [vmem:[%s243 + $0x268] sm:$0xff]
                  %334 = vst [vmem:[%s244 + $0x160] sm:$0xff] %v333
                  %v335 = vld [vmem:[%s243 + $0x270] sm:$0xff]
                  %336 = vst [vmem:[%s244 + $0x168] sm:$0xff] %v335
                  %v337 = vld [vmem:[%s243 + $0x284] sm:$0xff]
                  %338 = vst [vmem:[%s244 + $0x170] sm:$0xff] %v337
                  %v339 = vld [vmem:[%s243 + $0x28c] sm:$0xff]
                  %340 = vst [vmem:[%s244 + $0x178] sm:$0xff] %v339
                  %v341 = vld [vmem:[%s243 + $0x2a0] sm:$0xff]
                  %342 = vst [vmem:[%s244 + $0x180] sm:$0xff] %v341
                  %v343 = vld [vmem:[%s243 + $0x2a8] sm:$0xff]
                  %344 = vst [vmem:[%s244 + $0x188] sm:$0xff] %v343
                  %v345 = vld [vmem:[%s243 + $0x2bc] sm:$0xff]
                  %346 = vst [vmem:[%s244 + $0x190] sm:$0xff] %v345
                  %v347 = vld [vmem:[%s243 + $0x2c4] sm:$0xff]
                  %348 = vst [vmem:[%s244 + $0x198] sm:$0xff] %v347
                  %v349 = vld [vmem:[%s243 + $0x2d8] sm:$0xff]
                  %350 = vst [vmem:[%s244 + $0x1a0] sm:$0xff] %v349
                  %v351 = vld [vmem:[%s243 + $0x2e0] sm:$0xff]
                  %352 = vst [vmem:[%s244 + $0x1a8] sm:$0xff] %v351
                  %v353 = vld [vmem:[%s243 + $0x2f4] sm:$0xff]
                  %354 = vst [vmem:[%s244 + $0x1b0] sm:$0xff] %v353
                  %v355 = vld [vmem:[%s243 + $0x2fc] sm:$0xff]
                  %356 = vst [vmem:[%s244 + $0x1b8] sm:$0xff] %v355
                  %v357 = vld [vmem:[%s243 + $0x310] sm:$0xff]
                  %358 = vst [vmem:[%s244 + $0x1c0] sm:$0xff] %v357
                  %v359 = vld [vmem:[%s243 + $0x318] sm:$0xff]
                  %360 = vst [vmem:[%s244 + $0x1c8] sm:$0xff] %v359
                  %v361 = vld [vmem:[%s243 + $0x32c] sm:$0xff]
                  %362 = vst [vmem:[%s244 + $0x1d0] sm:$0xff] %v361
                  %v363 = vld [vmem:[%s243 + $0x334] sm:$0xff]
                  %364 = vst [vmem:[%s244 + $0x1d8] sm:$0xff] %v363
                  %v365 = vld [vmem:[%s243 + $0x348] sm:$0xff]
                  %366 = vst [vmem:[%s244 + $0x1e0] sm:$0xff] %v365
                  %v367 = vld [vmem:[%s243 + $0x350] sm:$0xff]
                  %368 = vst [vmem:[%s244 + $0x1e8] sm:$0xff] %v367
                  %v369 = vld [vmem:[%s243 + $0x364] sm:$0xff]
                  %370 = vst [vmem:[%s244 + $0x1f0] sm:$0xff] %v369
                  %v371 = vld [vmem:[%s243 + $0x36c] sm:$0xff]
                  %372 = vst [vmem:[%s244 + $0x1f8] sm:$0xff] %v371
                  %s373 = sadd.s32 1, %s242
                  %p374 = scmp.ge.s32.totalorder %s373, %s233
                  %s375 = scalar_select %p374, 0, %s373
                  %s376 = smul.u32 %s375, 16
                  %s377 = smul.u32 %s375, 16
                  %s378 = scalar_lea.vmem %s142, %s376
                  %s379 = scalar_lea.vmem %s134, %s377 [#allocation2]
                $region56: #{nature_cnn_forward.4} parent=50 // loop_footer
                  %s239 = sadd.s32 %s237, 1
                $region57: #{nature_cnn_forward.4} parent=50 // loop_footer_branch
                  %236 = sbr.rel target = $region53
                $region58: #{nature_cnn_forward.4} parent=50 // loop_exit
                  _
                %s380 = sshrl.u32 %s232, 1
                %s381 = sand.u32 %s232, 1
                %s382 = smul.u32 %s380, 2
                %s383 = smul.u32 128, %s382
                %s384 = sshra.s32 %s383, 4
                %s385 = scalar_lea.vmem %s142, %s384
                %s386 = smul.u32 128, %s382
                %s387 = sshra.s32 %s386, 4
                %s388 = scalar_lea.vmem %s134, %s387 [#allocation2]
                // While loop
                $region59: #{nature_cnn_forward.4} parent=50 // loop_pre_header
                  _
                $region60: #{nature_cnn_forward.4} parent=50 // loop_header
                  %s392 = sphi 0, %s394
                  %p393 = scmp.ge.s32.totalorder %s392, %s381
                  %s397 = sphi 0, %s466
                  %s398 = sphi %s385, %s469
                  %s399 = sphi %s388, %s470
                $region61: #{nature_cnn_forward.4} parent=50 // loop_header_branch
                  %396 = sbr.rel (%p393) target = $region65
                $region62: #{nature_cnn_forward.4} parent=50 // loop_body
                  %v400 = vld [vmem:[%s398] sm:$0xff]
                  %401 = vst [vmem:[%s399] sm:$0xff] %v400
                  %v402 = vld [vmem:[%s398 + $0x1c] sm:$0xff]
                  %403 = vst [vmem:[%s399 + $0x10] sm:$0xff] %v402
                  %v404 = vld [vmem:[%s398 + $0x38] sm:$0xff]
                  %405 = vst [vmem:[%s399 + $0x20] sm:$0xff] %v404
                  %v406 = vld [vmem:[%s398 + $0x54] sm:$0xff]
                  %407 = vst [vmem:[%s399 + $0x30] sm:$0xff] %v406
                  %v408 = vld [vmem:[%s398 + $0x70] sm:$0xff]
                  %409 = vst [vmem:[%s399 + $0x40] sm:$0xff] %v408
                  %v410 = vld [vmem:[%s398 + $0x8c] sm:$0xff]
                  %411 = vst [vmem:[%s399 + $0x50] sm:$0xff] %v410
                  %v412 = vld [vmem:[%s398 + $0xa8] sm:$0xff]
                  %413 = vst [vmem:[%s399 + $0x60] sm:$0xff] %v412
                  %v414 = vld [vmem:[%s398 + $0xc4] sm:$0xff]
                  %415 = vst [vmem:[%s399 + $0x70] sm:$0xff] %v414
                  %v416 = vld [vmem:[%s398 + $0xe0] sm:$0xff]
                  %417 = vst [vmem:[%s399 + $0x80] sm:$0xff] %v416
                  %v418 = vld [vmem:[%s398 + $0xfc] sm:$0xff]
                  %419 = vst [vmem:[%s399 + $0x90] sm:$0xff] %v418
                  %v420 = vld [vmem:[%s398 + $0x118] sm:$0xff]
                  %421 = vst [vmem:[%s399 + $0xa0] sm:$0xff] %v420
                  %v422 = vld [vmem:[%s398 + $0x134] sm:$0xff]
                  %423 = vst [vmem:[%s399 + $0xb0] sm:$0xff] %v422
                  %v424 = vld [vmem:[%s398 + $0x150] sm:$0xff]
                  %425 = vst [vmem:[%s399 + $0xc0] sm:$0xff] %v424
                  %v426 = vld [vmem:[%s398 + $0x16c] sm:$0xff]
                  %427 = vst [vmem:[%s399 + $0xd0] sm:$0xff] %v426
                  %v428 = vld [vmem:[%s398 + $0x188] sm:$0xff]
                  %429 = vst [vmem:[%s399 + $0xe0] sm:$0xff] %v428
                  %v430 = vld [vmem:[%s398 + $0x1a4] sm:$0xff]
                  %431 = vst [vmem:[%s399 + $0xf0] sm:$0xff] %v430
                  %v432 = vld [vmem:[%s398 + $0x1c0] sm:$0xff]
                  %433 = vst [vmem:[%s399 + $0x100] sm:$0xff] %v432
                  %v434 = vld [vmem:[%s398 + $0x1dc] sm:$0xff]
                  %435 = vst [vmem:[%s399 + $0x110] sm:$0xff] %v434
                  %v436 = vld [vmem:[%s398 + $0x1f8] sm:$0xff]
                  %437 = vst [vmem:[%s399 + $0x120] sm:$0xff] %v436
                  %v438 = vld [vmem:[%s398 + $0x214] sm:$0xff]
                  %439 = vst [vmem:[%s399 + $0x130] sm:$0xff] %v438
                  %v440 = vld [vmem:[%s398 + $0x230] sm:$0xff]
                  %441 = vst [vmem:[%s399 + $0x140] sm:$0xff] %v440
                  %v442 = vld [vmem:[%s398 + $0x24c] sm:$0xff]
                  %443 = vst [vmem:[%s399 + $0x150] sm:$0xff] %v442
                  %v444 = vld [vmem:[%s398 + $0x268] sm:$0xff]
                  %445 = vst [vmem:[%s399 + $0x160] sm:$0xff] %v444
                  %v446 = vld [vmem:[%s398 + $0x284] sm:$0xff]
                  %447 = vst [vmem:[%s399 + $0x170] sm:$0xff] %v446
                  %v448 = vld [vmem:[%s398 + $0x2a0] sm:$0xff]
                  %449 = vst [vmem:[%s399 + $0x180] sm:$0xff] %v448
                  %v450 = vld [vmem:[%s398 + $0x2bc] sm:$0xff]
                  %451 = vst [vmem:[%s399 + $0x190] sm:$0xff] %v450
                  %v452 = vld [vmem:[%s398 + $0x2d8] sm:$0xff]
                  %453 = vst [vmem:[%s399 + $0x1a0] sm:$0xff] %v452
                  %v454 = vld [vmem:[%s398 + $0x2f4] sm:$0xff]
                  %455 = vst [vmem:[%s399 + $0x1b0] sm:$0xff] %v454
                  %v456 = vld [vmem:[%s398 + $0x310] sm:$0xff]
                  %457 = vst [vmem:[%s399 + $0x1c0] sm:$0xff] %v456
                  %v458 = vld [vmem:[%s398 + $0x32c] sm:$0xff]
                  %459 = vst [vmem:[%s399 + $0x1d0] sm:$0xff] %v458
                  %v460 = vld [vmem:[%s398 + $0x348] sm:$0xff]
                  %461 = vst [vmem:[%s399 + $0x1e0] sm:$0xff] %v460
                  %v462 = vld [vmem:[%s398 + $0x364] sm:$0xff]
                  %463 = vst [vmem:[%s399 + $0x1f0] sm:$0xff] %v462
                  %s464 = sadd.s32 1, %s397
                  %p465 = scmp.ge.s32.totalorder %s464, %s381
                  %s466 = scalar_select %p465, 0, %s464
                  %s467 = smul.u32 %s466, 8
                  %s468 = smul.u32 %s466, 8
                  %s469 = scalar_lea.vmem %s385, %s467
                  %s470 = scalar_lea.vmem %s388, %s468 [#allocation2]
                $region63: #{nature_cnn_forward.4} parent=50 // loop_footer
                  %s394 = sadd.s32 %s392, 1
                $region64: #{nature_cnn_forward.4} parent=50 // loop_footer_branch
                  %391 = sbr.rel target = $region60
                $region65: #{nature_cnn_forward.4} parent=50 // loop_exit
                  _
              $region51: #{nature_cnn_forward.4} parent=35 // pred_fallthru
                _
              %p471 = pneg %p228
              // Predicated region
              $region66: #{nature_cnn_forward.4} parent=35 // pred_check
                _
              $region67: #{nature_cnn_forward.4} parent=35 // pred_check_branch
                %473 = sbr.rel (%p228) target = $region69
              $region68: #{nature_cnn_forward.4} parent=35 // pred_region
                %s474 = sand.u32 %s143, 7
                %s475 = ssub.s32 %s143, %s474
                %s476 = scalar_lea.vmem %s142, %s475
                %s477 = ssub.s32 %s143, %s474
                %s478 = scalar_lea.vmem %s134, %s477 [#allocation2]
                %s479 = sshrl.u32 %s143, 3
                %s480 = sshrl.u32 %s479, 1
                // While loop
                $region70: #{nature_cnn_forward.4} parent=68 // loop_pre_header
                  _
                $region71: #{nature_cnn_forward.4} parent=68 // loop_header
                  %s484 = sphi 0, %s486
                  %p485 = scmp.ge.s32.totalorder %s484, %s480
                  %s489 = sphi 0, %s622
                  %s490 = sphi %s142, %s625
                  %s491 = sphi %s134, %s626
                $region72: #{nature_cnn_forward.4} parent=68 // loop_header_branch
                  %488 = sbr.rel (%p485) target = $region76
                $region73: #{nature_cnn_forward.4} parent=68 // loop_body
                  %v492 = vld [vmem:[%s490] sm:$0xff]
                  %493 = vst [vmem:[%s491] sm:$0xff] %v492
                  %v494 = vld [vmem:[%s490 + $0x8] sm:$0xff]
                  %495 = vst [vmem:[%s491 + $0x8] sm:$0xff] %v494
                  %v496 = vld [vmem:[%s490 + $0x1c] sm:$0xff]
                  %497 = vst [vmem:[%s491 + $0x10] sm:$0xff] %v496
                  %v498 = vld [vmem:[%s490 + $0x24] sm:$0xff]
                  %499 = vst [vmem:[%s491 + $0x18] sm:$0xff] %v498
                  %v500 = vld [vmem:[%s490 + $0x38] sm:$0xff]
                  %501 = vst [vmem:[%s491 + $0x20] sm:$0xff] %v500
                  %v502 = vld [vmem:[%s490 + $0x40] sm:$0xff]
                  %503 = vst [vmem:[%s491 + $0x28] sm:$0xff] %v502
                  %v504 = vld [vmem:[%s490 + $0x54] sm:$0xff]
                  %505 = vst [vmem:[%s491 + $0x30] sm:$0xff] %v504
                  %v506 = vld [vmem:[%s490 + $0x5c] sm:$0xff]
                  %507 = vst [vmem:[%s491 + $0x38] sm:$0xff] %v506
                  %v508 = vld [vmem:[%s490 + $0x70] sm:$0xff]
                  %509 = vst [vmem:[%s491 + $0x40] sm:$0xff] %v508
                  %v510 = vld [vmem:[%s490 + $0x78] sm:$0xff]
                  %511 = vst [vmem:[%s491 + $0x48] sm:$0xff] %v510
                  %v512 = vld [vmem:[%s490 + $0x8c] sm:$0xff]
                  %513 = vst [vmem:[%s491 + $0x50] sm:$0xff] %v512
                  %v514 = vld [vmem:[%s490 + $0x94] sm:$0xff]
                  %515 = vst [vmem:[%s491 + $0x58] sm:$0xff] %v514
                  %v516 = vld [vmem:[%s490 + $0xa8] sm:$0xff]
                  %517 = vst [vmem:[%s491 + $0x60] sm:$0xff] %v516
                  %v518 = vld [vmem:[%s490 + $0xb0] sm:$0xff]
                  %519 = vst [vmem:[%s491 + $0x68] sm:$0xff] %v518
                  %v520 = vld [vmem:[%s490 + $0xc4] sm:$0xff]
                  %521 = vst [vmem:[%s491 + $0x70] sm:$0xff] %v520
                  %v522 = vld [vmem:[%s490 + $0xcc] sm:$0xff]
                  %523 = vst [vmem:[%s491 + $0x78] sm:$0xff] %v522
                  %v524 = vld [vmem:[%s490 + $0xe0] sm:$0xff]
                  %525 = vst [vmem:[%s491 + $0x80] sm:$0xff] %v524
                  %v526 = vld [vmem:[%s490 + $0xe8] sm:$0xff]
                  %527 = vst [vmem:[%s491 + $0x88] sm:$0xff] %v526
                  %v528 = vld [vmem:[%s490 + $0xfc] sm:$0xff]
                  %529 = vst [vmem:[%s491 + $0x90] sm:$0xff] %v528
                  %v530 = vld [vmem:[%s490 + $0x104] sm:$0xff]
                  %531 = vst [vmem:[%s491 + $0x98] sm:$0xff] %v530
                  %v532 = vld [vmem:[%s490 + $0x118] sm:$0xff]
                  %533 = vst [vmem:[%s491 + $0xa0] sm:$0xff] %v532
                  %v534 = vld [vmem:[%s490 + $0x120] sm:$0xff]
                  %535 = vst [vmem:[%s491 + $0xa8] sm:$0xff] %v534
                  %v536 = vld [vmem:[%s490 + $0x134] sm:$0xff]
                  %537 = vst [vmem:[%s491 + $0xb0] sm:$0xff] %v536
                  %v538 = vld [vmem:[%s490 + $0x13c] sm:$0xff]
                  %539 = vst [vmem:[%s491 + $0xb8] sm:$0xff] %v538
                  %v540 = vld [vmem:[%s490 + $0x150] sm:$0xff]
                  %541 = vst [vmem:[%s491 + $0xc0] sm:$0xff] %v540
                  %v542 = vld [vmem:[%s490 + $0x158] sm:$0xff]
                  %543 = vst [vmem:[%s491 + $0xc8] sm:$0xff] %v542
                  %v544 = vld [vmem:[%s490 + $0x16c] sm:$0xff]
                  %545 = vst [vmem:[%s491 + $0xd0] sm:$0xff] %v544
                  %v546 = vld [vmem:[%s490 + $0x174] sm:$0xff]
                  %547 = vst [vmem:[%s491 + $0xd8] sm:$0xff] %v546
                  %v548 = vld [vmem:[%s490 + $0x188] sm:$0xff]
                  %549 = vst [vmem:[%s491 + $0xe0] sm:$0xff] %v548
                  %v550 = vld [vmem:[%s490 + $0x190] sm:$0xff]
                  %551 = vst [vmem:[%s491 + $0xe8] sm:$0xff] %v550
                  %v552 = vld [vmem:[%s490 + $0x1a4] sm:$0xff]
                  %553 = vst [vmem:[%s491 + $0xf0] sm:$0xff] %v552
                  %v554 = vld [vmem:[%s490 + $0x1ac] sm:$0xff]
                  %555 = vst [vmem:[%s491 + $0xf8] sm:$0xff] %v554
                  %v556 = vld [vmem:[%s490 + $0x1c0] sm:$0xff]
                  %557 = vst [vmem:[%s491 + $0x100] sm:$0xff] %v556
                  %v558 = vld [vmem:[%s490 + $0x1c8] sm:$0xff]
                  %559 = vst [vmem:[%s491 + $0x108] sm:$0xff] %v558
                  %v560 = vld [vmem:[%s490 + $0x1dc] sm:$0xff]
                  %561 = vst [vmem:[%s491 + $0x110] sm:$0xff] %v560
                  %v562 = vld [vmem:[%s490 + $0x1e4] sm:$0xff]
                  %563 = vst [vmem:[%s491 + $0x118] sm:$0xff] %v562
                  %v564 = vld [vmem:[%s490 + $0x1f8] sm:$0xff]
                  %565 = vst [vmem:[%s491 + $0x120] sm:$0xff] %v564
                  %v566 = vld [vmem:[%s490 + $0x200] sm:$0xff]
                  %567 = vst [vmem:[%s491 + $0x128] sm:$0xff] %v566
                  %v568 = vld [vmem:[%s490 + $0x214] sm:$0xff]
                  %569 = vst [vmem:[%s491 + $0x130] sm:$0xff] %v568
                  %v570 = vld [vmem:[%s490 + $0x21c] sm:$0xff]
                  %571 = vst [vmem:[%s491 + $0x138] sm:$0xff] %v570
                  %v572 = vld [vmem:[%s490 + $0x230] sm:$0xff]
                  %573 = vst [vmem:[%s491 + $0x140] sm:$0xff] %v572
                  %v574 = vld [vmem:[%s490 + $0x238] sm:$0xff]
                  %575 = vst [vmem:[%s491 + $0x148] sm:$0xff] %v574
                  %v576 = vld [vmem:[%s490 + $0x24c] sm:$0xff]
                  %577 = vst [vmem:[%s491 + $0x150] sm:$0xff] %v576
                  %v578 = vld [vmem:[%s490 + $0x254] sm:$0xff]
                  %579 = vst [vmem:[%s491 + $0x158] sm:$0xff] %v578
                  %v580 = vld [vmem:[%s490 + $0x268] sm:$0xff]
                  %581 = vst [vmem:[%s491 + $0x160] sm:$0xff] %v580
                  %v582 = vld [vmem:[%s490 + $0x270] sm:$0xff]
                  %583 = vst [vmem:[%s491 + $0x168] sm:$0xff] %v582
                  %v584 = vld [vmem:[%s490 + $0x284] sm:$0xff]
                  %585 = vst [vmem:[%s491 + $0x170] sm:$0xff] %v584
                  %v586 = vld [vmem:[%s490 + $0x28c] sm:$0xff]
                  %587 = vst [vmem:[%s491 + $0x178] sm:$0xff] %v586
                  %v588 = vld [vmem:[%s490 + $0x2a0] sm:$0xff]
                  %589 = vst [vmem:[%s491 + $0x180] sm:$0xff] %v588
                  %v590 = vld [vmem:[%s490 + $0x2a8] sm:$0xff]
                  %591 = vst [vmem:[%s491 + $0x188] sm:$0xff] %v590
                  %v592 = vld [vmem:[%s490 + $0x2bc] sm:$0xff]
                  %593 = vst [vmem:[%s491 + $0x190] sm:$0xff] %v592
                  %v594 = vld [vmem:[%s490 + $0x2c4] sm:$0xff]
                  %595 = vst [vmem:[%s491 + $0x198] sm:$0xff] %v594
                  %v596 = vld [vmem:[%s490 + $0x2d8] sm:$0xff]
                  %597 = vst [vmem:[%s491 + $0x1a0] sm:$0xff] %v596
                  %v598 = vld [vmem:[%s490 + $0x2e0] sm:$0xff]
                  %599 = vst [vmem:[%s491 + $0x1a8] sm:$0xff] %v598
                  %v600 = vld [vmem:[%s490 + $0x2f4] sm:$0xff]
                  %601 = vst [vmem:[%s491 + $0x1b0] sm:$0xff] %v600
                  %v602 = vld [vmem:[%s490 + $0x2fc] sm:$0xff]
                  %603 = vst [vmem:[%s491 + $0x1b8] sm:$0xff] %v602
                  %v604 = vld [vmem:[%s490 + $0x310] sm:$0xff]
                  %605 = vst [vmem:[%s491 + $0x1c0] sm:$0xff] %v604
                  %v606 = vld [vmem:[%s490 + $0x318] sm:$0xff]
                  %607 = vst [vmem:[%s491 + $0x1c8] sm:$0xff] %v606
                  %v608 = vld [vmem:[%s490 + $0x32c] sm:$0xff]
                  %609 = vst [vmem:[%s491 + $0x1d0] sm:$0xff] %v608
                  %v610 = vld [vmem:[%s490 + $0x334] sm:$0xff]
                  %611 = vst [vmem:[%s491 + $0x1d8] sm:$0xff] %v610
                  %v612 = vld [vmem:[%s490 + $0x348] sm:$0xff]
                  %613 = vst [vmem:[%s491 + $0x1e0] sm:$0xff] %v612
                  %v614 = vld [vmem:[%s490 + $0x350] sm:$0xff]
                  %615 = vst [vmem:[%s491 + $0x1e8] sm:$0xff] %v614
                  %v616 = vld [vmem:[%s490 + $0x364] sm:$0xff]
                  %617 = vst [vmem:[%s491 + $0x1f0] sm:$0xff] %v616
                  %v618 = vld [vmem:[%s490 + $0x36c] sm:$0xff]
                  %619 = vst [vmem:[%s491 + $0x1f8] sm:$0xff] %v618
                  %s620 = sadd.s32 1, %s489
                  %p621 = scmp.ge.s32.totalorder %s620, %s480
                  %s622 = scalar_select %p621, 0, %s620
                  %s623 = smul.u32 %s622, 16
                  %s624 = smul.u32 %s622, 16
                  %s625 = scalar_lea.vmem %s142, %s623
                  %s626 = scalar_lea.vmem %s134, %s624 [#allocation2]
                $region74: #{nature_cnn_forward.4} parent=68 // loop_footer
                  %s486 = sadd.s32 %s484, 1
                $region75: #{nature_cnn_forward.4} parent=68 // loop_footer_branch
                  %483 = sbr.rel target = $region71
                $region76: #{nature_cnn_forward.4} parent=68 // loop_exit
                  _
                %s627 = sshrl.u32 %s479, 1
                %s628 = sand.u32 %s479, 1
                %s629 = smul.u32 %s627, 2
                %s630 = smul.u32 128, %s629
                %s631 = sshra.s32 %s630, 4
                %s632 = scalar_lea.vmem %s142, %s631
                %s633 = smul.u32 128, %s629
                %s634 = sshra.s32 %s633, 4
                %s635 = scalar_lea.vmem %s134, %s634 [#allocation2]
                // While loop
                $region77: #{nature_cnn_forward.4} parent=68 // loop_pre_header
                  _
                $region78: #{nature_cnn_forward.4} parent=68 // loop_header
                  %s639 = sphi 0, %s641
                  %p640 = scmp.ge.s32.totalorder %s639, %s628
                  %s644 = sphi 0, %s713
                  %s645 = sphi %s632, %s716
                  %s646 = sphi %s635, %s717
                $region79: #{nature_cnn_forward.4} parent=68 // loop_header_branch
                  %643 = sbr.rel (%p640) target = $region83
                $region80: #{nature_cnn_forward.4} parent=68 // loop_body
                  %v647 = vld [vmem:[%s645] sm:$0xff]
                  %648 = vst [vmem:[%s646] sm:$0xff] %v647
                  %v649 = vld [vmem:[%s645 + $0x1c] sm:$0xff]
                  %650 = vst [vmem:[%s646 + $0x10] sm:$0xff] %v649
                  %v651 = vld [vmem:[%s645 + $0x38] sm:$0xff]
                  %652 = vst [vmem:[%s646 + $0x20] sm:$0xff] %v651
                  %v653 = vld [vmem:[%s645 + $0x54] sm:$0xff]
                  %654 = vst [vmem:[%s646 + $0x30] sm:$0xff] %v653
                  %v655 = vld [vmem:[%s645 + $0x70] sm:$0xff]
                  %656 = vst [vmem:[%s646 + $0x40] sm:$0xff] %v655
                  %v657 = vld [vmem:[%s645 + $0x8c] sm:$0xff]
                  %658 = vst [vmem:[%s646 + $0x50] sm:$0xff] %v657
                  %v659 = vld [vmem:[%s645 + $0xa8] sm:$0xff]
                  %660 = vst [vmem:[%s646 + $0x60] sm:$0xff] %v659
                  %v661 = vld [vmem:[%s645 + $0xc4] sm:$0xff]
                  %662 = vst [vmem:[%s646 + $0x70] sm:$0xff] %v661
                  %v663 = vld [vmem:[%s645 + $0xe0] sm:$0xff]
                  %664 = vst [vmem:[%s646 + $0x80] sm:$0xff] %v663
                  %v665 = vld [vmem:[%s645 + $0xfc] sm:$0xff]
                  %666 = vst [vmem:[%s646 + $0x90] sm:$0xff] %v665
                  %v667 = vld [vmem:[%s645 + $0x118] sm:$0xff]
                  %668 = vst [vmem:[%s646 + $0xa0] sm:$0xff] %v667
                  %v669 = vld [vmem:[%s645 + $0x134] sm:$0xff]
                  %670 = vst [vmem:[%s646 + $0xb0] sm:$0xff] %v669
                  %v671 = vld [vmem:[%s645 + $0x150] sm:$0xff]
                  %672 = vst [vmem:[%s646 + $0xc0] sm:$0xff] %v671
                  %v673 = vld [vmem:[%s645 + $0x16c] sm:$0xff]
                  %674 = vst [vmem:[%s646 + $0xd0] sm:$0xff] %v673
                  %v675 = vld [vmem:[%s645 + $0x188] sm:$0xff]
                  %676 = vst [vmem:[%s646 + $0xe0] sm:$0xff] %v675
                  %v677 = vld [vmem:[%s645 + $0x1a4] sm:$0xff]
                  %678 = vst [vmem:[%s646 + $0xf0] sm:$0xff] %v677
                  %v679 = vld [vmem:[%s645 + $0x1c0] sm:$0xff]
                  %680 = vst [vmem:[%s646 + $0x100] sm:$0xff] %v679
                  %v681 = vld [vmem:[%s645 + $0x1dc] sm:$0xff]
                  %682 = vst [vmem:[%s646 + $0x110] sm:$0xff] %v681
                  %v683 = vld [vmem:[%s645 + $0x1f8] sm:$0xff]
                  %684 = vst [vmem:[%s646 + $0x120] sm:$0xff] %v683
                  %v685 = vld [vmem:[%s645 + $0x214] sm:$0xff]
                  %686 = vst [vmem:[%s646 + $0x130] sm:$0xff] %v685
                  %v687 = vld [vmem:[%s645 + $0x230] sm:$0xff]
                  %688 = vst [vmem:[%s646 + $0x140] sm:$0xff] %v687
                  %v689 = vld [vmem:[%s645 + $0x24c] sm:$0xff]
                  %690 = vst [vmem:[%s646 + $0x150] sm:$0xff] %v689
                  %v691 = vld [vmem:[%s645 + $0x268] sm:$0xff]
                  %692 = vst [vmem:[%s646 + $0x160] sm:$0xff] %v691
                  %v693 = vld [vmem:[%s645 + $0x284] sm:$0xff]
                  %694 = vst [vmem:[%s646 + $0x170] sm:$0xff] %v693
                  %v695 = vld [vmem:[%s645 + $0x2a0] sm:$0xff]
                  %696 = vst [vmem:[%s646 + $0x180] sm:$0xff] %v695
                  %v697 = vld [vmem:[%s645 + $0x2bc] sm:$0xff]
                  %698 = vst [vmem:[%s646 + $0x190] sm:$0xff] %v697
                  %v699 = vld [vmem:[%s645 + $0x2d8] sm:$0xff]
                  %700 = vst [vmem:[%s646 + $0x1a0] sm:$0xff] %v699
                  %v701 = vld [vmem:[%s645 + $0x2f4] sm:$0xff]
                  %702 = vst [vmem:[%s646 + $0x1b0] sm:$0xff] %v701
                  %v703 = vld [vmem:[%s645 + $0x310] sm:$0xff]
                  %704 = vst [vmem:[%s646 + $0x1c0] sm:$0xff] %v703
                  %v705 = vld [vmem:[%s645 + $0x32c] sm:$0xff]
                  %706 = vst [vmem:[%s646 + $0x1d0] sm:$0xff] %v705
                  %v707 = vld [vmem:[%s645 + $0x348] sm:$0xff]
                  %708 = vst [vmem:[%s646 + $0x1e0] sm:$0xff] %v707
                  %v709 = vld [vmem:[%s645 + $0x364] sm:$0xff]
                  %710 = vst [vmem:[%s646 + $0x1f0] sm:$0xff] %v709
                  %s711 = sadd.s32 1, %s644
                  %p712 = scmp.ge.s32.totalorder %s711, %s628
                  %s713 = scalar_select %p712, 0, %s711
                  %s714 = smul.u32 %s713, 8
                  %s715 = smul.u32 %s713, 8
                  %s716 = scalar_lea.vmem %s632, %s714
                  %s717 = scalar_lea.vmem %s635, %s715 [#allocation2]
                $region81: #{nature_cnn_forward.4} parent=68 // loop_footer
                  %s641 = sadd.s32 %s639, 1
                $region82: #{nature_cnn_forward.4} parent=68 // loop_footer_branch
                  %638 = sbr.rel target = $region78
                $region83: #{nature_cnn_forward.4} parent=68 // loop_exit
                  _
                %s718 = sshllo.u32 0, %s474
                loop: start=0, step=1, limit=1
                $region84: #{nature_cnn_forward.4} parent=68 // loop_pre_header
                  _
                $region85: #{nature_cnn_forward.4} parent=68 // loop_header
                  %s720 = sphi 0, %s724
                  %p721 = scmp.ge.s32.totalorder %s720, 1
                  %s725 = sphi %s476, %s476
                  %s726 = sphi %s478, %s478
                $region86: #{nature_cnn_forward.4} parent=68 // loop_header_branch
                  %723 = sbr.rel (%p721) target = $region90
                $region87: #{nature_cnn_forward.4} parent=68 // loop_body
                  %v727 = vld [vmem:[%s725] sm:%s718]
                  %728 = vst [vmem:[%s726] sm:%s718] %v727
                  %v729 = vld [vmem:[%s725 + $0x1c] sm:%s718]
                  %730 = vst [vmem:[%s726 + $0x10] sm:%s718] %v729
                  %v731 = vld [vmem:[%s725 + $0x38] sm:%s718]
                  %732 = vst [vmem:[%s726 + $0x20] sm:%s718] %v731
                  %v733 = vld [vmem:[%s725 + $0x54] sm:%s718]
                  %734 = vst [vmem:[%s726 + $0x30] sm:%s718] %v733
                  %v735 = vld [vmem:[%s725 + $0x70] sm:%s718]
                  %736 = vst [vmem:[%s726 + $0x40] sm:%s718] %v735
                  %v737 = vld [vmem:[%s725 + $0x8c] sm:%s718]
                  %738 = vst [vmem:[%s726 + $0x50] sm:%s718] %v737
                  %v739 = vld [vmem:[%s725 + $0xa8] sm:%s718]
                  %740 = vst [vmem:[%s726 + $0x60] sm:%s718] %v739
                  %v741 = vld [vmem:[%s725 + $0xc4] sm:%s718]
                  %742 = vst [vmem:[%s726 + $0x70] sm:%s718] %v741
                  %v743 = vld [vmem:[%s725 + $0xe0] sm:%s718]
                  %744 = vst [vmem:[%s726 + $0x80] sm:%s718] %v743
                  %v745 = vld [vmem:[%s725 + $0xfc] sm:%s718]
                  %746 = vst [vmem:[%s726 + $0x90] sm:%s718] %v745
                  %v747 = vld [vmem:[%s725 + $0x118] sm:%s718]
                  %748 = vst [vmem:[%s726 + $0xa0] sm:%s718] %v747
                  %v749 = vld [vmem:[%s725 + $0x134] sm:%s718]
                  %750 = vst [vmem:[%s726 + $0xb0] sm:%s718] %v749
                  %v751 = vld [vmem:[%s725 + $0x150] sm:%s718]
                  %752 = vst [vmem:[%s726 + $0xc0] sm:%s718] %v751
                  %v753 = vld [vmem:[%s725 + $0x16c] sm:%s718]
                  %754 = vst [vmem:[%s726 + $0xd0] sm:%s718] %v753
                  %v755 = vld [vmem:[%s725 + $0x188] sm:%s718]
                  %756 = vst [vmem:[%s726 + $0xe0] sm:%s718] %v755
                  %v757 = vld [vmem:[%s725 + $0x1a4] sm:%s718]
                  %758 = vst [vmem:[%s726 + $0xf0] sm:%s718] %v757
                  %v759 = vld [vmem:[%s725 + $0x1c0] sm:%s718]
                  %760 = vst [vmem:[%s726 + $0x100] sm:%s718] %v759
                  %v761 = vld [vmem:[%s725 + $0x1dc] sm:%s718]
                  %762 = vst [vmem:[%s726 + $0x110] sm:%s718] %v761
                  %v763 = vld [vmem:[%s725 + $0x1f8] sm:%s718]
                  %764 = vst [vmem:[%s726 + $0x120] sm:%s718] %v763
                  %v765 = vld [vmem:[%s725 + $0x214] sm:%s718]
                  %766 = vst [vmem:[%s726 + $0x130] sm:%s718] %v765
                  %v767 = vld [vmem:[%s725 + $0x230] sm:%s718]
                  %768 = vst [vmem:[%s726 + $0x140] sm:%s718] %v767
                  %v769 = vld [vmem:[%s725 + $0x24c] sm:%s718]
                  %770 = vst [vmem:[%s726 + $0x150] sm:%s718] %v769
                  %v771 = vld [vmem:[%s725 + $0x268] sm:%s718]
                  %772 = vst [vmem:[%s726 + $0x160] sm:%s718] %v771
                  %v773 = vld [vmem:[%s725 + $0x284] sm:%s718]
                  %774 = vst [vmem:[%s726 + $0x170] sm:%s718] %v773
                  %v775 = vld [vmem:[%s725 + $0x2a0] sm:%s718]
                  %776 = vst [vmem:[%s726 + $0x180] sm:%s718] %v775
                  %v777 = vld [vmem:[%s725 + $0x2bc] sm:%s718]
                  %778 = vst [vmem:[%s726 + $0x190] sm:%s718] %v777
                  %v779 = vld [vmem:[%s725 + $0x2d8] sm:%s718]
                  %780 = vst [vmem:[%s726 + $0x1a0] sm:%s718] %v779
                  %v781 = vld [vmem:[%s725 + $0x2f4] sm:%s718]
                  %782 = vst [vmem:[%s726 + $0x1b0] sm:%s718] %v781
                  %v783 = vld [vmem:[%s725 + $0x310] sm:%s718]
                  %784 = vst [vmem:[%s726 + $0x1c0] sm:%s718] %v783
                  %v785 = vld [vmem:[%s725 + $0x32c] sm:%s718]
                  %786 = vst [vmem:[%s726 + $0x1d0] sm:%s718] %v785
                  %v787 = vld [vmem:[%s725 + $0x348] sm:%s718]
                  %788 = vst [vmem:[%s726 + $0x1e0] sm:%s718] %v787
                  %v789 = vld [vmem:[%s725 + $0x364] sm:%s718]
                  %790 = vst [vmem:[%s726 + $0x1f0] sm:%s718] %v789
                $region88: #{nature_cnn_forward.4} parent=68 // loop_footer
                  %s724 = sadd.s32 1, %s720
                $region89: #{nature_cnn_forward.4} parent=68 // loop_footer_branch
                  %719 = sbr.rel target = $region85
                $region90: #{nature_cnn_forward.4} parent=68 // loop_exit
                  _
              $region69: #{nature_cnn_forward.4} parent=35 // pred_fallthru
                _
            $region36: #{nature_cnn_forward.4} parent=31 // pred_fallthru
              _
            // Predicated region
            $region37: #{nature_cnn_forward.4} parent=31 // pred_check
              %p151 = pneg %p147
            $region38: #{nature_cnn_forward.4} parent=31 // pred_check_branch
              %153 = sbr.rel (%p151) target = $region40
            $region39: #{nature_cnn_forward.4} parent=31 // pred_region
              %s154 = sshllo.u32 0, %s143
              loop: start=0, step=1, limit=1
              $region41: #{nature_cnn_forward.4} parent=39 // loop_pre_header
                _
              $region42: #{nature_cnn_forward.4} parent=39 // loop_header
                %s156 = sphi 0, %s160
                %p157 = scmp.ge.s32.totalorder %s156, 1
                %s161 = sphi %s142, %s142
                %s162 = sphi %s134, %s134
              $region43: #{nature_cnn_forward.4} parent=39 // loop_header_branch
                %159 = sbr.rel (%p157) target = $region47
              $region44: #{nature_cnn_forward.4} parent=39 // loop_body
                %v163 = vld [vmem:[%s161] sm:%s154]
                %164 = vst [vmem:[%s162] sm:%s154] %v163
                %v165 = vld [vmem:[%s161 + $0x1c] sm:%s154]
                %166 = vst [vmem:[%s162 + $0x10] sm:%s154] %v165
                %v167 = vld [vmem:[%s161 + $0x38] sm:%s154]
                %168 = vst [vmem:[%s162 + $0x20] sm:%s154] %v167
                %v169 = vld [vmem:[%s161 + $0x54] sm:%s154]
                %170 = vst [vmem:[%s162 + $0x30] sm:%s154] %v169
                %v171 = vld [vmem:[%s161 + $0x70] sm:%s154]
                %172 = vst [vmem:[%s162 + $0x40] sm:%s154] %v171
                %v173 = vld [vmem:[%s161 + $0x8c] sm:%s154]
                %174 = vst [vmem:[%s162 + $0x50] sm:%s154] %v173
                %v175 = vld [vmem:[%s161 + $0xa8] sm:%s154]
                %176 = vst [vmem:[%s162 + $0x60] sm:%s154] %v175
                %v177 = vld [vmem:[%s161 + $0xc4] sm:%s154]
                %178 = vst [vmem:[%s162 + $0x70] sm:%s154] %v177
                %v179 = vld [vmem:[%s161 + $0xe0] sm:%s154]
                %180 = vst [vmem:[%s162 + $0x80] sm:%s154] %v179
                %v181 = vld [vmem:[%s161 + $0xfc] sm:%s154]
                %182 = vst [vmem:[%s162 + $0x90] sm:%s154] %v181
                %v183 = vld [vmem:[%s161 + $0x118] sm:%s154]
                %184 = vst [vmem:[%s162 + $0xa0] sm:%s154] %v183
                %v185 = vld [vmem:[%s161 + $0x134] sm:%s154]
                %186 = vst [vmem:[%s162 + $0xb0] sm:%s154] %v185
                %v187 = vld [vmem:[%s161 + $0x150] sm:%s154]
                %188 = vst [vmem:[%s162 + $0xc0] sm:%s154] %v187
                %v189 = vld [vmem:[%s161 + $0x16c] sm:%s154]
                %190 = vst [vmem:[%s162 + $0xd0] sm:%s154] %v189
                %v191 = vld [vmem:[%s161 + $0x188] sm:%s154]
                %192 = vst [vmem:[%s162 + $0xe0] sm:%s154] %v191
                %v193 = vld [vmem:[%s161 + $0x1a4] sm:%s154]
                %194 = vst [vmem:[%s162 + $0xf0] sm:%s154] %v193
                %v195 = vld [vmem:[%s161 + $0x1c0] sm:%s154]
                %196 = vst [vmem:[%s162 + $0x100] sm:%s154] %v195
                %v197 = vld [vmem:[%s161 + $0x1dc] sm:%s154]
                %198 = vst [vmem:[%s162 + $0x110] sm:%s154] %v197
                %v199 = vld [vmem:[%s161 + $0x1f8] sm:%s154]
                %200 = vst [vmem:[%s162 + $0x120] sm:%s154] %v199
                %v201 = vld [vmem:[%s161 + $0x214] sm:%s154]
                %202 = vst [vmem:[%s162 + $0x130] sm:%s154] %v201
                %v203 = vld [vmem:[%s161 + $0x230] sm:%s154]
                %204 = vst [vmem:[%s162 + $0x140] sm:%s154] %v203
                %v205 = vld [vmem:[%s161 + $0x24c] sm:%s154]
                %206 = vst [vmem:[%s162 + $0x150] sm:%s154] %v205
                %v207 = vld [vmem:[%s161 + $0x268] sm:%s154]
                %208 = vst [vmem:[%s162 + $0x160] sm:%s154] %v207
                %v209 = vld [vmem:[%s161 + $0x284] sm:%s154]
                %210 = vst [vmem:[%s162 + $0x170] sm:%s154] %v209
                %v211 = vld [vmem:[%s161 + $0x2a0] sm:%s154]
                %212 = vst [vmem:[%s162 + $0x180] sm:%s154] %v211
                %v213 = vld [vmem:[%s161 + $0x2bc] sm:%s154]
                %214 = vst [vmem:[%s162 + $0x190] sm:%s154] %v213
                %v215 = vld [vmem:[%s161 + $0x2d8] sm:%s154]
                %216 = vst [vmem:[%s162 + $0x1a0] sm:%s154] %v215
                %v217 = vld [vmem:[%s161 + $0x2f4] sm:%s154]
                %218 = vst [vmem:[%s162 + $0x1b0] sm:%s154] %v217
                %v219 = vld [vmem:[%s161 + $0x310] sm:%s154]
                %220 = vst [vmem:[%s162 + $0x1c0] sm:%s154] %v219
                %v221 = vld [vmem:[%s161 + $0x32c] sm:%s154]
                %222 = vst [vmem:[%s162 + $0x1d0] sm:%s154] %v221
                %v223 = vld [vmem:[%s161 + $0x348] sm:%s154]
                %224 = vst [vmem:[%s162 + $0x1e0] sm:%s154] %v223
                %v225 = vld [vmem:[%s161 + $0x364] sm:%s154]
                %226 = vst [vmem:[%s162 + $0x1f0] sm:%s154] %v225
              $region45: #{nature_cnn_forward.4} parent=39 // loop_footer
                %s160 = sadd.s32 1, %s156
              $region46: #{nature_cnn_forward.4} parent=39 // loop_footer_branch
                %155 = sbr.rel target = $region42
              $region47: #{nature_cnn_forward.4} parent=39 // loop_exit
                _
            $region40: #{nature_cnn_forward.4} parent=31 // pred_fallthru
              _
          $region32: #{nature_cnn_forward.4} parent=27 // pred_fallthru
            _
          %791 = vnop
        $region28: #{nature_cnn_forward.4} parent=23 // pred_fallthru
          _
      $region24: #{nature_cnn_forward.4} parent=5 // pred_fallthru
        _
      %p792 = scmp.le.s32.totalorder 1, %s9
      %p793 = scmp.lt.s32.totalorder %s9, 3
      %p794 = pnand %p792, %p793
      %p795 = pneg %p794
      // Predicated region
      $region91: #{nature_cnn_forward.4} parent=5 // pred_check
        _
      $region92: #{nature_cnn_forward.4} parent=5 // pred_check_branch
        %797 = sbr.rel (%p794) target = $region94
      $region93: #{nature_cnn_forward.4} parent=5 // pred_region
        %s798 = ssub.s32 %s9, 1
        %s799 = sand.u32 %s22, 1
        %s800 = sand.u32 %s22, 1
        %s801 = smul.addr %s800, 512
        %s802 = scalar_lea.vmem [#allocation2], %s801
        // Predicated region
        $region95: #{nature_cnn_forward.4} parent=93 // pred_check
          %p803 = pneg %p35
        $region96: #{nature_cnn_forward.4} parent=93 // pred_check_branch
          %805 = sbr.rel (%p803) target = $region98
        $region97: #{nature_cnn_forward.4} parent=93 // pred_region
          _
        $region98: #{nature_cnn_forward.4} parent=93 // pred_fallthru
          _
        %s806 = sand.u32 %s22, 1
        %s807 = sand.u32 %s22, 1
        %s808 = smul.addr %s807, 512
        %s809 = scalar_lea.vmem [#allocation2], %s808
        %p810 = pneg %p35
        %p811 = pneg %p32
        %p812 = pneg %p56
        %p813 = pneg %p53
        %p814 = pneg %p77
        %p815 = pneg %p74
        %p816 = pneg %p103
        %p817 = pneg %p100
        %s818 = sand.u32 %s90, 1
        %s819 = sand.u32 %s90, 1
        %s820 = smul.addr %s819, 64
        %s821 = scalar_lea.vmem [#allocation3], %s820
        %s822 = smul.u32 4, %s14
        %s823 = ssub.s32 7, %s822
        %p824 = scmp.lt.s32.totalorder %s823, 4
        %s825 = scalar_select %p824, %s823, 4
        %s826 = smul.u32 2048, %s825
        %s827 = smul.u32 4, %s14
        %s828 = ssub.s32 7, %s827
        %p829 = scmp.lt.s32.totalorder %s828, 4
        %s830 = scalar_select %p829, %s828, 4
        %s831 = smul.u32 256, %s830
        %v832 = vld [vmem:[%s1] sm:$0xff]
        %v833 = vld [vmem:[%s1 + $0x8] sm:$0xff]
        %v834 = vld [vmem:[%s1 + $0x10] sm:$0xff]
        %v835 = vld [vmem:[%s1 + $0x18] sm:$0xff]
        %v836 = vld [vmem:[%s802] sm:$0xff]
        %v837 = vld [vmem:[%s802 + $0x8] sm:$0xff]
        %v838 = vld [vmem:[%s802 + $0x10] sm:$0xff]
        %v839 = vld [vmem:[%s802 + $0x18] sm:$0xff]
        %v840 = vld [vmem:[%s802 + $0x20] sm:$0xff]
        %v841 = vld [vmem:[%s802 + $0x28] sm:$0xff]
        %v842 = vld [vmem:[%s802 + $0x30] sm:$0xff]
        %v843 = vld [vmem:[%s802 + $0x38] sm:$0xff]
        %v844 = vld [vmem:[%s802 + $0x40] sm:$0xff]
        %v845 = vld [vmem:[%s802 + $0x48] sm:$0xff]
        %v846 = vld [vmem:[%s802 + $0x50] sm:$0xff]
        %v847 = vld [vmem:[%s802 + $0x58] sm:$0xff]
        %v848 = vld [vmem:[%s802 + $0x60] sm:$0xff]
        %v849 = vld [vmem:[%s802 + $0x68] sm:$0xff]
        %v850 = vld [vmem:[%s802 + $0x70] sm:$0xff]
        %v851 = vld [vmem:[%s802 + $0x78] sm:$0xff]
        %v852 = vld [vmem:[%s802 + $0x80] sm:$0xff]
        %v853 = vld [vmem:[%s802 + $0x88] sm:$0xff]
        %v854 = vld [vmem:[%s802 + $0x90] sm:$0xff]
        %v855 = vld [vmem:[%s802 + $0x98] sm:$0xff]
        %v856 = vld [vmem:[%s802 + $0xa0] sm:$0xff]
        %v857 = vld [vmem:[%s802 + $0xa8] sm:$0xff]
        %v858 = vld [vmem:[%s802 + $0xb0] sm:$0xff]
        %v859 = vld [vmem:[%s802 + $0xb8] sm:$0xff]
        %v860 = vld [vmem:[%s802 + $0xc0] sm:$0xff]
        %v861 = vld [vmem:[%s802 + $0xc8] sm:$0xff]
        %v862 = vld [vmem:[%s802 + $0xd0] sm:$0xff]
        %v863 = vld [vmem:[%s802 + $0xd8] sm:$0xff]
        %v864 = vld [vmem:[%s802 + $0xe0] sm:$0xff]
        %v865 = vld [vmem:[%s802 + $0xe8] sm:$0xff]
        %v866 = vld [vmem:[%s802 + $0xf0] sm:$0xff]
        %v867 = vld [vmem:[%s802 + $0xf8] sm:$0xff]
        %v868 = vld [vmem:[%s802 + $0x100] sm:$0xff]
        %v869 = vld [vmem:[%s802 + $0x108] sm:$0xff]
        %v870 = vld [vmem:[%s802 + $0x110] sm:$0xff]
        %v871 = vld [vmem:[%s802 + $0x118] sm:$0xff]
        %v872 = vld [vmem:[%s802 + $0x120] sm:$0xff]
        %v873 = vld [vmem:[%s802 + $0x128] sm:$0xff]
        %v874 = vld [vmem:[%s802 + $0x130] sm:$0xff]
        %v875 = vld [vmem:[%s802 + $0x138] sm:$0xff]
        %v876 = vld [vmem:[%s802 + $0x140] sm:$0xff]
        %v877 = vld [vmem:[%s802 + $0x148] sm:$0xff]
        %v878 = vld [vmem:[%s802 + $0x150] sm:$0xff]
        %v879 = vld [vmem:[%s802 + $0x158] sm:$0xff]
        %v880 = vld [vmem:[%s802 + $0x160] sm:$0xff]
        %v881 = vld [vmem:[%s802 + $0x168] sm:$0xff]
        %v882 = vld [vmem:[%s802 + $0x170] sm:$0xff]
        %v883 = vld [vmem:[%s802 + $0x178] sm:$0xff]
        %v884 = vld [vmem:[%s802 + $0x180] sm:$0xff]
        %v885 = vld [vmem:[%s802 + $0x188] sm:$0xff]
        %v886 = vld [vmem:[%s802 + $0x190] sm:$0xff]
        %v887 = vld [vmem:[%s802 + $0x198] sm:$0xff]
        %v888 = vld [vmem:[%s802 + $0x1a0] sm:$0xff]
        %v889 = vld [vmem:[%s802 + $0x1a8] sm:$0xff]
        %v890 = vld [vmem:[%s802 + $0x1b0] sm:$0xff]
        %v891 = vld [vmem:[%s802 + $0x1b8] sm:$0xff]
        %v892 = vld [vmem:[%s802 + $0x1c0] sm:$0xff]
        %v893 = vld [vmem:[%s802 + $0x1c8] sm:$0xff]
        %v894 = vld [vmem:[%s802 + $0x1d0] sm:$0xff]
        %v895 = vld [vmem:[%s802 + $0x1d8] sm:$0xff]
        %v896 = vld [vmem:[%s802 + $0x1e0] sm:$0xff]
        %v897 = vld [vmem:[%s802 + $0x1e8] sm:$0xff]
        %v898 = vld [vmem:[%s802 + $0x1f0] sm:$0xff]
        %v899 = vld [vmem:[%s802 + $0x1f8] sm:$0xff]
        %v900 = vld [vmem:[%s2] sm:$0xff]
        %v901 = vld [vmem:[%s2 + $0x8] sm:$0xff]
        %v902 = vld [vmem:[%s2 + $0x10] sm:$0xff]
        %v903 = vld [vmem:[%s2 + $0x18] sm:$0xff]
        %905 = vset.pattern.permute.xlu0 0
        %906 = vperm.xlu0 %905, %v900
        %v907 = vpop.permute.xlu0 %906
        %910 = vset.pattern.permute.xlu0 0
        %911 = vperm.xlu0 %910, %v901
        %v912 = vpop.permute.xlu0 %911
        %915 = vset.pattern.permute.xlu0 0
        %916 = vperm.xlu0 %915, %v902
        %v917 = vpop.permute.xlu0 %916
        %920 = vset.pattern.permute.xlu0 0
        %921 = vperm.xlu0 %920, %v903
        %v922 = vpop.permute.xlu0 %921
        %v928 = vunpack.c.l.b16 %v832
        %v929 = vunpack.c.h.b16 %v832
        %v930 = vunpack.c.l.b16 %v833
        %v931 = vunpack.c.h.b16 %v833
        %v932 = vunpack.c.l.b16 %v834
        %v933 = vunpack.c.h.b16 %v834
        %v934 = vunpack.c.l.b16 %v835
        %v935 = vunpack.c.h.b16 %v835
        %v936 = vpack.c.b16 %v930, %v928
        %v937 = vpack.c.b16 %v931, %v929
        %v938 = vpack.c.b16 %v934, %v932
        %v939 = vpack.c.b16 %v935, %v933
        %v1008 = vunpack.c.l.b16 %v836
        %v1009 = vunpack.c.h.b16 %v836
        %v1010 = vunpack.c.l.b16 %v837
        %v1011 = vunpack.c.h.b16 %v837
        %v1012 = vunpack.c.l.b16 %v838
        %v1013 = vunpack.c.h.b16 %v838
        %v1014 = vunpack.c.l.b16 %v839
        %v1015 = vunpack.c.h.b16 %v839
        %v1016 = vunpack.c.l.b16 %v840
        %v1017 = vunpack.c.h.b16 %v840
        %v1018 = vunpack.c.l.b16 %v841
        %v1019 = vunpack.c.h.b16 %v841
        %v1020 = vunpack.c.l.b16 %v842
        %v1021 = vunpack.c.h.b16 %v842
        %v1022 = vunpack.c.l.b16 %v843
        %v1023 = vunpack.c.h.b16 %v843
        %v1024 = vunpack.c.l.b16 %v844
        %v1025 = vunpack.c.h.b16 %v844
        %v1026 = vunpack.c.l.b16 %v845
        %v1027 = vunpack.c.h.b16 %v845
        %v1028 = vunpack.c.l.b16 %v846
        %v1029 = vunpack.c.h.b16 %v846
        %v1030 = vunpack.c.l.b16 %v847
        %v1031 = vunpack.c.h.b16 %v847
        %v1032 = vunpack.c.l.b16 %v848
        %v1033 = vunpack.c.h.b16 %v848
        %v1034 = vunpack.c.l.b16 %v849
        %v1035 = vunpack.c.h.b16 %v849
        %v1036 = vunpack.c.l.b16 %v850
        %v1037 = vunpack.c.h.b16 %v850
        %v1038 = vunpack.c.l.b16 %v851
        %v1039 = vunpack.c.h.b16 %v851
        %v1040 = vunpack.c.l.b16 %v852
        %v1041 = vunpack.c.h.b16 %v852
        %v1042 = vunpack.c.l.b16 %v853
        %v1043 = vunpack.c.h.b16 %v853
        %v1044 = vunpack.c.l.b16 %v854
        %v1045 = vunpack.c.h.b16 %v854
        %v1046 = vunpack.c.l.b16 %v855
        %v1047 = vunpack.c.h.b16 %v855
        %v1048 = vunpack.c.l.b16 %v856
        %v1049 = vunpack.c.h.b16 %v856
        %v1050 = vunpack.c.l.b16 %v857
        %v1051 = vunpack.c.h.b16 %v857
        %v1052 = vunpack.c.l.b16 %v858
        %v1053 = vunpack.c.h.b16 %v858
        %v1054 = vunpack.c.l.b16 %v859
        %v1055 = vunpack.c.h.b16 %v859
        %v1056 = vunpack.c.l.b16 %v860
        %v1057 = vunpack.c.h.b16 %v860
        %v1058 = vunpack.c.l.b16 %v861
        %v1059 = vunpack.c.h.b16 %v861
        %v1060 = vunpack.c.l.b16 %v862
        %v1061 = vunpack.c.h.b16 %v862
        %v1062 = vunpack.c.l.b16 %v863
        %v1063 = vunpack.c.h.b16 %v863
        %v1064 = vunpack.c.l.b16 %v864
        %v1065 = vunpack.c.h.b16 %v864
        %v1066 = vunpack.c.l.b16 %v865
        %v1067 = vunpack.c.h.b16 %v865
        %v1068 = vunpack.c.l.b16 %v866
        %v1069 = vunpack.c.h.b16 %v866
        %v1070 = vunpack.c.l.b16 %v867
        %v1071 = vunpack.c.h.b16 %v867
        %v1072 = vunpack.c.l.b16 %v868
        %v1073 = vunpack.c.h.b16 %v868
        %v1074 = vunpack.c.l.b16 %v869
        %v1075 = vunpack.c.h.b16 %v869
        %v1076 = vunpack.c.l.b16 %v870
        %v1077 = vunpack.c.h.b16 %v870
        %v1078 = vunpack.c.l.b16 %v871
        %v1079 = vunpack.c.h.b16 %v871
        %v1080 = vunpack.c.l.b16 %v872
        %v1081 = vunpack.c.h.b16 %v872
        %v1082 = vunpack.c.l.b16 %v873
        %v1083 = vunpack.c.h.b16 %v873
        %v1084 = vunpack.c.l.b16 %v874
        %v1085 = vunpack.c.h.b16 %v874
        %v1086 = vunpack.c.l.b16 %v875
        %v1087 = vunpack.c.h.b16 %v875
        %v1088 = vunpack.c.l.b16 %v876
        %v1089 = vunpack.c.h.b16 %v876
        %v1090 = vunpack.c.l.b16 %v877
        %v1091 = vunpack.c.h.b16 %v877
        %v1092 = vunpack.c.l.b16 %v878
        %v1093 = vunpack.c.h.b16 %v878
        %v1094 = vunpack.c.l.b16 %v879
        %v1095 = vunpack.c.h.b16 %v879
        %v1096 = vunpack.c.l.b16 %v880
        %v1097 = vunpack.c.h.b16 %v880
        %v1098 = vunpack.c.l.b16 %v881
        %v1099 = vunpack.c.h.b16 %v881
        %v1100 = vunpack.c.l.b16 %v882
        %v1101 = vunpack.c.h.b16 %v882
        %v1102 = vunpack.c.l.b16 %v883
        %v1103 = vunpack.c.h.b16 %v883
        %v1104 = vunpack.c.l.b16 %v884
        %v1105 = vunpack.c.h.b16 %v884
        %v1106 = vunpack.c.l.b16 %v885
        %v1107 = vunpack.c.h.b16 %v885
        %v1108 = vunpack.c.l.b16 %v886
        %v1109 = vunpack.c.h.b16 %v886
        %v1110 = vunpack.c.l.b16 %v887
        %v1111 = vunpack.c.h.b16 %v887
        %v1112 = vunpack.c.l.b16 %v888
        %v1113 = vunpack.c.h.b16 %v888
        %v1114 = vunpack.c.l.b16 %v889
        %v1115 = vunpack.c.h.b16 %v889
        %v1116 = vunpack.c.l.b16 %v890
        %v1117 = vunpack.c.h.b16 %v890
        %v1118 = vunpack.c.l.b16 %v891
        %v1119 = vunpack.c.h.b16 %v891
        %v1120 = vunpack.c.l.b16 %v892
        %v1121 = vunpack.c.h.b16 %v892
        %v1122 = vunpack.c.l.b16 %v893
        %v1123 = vunpack.c.h.b16 %v893
        %v1124 = vunpack.c.l.b16 %v894
        %v1125 = vunpack.c.h.b16 %v894
        %v1126 = vunpack.c.l.b16 %v895
        %v1127 = vunpack.c.h.b16 %v895
        %v1128 = vunpack.c.l.b16 %v896
        %v1129 = vunpack.c.h.b16 %v896
        %v1130 = vunpack.c.l.b16 %v897
        %v1131 = vunpack.c.h.b16 %v897
        %v1132 = vunpack.c.l.b16 %v898
        %v1133 = vunpack.c.h.b16 %v898
        %v1134 = vunpack.c.l.b16 %v899
        %v1135 = vunpack.c.h.b16 %v899
        %v1136 = vpack.c.b16 %v1012, %v1008
        %v1137 = vpack.c.b16 %v1013, %v1009
        %v1138 = vpack.c.b16 %v1014, %v1010
        %v1139 = vpack.c.b16 %v1015, %v1011
        %v1140 = vpack.c.b16 %v1020, %v1016
        %v1141 = vpack.c.b16 %v1021, %v1017
        %v1142 = vpack.c.b16 %v1022, %v1018
        %v1143 = vpack.c.b16 %v1023, %v1019
        %v1144 = vpack.c.b16 %v1028, %v1024
        %v1145 = vpack.c.b16 %v1029, %v1025
        %v1146 = vpack.c.b16 %v1030, %v1026
        %v1147 = vpack.c.b16 %v1031, %v1027
        %v1148 = vpack.c.b16 %v1036, %v1032
        %v1149 = vpack.c.b16 %v1037, %v1033
        %v1150 = vpack.c.b16 %v1038, %v1034
        %v1151 = vpack.c.b16 %v1039, %v1035
        %v1152 = vpack.c.b16 %v1044, %v1040
        %v1153 = vpack.c.b16 %v1045, %v1041
        %v1154 = vpack.c.b16 %v1046, %v1042
        %v1155 = vpack.c.b16 %v1047, %v1043
        %v1156 = vpack.c.b16 %v1052, %v1048
        %v1157 = vpack.c.b16 %v1053, %v1049
        %v1158 = vpack.c.b16 %v1054, %v1050
        %v1159 = vpack.c.b16 %v1055, %v1051
        %v1160 = vpack.c.b16 %v1060, %v1056
        %v1161 = vpack.c.b16 %v1061, %v1057
        %v1162 = vpack.c.b16 %v1062, %v1058
        %v1163 = vpack.c.b16 %v1063, %v1059
        %v1164 = vpack.c.b16 %v1068, %v1064
        %v1165 = vpack.c.b16 %v1069, %v1065
        %v1166 = vpack.c.b16 %v1070, %v1066
        %v1167 = vpack.c.b16 %v1071, %v1067
        %v1168 = vpack.c.b16 %v1076, %v1072
        %v1169 = vpack.c.b16 %v1077, %v1073
        %v1170 = vpack.c.b16 %v1078, %v1074
        %v1171 = vpack.c.b16 %v1079, %v1075
        %v1172 = vpack.c.b16 %v1084, %v1080
        %v1173 = vpack.c.b16 %v1085, %v1081
        %v1174 = vpack.c.b16 %v1086, %v1082
        %v1175 = vpack.c.b16 %v1087, %v1083
        %v1176 = vpack.c.b16 %v1092, %v1088
        %v1177 = vpack.c.b16 %v1093, %v1089
        %v1178 = vpack.c.b16 %v1094, %v1090
        %v1179 = vpack.c.b16 %v1095, %v1091
        %v1180 = vpack.c.b16 %v1100, %v1096
        %v1181 = vpack.c.b16 %v1101, %v1097
        %v1182 = vpack.c.b16 %v1102, %v1098
        %v1183 = vpack.c.b16 %v1103, %v1099
        %v1184 = vpack.c.b16 %v1108, %v1104
        %v1185 = vpack.c.b16 %v1109, %v1105
        %v1186 = vpack.c.b16 %v1110, %v1106
        %v1187 = vpack.c.b16 %v1111, %v1107
        %v1188 = vpack.c.b16 %v1116, %v1112
        %v1189 = vpack.c.b16 %v1117, %v1113
        %v1190 = vpack.c.b16 %v1118, %v1114
        %v1191 = vpack.c.b16 %v1119, %v1115
        %v1192 = vpack.c.b16 %v1124, %v1120
        %v1193 = vpack.c.b16 %v1125, %v1121
        %v1194 = vpack.c.b16 %v1126, %v1122
        %v1195 = vpack.c.b16 %v1127, %v1123
        %v1196 = vpack.c.b16 %v1132, %v1128
        %v1197 = vpack.c.b16 %v1133, %v1129
        %v1198 = vpack.c.b16 %v1134, %v1130
        %v1199 = vpack.c.b16 %v1135, %v1131
        %1264 = vmatprep.subr.bf16.mxu0 %v1137
        %1265 = vmatpush1.bf16.msra.mxu0 %v1136
        %1266 = vmatprep.subr.bf16.mxu0 %v1141
        %1267 = vmatpush1.bf16.msra.mxu0 %v1140
        %1268 = vmatprep.subr.bf16.mxu0 %v1145
        %1269 = vmatpush1.bf16.msra.mxu0 %v1144
        %1270 = vmatprep.subr.bf16.mxu0 %v1149
        %1271 = vmatpush1.bf16.msra.mxu0 %v1148
        %1272 = vmatprep.subr.bf16.mxu0 %v1153
        %1273 = vmatpush1.bf16.msra.mxu0 %v1152
        %1274 = vmatprep.subr.bf16.mxu0 %v1157
        %1275 = vmatpush1.bf16.msra.mxu0 %v1156
        %1276 = vmatprep.subr.bf16.mxu0 %v1161
        %1277 = vmatpush1.bf16.msra.mxu0 %v1160
        %1278 = vmatprep.subr.bf16.mxu0 %v1165
        %1279 = vmatpush1.bf16.msra.mxu0 %v1164
        %1280 = vmatprep.subr.bf16.mxu0 %v1169
        %1281 = vmatpush1.bf16.msra.mxu0 %v1168
        %1282 = vmatprep.subr.bf16.mxu0 %v1173
        %1283 = vmatpush1.bf16.msra.mxu0 %v1172
        %1284 = vmatprep.subr.bf16.mxu0 %v1177
        %1285 = vmatpush1.bf16.msra.mxu0 %v1176
        %1286 = vmatprep.subr.bf16.mxu0 %v1181
        %1287 = vmatpush1.bf16.msra.mxu0 %v1180
        %1288 = vmatprep.subr.bf16.mxu0 %v1185
        %1289 = vmatpush1.bf16.msra.mxu0 %v1184
        %1290 = vmatprep.subr.bf16.mxu0 %v1189
        %1291 = vmatpush1.bf16.msra.mxu0 %v1188
        %1292 = vmatprep.subr.bf16.mxu0 %v1193
        %1293 = vmatpush1.bf16.msra.mxu0 %v1192
        %1294 = vmatprep.subr.bf16.mxu0 %v1197
        %1295 = vmatpush1.bf16.msra.mxu0 %v1196
        %1296 = vmatprep.mubr.bf16.mxu0 %v937
        %1297 = vmatmul.mubr.bf16.gmra.mrb[0].mxu0 %v936
        %v1298 = vpop.f32.mrb[0].mxu0
        %v1299 = vadd.f32 %v907, %v1298
        %v1300 = vpop.f32.mrb[0].mxu0
        %v1301 = vadd.f32 %v907, %v1300
        %v1302 = vpop.f32.mrb[0].mxu0
        %v1303 = vadd.f32 %v912, %v1302
        %v1304 = vpop.f32.mrb[0].mxu0
        %v1305 = vadd.f32 %v912, %v1304
        %1306 = vmatprep.mubr.bf16.mxu0 %v939
        %1307 = vmatmul.mubr.bf16.gmra.mrb[0].mxu0 %v938
        %v1308 = vpop.f32.mrb[0].mxu0
        %v1309 = vadd.f32 %v917, %v1308
        %v1310 = vpop.f32.mrb[0].mxu0
        %v1311 = vadd.f32 %v917, %v1310
        %v1312 = vpop.f32.mrb[0].mxu0
        %v1313 = vadd.f32 %v922, %v1312
        %v1314 = vpop.f32.mrb[0].mxu0
        %v1315 = vadd.f32 %v922, %v1314
        %1316 = vdwg.mxu0
        %1317 = vmatprep.subr.bf16.mxu0 %v1139
        %1318 = vmatpush1.bf16.msra.mxu0 %v1138
        %1319 = vmatprep.subr.bf16.mxu0 %v1143
        %1320 = vmatpush1.bf16.msra.mxu0 %v1142
        %1321 = vmatprep.subr.bf16.mxu0 %v1147
        %1322 = vmatpush1.bf16.msra.mxu0 %v1146
        %1323 = vmatprep.subr.bf16.mxu0 %v1151
        %1324 = vmatpush1.bf16.msra.mxu0 %v1150
        %1325 = vmatprep.subr.bf16.mxu0 %v1155
        %1326 = vmatpush1.bf16.msra.mxu0 %v1154
        %1327 = vmatprep.subr.bf16.mxu0 %v1159
        %1328 = vmatpush1.bf16.msra.mxu0 %v1158
        %1329 = vmatprep.subr.bf16.mxu0 %v1163
        %1330 = vmatpush1.bf16.msra.mxu0 %v1162
        %1331 = vmatprep.subr.bf16.mxu0 %v1167
        %1332 = vmatpush1.bf16.msra.mxu0 %v1166
        %1333 = vmatprep.subr.bf16.mxu0 %v1171
        %1334 = vmatpush1.bf16.msra.mxu0 %v1170
        %1335 = vmatprep.subr.bf16.mxu0 %v1175
        %1336 = vmatpush1.bf16.msra.mxu0 %v1174
        %1337 = vmatprep.subr.bf16.mxu0 %v1179
        %1338 = vmatpush1.bf16.msra.mxu0 %v1178
        %1339 = vmatprep.subr.bf16.mxu0 %v1183
        %1340 = vmatpush1.bf16.msra.mxu0 %v1182
        %1341 = vmatprep.subr.bf16.mxu0 %v1187
        %1342 = vmatpush1.bf16.msra.mxu0 %v1186
        %1343 = vmatprep.subr.bf16.mxu0 %v1191
        %1344 = vmatpush1.bf16.msra.mxu0 %v1190
        %1345 = vmatprep.subr.bf16.mxu0 %v1195
        %1346 = vmatpush1.bf16.msra.mxu0 %v1194
        %1347 = vmatprep.subr.bf16.mxu0 %v1199
        %1348 = vmatpush1.bf16.msra.mxu0 %v1198
        %1349 = vmatprep.mubr.bf16.mxu0 %v937
        %1350 = vmatmul.mubr.bf16.gmra.mrb[0].mxu0 %v936
        %v1351 = vpop.f32.mrb[0].mxu0
        %v1352 = vadd.f32 %v907, %v1351
        %v1353 = vpop.f32.mrb[0].mxu0
        %v1354 = vadd.f32 %v907, %v1353
        %v1355 = vpop.f32.mrb[0].mxu0
        %v1356 = vadd.f32 %v912, %v1355
        %v1357 = vpop.f32.mrb[0].mxu0
        %v1358 = vadd.f32 %v912, %v1357
        %1359 = vmatprep.mubr.bf16.mxu0 %v939
        %1360 = vmatmul.mubr.bf16.gmra.mrb[0].mxu0 %v938
        %v1361 = vpop.f32.mrb[0].mxu0
        %v1362 = vadd.f32 %v917, %v1361
        %v1363 = vpop.f32.mrb[0].mxu0
        %v1364 = vadd.f32 %v917, %v1363
        %v1365 = vpop.f32.mrb[0].mxu0
        %v1366 = vadd.f32 %v922, %v1365
        %v1367 = vpop.f32.mrb[0].mxu0
        %v1368 = vadd.f32 %v922, %v1367
        %1369 = vdwg.mxu0
        %v1370 = vmax.f32 %v1299, 0.0
        %v1371 = vmax.f32 %v1301, 0.0
        %v1372 = vmax.f32 %v1352, 0.0
        %v1373 = vmax.f32 %v1354, 0.0
        %v1374 = vmax.f32 %v1303, 0.0
        %v1375 = vmax.f32 %v1305, 0.0
        %v1376 = vmax.f32 %v1356, 0.0
        %v1377 = vmax.f32 %v1358, 0.0
        %v1378 = vmax.f32 %v1309, 0.0
        %v1379 = vmax.f32 %v1311, 0.0
        %v1380 = vmax.f32 %v1362, 0.0
        %v1381 = vmax.f32 %v1364, 0.0
        %v1382 = vmax.f32 %v1313, 0.0
        %v1383 = vmax.f32 %v1315, 0.0
        %v1384 = vmax.f32 %v1366, 0.0
        %v1385 = vmax.f32 %v1368, 0.0
        %v1386 = vpack.c.bf16 %v1374, %v1370
        %v1387 = vpack.c.bf16 %v1375, %v1371
        %v1388 = vpack.c.bf16 %v1376, %v1372
        %v1389 = vpack.c.bf16 %v1377, %v1373
        %v1390 = vpack.c.bf16 %v1382, %v1378
        %v1391 = vpack.c.bf16 %v1383, %v1379
        %v1392 = vpack.c.bf16 %v1384, %v1380
        %v1393 = vpack.c.bf16 %v1385, %v1381
        %v1402 = vunpack.c.l.b16 %v1386
        %v1403 = vunpack.c.l.b16 %v1387
        %v1404 = vunpack.c.l.b16 %v1388
        %v1405 = vunpack.c.l.b16 %v1389
        %v1406 = vunpack.c.h.b16 %v1386
        %v1407 = vunpack.c.h.b16 %v1387
        %v1408 = vunpack.c.h.b16 %v1388
        %v1409 = vunpack.c.h.b16 %v1389
        %v1410 = vunpack.c.l.b16 %v1390
        %v1411 = vunpack.c.l.b16 %v1391
        %v1412 = vunpack.c.l.b16 %v1392
        %v1413 = vunpack.c.l.b16 %v1393
        %v1414 = vunpack.c.h.b16 %v1390
        %v1415 = vunpack.c.h.b16 %v1391
        %v1416 = vunpack.c.h.b16 %v1392
        %v1417 = vunpack.c.h.b16 %v1393
        %v1418 = vpack.c.b16 %v1403, %v1402
        %v1419 = vpack.c.b16 %v1405, %v1404
        %v1420 = vpack.c.b16 %v1407, %v1406
        %v1421 = vpack.c.b16 %v1409, %v1408
        %v1422 = vpack.c.b16 %v1411, %v1410
        %v1423 = vpack.c.b16 %v1413, %v1412
        %v1424 = vpack.c.b16 %v1415, %v1414
        %v1425 = vpack.c.b16 %v1417, %v1416
        %1434 = vst [vmem:[%s821] sm:$0xff] %v1418
        %1435 = vst [vmem:[%s821 + $0x8] sm:$0xff] %v1419
        %1436 = vst [vmem:[%s821 + $0x10] sm:$0xff] %v1420
        %1437 = vst [vmem:[%s821 + $0x18] sm:$0xff] %v1421
        %1438 = vst [vmem:[%s821 + $0x20] sm:$0xff] %v1422
        %1439 = vst [vmem:[%s821 + $0x28] sm:$0xff] %v1423
        %1440 = vst [vmem:[%s821 + $0x30] sm:$0xff] %v1424
        %1441 = vst [vmem:[%s821 + $0x38] sm:$0xff] %v1425
        %s1442 = sand.u32 %s90, 1
        %s1443 = sand.u32 %s90, 1
        %s1444 = smul.addr %s1443, 64
        %s1445 = scalar_lea.vmem [#allocation3], %s1444
        // Predicated region
        $region99: #{nature_cnn_forward.4} parent=93 // pred_check
          %p1446 = pneg %p100
        $region100: #{nature_cnn_forward.4} parent=93 // pred_check_branch
          %1448 = sbr.rel (%p1446) target = $region102
        $region101: #{nature_cnn_forward.4} parent=93 // pred_region
          %s1449 = smul.u32 4, %s14
          %s1450 = ssub.s32 7, %s1449
          %p1451 = scmp.lt.s32.totalorder %s1450, 4
          %s1452 = scalar_select %p1451, %s1450, 4
          %s1453 = smul.u32 256, %s1452
          %p1454 = scmp.ne.s32.totalorder 0, %s1453
          %s1455 = smul.addr %s1449, 4
          %s1456 = scalar_lea.vmem %s3, %s1455
          %s1457 = smul.u32 %s1452, 4
          // Predicated region
          $region103: #{nature_cnn_forward.4} parent=101 // pred_check
            %p1458 = pneg %p1454
          $region104: #{nature_cnn_forward.4} parent=101 // pred_check_branch
            %1460 = sbr.rel (%p1458) target = $region106
          $region105: #{nature_cnn_forward.4} parent=101 // pred_region
            %p1461 = scmp.lt.u32.totalorder %s1457, 8
            %p1462 = pneg %p1461
            // Predicated region
            $region107: #{nature_cnn_forward.4} parent=105 // pred_check
              _
            $region108: #{nature_cnn_forward.4} parent=105 // pred_check_branch
              %1464 = sbr.rel (%p1461) target = $region110
            $region109: #{nature_cnn_forward.4} parent=105 // pred_region
              %s1485 = sand.u32 %s1457, 7
              %p1486 = scmp.eq.s32.totalorder %s1485, 0
              // Predicated region
              $region122: #{nature_cnn_forward.4} parent=109 // pred_check
                %p1487 = pneg %p1486
              $region123: #{nature_cnn_forward.4} parent=109 // pred_check_branch
                %1489 = sbr.rel (%p1487) target = $region125
              $region124: #{nature_cnn_forward.4} parent=109 // pred_region
                %s1490 = sshrl.u32 %s1457, 3
                %s1491 = sshrl.u32 %s1490, 4
                // While loop
                $region126: #{nature_cnn_forward.4} parent=124 // loop_pre_header
                  _
                $region127: #{nature_cnn_forward.4} parent=124 // loop_header
                  %s1495 = sphi 0, %s1497
                  %p1496 = scmp.ge.s32.totalorder %s1495, %s1491
                  %s1500 = sphi 0, %s1633
                  %s1501 = sphi %s1445, %s1636
                  %s1502 = sphi %s1456, %s1637
                $region128: #{nature_cnn_forward.4} parent=124 // loop_header_branch
                  %1499 = sbr.rel (%p1496) target = $region132
                $region129: #{nature_cnn_forward.4} parent=124 // loop_body
                  %v1503 = vld [vmem:[%s1501] sm:$0xff]
                  %1504 = vst [vmem:[%s1502] sm:$0xff] %v1503
                  %v1505 = vld [vmem:[%s1501 + $0x8] sm:$0xff]
                  %1506 = vst [vmem:[%s1502 + $0x8] sm:$0xff] %v1505
                  %v1507 = vld [vmem:[%s1501 + $0x10] sm:$0xff]
                  %1508 = vst [vmem:[%s1502 + $0x10] sm:$0xff] %v1507
                  %v1509 = vld [vmem:[%s1501 + $0x18] sm:$0xff]
                  %1510 = vst [vmem:[%s1502 + $0x18] sm:$0xff] %v1509
                  %v1511 = vld [vmem:[%s1501 + $0x20] sm:$0xff]
                  %1512 = vst [vmem:[%s1502 + $0x20] sm:$0xff] %v1511
                  %v1513 = vld [vmem:[%s1501 + $0x28] sm:$0xff]
                  %1514 = vst [vmem:[%s1502 + $0x28] sm:$0xff] %v1513
                  %v1515 = vld [vmem:[%s1501 + $0x30] sm:$0xff]
                  %1516 = vst [vmem:[%s1502 + $0x30] sm:$0xff] %v1515
                  %v1517 = vld [vmem:[%s1501 + $0x38] sm:$0xff]
                  %1518 = vst [vmem:[%s1502 + $0x38] sm:$0xff] %v1517
                  %v1519 = vld [vmem:[%s1501 + $0x40] sm:$0xff]
                  %1520 = vst [vmem:[%s1502 + $0x40] sm:$0xff] %v1519
                  %v1521 = vld [vmem:[%s1501 + $0x48] sm:$0xff]
                  %1522 = vst [vmem:[%s1502 + $0x48] sm:$0xff] %v1521
                  %v1523 = vld [vmem:[%s1501 + $0x50] sm:$0xff]
                  %1524 = vst [vmem:[%s1502 + $0x50] sm:$0xff] %v1523
                  %v1525 = vld [vmem:[%s1501 + $0x58] sm:$0xff]
                  %1526 = vst [vmem:[%s1502 + $0x58] sm:$0xff] %v1525
                  %v1527 = vld [vmem:[%s1501 + $0x60] sm:$0xff]
                  %1528 = vst [vmem:[%s1502 + $0x60] sm:$0xff] %v1527
                  %v1529 = vld [vmem:[%s1501 + $0x68] sm:$0xff]
                  %1530 = vst [vmem:[%s1502 + $0x68] sm:$0xff] %v1529
                  %v1531 = vld [vmem:[%s1501 + $0x70] sm:$0xff]
                  %1532 = vst [vmem:[%s1502 + $0x70] sm:$0xff] %v1531
                  %v1533 = vld [vmem:[%s1501 + $0x78] sm:$0xff]
                  %1534 = vst [vmem:[%s1502 + $0x78] sm:$0xff] %v1533
                  %v1535 = vld [vmem:[%s1501 + $0x10] sm:$0xff]
                  %1536 = vst [vmem:[%s1502 + $0x1c] sm:$0xff] %v1535
                  %v1537 = vld [vmem:[%s1501 + $0x18] sm:$0xff]
                  %1538 = vst [vmem:[%s1502 + $0x24] sm:$0xff] %v1537
                  %v1539 = vld [vmem:[%s1501 + $0x20] sm:$0xff]
                  %1540 = vst [vmem:[%s1502 + $0x2c] sm:$0xff] %v1539
                  %v1541 = vld [vmem:[%s1501 + $0x28] sm:$0xff]
                  %1542 = vst [vmem:[%s1502 + $0x34] sm:$0xff] %v1541
                  %v1543 = vld [vmem:[%s1501 + $0x30] sm:$0xff]
                  %1544 = vst [vmem:[%s1502 + $0x3c] sm:$0xff] %v1543
                  %v1545 = vld [vmem:[%s1501 + $0x38] sm:$0xff]
                  %1546 = vst [vmem:[%s1502 + $0x44] sm:$0xff] %v1545
                  %v1547 = vld [vmem:[%s1501 + $0x40] sm:$0xff]
                  %1548 = vst [vmem:[%s1502 + $0x4c] sm:$0xff] %v1547
                  %v1549 = vld [vmem:[%s1501 + $0x48] sm:$0xff]
                  %1550 = vst [vmem:[%s1502 + $0x54] sm:$0xff] %v1549
                  %v1551 = vld [vmem:[%s1501 + $0x50] sm:$0xff]
                  %1552 = vst [vmem:[%s1502 + $0x5c] sm:$0xff] %v1551
                  %v1553 = vld [vmem:[%s1501 + $0x58] sm:$0xff]
                  %1554 = vst [vmem:[%s1502 + $0x64] sm:$0xff] %v1553
                  %v1555 = vld [vmem:[%s1501 + $0x60] sm:$0xff]
                  %1556 = vst [vmem:[%s1502 + $0x6c] sm:$0xff] %v1555
                  %v1557 = vld [vmem:[%s1501 + $0x68] sm:$0xff]
                  %1558 = vst [vmem:[%s1502 + $0x74] sm:$0xff] %v1557
                  %v1559 = vld [vmem:[%s1501 + $0x70] sm:$0xff]
                  %1560 = vst [vmem:[%s1502 + $0x7c] sm:$0xff] %v1559
                  %v1561 = vld [vmem:[%s1501 + $0x78] sm:$0xff]
                  %1562 = vst [vmem:[%s1502 + $0x84] sm:$0xff] %v1561
                  %v1563 = vld [vmem:[%s1501 + $0x80] sm:$0xff]
                  %1564 = vst [vmem:[%s1502 + $0x8c] sm:$0xff] %v1563
                  %v1565 = vld [vmem:[%s1501 + $0x88] sm:$0xff]
                  %1566 = vst [vmem:[%s1502 + $0x94] sm:$0xff] %v1565
                  %v1567 = vld [vmem:[%s1501 + $0x20] sm:$0xff]
                  %1568 = vst [vmem:[%s1502 + $0x38] sm:$0xff] %v1567
                  %v1569 = vld [vmem:[%s1501 + $0x28] sm:$0xff]
                  %1570 = vst [vmem:[%s1502 + $0x40] sm:$0xff] %v1569
                  %v1571 = vld [vmem:[%s1501 + $0x30] sm:$0xff]
                  %1572 = vst [vmem:[%s1502 + $0x48] sm:$0xff] %v1571
                  %v1573 = vld [vmem:[%s1501 + $0x38] sm:$0xff]
                  %1574 = vst [vmem:[%s1502 + $0x50] sm:$0xff] %v1573
                  %v1575 = vld [vmem:[%s1501 + $0x40] sm:$0xff]
                  %1576 = vst [vmem:[%s1502 + $0x58] sm:$0xff] %v1575
                  %v1577 = vld [vmem:[%s1501 + $0x48] sm:$0xff]
                  %1578 = vst [vmem:[%s1502 + $0x60] sm:$0xff] %v1577
                  %v1579 = vld [vmem:[%s1501 + $0x50] sm:$0xff]
                  %1580 = vst [vmem:[%s1502 + $0x68] sm:$0xff] %v1579
                  %v1581 = vld [vmem:[%s1501 + $0x58] sm:$0xff]
                  %1582 = vst [vmem:[%s1502 + $0x70] sm:$0xff] %v1581
                  %v1583 = vld [vmem:[%s1501 + $0x60] sm:$0xff]
                  %1584 = vst [vmem:[%s1502 + $0x78] sm:$0xff] %v1583
                  %v1585 = vld [vmem:[%s1501 + $0x68] sm:$0xff]
                  %1586 = vst [vmem:[%s1502 + $0x80] sm:$0xff] %v1585
                  %v1587 = vld [vmem:[%s1501 + $0x70] sm:$0xff]
                  %1588 = vst [vmem:[%s1502 + $0x88] sm:$0xff] %v1587
                  %v1589 = vld [vmem:[%s1501 + $0x78] sm:$0xff]
                  %1590 = vst [vmem:[%s1502 + $0x90] sm:$0xff] %v1589
                  %v1591 = vld [vmem:[%s1501 + $0x80] sm:$0xff]
                  %1592 = vst [vmem:[%s1502 + $0x98] sm:$0xff] %v1591
                  %v1593 = vld [vmem:[%s1501 + $0x88] sm:$0xff]
                  %1594 = vst [vmem:[%s1502 + $0xa0] sm:$0xff] %v1593
                  %v1595 = vld [vmem:[%s1501 + $0x90] sm:$0xff]
                  %1596 = vst [vmem:[%s1502 + $0xa8] sm:$0xff] %v1595
                  %v1597 = vld [vmem:[%s1501 + $0x98] sm:$0xff]
                  %1598 = vst [vmem:[%s1502 + $0xb0] sm:$0xff] %v1597
                  %v1599 = vld [vmem:[%s1501 + $0x30] sm:$0xff]
                  %1600 = vst [vmem:[%s1502 + $0x54] sm:$0xff] %v1599
                  %v1601 = vld [vmem:[%s1501 + $0x38] sm:$0xff]
                  %1602 = vst [vmem:[%s1502 + $0x5c] sm:$0xff] %v1601
                  %v1603 = vld [vmem:[%s1501 + $0x40] sm:$0xff]
                  %1604 = vst [vmem:[%s1502 + $0x64] sm:$0xff] %v1603
                  %v1605 = vld [vmem:[%s1501 + $0x48] sm:$0xff]
                  %1606 = vst [vmem:[%s1502 + $0x6c] sm:$0xff] %v1605
                  %v1607 = vld [vmem:[%s1501 + $0x50] sm:$0xff]
                  %1608 = vst [vmem:[%s1502 + $0x74] sm:$0xff] %v1607
                  %v1609 = vld [vmem:[%s1501 + $0x58] sm:$0xff]
                  %1610 = vst [vmem:[%s1502 + $0x7c] sm:$0xff] %v1609
                  %v1611 = vld [vmem:[%s1501 + $0x60] sm:$0xff]
                  %1612 = vst [vmem:[%s1502 + $0x84] sm:$0xff] %v1611
                  %v1613 = vld [vmem:[%s1501 + $0x68] sm:$0xff]
                  %1614 = vst [vmem:[%s1502 + $0x8c] sm:$0xff] %v1613
                  %v1615 = vld [vmem:[%s1501 + $0x70] sm:$0xff]
                  %1616 = vst [vmem:[%s1502 + $0x94] sm:$0xff] %v1615
                  %v1617 = vld [vmem:[%s1501 + $0x78] sm:$0xff]
                  %1618 = vst [vmem:[%s1502 + $0x9c] sm:$0xff] %v1617
                  %v1619 = vld [vmem:[%s1501 + $0x80] sm:$0xff]
                  %1620 = vst [vmem:[%s1502 + $0xa4] sm:$0xff] %v1619
                  %v1621 = vld [vmem:[%s1501 + $0x88] sm:$0xff]
                  %1622 = vst [vmem:[%s1502 + $0xac] sm:$0xff] %v1621
                  %v1623 = vld [vmem:[%s1501 + $0x90] sm:$0xff]
                  %1624 = vst [vmem:[%s1502 + $0xb4] sm:$0xff] %v1623
                  %v1625 = vld [vmem:[%s1501 + $0x98] sm:$0xff]
                  %1626 = vst [vmem:[%s1502 + $0xbc] sm:$0xff] %v1625
                  %v1627 = vld [vmem:[%s1501 + $0xa0] sm:$0xff]
                  %1628 = vst [vmem:[%s1502 + $0xc4] sm:$0xff] %v1627
                  %v1629 = vld [vmem:[%s1501 + $0xa8] sm:$0xff]
                  %1630 = vst [vmem:[%s1502 + $0xcc] sm:$0xff] %v1629
                  %s1631 = sadd.s32 1, %s1500
                  %p1632 = scmp.ge.s32.totalorder %s1631, %s1491
                  %s1633 = scalar_select %p1632, 0, %s1631
                  %s1634 = smul.u32 %s1633, 128
                  %s1635 = smul.u32 %s1633, 128
                  %s1636 = scalar_lea.vmem %s1445, %s1634 [#allocation3]
                  %s1637 = scalar_lea.vmem %s1456, %s1635
                $region130: #{nature_cnn_forward.4} parent=124 // loop_footer
                  %s1497 = sadd.s32 %s1495, 1
                $region131: #{nature_cnn_forward.4} parent=124 // loop_footer_branch
                  %1494 = sbr.rel target = $region127
                $region132: #{nature_cnn_forward.4} parent=124 // loop_exit
                  _
                %s1638 = sshrl.u32 %s1490, 4
                %s1639 = sand.u32 %s1490, 15
                %s1640 = smul.u32 %s1638, 16
                %s1641 = smul.u32 128, %s1640
                %s1642 = sshra.s32 %s1641, 4
                %s1643 = scalar_lea.vmem %s1445, %s1642 [#allocation3]
                %s1644 = smul.u32 128, %s1640
                %s1645 = sshra.s32 %s1644, 4
                %s1646 = scalar_lea.vmem %s1456, %s1645
                // While loop
                $region133: #{nature_cnn_forward.4} parent=124 // loop_pre_header
                  _
                $region134: #{nature_cnn_forward.4} parent=124 // loop_header
                  %s1650 = sphi 0, %s1652
                  %p1651 = scmp.ge.s32.totalorder %s1650, %s1639
                  %s1655 = sphi 0, %s1668
                  %s1656 = sphi %s1643, %s1671
                  %s1657 = sphi %s1646, %s1672
                $region135: #{nature_cnn_forward.4} parent=124 // loop_header_branch
                  %1654 = sbr.rel (%p1651) target = $region139
                $region136: #{nature_cnn_forward.4} parent=124 // loop_body
                  %v1658 = vld [vmem:[%s1656] sm:$0xff]
                  %1659 = vst [vmem:[%s1657] sm:$0xff] %v1658
                  %v1660 = vld [vmem:[%s1656 + $0x10] sm:$0xff]
                  %1661 = vst [vmem:[%s1657 + $0x1c] sm:$0xff] %v1660
                  %v1662 = vld [vmem:[%s1656 + $0x20] sm:$0xff]
                  %1663 = vst [vmem:[%s1657 + $0x38] sm:$0xff] %v1662
                  %v1664 = vld [vmem:[%s1656 + $0x30] sm:$0xff]
                  %1665 = vst [vmem:[%s1657 + $0x54] sm:$0xff] %v1664
                  %s1666 = sadd.s32 1, %s1655
                  %p1667 = scmp.ge.s32.totalorder %s1666, %s1639
                  %s1668 = scalar_select %p1667, 0, %s1666
                  %s1669 = smul.u32 %s1668, 8
                  %s1670 = smul.u32 %s1668, 8
                  %s1671 = scalar_lea.vmem %s1643, %s1669 [#allocation3]
                  %s1672 = scalar_lea.vmem %s1646, %s1670
                $region137: #{nature_cnn_forward.4} parent=124 // loop_footer
                  %s1652 = sadd.s32 %s1650, 1
                $region138: #{nature_cnn_forward.4} parent=124 // loop_footer_branch
                  %1649 = sbr.rel target = $region134
                $region139: #{nature_cnn_forward.4} parent=124 // loop_exit
                  _
              $region125: #{nature_cnn_forward.4} parent=109 // pred_fallthru
                _
              %p1673 = pneg %p1486
              // Predicated region
              $region140: #{nature_cnn_forward.4} parent=109 // pred_check
                _
              $region141: #{nature_cnn_forward.4} parent=109 // pred_check_branch
                %1675 = sbr.rel (%p1486) target = $region143
              $region142: #{nature_cnn_forward.4} parent=109 // pred_region
                %s1676 = sand.u32 %s1457, 7
                %s1677 = ssub.s32 %s1457, %s1676
                %s1678 = scalar_lea.vmem %s1445, %s1677 [#allocation3]
                %s1679 = ssub.s32 %s1457, %s1676
                %s1680 = scalar_lea.vmem %s1456, %s1679
                %s1681 = sshrl.u32 %s1457, 3
                %s1682 = sshrl.u32 %s1681, 4
                // While loop
                $region144: #{nature_cnn_forward.4} parent=142 // loop_pre_header
                  _
                $region145: #{nature_cnn_forward.4} parent=142 // loop_header
                  %s1686 = sphi 0, %s1688
                  %p1687 = scmp.ge.s32.totalorder %s1686, %s1682
                  %s1691 = sphi 0, %s1824
                  %s1692 = sphi %s1445, %s1827
                  %s1693 = sphi %s1456, %s1828
                $region146: #{nature_cnn_forward.4} parent=142 // loop_header_branch
                  %1690 = sbr.rel (%p1687) target = $region150
                $region147: #{nature_cnn_forward.4} parent=142 // loop_body
                  %v1694 = vld [vmem:[%s1692] sm:$0xff]
                  %1695 = vst [vmem:[%s1693] sm:$0xff] %v1694
                  %v1696 = vld [vmem:[%s1692 + $0x8] sm:$0xff]
                  %1697 = vst [vmem:[%s1693 + $0x8] sm:$0xff] %v1696
                  %v1698 = vld [vmem:[%s1692 + $0x10] sm:$0xff]
                  %1699 = vst [vmem:[%s1693 + $0x10] sm:$0xff] %v1698
                  %v1700 = vld [vmem:[%s1692 + $0x18] sm:$0xff]
                  %1701 = vst [vmem:[%s1693 + $0x18] sm:$0xff] %v1700
                  %v1702 = vld [vmem:[%s1692 + $0x20] sm:$0xff]
                  %1703 = vst [vmem:[%s1693 + $0x20] sm:$0xff] %v1702
                  %v1704 = vld [vmem:[%s1692 + $0x28] sm:$0xff]
                  %1705 = vst [vmem:[%s1693 + $0x28] sm:$0xff] %v1704
                  %v1706 = vld [vmem:[%s1692 + $0x30] sm:$0xff]
                  %1707 = vst [vmem:[%s1693 + $0x30] sm:$0xff] %v1706
                  %v1708 = vld [vmem:[%s1692 + $0x38] sm:$0xff]
                  %1709 = vst [vmem:[%s1693 + $0x38] sm:$0xff] %v1708
                  %v1710 = vld [vmem:[%s1692 + $0x40] sm:$0xff]
                  %1711 = vst [vmem:[%s1693 + $0x40] sm:$0xff] %v1710
                  %v1712 = vld [vmem:[%s1692 + $0x48] sm:$0xff]
                  %1713 = vst [vmem:[%s1693 + $0x48] sm:$0xff] %v1712
                  %v1714 = vld [vmem:[%s1692 + $0x50] sm:$0xff]
                  %1715 = vst [vmem:[%s1693 + $0x50] sm:$0xff] %v1714
                  %v1716 = vld [vmem:[%s1692 + $0x58] sm:$0xff]
                  %1717 = vst [vmem:[%s1693 + $0x58] sm:$0xff] %v1716
                  %v1718 = vld [vmem:[%s1692 + $0x60] sm:$0xff]
                  %1719 = vst [vmem:[%s1693 + $0x60] sm:$0xff] %v1718
                  %v1720 = vld [vmem:[%s1692 + $0x68] sm:$0xff]
                  %1721 = vst [vmem:[%s1693 + $0x68] sm:$0xff] %v1720
                  %v1722 = vld [vmem:[%s1692 + $0x70] sm:$0xff]
                  %1723 = vst [vmem:[%s1693 + $0x70] sm:$0xff] %v1722
                  %v1724 = vld [vmem:[%s1692 + $0x78] sm:$0xff]
                  %1725 = vst [vmem:[%s1693 + $0x78] sm:$0xff] %v1724
                  %v1726 = vld [vmem:[%s1692 + $0x10] sm:$0xff]
                  %1727 = vst [vmem:[%s1693 + $0x1c] sm:$0xff] %v1726
                  %v1728 = vld [vmem:[%s1692 + $0x18] sm:$0xff]
                  %1729 = vst [vmem:[%s1693 + $0x24] sm:$0xff] %v1728
                  %v1730 = vld [vmem:[%s1692 + $0x20] sm:$0xff]
                  %1731 = vst [vmem:[%s1693 + $0x2c] sm:$0xff] %v1730
                  %v1732 = vld [vmem:[%s1692 + $0x28] sm:$0xff]
                  %1733 = vst [vmem:[%s1693 + $0x34] sm:$0xff] %v1732
                  %v1734 = vld [vmem:[%s1692 + $0x30] sm:$0xff]
                  %1735 = vst [vmem:[%s1693 + $0x3c] sm:$0xff] %v1734
                  %v1736 = vld [vmem:[%s1692 + $0x38] sm:$0xff]
                  %1737 = vst [vmem:[%s1693 + $0x44] sm:$0xff] %v1736
                  %v1738 = vld [vmem:[%s1692 + $0x40] sm:$0xff]
                  %1739 = vst [vmem:[%s1693 + $0x4c] sm:$0xff] %v1738
                  %v1740 = vld [vmem:[%s1692 + $0x48] sm:$0xff]
                  %1741 = vst [vmem:[%s1693 + $0x54] sm:$0xff] %v1740
                  %v1742 = vld [vmem:[%s1692 + $0x50] sm:$0xff]
                  %1743 = vst [vmem:[%s1693 + $0x5c] sm:$0xff] %v1742
                  %v1744 = vld [vmem:[%s1692 + $0x58] sm:$0xff]
                  %1745 = vst [vmem:[%s1693 + $0x64] sm:$0xff] %v1744
                  %v1746 = vld [vmem:[%s1692 + $0x60] sm:$0xff]
                  %1747 = vst [vmem:[%s1693 + $0x6c] sm:$0xff] %v1746
                  %v1748 = vld [vmem:[%s1692 + $0x68] sm:$0xff]
                  %1749 = vst [vmem:[%s1693 + $0x74] sm:$0xff] %v1748
                  %v1750 = vld [vmem:[%s1692 + $0x70] sm:$0xff]
                  %1751 = vst [vmem:[%s1693 + $0x7c] sm:$0xff] %v1750
                  %v1752 = vld [vmem:[%s1692 + $0x78] sm:$0xff]
                  %1753 = vst [vmem:[%s1693 + $0x84] sm:$0xff] %v1752
                  %v1754 = vld [vmem:[%s1692 + $0x80] sm:$0xff]
                  %1755 = vst [vmem:[%s1693 + $0x8c] sm:$0xff] %v1754
                  %v1756 = vld [vmem:[%s1692 + $0x88] sm:$0xff]
                  %1757 = vst [vmem:[%s1693 + $0x94] sm:$0xff] %v1756
                  %v1758 = vld [vmem:[%s1692 + $0x20] sm:$0xff]
                  %1759 = vst [vmem:[%s1693 + $0x38] sm:$0xff] %v1758
                  %v1760 = vld [vmem:[%s1692 + $0x28] sm:$0xff]
                  %1761 = vst [vmem:[%s1693 + $0x40] sm:$0xff] %v1760
                  %v1762 = vld [vmem:[%s1692 + $0x30] sm:$0xff]
                  %1763 = vst [vmem:[%s1693 + $0x48] sm:$0xff] %v1762
                  %v1764 = vld [vmem:[%s1692 + $0x38] sm:$0xff]
                  %1765 = vst [vmem:[%s1693 + $0x50] sm:$0xff] %v1764
                  %v1766 = vld [vmem:[%s1692 + $0x40] sm:$0xff]
                  %1767 = vst [vmem:[%s1693 + $0x58] sm:$0xff] %v1766
                  %v1768 = vld [vmem:[%s1692 + $0x48] sm:$0xff]
                  %1769 = vst [vmem:[%s1693 + $0x60] sm:$0xff] %v1768
                  %v1770 = vld [vmem:[%s1692 + $0x50] sm:$0xff]
                  %1771 = vst [vmem:[%s1693 + $0x68] sm:$0xff] %v1770
                  %v1772 = vld [vmem:[%s1692 + $0x58] sm:$0xff]
                  %1773 = vst [vmem:[%s1693 + $0x70] sm:$0xff] %v1772
                  %v1774 = vld [vmem:[%s1692 + $0x60] sm:$0xff]
                  %1775 = vst [vmem:[%s1693 + $0x78] sm:$0xff] %v1774
                  %v1776 = vld [vmem:[%s1692 + $0x68] sm:$0xff]
                  %1777 = vst [vmem:[%s1693 + $0x80] sm:$0xff] %v1776
                  %v1778 = vld [vmem:[%s1692 + $0x70] sm:$0xff]
                  %1779 = vst [vmem:[%s1693 + $0x88] sm:$0xff] %v1778
                  %v1780 = vld [vmem:[%s1692 + $0x78] sm:$0xff]
                  %1781 = vst [vmem:[%s1693 + $0x90] sm:$0xff] %v1780
                  %v1782 = vld [vmem:[%s1692 + $0x80] sm:$0xff]
                  %1783 = vst [vmem:[%s1693 + $0x98] sm:$0xff] %v1782
                  %v1784 = vld [vmem:[%s1692 + $0x88] sm:$0xff]
                  %1785 = vst [vmem:[%s1693 + $0xa0] sm:$0xff] %v1784
                  %v1786 = vld [vmem:[%s1692 + $0x90] sm:$0xff]
                  %1787 = vst [vmem:[%s1693 + $0xa8] sm:$0xff] %v1786
                  %v1788 = vld [vmem:[%s1692 + $0x98] sm:$0xff]
                  %1789 = vst [vmem:[%s1693 + $0xb0] sm:$0xff] %v1788
                  %v1790 = vld [vmem:[%s1692 + $0x30] sm:$0xff]
                  %1791 = vst [vmem:[%s1693 + $0x54] sm:$0xff] %v1790
                  %v1792 = vld [vmem:[%s1692 + $0x38] sm:$0xff]
                  %1793 = vst [vmem:[%s1693 + $0x5c] sm:$0xff] %v1792
                  %v1794 = vld [vmem:[%s1692 + $0x40] sm:$0xff]
                  %1795 = vst [vmem:[%s1693 + $0x64] sm:$0xff] %v1794
                  %v1796 = vld [vmem:[%s1692 + $0x48] sm:$0xff]
                  %1797 = vst [vmem:[%s1693 + $0x6c] sm:$0xff] %v1796
                  %v1798 = vld [vmem:[%s1692 + $0x50] sm:$0xff]
                  %1799 = vst [vmem:[%s1693 + $0x74] sm:$0xff] %v1798
                  %v1800 = vld [vmem:[%s1692 + $0x58] sm:$0xff]
                  %1801 = vst [vmem:[%s1693 + $0x7c] sm:$0xff] %v1800
                  %v1802 = vld [vmem:[%s1692 + $0x60] sm:$0xff]
                  %1803 = vst [vmem:[%s1693 + $0x84] sm:$0xff] %v1802
                  %v1804 = vld [vmem:[%s1692 + $0x68] sm:$0xff]
                  %1805 = vst [vmem:[%s1693 + $0x8c] sm:$0xff] %v1804
                  %v1806 = vld [vmem:[%s1692 + $0x70] sm:$0xff]
                  %1807 = vst [vmem:[%s1693 + $0x94] sm:$0xff] %v1806
                  %v1808 = vld [vmem:[%s1692 + $0x78] sm:$0xff]
                  %1809 = vst [vmem:[%s1693 + $0x9c] sm:$0xff] %v1808
                  %v1810 = vld [vmem:[%s1692 + $0x80] sm:$0xff]
                  %1811 = vst [vmem:[%s1693 + $0xa4] sm:$0xff] %v1810
                  %v1812 = vld [vmem:[%s1692 + $0x88] sm:$0xff]
                  %1813 = vst [vmem:[%s1693 + $0xac] sm:$0xff] %v1812
                  %v1814 = vld [vmem:[%s1692 + $0x90] sm:$0xff]
                  %1815 = vst [vmem:[%s1693 + $0xb4] sm:$0xff] %v1814
                  %v1816 = vld [vmem:[%s1692 + $0x98] sm:$0xff]
                  %1817 = vst [vmem:[%s1693 + $0xbc] sm:$0xff] %v1816
                  %v1818 = vld [vmem:[%s1692 + $0xa0] sm:$0xff]
                  %1819 = vst [vmem:[%s1693 + $0xc4] sm:$0xff] %v1818
                  %v1820 = vld [vmem:[%s1692 + $0xa8] sm:$0xff]
                  %1821 = vst [vmem:[%s1693 + $0xcc] sm:$0xff] %v1820
                  %s1822 = sadd.s32 1, %s1691
                  %p1823 = scmp.ge.s32.totalorder %s1822, %s1682
                  %s1824 = scalar_select %p1823, 0, %s1822
                  %s1825 = smul.u32 %s1824, 128
                  %s1826 = smul.u32 %s1824, 128
                  %s1827 = scalar_lea.vmem %s1445, %s1825 [#allocation3]
                  %s1828 = scalar_lea.vmem %s1456, %s1826
                $region148: #{nature_cnn_forward.4} parent=142 // loop_footer
                  %s1688 = sadd.s32 %s1686, 1
                $region149: #{nature_cnn_forward.4} parent=142 // loop_footer_branch
                  %1685 = sbr.rel target = $region145
                $region150: #{nature_cnn_forward.4} parent=142 // loop_exit
                  _
                %s1829 = sshrl.u32 %s1681, 4
                %s1830 = sand.u32 %s1681, 15
                %s1831 = smul.u32 %s1829, 16
                %s1832 = smul.u32 128, %s1831
                %s1833 = sshra.s32 %s1832, 4
                %s1834 = scalar_lea.vmem %s1445, %s1833 [#allocation3]
                %s1835 = smul.u32 128, %s1831
                %s1836 = sshra.s32 %s1835, 4
                %s1837 = scalar_lea.vmem %s1456, %s1836
                // While loop
                $region151: #{nature_cnn_forward.4} parent=142 // loop_pre_header
                  _
                $region152: #{nature_cnn_forward.4} parent=142 // loop_header
                  %s1841 = sphi 0, %s1843
                  %p1842 = scmp.ge.s32.totalorder %s1841, %s1830
                  %s1846 = sphi 0, %s1859
                  %s1847 = sphi %s1834, %s1862
                  %s1848 = sphi %s1837, %s1863
                $region153: #{nature_cnn_forward.4} parent=142 // loop_header_branch
                  %1845 = sbr.rel (%p1842) target = $region157
                $region154: #{nature_cnn_forward.4} parent=142 // loop_body
                  %v1849 = vld [vmem:[%s1847] sm:$0xff]
                  %1850 = vst [vmem:[%s1848] sm:$0xff] %v1849
                  %v1851 = vld [vmem:[%s1847 + $0x10] sm:$0xff]
                  %1852 = vst [vmem:[%s1848 + $0x1c] sm:$0xff] %v1851
                  %v1853 = vld [vmem:[%s1847 + $0x20] sm:$0xff]
                  %1854 = vst [vmem:[%s1848 + $0x38] sm:$0xff] %v1853
                  %v1855 = vld [vmem:[%s1847 + $0x30] sm:$0xff]
                  %1856 = vst [vmem:[%s1848 + $0x54] sm:$0xff] %v1855
                  %s1857 = sadd.s32 1, %s1846
                  %p1858 = scmp.ge.s32.totalorder %s1857, %s1830
                  %s1859 = scalar_select %p1858, 0, %s1857
                  %s1860 = smul.u32 %s1859, 8
                  %s1861 = smul.u32 %s1859, 8
                  %s1862 = scalar_lea.vmem %s1834, %s1860 [#allocation3]
                  %s1863 = scalar_lea.vmem %s1837, %s1861
                $region155: #{nature_cnn_forward.4} parent=142 // loop_footer
                  %s1843 = sadd.s32 %s1841, 1
                $region156: #{nature_cnn_forward.4} parent=142 // loop_footer_branch
                  %1840 = sbr.rel target = $region152
                $region157: #{nature_cnn_forward.4} parent=142 // loop_exit
                  _
                %s1864 = sshllo.u32 0, %s1676
                loop: start=0, step=1, limit=1
                $region158: #{nature_cnn_forward.4} parent=142 // loop_pre_header
                  _
                $region159: #{nature_cnn_forward.4} parent=142 // loop_header
                  %s1866 = sphi 0, %s1870
                  %p1867 = scmp.ge.s32.totalorder %s1866, 1
                  %s1871 = sphi %s1678, %s1678
                  %s1872 = sphi %s1680, %s1680
                $region160: #{nature_cnn_forward.4} parent=142 // loop_header_branch
                  %1869 = sbr.rel (%p1867) target = $region164
                $region161: #{nature_cnn_forward.4} parent=142 // loop_body
                  %v1873 = vld [vmem:[%s1871] sm:%s1864]
                  %1874 = vst [vmem:[%s1872] sm:%s1864] %v1873
                  %v1875 = vld [vmem:[%s1871 + $0x10] sm:%s1864]
                  %1876 = vst [vmem:[%s1872 + $0x1c] sm:%s1864] %v1875
                  %v1877 = vld [vmem:[%s1871 + $0x20] sm:%s1864]
                  %1878 = vst [vmem:[%s1872 + $0x38] sm:%s1864] %v1877
                  %v1879 = vld [vmem:[%s1871 + $0x30] sm:%s1864]
                  %1880 = vst [vmem:[%s1872 + $0x54] sm:%s1864] %v1879
                $region162: #{nature_cnn_forward.4} parent=142 // loop_footer
                  %s1870 = sadd.s32 1, %s1866
                $region163: #{nature_cnn_forward.4} parent=142 // loop_footer_branch
                  %1865 = sbr.rel target = $region159
                $region164: #{nature_cnn_forward.4} parent=142 // loop_exit
                  _
              $region143: #{nature_cnn_forward.4} parent=109 // pred_fallthru
                _
            $region110: #{nature_cnn_forward.4} parent=105 // pred_fallthru
              _
            // Predicated region
            $region111: #{nature_cnn_forward.4} parent=105 // pred_check
              %p1465 = pneg %p1461
            $region112: #{nature_cnn_forward.4} parent=105 // pred_check_branch
              %1467 = sbr.rel (%p1465) target = $region114
            $region113: #{nature_cnn_forward.4} parent=105 // pred_region
              %s1468 = sshllo.u32 0, %s1457
              loop: start=0, step=1, limit=1
              $region115: #{nature_cnn_forward.4} parent=113 // loop_pre_header
                _
              $region116: #{nature_cnn_forward.4} parent=113 // loop_header
                %s1470 = sphi 0, %s1474
                %p1471 = scmp.ge.s32.totalorder %s1470, 1
                %s1475 = sphi %s1445, %s1445
                %s1476 = sphi %s1456, %s1456
              $region117: #{nature_cnn_forward.4} parent=113 // loop_header_branch
                %1473 = sbr.rel (%p1471) target = $region121
              $region118: #{nature_cnn_forward.4} parent=113 // loop_body
                %v1477 = vld [vmem:[%s1475] sm:%s1468]
                %1478 = vst [vmem:[%s1476] sm:%s1468] %v1477
                %v1479 = vld [vmem:[%s1475 + $0x10] sm:%s1468]
                %1480 = vst [vmem:[%s1476 + $0x1c] sm:%s1468] %v1479
                %v1481 = vld [vmem:[%s1475 + $0x20] sm:%s1468]
                %1482 = vst [vmem:[%s1476 + $0x38] sm:%s1468] %v1481
                %v1483 = vld [vmem:[%s1475 + $0x30] sm:%s1468]
                %1484 = vst [vmem:[%s1476 + $0x54] sm:%s1468] %v1483
              $region119: #{nature_cnn_forward.4} parent=113 // loop_footer
                %s1474 = sadd.s32 1, %s1470
              $region120: #{nature_cnn_forward.4} parent=113 // loop_footer_branch
                %1469 = sbr.rel target = $region116
              $region121: #{nature_cnn_forward.4} parent=113 // loop_exit
                _
            $region114: #{nature_cnn_forward.4} parent=105 // pred_fallthru
              _
          $region106: #{nature_cnn_forward.4} parent=101 // pred_fallthru
            _
          %1881 = vnop
        $region102: #{nature_cnn_forward.4} parent=93 // pred_fallthru
          _
      $region94: #{nature_cnn_forward.4} parent=5 // pred_fallthru
        _
      %p1882 = scmp.le.s32.totalorder 2, %s9
      // Predicated region
      $region165: #{nature_cnn_forward.4} parent=5 // pred_check
        %p1883 = pneg %p1882
      $region166: #{nature_cnn_forward.4} parent=5 // pred_check_branch
        %1885 = sbr.rel (%p1883) target = $region168
      $region167: #{nature_cnn_forward.4} parent=5 // pred_region
        %s1886 = ssub.s32 %s9, 2
        // Predicated region
        $region169: #{nature_cnn_forward.4} parent=167 // pred_check
          %p1887 = pneg %p106
        $region170: #{nature_cnn_forward.4} parent=167 // pred_check_branch
          %1889 = sbr.rel (%p1887) target = $region172
        $region171: #{nature_cnn_forward.4} parent=167 // pred_region
          %s1890 = sand.u32 %s91, 1
          %s1891 = sand.u32 %s91, 1
          %s1892 = smul.addr %s1891, 64
          %s1893 = scalar_lea.vmem [#allocation3], %s1892
        $region172: #{nature_cnn_forward.4} parent=167 // pred_fallthru
          _
      $region168: #{nature_cnn_forward.4} parent=5 // pred_fallthru
        _
    $region6: #{nature_cnn_forward.4} parent=1 // loop_footer
      %s13 = sadd.s32 1, %s9
    $region7: #{nature_cnn_forward.4} parent=1 // loop_footer_branch
      %8 = sbr.rel target = $region3
    $region8: #{nature_cnn_forward.4} parent=1 // loop_exit
      _

// kernel: nature_cnn_forward.5
$region0: #{nature_cnn_forward.5}
  #allocation0 [shape = 'u32[]', space=smem, size = 0x4, offset = 0x4, fixed_abs, tag = 'smem constant byte address 0x4 - core index']
  #allocation1 [shape = 'u32[144,128]{1,0:T(1,128)}', space=vmem, size = 0x12000, scoped, tag = 'internal scratch']
  %s0 = inlined_call_operand.vmem [shape: bf16[512,162], index: 0, kind: input, shape index: {}]
  %s1 = inlined_call_operand.vmem [shape: bf16[64,512], index: 1, kind: input, shape index: {}]
  %s2 = inlined_call_operand.vmem [shape: f32[64,1], index: 2, kind: input, shape index: {}]
  %s3 = inlined_call_operand.vmem [shape: bf16[64,162], index: 3, kind: output, shape index: {}]
  %s4 = sld [smem:[#allocation0]]
  $region22: #{nature_cnn_forward.5} parent=0
    _
  %s6 = ssub.s32 1, %s4
  %s7 = scalar_select 0, %s6, %s4
  // Predicated region
  $region2: #{nature_cnn_forward.5} parent=0 // pred_check
    _
  $region3: #{nature_cnn_forward.5} parent=0 // pred_check_branch
    %9 = sbr.rel (0) target = $region5
  $region4: #{nature_cnn_forward.5} parent=0 // pred_region
    _
  $region5: #{nature_cnn_forward.5} parent=0 // pred_fallthru
    _
  // Predicated region
  $region6: #{nature_cnn_forward.5} parent=0 // pred_check
    _
  $region7: #{nature_cnn_forward.5} parent=0 // pred_check_branch
    %11 = sbr.rel (0) target = $region9
  $region8: #{nature_cnn_forward.5} parent=0 // pred_region
    _
  $region9: #{nature_cnn_forward.5} parent=0 // pred_fallthru
    _
  // Predicated region
  $region10: #{nature_cnn_forward.5} parent=0 // pred_check
    _
  $region11: #{nature_cnn_forward.5} parent=0 // pred_check_branch
    %13 = sbr.rel (0) target = $region13
  $region12: #{nature_cnn_forward.5} parent=0 // pred_region
    _
  $region13: #{nature_cnn_forward.5} parent=0 // pred_fallthru
    _
  %v14 = vld [vmem:[%s1] sm:$0xff]
  %v15 = vld [vmem:[%s1 + $0x8] sm:$0xff]
  %v16 = vld [vmem:[%s1 + $0x10] sm:$0xff]
  %v17 = vld [vmem:[%s1 + $0x18] sm:$0xff]
  %v18 = vld [vmem:[%s1 + $0x20] sm:$0xff]
  %v19 = vld [vmem:[%s1 + $0x28] sm:$0xff]
  %v20 = vld [vmem:[%s1 + $0x30] sm:$0xff]
  %v21 = vld [vmem:[%s1 + $0x38] sm:$0xff]
  %v22 = vld [vmem:[%s1 + $0x40] sm:$0xff]
  %v23 = vld [vmem:[%s1 + $0x48] sm:$0xff]
  %v24 = vld [vmem:[%s1 + $0x50] sm:$0xff]
  %v25 = vld [vmem:[%s1 + $0x58] sm:$0xff]
  %v26 = vld [vmem:[%s1 + $0x60] sm:$0xff]
  %v27 = vld [vmem:[%s1 + $0x68] sm:$0xff]
  %v28 = vld [vmem:[%s1 + $0x70] sm:$0xff]
  %v29 = vld [vmem:[%s1 + $0x78] sm:$0xff]
  %v30 = vld [vmem:[%s0] sm:$0xff]
  %v31 = vld [vmem:[%s0 + $0x8] sm:$0xff]
  %v32 = vld [vmem:[%s0 + $0x10] sm:$0xff]
  %v33 = vld [vmem:[%s0 + $0x18] sm:$0xff]
  %v34 = vld [vmem:[%s0 + $0x20] sm:$0xff]
  %v35 = vld [vmem:[%s0 + $0x28] sm:$0xff]
  %v36 = vld [vmem:[%s0 + $0x30] sm:$0xff]
  %v37 = vld [vmem:[%s0 + $0x38] sm:$0xff]
  %v38 = vld [vmem:[%s0 + $0x40] sm:$0xff]
  %v39 = vld [vmem:[%s0 + $0x48] sm:$0xff]
  %v40 = vld [vmem:[%s0 + $0x50] sm:$0xff]
  %v41 = vld [vmem:[%s0 + $0x58] sm:$0xff]
  %v42 = vld [vmem:[%s0 + $0x60] sm:$0xff]
  %v43 = vld [vmem:[%s0 + $0x68] sm:$0xff]
  %v44 = vld [vmem:[%s0 + $0x70] sm:$0xff]
  %v45 = vld [vmem:[%s0 + $0x78] sm:$0xff]
  %v46 = vld [vmem:[%s0 + $0x80] sm:$0xff]
  %v47 = vld [vmem:[%s0 + $0x88] sm:$0xff]
  %v48 = vld [vmem:[%s0 + $0x90] sm:$0xff]
  %v49 = vld [vmem:[%s0 + $0x98] sm:$0xff]
  %v50 = vld [vmem:[%s0 + $0xa0] sm:$0xff]
  %v51 = vld [vmem:[%s0 + $0xa8] sm:$0xff]
  %v52 = vld [vmem:[%s0 + $0xb0] sm:$0xff]
  %v53 = vld [vmem:[%s0 + $0xb8] sm:$0xff]
  %v54 = vld [vmem:[%s0 + $0xc0] sm:$0xff]
  %v55 = vld [vmem:[%s0 + $0xc8] sm:$0xff]
  %v56 = vld [vmem:[%s0 + $0xd0] sm:$0xff]
  %v57 = vld [vmem:[%s0 + $0xd8] sm:$0xff]
  %v58 = vld [vmem:[%s0 + $0xe0] sm:$0xff]
  %v59 = vld [vmem:[%s0 + $0xe8] sm:$0xff]
  %v60 = vld [vmem:[%s0 + $0xf0] sm:$0xff]
  %v61 = vld [vmem:[%s0 + $0xf8] sm:$0xff]
  %v62 = vld [vmem:[%s0 + $0x100] sm:$0xff]
  %v63 = vld [vmem:[%s0 + $0x108] sm:$0xff]
  %v64 = vld [vmem:[%s0 + $0x110] sm:$0xff]
  %v65 = vld [vmem:[%s0 + $0x118] sm:$0xff]
  %v66 = vld [vmem:[%s0 + $0x120] sm:$0xff]
  %v67 = vld [vmem:[%s0 + $0x128] sm:$0xff]
  %v68 = vld [vmem:[%s0 + $0x130] sm:$0xff]
  %v69 = vld [vmem:[%s0 + $0x138] sm:$0xff]
  %v70 = vld [vmem:[%s0 + $0x140] sm:$0xff]
  %v71 = vld [vmem:[%s0 + $0x148] sm:$0xff]
  %v72 = vld [vmem:[%s0 + $0x150] sm:$0xff]
  %v73 = vld [vmem:[%s0 + $0x158] sm:$0xff]
  %v74 = vld [vmem:[%s0 + $0x160] sm:$0xff]
  %v75 = vld [vmem:[%s0 + $0x168] sm:$0xff]
  %v76 = vld [vmem:[%s0 + $0x170] sm:$0xff]
  %v77 = vld [vmem:[%s0 + $0x178] sm:$0xff]
  %v78 = vld [vmem:[%s0 + $0x180] sm:$0xff]
  %v79 = vld [vmem:[%s0 + $0x188] sm:$0xff]
  %v80 = vld [vmem:[%s0 + $0x190] sm:$0xff]
  %v81 = vld [vmem:[%s0 + $0x198] sm:$0xff]
  %v82 = vld [vmem:[%s0 + $0x1a0] sm:$0xff]
  %v83 = vld [vmem:[%s0 + $0x1a8] sm:$0xff]
  %v84 = vld [vmem:[%s0 + $0x1b0] sm:$0xff]
  %v85 = vld [vmem:[%s0 + $0x1b8] sm:$0xff]
  %v86 = vld [vmem:[%s0 + $0x1c0] sm:$0xff]
  %v87 = vld [vmem:[%s0 + $0x1c8] sm:$0xff]
  %v88 = vld [vmem:[%s0 + $0x1d0] sm:$0xff]
  %v89 = vld [vmem:[%s0 + $0x1d8] sm:$0xff]
  %v90 = vld [vmem:[%s0 + $0x1e0] sm:$0xff]
  %v91 = vld [vmem:[%s0 + $0x1e8] sm:$0xff]
  %v92 = vld [vmem:[%s0 + $0x1f0] sm:$0xff]
  %v93 = vld [vmem:[%s0 + $0x1f8] sm:$0xff]
  %v94 = vld [vmem:[%s2] sm:$0xff]
  %v95 = vld [vmem:[%s2 + $0x8] sm:$0xff]
  %v96 = vld [vmem:[%s2 + $0x10] sm:$0xff]
  %v97 = vld [vmem:[%s2 + $0x18] sm:$0xff]
  %v98 = vld [vmem:[%s2 + $0x20] sm:$0xff]
  %v99 = vld [vmem:[%s2 + $0x28] sm:$0xff]
  %v100 = vld [vmem:[%s2 + $0x30] sm:$0xff]
  %v101 = vld [vmem:[%s2 + $0x38] sm:$0xff]
  %103 = vset.pattern.permute.xlu0 0
  %104 = vperm.xlu0 %103, %v94
  %v105 = vpop.permute.xlu0 %104
  %108 = vset.pattern.permute.xlu0 0
  %109 = vperm.xlu0 %108, %v95
  %v110 = vpop.permute.xlu0 %109
  %113 = vset.pattern.permute.xlu0 0
  %114 = vperm.xlu0 %113, %v96
  %v115 = vpop.permute.xlu0 %114
  %118 = vset.pattern.permute.xlu0 0
  %119 = vperm.xlu0 %118, %v97
  %v120 = vpop.permute.xlu0 %119
  %123 = vset.pattern.permute.xlu0 0
  %124 = vperm.xlu0 %123, %v98
  %v125 = vpop.permute.xlu0 %124
  %128 = vset.pattern.permute.xlu0 0
  %129 = vperm.xlu0 %128, %v99
  %v130 = vpop.permute.xlu0 %129
  %133 = vset.pattern.permute.xlu0 0
  %134 = vperm.xlu0 %133, %v100
  %v135 = vpop.permute.xlu0 %134
  %138 = vset.pattern.permute.xlu0 0
  %139 = vperm.xlu0 %138, %v101
  %v140 = vpop.permute.xlu0 %139
  %v158 = vunpack.c.l.b16 %v14
  %v159 = vunpack.c.h.b16 %v14
  %v160 = vunpack.c.l.b16 %v15
  %v161 = vunpack.c.h.b16 %v15
  %v162 = vunpack.c.l.b16 %v16
  %v163 = vunpack.c.h.b16 %v16
  %v164 = vunpack.c.l.b16 %v17
  %v165 = vunpack.c.h.b16 %v17
  %v166 = vunpack.c.l.b16 %v18
  %v167 = vunpack.c.h.b16 %v18
  %v168 = vunpack.c.l.b16 %v19
  %v169 = vunpack.c.h.b16 %v19
  %v170 = vunpack.c.l.b16 %v20
  %v171 = vunpack.c.h.b16 %v20
  %v172 = vunpack.c.l.b16 %v21
  %v173 = vunpack.c.h.b16 %v21
  %v174 = vunpack.c.l.b16 %v22
  %v175 = vunpack.c.h.b16 %v22
  %v176 = vunpack.c.l.b16 %v23
  %v177 = vunpack.c.h.b16 %v23
  %v178 = vunpack.c.l.b16 %v24
  %v179 = vunpack.c.h.b16 %v24
  %v180 = vunpack.c.l.b16 %v25
  %v181 = vunpack.c.h.b16 %v25
  %v182 = vunpack.c.l.b16 %v26
  %v183 = vunpack.c.h.b16 %v26
  %v184 = vunpack.c.l.b16 %v27
  %v185 = vunpack.c.h.b16 %v27
  %v186 = vunpack.c.l.b16 %v28
  %v187 = vunpack.c.h.b16 %v28
  %v188 = vunpack.c.l.b16 %v29
  %v189 = vunpack.c.h.b16 %v29
  %v190 = vpack.c.b16 %v162, %v158
  %v191 = vpack.c.b16 %v163, %v159
  %v192 = vpack.c.b16 %v164, %v160
  %v193 = vpack.c.b16 %v165, %v161
  %v194 = vpack.c.b16 %v170, %v166
  %v195 = vpack.c.b16 %v171, %v167
  %v196 = vpack.c.b16 %v172, %v168
  %v197 = vpack.c.b16 %v173, %v169
  %v198 = vpack.c.b16 %v178, %v174
  %v199 = vpack.c.b16 %v179, %v175
  %v200 = vpack.c.b16 %v180, %v176
  %v201 = vpack.c.b16 %v181, %v177
  %v202 = vpack.c.b16 %v186, %v182
  %v203 = vpack.c.b16 %v187, %v183
  %v204 = vpack.c.b16 %v188, %v184
  %v205 = vpack.c.b16 %v189, %v185
  %v286 = vunpack.c.l.b16 %v30
  %v287 = vunpack.c.h.b16 %v30
  %v288 = vunpack.c.l.b16 %v31
  %v289 = vunpack.c.h.b16 %v31
  %v290 = vunpack.c.l.b16 %v32
  %v291 = vunpack.c.h.b16 %v32
  %v292 = vunpack.c.l.b16 %v33
  %v293 = vunpack.c.h.b16 %v33
  %v294 = vunpack.c.l.b16 %v34
  %v295 = vunpack.c.h.b16 %v34
  %v296 = vunpack.c.l.b16 %v35
  %v297 = vunpack.c.h.b16 %v35
  %v298 = vunpack.c.l.b16 %v36
  %v299 = vunpack.c.h.b16 %v36
  %v300 = vunpack.c.l.b16 %v37
  %v301 = vunpack.c.h.b16 %v37
  %v302 = vunpack.c.l.b16 %v38
  %v303 = vunpack.c.h.b16 %v38
  %v304 = vunpack.c.l.b16 %v39
  %v305 = vunpack.c.h.b16 %v39
  %v306 = vunpack.c.l.b16 %v40
  %v307 = vunpack.c.h.b16 %v40
  %v308 = vunpack.c.l.b16 %v41
  %v309 = vunpack.c.h.b16 %v41
  %v310 = vunpack.c.l.b16 %v42
  %v311 = vunpack.c.h.b16 %v42
  %v312 = vunpack.c.l.b16 %v43
  %v313 = vunpack.c.h.b16 %v43
  %v314 = vunpack.c.l.b16 %v44
  %v315 = vunpack.c.h.b16 %v44
  %v316 = vunpack.c.l.b16 %v45
  %v317 = vunpack.c.h.b16 %v45
  %v318 = vunpack.c.l.b16 %v46
  %v319 = vunpack.c.h.b16 %v46
  %v320 = vunpack.c.l.b16 %v47
  %v321 = vunpack.c.h.b16 %v47
  %v322 = vunpack.c.l.b16 %v48
  %v323 = vunpack.c.h.b16 %v48
  %v324 = vunpack.c.l.b16 %v49
  %v325 = vunpack.c.h.b16 %v49
  %v326 = vunpack.c.l.b16 %v50
  %v327 = vunpack.c.h.b16 %v50
  %v328 = vunpack.c.l.b16 %v51
  %v329 = vunpack.c.h.b16 %v51
  %v330 = vunpack.c.l.b16 %v52
  %v331 = vunpack.c.h.b16 %v52
  %v332 = vunpack.c.l.b16 %v53
  %v333 = vunpack.c.h.b16 %v53
  %v334 = vunpack.c.l.b16 %v54
  %v335 = vunpack.c.h.b16 %v54
  %v336 = vunpack.c.l.b16 %v55
  %v337 = vunpack.c.h.b16 %v55
  %v338 = vunpack.c.l.b16 %v56
  %v339 = vunpack.c.h.b16 %v56
  %v340 = vunpack.c.l.b16 %v57
  %v341 = vunpack.c.h.b16 %v57
  %v342 = vunpack.c.l.b16 %v58
  %v343 = vunpack.c.h.b16 %v58
  %v344 = vunpack.c.l.b16 %v59
  %v345 = vunpack.c.h.b16 %v59
  %v346 = vunpack.c.l.b16 %v60
  %v347 = vunpack.c.h.b16 %v60
  %v348 = vunpack.c.l.b16 %v61
  %v349 = vunpack.c.h.b16 %v61
  %v350 = vunpack.c.l.b16 %v62
  %v351 = vunpack.c.h.b16 %v62
  %v352 = vunpack.c.l.b16 %v63
  %v353 = vunpack.c.h.b16 %v63
  %v354 = vunpack.c.l.b16 %v64
  %v355 = vunpack.c.h.b16 %v64
  %v356 = vunpack.c.l.b16 %v65
  %v357 = vunpack.c.h.b16 %v65
  %v358 = vunpack.c.l.b16 %v66
  %v359 = vunpack.c.h.b16 %v66
  %v360 = vunpack.c.l.b16 %v67
  %v361 = vunpack.c.h.b16 %v67
  %v362 = vunpack.c.l.b16 %v68
  %v363 = vunpack.c.h.b16 %v68
  %v364 = vunpack.c.l.b16 %v69
  %v365 = vunpack.c.h.b16 %v69
  %v366 = vunpack.c.l.b16 %v70
  %v367 = vunpack.c.h.b16 %v70
  %v368 = vunpack.c.l.b16 %v71
  %v369 = vunpack.c.h.b16 %v71
  %v370 = vunpack.c.l.b16 %v72
  %v371 = vunpack.c.h.b16 %v72
  %v372 = vunpack.c.l.b16 %v73
  %v373 = vunpack.c.h.b16 %v73
  %v374 = vunpack.c.l.b16 %v74
  %v375 = vunpack.c.h.b16 %v74
  %v376 = vunpack.c.l.b16 %v75
  %v377 = vunpack.c.h.b16 %v75
  %v378 = vunpack.c.l.b16 %v76
  %v379 = vunpack.c.h.b16 %v76
  %v380 = vunpack.c.l.b16 %v77
  %v381 = vunpack.c.h.b16 %v77
  %v382 = vunpack.c.l.b16 %v78
  %v383 = vunpack.c.h.b16 %v78
  %v384 = vunpack.c.l.b16 %v79
  %v385 = vunpack.c.h.b16 %v79
  %v386 = vunpack.c.l.b16 %v80
  %v387 = vunpack.c.h.b16 %v80
  %v388 = vunpack.c.l.b16 %v81
  %v389 = vunpack.c.h.b16 %v81
  %v390 = vunpack.c.l.b16 %v82
  %v391 = vunpack.c.h.b16 %v82
  %v392 = vunpack.c.l.b16 %v83
  %v393 = vunpack.c.h.b16 %v83
  %v394 = vunpack.c.l.b16 %v84
  %v395 = vunpack.c.h.b16 %v84
  %v396 = vunpack.c.l.b16 %v85
  %v397 = vunpack.c.h.b16 %v85
  %v398 = vunpack.c.l.b16 %v86
  %v399 = vunpack.c.h.b16 %v86
  %v400 = vunpack.c.l.b16 %v87
  %v401 = vunpack.c.h.b16 %v87
  %v402 = vunpack.c.l.b16 %v88
  %v403 = vunpack.c.h.b16 %v88
  %v404 = vunpack.c.l.b16 %v89
  %v405 = vunpack.c.h.b16 %v89
  %v406 = vunpack.c.l.b16 %v90
  %v407 = vunpack.c.h.b16 %v90
  %v408 = vunpack.c.l.b16 %v91
  %v409 = vunpack.c.h.b16 %v91
  %v410 = vunpack.c.l.b16 %v92
  %v411 = vunpack.c.h.b16 %v92
  %v412 = vunpack.c.l.b16 %v93
  %v413 = vunpack.c.h.b16 %v93
  %v414 = vpack.c.b16 %v288, %v286
  %v415 = vpack.c.b16 %v289, %v287
  %v416 = vpack.c.b16 %v292, %v290
  %v417 = vpack.c.b16 %v293, %v291
  %v418 = vpack.c.b16 %v296, %v294
  %v419 = vpack.c.b16 %v297, %v295
  %v420 = vpack.c.b16 %v300, %v298
  %v421 = vpack.c.b16 %v301, %v299
  %v422 = vpack.c.b16 %v304, %v302
  %v423 = vpack.c.b16 %v305, %v303
  %v424 = vpack.c.b16 %v308, %v306
  %v425 = vpack.c.b16 %v309, %v307
  %v426 = vpack.c.b16 %v312, %v310
  %v427 = vpack.c.b16 %v313, %v311
  %v428 = vpack.c.b16 %v316, %v314
  %v429 = vpack.c.b16 %v317, %v315
  %v430 = vpack.c.b16 %v320, %v318
  %v431 = vpack.c.b16 %v321, %v319
  %v432 = vpack.c.b16 %v324, %v322
  %v433 = vpack.c.b16 %v325, %v323
  %v434 = vpack.c.b16 %v328, %v326
  %v435 = vpack.c.b16 %v329, %v327
  %v436 = vpack.c.b16 %v332, %v330
  %v437 = vpack.c.b16 %v333, %v331
  %v438 = vpack.c.b16 %v336, %v334
  %v439 = vpack.c.b16 %v337, %v335
  %v440 = vpack.c.b16 %v340, %v338
  %v441 = vpack.c.b16 %v341, %v339
  %v442 = vpack.c.b16 %v344, %v342
  %v443 = vpack.c.b16 %v345, %v343
  %v444 = vpack.c.b16 %v348, %v346
  %v445 = vpack.c.b16 %v349, %v347
  %v446 = vpack.c.b16 %v352, %v350
  %v447 = vpack.c.b16 %v353, %v351
  %v448 = vpack.c.b16 %v356, %v354
  %v449 = vpack.c.b16 %v357, %v355
  %v450 = vpack.c.b16 %v360, %v358
  %v451 = vpack.c.b16 %v361, %v359
  %v452 = vpack.c.b16 %v364, %v362
  %v453 = vpack.c.b16 %v365, %v363
  %v454 = vpack.c.b16 %v368, %v366
  %v455 = vpack.c.b16 %v369, %v367
  %v456 = vpack.c.b16 %v372, %v370
  %v457 = vpack.c.b16 %v373, %v371
  %v458 = vpack.c.b16 %v376, %v374
  %v459 = vpack.c.b16 %v377, %v375
  %v460 = vpack.c.b16 %v380, %v378
  %v461 = vpack.c.b16 %v381, %v379
  %v462 = vpack.c.b16 %v384, %v382
  %v463 = vpack.c.b16 %v385, %v383
  %v464 = vpack.c.b16 %v388, %v386
  %v465 = vpack.c.b16 %v389, %v387
  %v466 = vpack.c.b16 %v392, %v390
  %v467 = vpack.c.b16 %v393, %v391
  %v468 = vpack.c.b16 %v396, %v394
  %v469 = vpack.c.b16 %v397, %v395
  %v470 = vpack.c.b16 %v400, %v398
  %v471 = vpack.c.b16 %v401, %v399
  %v472 = vpack.c.b16 %v404, %v402
  %v473 = vpack.c.b16 %v405, %v403
  %v474 = vpack.c.b16 %v408, %v406
  %v475 = vpack.c.b16 %v409, %v407
  %v476 = vpack.c.b16 %v412, %v410
  %v477 = vpack.c.b16 %v413, %v411
  %542 = vmatprep.subr.bf16.mxu0 %v415
  %543 = vmatpush1.bf16.msra.mxu0 %v414
  %544 = vmatprep.subr.bf16.mxu0 %v417
  %545 = vmatpush1.bf16.msra.mxu0 %v416
  %546 = vmatprep.subr.bf16.mxu0 %v419
  %547 = vmatpush1.bf16.msra.mxu0 %v418
  %548 = vmatprep.subr.bf16.mxu0 %v421
  %549 = vmatpush1.bf16.msra.mxu0 %v420
  %550 = vmatprep.subr.bf16.mxu0 %v423
  %551 = vmatpush1.bf16.msra.mxu0 %v422
  %552 = vmatprep.subr.bf16.mxu0 %v425
  %553 = vmatpush1.bf16.msra.mxu0 %v424
  %554 = vmatprep.subr.bf16.mxu0 %v427
  %555 = vmatpush1.bf16.msra.mxu0 %v426
  %556 = vmatprep.subr.bf16.mxu0 %v429
  %557 = vmatpush1.bf16.msra.mxu0 %v428
  %558 = vmatprep.subr.bf16.mxu0 %v431
  %559 = vmatpush1.bf16.msra.mxu0 %v430
  %560 = vmatprep.subr.bf16.mxu0 %v433
  %561 = vmatpush1.bf16.msra.mxu0 %v432
  %562 = vmatprep.subr.bf16.mxu0 %v435
  %563 = vmatpush1.bf16.msra.mxu0 %v434
  %564 = vmatprep.subr.bf16.mxu0 %v437
  %565 = vmatpush1.bf16.msra.mxu0 %v436
  %566 = vmatprep.subr.bf16.mxu0 %v439
  %567 = vmatpush1.bf16.msra.mxu0 %v438
  %568 = vmatprep.subr.bf16.mxu0 %v441
  %569 = vmatpush1.bf16.msra.mxu0 %v440
  %570 = vmatprep.subr.bf16.mxu0 %v443
  %571 = vmatpush1.bf16.msra.mxu0 %v442
  %572 = vmatprep.subr.bf16.mxu0 %v445
  %573 = vmatpush1.bf16.msra.mxu0 %v444
  %574 = vmatprep.mubr.bf16.mxu0 %v191
  %575 = vmatmul.mubr.bf16.gmra.mrb[0].mxu0 %v190
  %v576 = vpop.f32.mrb[0].mxu0
  %v577 = vadd.f32 %v105, %v576
  %v578 = vpop.f32.mrb[0].mxu0
  %v579 = vadd.f32 %v105, %v578
  %v580 = vpop.f32.mrb[0].mxu0
  %v581 = vadd.f32 %v110, %v580
  %v582 = vpop.f32.mrb[0].mxu0
  %v583 = vadd.f32 %v110, %v582
  %584 = vmatprep.mubr.bf16.mxu0 %v195
  %585 = vmatmul.mubr.bf16.gmra.mrb[0].mxu0 %v194
  %v586 = vpop.f32.mrb[0].mxu0
  %v587 = vadd.f32 %v115, %v586
  %v588 = vpop.f32.mrb[0].mxu0
  %v589 = vadd.f32 %v115, %v588
  %v590 = vpop.f32.mrb[0].mxu0
  %v591 = vadd.f32 %v120, %v590
  %v592 = vpop.f32.mrb[0].mxu0
  %v593 = vadd.f32 %v120, %v592
  %594 = vmatprep.mubr.bf16.mxu0 %v199
  %595 = vmatmul.mubr.bf16.gmra.mrb[0].mxu0 %v198
  %v596 = vpop.f32.mrb[0].mxu0
  %v597 = vadd.f32 %v125, %v596
  %v598 = vpop.f32.mrb[0].mxu0
  %v599 = vadd.f32 %v125, %v598
  %v600 = vpop.f32.mrb[0].mxu0
  %v601 = vadd.f32 %v130, %v600
  %v602 = vpop.f32.mrb[0].mxu0
  %v603 = vadd.f32 %v130, %v602
  %604 = vmatprep.mubr.bf16.mxu0 %v203
  %605 = vmatmul.mubr.bf16.gmra.mrb[0].mxu0 %v202
  %v606 = vpop.f32.mrb[0].mxu0
  %v607 = vadd.f32 %v135, %v606
  %v608 = vpop.f32.mrb[0].mxu0
  %v609 = vadd.f32 %v135, %v608
  %v610 = vpop.f32.mrb[0].mxu0
  %v611 = vadd.f32 %v140, %v610
  %v612 = vpop.f32.mrb[0].mxu0
  %v613 = vadd.f32 %v140, %v612
  %614 = vdwg.mxu0
  %615 = vmatprep.subr.bf16.mxu0 %v447
  %616 = vmatpush1.bf16.msra.mxu0 %v446
  %617 = vmatprep.subr.bf16.mxu0 %v449
  %618 = vmatpush1.bf16.msra.mxu0 %v448
  %619 = vmatprep.subr.bf16.mxu0 %v451
  %620 = vmatpush1.bf16.msra.mxu0 %v450
  %621 = vmatprep.subr.bf16.mxu0 %v453
  %622 = vmatpush1.bf16.msra.mxu0 %v452
  %623 = vmatprep.subr.bf16.mxu0 %v455
  %624 = vmatpush1.bf16.msra.mxu0 %v454
  %625 = vmatprep.subr.bf16.mxu0 %v457
  %626 = vmatpush1.bf16.msra.mxu0 %v456
  %627 = vmatprep.subr.bf16.mxu0 %v459
  %628 = vmatpush1.bf16.msra.mxu0 %v458
  %629 = vmatprep.subr.bf16.mxu0 %v461
  %630 = vmatpush1.bf16.msra.mxu0 %v460
  %631 = vmatprep.subr.bf16.mxu0 %v463
  %632 = vmatpush1.bf16.msra.mxu0 %v462
  %633 = vmatprep.subr.bf16.mxu0 %v465
  %634 = vmatpush1.bf16.msra.mxu0 %v464
  %635 = vmatprep.subr.bf16.mxu0 %v467
  %636 = vmatpush1.bf16.msra.mxu0 %v466
  %637 = vmatprep.subr.bf16.mxu0 %v469
  %638 = vmatpush1.bf16.msra.mxu0 %v468
  %639 = vmatprep.subr.bf16.mxu0 %v471
  %640 = vmatpush1.bf16.msra.mxu0 %v470
  %641 = vmatprep.subr.bf16.mxu0 %v473
  %642 = vmatpush1.bf16.msra.mxu0 %v472
  %643 = vmatprep.subr.bf16.mxu0 %v475
  %644 = vmatpush1.bf16.msra.mxu0 %v474
  %645 = vmatprep.subr.bf16.mxu0 %v477
  %646 = vmatpush1.bf16.msra.mxu0 %v476
  %647 = vmatprep.mubr.bf16.mxu0 %v193
  %648 = vmatmul.mubr.bf16.gmra.mrb[0].mxu0 %v192
  %v649 = vpop.f32.mrb[0].mxu0
  %v650 = vadd.f32 %v577, %v649
  %v651 = vpop.f32.mrb[0].mxu0
  %v652 = vadd.f32 %v579, %v651
  %v653 = vpop.f32.mrb[0].mxu0
  %v654 = vadd.f32 %v581, %v653
  %v655 = vpop.f32.mrb[0].mxu0
  %v656 = vadd.f32 %v583, %v655
  %657 = vmatprep.mubr.bf16.mxu0 %v197
  %658 = vmatmul.mubr.bf16.gmra.mrb[0].mxu0 %v196
  %v659 = vpop.f32.mrb[0].mxu0
  %v660 = vadd.f32 %v587, %v659
  %v661 = vpop.f32.mrb[0].mxu0
  %v662 = vadd.f32 %v589, %v661
  %v663 = vpop.f32.mrb[0].mxu0
  %v664 = vadd.f32 %v591, %v663
  %v665 = vpop.f32.mrb[0].mxu0
  %v666 = vadd.f32 %v593, %v665
  %667 = vmatprep.mubr.bf16.mxu0 %v201
  %668 = vmatmul.mubr.bf16.gmra.mrb[0].mxu0 %v200
  %v669 = vpop.f32.mrb[0].mxu0
  %v670 = vadd.f32 %v597, %v669
  %v671 = vpop.f32.mrb[0].mxu0
  %v672 = vadd.f32 %v599, %v671
  %v673 = vpop.f32.mrb[0].mxu0
  %v674 = vadd.f32 %v601, %v673
  %v675 = vpop.f32.mrb[0].mxu0
  %v676 = vadd.f32 %v603, %v675
  %677 = vmatprep.mubr.bf16.mxu0 %v205
  %678 = vmatmul.mubr.bf16.gmra.mrb[0].mxu0 %v204
  %v679 = vpop.f32.mrb[0].mxu0
  %v680 = vadd.f32 %v607, %v679
  %v681 = vpop.f32.mrb[0].mxu0
  %v682 = vadd.f32 %v609, %v681
  %v683 = vpop.f32.mrb[0].mxu0
  %v684 = vadd.f32 %v611, %v683
  %v685 = vpop.f32.mrb[0].mxu0
  %v686 = vadd.f32 %v613, %v685
  %687 = vdwg.mxu0
  %v688 = vmax.f32 %v650, 0.0
  %v689 = vmax.f32 %v652, 0.0
  %v690 = vmax.f32 %v654, 0.0
  %v691 = vmax.f32 %v656, 0.0
  %v692 = vmax.f32 %v660, 0.0
  %v693 = vmax.f32 %v662, 0.0
  %v694 = vmax.f32 %v664, 0.0
  %v695 = vmax.f32 %v666, 0.0
  %v696 = vmax.f32 %v670, 0.0
  %v697 = vmax.f32 %v672, 0.0
  %v698 = vmax.f32 %v674, 0.0
  %v699 = vmax.f32 %v676, 0.0
  %v700 = vmax.f32 %v680, 0.0
  %v701 = vmax.f32 %v682, 0.0
  %v702 = vmax.f32 %v684, 0.0
  %v703 = vmax.f32 %v686, 0.0
  %v704 = vpack.c.bf16 %v690, %v688
  %v705 = vpack.c.bf16 %v691, %v689
  %v706 = vpack.c.bf16 %v694, %v692
  %v707 = vpack.c.bf16 %v695, %v693
  %v708 = vpack.c.bf16 %v698, %v696
  %v709 = vpack.c.bf16 %v699, %v697
  %v710 = vpack.c.bf16 %v702, %v700
  %v711 = vpack.c.bf16 %v703, %v701
  %v720 = vunpack.c.l.b16 %v704
  %v721 = vunpack.c.l.b16 %v705
  %v722 = vunpack.c.h.b16 %v704
  %v723 = vunpack.c.h.b16 %v705
  %v724 = vunpack.c.l.b16 %v706
  %v725 = vunpack.c.l.b16 %v707
  %v726 = vunpack.c.h.b16 %v706
  %v727 = vunpack.c.h.b16 %v707
  %v728 = vunpack.c.l.b16 %v708
  %v729 = vunpack.c.l.b16 %v709
  %v730 = vunpack.c.h.b16 %v708
  %v731 = vunpack.c.h.b16 %v709
  %v732 = vunpack.c.l.b16 %v710
  %v733 = vunpack.c.l.b16 %v711
  %v734 = vunpack.c.h.b16 %v710
  %v735 = vunpack.c.h.b16 %v711
  %v736 = vpack.c.b16 %v721, %v720
  %v737 = vpack.c.b16 %v723, %v722
  %v738 = vpack.c.b16 %v725, %v724
  %v739 = vpack.c.b16 %v727, %v726
  %v740 = vpack.c.b16 %v729, %v728
  %v741 = vpack.c.b16 %v731, %v730
  %v742 = vpack.c.b16 %v733, %v732
  %v743 = vpack.c.b16 %v735, %v734
  %752 = vst [vmem:[%s3] sm:$0xff] %v736
  %753 = vst [vmem:[%s3 + $0x8] sm:$0xff] %v737
  %754 = vst [vmem:[%s3 + $0x10] sm:$0xff] %v738
  %755 = vst [vmem:[%s3 + $0x18] sm:$0xff] %v739
  %756 = vst [vmem:[%s3 + $0x20] sm:$0xff] %v740
  %757 = vst [vmem:[%s3 + $0x28] sm:$0xff] %v741
  %758 = vst [vmem:[%s3 + $0x30] sm:$0xff] %v742
  %759 = vst [vmem:[%s3 + $0x38] sm:$0xff] %v743
  // Predicated region
  $region14: #{nature_cnn_forward.5} parent=0 // pred_check
    _
  $region15: #{nature_cnn_forward.5} parent=0 // pred_check_branch
    %761 = sbr.rel (0) target = $region17
  $region16: #{nature_cnn_forward.5} parent=0 // pred_region
    _
  $region17: #{nature_cnn_forward.5} parent=0 // pred_fallthru
    _
  // Predicated region
  $region18: #{nature_cnn_forward.5} parent=0 // pred_check
    _
  $region19: #{nature_cnn_forward.5} parent=0 // pred_check_branch
    %763 = sbr.rel (0) target = $region21
  $region20: #{nature_cnn_forward.5} parent=0 // pred_region
    _
  $region21: #{nature_cnn_forward.5} parent=0 // pred_fallthru
    _

// kernel: nature_cnn_forward.6
$region0: #{nature_cnn_forward.6}
  #allocation0 [shape = 'u32[]', space=smem, size = 0x4, offset = 0x4, fixed_abs, tag = 'smem constant byte address 0x4 - core index']
  #allocation1 [shape = 'u32[144,128]{1,0:T(1,128)}', space=vmem, size = 0x12000, scoped, tag = 'internal scratch']
  %s0 = inlined_call_operand.vmem [shape: bf16[576,98], index: 0, kind: input, shape index: {}]
  %s1 = inlined_call_operand.vmem [shape: bf16[64,576], index: 1, kind: input, shape index: {}]
  %s2 = inlined_call_operand.vmem [shape: f32[64,1], index: 2, kind: input, shape index: {}]
  %s3 = inlined_call_operand.vmem [shape: bf16[64,98], index: 3, kind: output, shape index: {}]
  %s4 = sld [smem:[#allocation0]]
  $region22: #{nature_cnn_forward.6} parent=0
    _
  %s6 = ssub.s32 1, %s4
  %s7 = scalar_select 0, %s6, %s4
  // Predicated region
  $region2: #{nature_cnn_forward.6} parent=0 // pred_check
    _
  $region3: #{nature_cnn_forward.6} parent=0 // pred_check_branch
    %9 = sbr.rel (0) target = $region5
  $region4: #{nature_cnn_forward.6} parent=0 // pred_region
    _
  $region5: #{nature_cnn_forward.6} parent=0 // pred_fallthru
    _
  // Predicated region
  $region6: #{nature_cnn_forward.6} parent=0 // pred_check
    _
  $region7: #{nature_cnn_forward.6} parent=0 // pred_check_branch
    %11 = sbr.rel (0) target = $region9
  $region8: #{nature_cnn_forward.6} parent=0 // pred_region
    _
  $region9: #{nature_cnn_forward.6} parent=0 // pred_fallthru
    _
  // Predicated region
  $region10: #{nature_cnn_forward.6} parent=0 // pred_check
    _
  $region11: #{nature_cnn_forward.6} parent=0 // pred_check_branch
    %13 = sbr.rel (0) target = $region13
  $region12: #{nature_cnn_forward.6} parent=0 // pred_region
    _
  $region13: #{nature_cnn_forward.6} parent=0 // pred_fallthru
    _
  %v15 = vld [vmem:[%s1] sm:$0xff]
  %v16 = vld [vmem:[%s1 + $0x8] sm:$0xff]
  %v17 = vld [vmem:[%s1 + $0x10] sm:$0xf]
  %v18 = vld [vmem:[%s1 + $0x14] sm:$0xff]
  %v19 = vld [vmem:[%s1 + $0x1c] sm:$0xff]
  %v20 = vld [vmem:[%s1 + $0x24] sm:$0xf]
  %v21 = vld [vmem:[%s1 + $0x28] sm:$0xff]
  %v22 = vld [vmem:[%s1 + $0x30] sm:$0xff]
  %v23 = vld [vmem:[%s1 + $0x38] sm:$0xf]
  %v24 = vld [vmem:[%s1 + $0x3c] sm:$0xff]
  %v25 = vld [vmem:[%s1 + $0x44] sm:$0xff]
  %v26 = vld [vmem:[%s1 + $0x4c] sm:$0xf]
  %v27 = vld [vmem:[%s1 + $0x50] sm:$0xff]
  %v28 = vld [vmem:[%s1 + $0x58] sm:$0xff]
  %v29 = vld [vmem:[%s1 + $0x60] sm:$0xf]
  %v30 = vld [vmem:[%s1 + $0x64] sm:$0xff]
  %v31 = vld [vmem:[%s1 + $0x6c] sm:$0xff]
  %v32 = vld [vmem:[%s1 + $0x74] sm:$0xf]
  %v33 = vld [vmem:[%s1 + $0x78] sm:$0xff]
  %v34 = vld [vmem:[%s1 + $0x80] sm:$0xff]
  %v35 = vld [vmem:[%s1 + $0x88] sm:$0xf]
  %v36 = vld [vmem:[%s1 + $0x8c] sm:$0xff]
  %v37 = vld [vmem:[%s1 + $0x94] sm:$0xff]
  %v38 = vld [vmem:[%s1 + $0x9c] sm:$0xf]
  %v39 = vld [vmem:[%s0] sm:$0xf]
  %v40 = vld [vmem:[%s0 + $0x4] sm:$0xf]
  %v41 = vld [vmem:[%s0 + $0x8] sm:$0xf]
  %v42 = vld [vmem:[%s0 + $0xc] sm:$0xf]
  %v43 = vld [vmem:[%s0 + $0x10] sm:$0xf]
  %v44 = vld [vmem:[%s0 + $0x14] sm:$0xf]
  %v45 = vld [vmem:[%s0 + $0x18] sm:$0xf]
  %v46 = vld [vmem:[%s0 + $0x1c] sm:$0xf]
  %v47 = vld [vmem:[%s0 + $0x20] sm:$0xf]
  %v48 = vld [vmem:[%s0 + $0x24] sm:$0xf]
  %v49 = vld [vmem:[%s0 + $0x28] sm:$0xf]
  %v50 = vld [vmem:[%s0 + $0x2c] sm:$0xf]
  %v51 = vld [vmem:[%s0 + $0x30] sm:$0xf]
  %v52 = vld [vmem:[%s0 + $0x34] sm:$0xf]
  %v53 = vld [vmem:[%s0 + $0x38] sm:$0xf]
  %v54 = vld [vmem:[%s0 + $0x3c] sm:$0xf]
  %v55 = vld [vmem:[%s0 + $0x40] sm:$0xf]
  %v56 = vld [vmem:[%s0 + $0x44] sm:$0xf]
  %v57 = vld [vmem:[%s0 + $0x48] sm:$0xf]
  %v58 = vld [vmem:[%s0 + $0x4c] sm:$0xf]
  %v59 = vld [vmem:[%s0 + $0x50] sm:$0xf]
  %v60 = vld [vmem:[%s0 + $0x54] sm:$0xf]
  %v61 = vld [vmem:[%s0 + $0x58] sm:$0xf]
  %v62 = vld [vmem:[%s0 + $0x5c] sm:$0xf]
  %v63 = vld [vmem:[%s0 + $0x60] sm:$0xf]
  %v64 = vld [vmem:[%s0 + $0x64] sm:$0xf]
  %v65 = vld [vmem:[%s0 + $0x68] sm:$0xf]
  %v66 = vld [vmem:[%s0 + $0x6c] sm:$0xf]
  %v67 = vld [vmem:[%s0 + $0x70] sm:$0xf]
  %v68 = vld [vmem:[%s0 + $0x74] sm:$0xf]
  %v69 = vld [vmem:[%s0 + $0x78] sm:$0xf]
  %v70 = vld [vmem:[%s0 + $0x7c] sm:$0xf]
  %v71 = vld [vmem:[%s0 + $0x80] sm:$0xf]
  %v72 = vld [vmem:[%s0 + $0x84] sm:$0xf]
  %v73 = vld [vmem:[%s0 + $0x88] sm:$0xf]
  %v74 = vld [vmem:[%s0 + $0x8c] sm:$0xf]
  %v75 = vld [vmem:[%s0 + $0x90] sm:$0xf]
  %v76 = vld [vmem:[%s0 + $0x94] sm:$0xf]
  %v77 = vld [vmem:[%s0 + $0x98] sm:$0xf]
  %v78 = vld [vmem:[%s0 + $0x9c] sm:$0xf]
  %v79 = vld [vmem:[%s0 + $0xa0] sm:$0xf]
  %v80 = vld [vmem:[%s0 + $0xa4] sm:$0xf]
  %v81 = vld [vmem:[%s0 + $0xa8] sm:$0xf]
  %v82 = vld [vmem:[%s0 + $0xac] sm:$0xf]
  %v83 = vld [vmem:[%s0 + $0xb0] sm:$0xf]
  %v84 = vld [vmem:[%s0 + $0xb4] sm:$0xf]
  %v85 = vld [vmem:[%s0 + $0xb8] sm:$0xf]
  %v86 = vld [vmem:[%s0 + $0xbc] sm:$0xf]
  %v87 = vld [vmem:[%s0 + $0xc0] sm:$0xf]
  %v88 = vld [vmem:[%s0 + $0xc4] sm:$0xf]
  %v89 = vld [vmem:[%s0 + $0xc8] sm:$0xf]
  %v90 = vld [vmem:[%s0 + $0xcc] sm:$0xf]
  %v91 = vld [vmem:[%s0 + $0xd0] sm:$0xf]
  %v92 = vld [vmem:[%s0 + $0xd4] sm:$0xf]
  %v93 = vld [vmem:[%s0 + $0xd8] sm:$0xf]
  %v94 = vld [vmem:[%s0 + $0xdc] sm:$0xf]
  %v95 = vld [vmem:[%s0 + $0xe0] sm:$0xf]
  %v96 = vld [vmem:[%s0 + $0xe4] sm:$0xf]
  %v97 = vld [vmem:[%s0 + $0xe8] sm:$0xf]
  %v98 = vld [vmem:[%s0 + $0xec] sm:$0xf]
  %v99 = vld [vmem:[%s0 + $0xf0] sm:$0xf]
  %v100 = vld [vmem:[%s0 + $0xf4] sm:$0xf]
  %v101 = vld [vmem:[%s0 + $0xf8] sm:$0xf]
  %v102 = vld [vmem:[%s0 + $0xfc] sm:$0xf]
  %v103 = vld [vmem:[%s0 + $0x100] sm:$0xf]
  %v104 = vld [vmem:[%s0 + $0x104] sm:$0xf]
  %v105 = vld [vmem:[%s0 + $0x108] sm:$0xf]
  %v106 = vld [vmem:[%s0 + $0x10c] sm:$0xf]
  %v107 = vld [vmem:[%s0 + $0x110] sm:$0xf]
  %v108 = vld [vmem:[%s0 + $0x114] sm:$0xf]
  %v109 = vld [vmem:[%s0 + $0x118] sm:$0xf]
  %v110 = vld [vmem:[%s0 + $0x11c] sm:$0xf]
  %v111 = vld [vmem:[%s2] sm:$0xff]
  %v112 = vld [vmem:[%s2 + $0x8] sm:$0xff]
  %v113 = vld [vmem:[%s2 + $0x10] sm:$0xff]
  %v114 = vld [vmem:[%s2 + $0x18] sm:$0xff]
  %v115 = vld [vmem:[%s2 + $0x20] sm:$0xff]
  %v116 = vld [vmem:[%s2 + $0x28] sm:$0xff]
  %v117 = vld [vmem:[%s2 + $0x30] sm:$0xff]
  %v118 = vld [vmem:[%s2 + $0x38] sm:$0xff]
  %120 = vset.pattern.permute.xlu0 0
  %121 = vperm.xlu0 %120, %v111
  %v122 = vpop.permute.xlu0 %121
  %125 = vset.pattern.permute.xlu0 0
  %126 = vperm.xlu0 %125, %v112
  %v127 = vpop.permute.xlu0 %126
  %130 = vset.pattern.permute.xlu0 0
  %131 = vperm.xlu0 %130, %v113
  %v132 = vpop.permute.xlu0 %131
  %135 = vset.pattern.permute.xlu0 0
  %136 = vperm.xlu0 %135, %v114
  %v137 = vpop.permute.xlu0 %136
  %140 = vset.pattern.permute.xlu0 0
  %141 = vperm.xlu0 %140, %v115
  %v142 = vpop.permute.xlu0 %141
  %145 = vset.pattern.permute.xlu0 0
  %146 = vperm.xlu0 %145, %v116
  %v147 = vpop.permute.xlu0 %146
  %150 = vset.pattern.permute.xlu0 0
  %151 = vperm.xlu0 %150, %v117
  %v152 = vpop.permute.xlu0 %151
  %155 = vset.pattern.permute.xlu0 0
  %156 = vperm.xlu0 %155, %v118
  %v157 = vpop.permute.xlu0 %156
  %v183 = vunpack.c.l.b16 %v15
  %v184 = vunpack.c.h.b16 %v15
  %v185 = vunpack.c.l.b16 %v16
  %v186 = vunpack.c.h.b16 %v16
  %v187 = vunpack.c.l.b16 %v17
  %v188 = vunpack.c.l.b16 %v18
  %v189 = vunpack.c.h.b16 %v18
  %v190 = vunpack.c.l.b16 %v19
  %v191 = vunpack.c.h.b16 %v19
  %v192 = vunpack.c.l.b16 %v20
  %v193 = vunpack.c.l.b16 %v21
  %v194 = vunpack.c.h.b16 %v21
  %v195 = vunpack.c.l.b16 %v22
  %v196 = vunpack.c.h.b16 %v22
  %v197 = vunpack.c.l.b16 %v23
  %v198 = vunpack.c.l.b16 %v24
  %v199 = vunpack.c.h.b16 %v24
  %v200 = vunpack.c.l.b16 %v25
  %v201 = vunpack.c.h.b16 %v25
  %v202 = vunpack.c.l.b16 %v26
  %v203 = vunpack.c.l.b16 %v27
  %v204 = vunpack.c.h.b16 %v27
  %v205 = vunpack.c.l.b16 %v28
  %v206 = vunpack.c.h.b16 %v28
  %v207 = vunpack.c.l.b16 %v29
  %v208 = vunpack.c.l.b16 %v30
  %v209 = vunpack.c.h.b16 %v30
  %v210 = vunpack.c.l.b16 %v31
  %v211 = vunpack.c.h.b16 %v31
  %v212 = vunpack.c.l.b16 %v32
  %v213 = vunpack.c.l.b16 %v33
  %v214 = vunpack.c.h.b16 %v33
  %v215 = vunpack.c.l.b16 %v34
  %v216 = vunpack.c.h.b16 %v34
  %v217 = vunpack.c.l.b16 %v35
  %v218 = vunpack.c.l.b16 %v36
  %v219 = vunpack.c.h.b16 %v36
  %v220 = vunpack.c.l.b16 %v37
  %v221 = vunpack.c.h.b16 %v37
  %v222 = vunpack.c.l.b16 %v38
  %v223 = vpack.c.b16 %v188, %v183
  %v224 = vpack.c.b16 %v189, %v184
  %v225 = vpack.c.b16 %v190, %v185
  %v226 = vpack.c.b16 %v191, %v186
  %v227 = vpack.c.b16 %v192, %v187
  %v228 = vpack.c.b16 %v198, %v193
  %v229 = vpack.c.b16 %v199, %v194
  %v230 = vpack.c.b16 %v200, %v195
  %v231 = vpack.c.b16 %v201, %v196
  %v232 = vpack.c.b16 %v202, %v197
  %v233 = vpack.c.b16 %v208, %v203
  %v234 = vpack.c.b16 %v209, %v204
  %v235 = vpack.c.b16 %v210, %v205
  %v236 = vpack.c.b16 %v211, %v206
  %v237 = vpack.c.b16 %v212, %v207
  %v238 = vpack.c.b16 %v218, %v213
  %v239 = vpack.c.b16 %v219, %v214
  %v240 = vpack.c.b16 %v220, %v215
  %v241 = vpack.c.b16 %v221, %v216
  %v242 = vpack.c.b16 %v222, %v217
  %v331 = vunpack.c.l.b16 %v39
  %v332 = vunpack.c.l.b16 %v40
  %v333 = vunpack.c.l.b16 %v41
  %v334 = vunpack.c.l.b16 %v42
  %v335 = vunpack.c.l.b16 %v43
  %v336 = vunpack.c.l.b16 %v44
  %v337 = vunpack.c.l.b16 %v45
  %v338 = vunpack.c.l.b16 %v46
  %v339 = vunpack.c.l.b16 %v47
  %v340 = vunpack.c.l.b16 %v48
  %v341 = vunpack.c.l.b16 %v49
  %v342 = vunpack.c.l.b16 %v50
  %v343 = vunpack.c.l.b16 %v51
  %v344 = vunpack.c.l.b16 %v52
  %v345 = vunpack.c.l.b16 %v53
  %v346 = vunpack.c.l.b16 %v54
  %v347 = vunpack.c.l.b16 %v55
  %v348 = vunpack.c.l.b16 %v56
  %v349 = vunpack.c.l.b16 %v57
  %v350 = vunpack.c.l.b16 %v58
  %v351 = vunpack.c.l.b16 %v59
  %v352 = vunpack.c.l.b16 %v60
  %v353 = vunpack.c.l.b16 %v61
  %v354 = vunpack.c.l.b16 %v62
  %v355 = vunpack.c.l.b16 %v63
  %v356 = vunpack.c.l.b16 %v64
  %v357 = vunpack.c.l.b16 %v65
  %v358 = vunpack.c.l.b16 %v66
  %v359 = vunpack.c.l.b16 %v67
  %v360 = vunpack.c.l.b16 %v68
  %v361 = vunpack.c.l.b16 %v69
  %v362 = vunpack.c.l.b16 %v70
  %v363 = vunpack.c.l.b16 %v71
  %v364 = vunpack.c.l.b16 %v72
  %v365 = vunpack.c.l.b16 %v73
  %v366 = vunpack.c.l.b16 %v74
  %v367 = vunpack.c.l.b16 %v75
  %v368 = vunpack.c.l.b16 %v76
  %v369 = vunpack.c.l.b16 %v77
  %v370 = vunpack.c.l.b16 %v78
  %v371 = vunpack.c.l.b16 %v79
  %v372 = vunpack.c.l.b16 %v80
  %v373 = vunpack.c.l.b16 %v81
  %v374 = vunpack.c.l.b16 %v82
  %v375 = vunpack.c.l.b16 %v83
  %v376 = vunpack.c.l.b16 %v84
  %v377 = vunpack.c.l.b16 %v85
  %v378 = vunpack.c.l.b16 %v86
  %v379 = vunpack.c.l.b16 %v87
  %v380 = vunpack.c.l.b16 %v88
  %v381 = vunpack.c.l.b16 %v89
  %v382 = vunpack.c.l.b16 %v90
  %v383 = vunpack.c.l.b16 %v91
  %v384 = vunpack.c.l.b16 %v92
  %v385 = vunpack.c.l.b16 %v93
  %v386 = vunpack.c.l.b16 %v94
  %v387 = vunpack.c.l.b16 %v95
  %v388 = vunpack.c.l.b16 %v96
  %v389 = vunpack.c.l.b16 %v97
  %v390 = vunpack.c.l.b16 %v98
  %v391 = vunpack.c.l.b16 %v99
  %v392 = vunpack.c.l.b16 %v100
  %v393 = vunpack.c.l.b16 %v101
  %v394 = vunpack.c.l.b16 %v102
  %v395 = vunpack.c.l.b16 %v103
  %v396 = vunpack.c.l.b16 %v104
  %v397 = vunpack.c.l.b16 %v105
  %v398 = vunpack.c.l.b16 %v106
  %v399 = vunpack.c.l.b16 %v107
  %v400 = vunpack.c.l.b16 %v108
  %v401 = vunpack.c.l.b16 %v109
  %v402 = vunpack.c.l.b16 %v110
  %v403 = vpack.c.b16 %v332, %v331
  %v404 = vpack.c.b16 %v334, %v333
  %v405 = vpack.c.b16 %v336, %v335
  %v406 = vpack.c.b16 %v338, %v337
  %v407 = vpack.c.b16 %v340, %v339
  %v408 = vpack.c.b16 %v342, %v341
  %v409 = vpack.c.b16 %v344, %v343
  %v410 = vpack.c.b16 %v346, %v345
  %v411 = vpack.c.b16 %v348, %v347
  %v412 = vpack.c.b16 %v350, %v349
  %v413 = vpack.c.b16 %v352, %v351
  %v414 = vpack.c.b16 %v354, %v353
  %v415 = vpack.c.b16 %v356, %v355
  %v416 = vpack.c.b16 %v358, %v357
  %v417 = vpack.c.b16 %v360, %v359
  %v418 = vpack.c.b16 %v362, %v361
  %v419 = vpack.c.b16 %v364, %v363
  %v420 = vpack.c.b16 %v366, %v365
  %v421 = vpack.c.b16 %v368, %v367
  %v422 = vpack.c.b16 %v370, %v369
  %v423 = vpack.c.b16 %v372, %v371
  %v424 = vpack.c.b16 %v374, %v373
  %v425 = vpack.c.b16 %v376, %v375
  %v426 = vpack.c.b16 %v378, %v377
  %v427 = vpack.c.b16 %v380, %v379
  %v428 = vpack.c.b16 %v382, %v381
  %v429 = vpack.c.b16 %v384, %v383
  %v430 = vpack.c.b16 %v386, %v385
  %v431 = vpack.c.b16 %v388, %v387
  %v432 = vpack.c.b16 %v390, %v389
  %v433 = vpack.c.b16 %v392, %v391
  %v434 = vpack.c.b16 %v394, %v393
  %v435 = vpack.c.b16 %v396, %v395
  %v436 = vpack.c.b16 %v398, %v397
  %v437 = vpack.c.b16 %v400, %v399
  %v438 = vpack.c.b16 %v402, %v401
  %vm475 = vcmask 523264
  %v477 = vsel %vm475, %v227, 0
  %v480 = vsel %vm475, %v232, 0
  %v483 = vsel %vm475, %v237, 0
  %v486 = vsel %vm475, %v242, 0
  %488 = vmatprep.subr.bf16.mxu0 0
  %489 = vmatpush1.bf16.msra.mxu0 %v403
  %490 = vmatprep.subr.bf16.mxu0 0
  %491 = vmatpush1.bf16.msra.mxu0 %v404
  %492 = vmatprep.subr.bf16.mxu0 0
  %493 = vmatpush1.bf16.msra.mxu0 %v405
  %494 = vmatprep.subr.bf16.mxu0 0
  %495 = vmatpush1.bf16.msra.mxu0 %v406
  %496 = vmatprep.subr.bf16.mxu0 0
  %497 = vmatpush1.bf16.msra.mxu0 %v407
  %498 = vmatprep.subr.bf16.mxu0 0
  %499 = vmatpush1.bf16.msra.mxu0 %v408
  %500 = vmatprep.subr.bf16.mxu0 0
  %501 = vmatpush1.bf16.msra.mxu0 %v409
  %502 = vmatprep.subr.bf16.mxu0 0
  %503 = vmatpush1.bf16.msra.mxu0 %v410
  %504 = vmatprep.subr.bf16.mxu0 0
  %505 = vmatpush1.bf16.msra.mxu0 %v411
  %506 = vmatprep.subr.bf16.mxu0 0
  %507 = vmatpush1.bf16.msra.mxu0 %v412
  %508 = vmatprep.subr.bf16.mxu0 0
  %509 = vmatpush1.bf16.msra.mxu0 %v413
  %510 = vmatprep.subr.bf16.mxu0 0
  %511 = vmatpush1.bf16.msra.mxu0 %v414
  %512 = vmatprep.subr.bf16.mxu0 0
  %513 = vmatpush1.bf16.msra.mxu0 %v415
  %514 = vmatprep.subr.bf16.mxu0 0
  %515 = vmatpush1.bf16.msra.mxu0 %v416
  %516 = vmatprep.subr.bf16.mxu0 0
  %517 = vmatpush1.bf16.msra.mxu0 %v417
  %518 = vmatprep.subr.bf16.mxu0 0
  %519 = vmatpush1.bf16.msra.mxu0 %v418
  %520 = vmatprep.mubr.bf16.mxu0 %v224
  %521 = vmatmul.mubr.bf16.gmra.mrb[0].mxu0 %v223
  %v522 = vpop.f32.mrb[0].mxu0
  %v523 = vadd.f32 %v122, %v522
  %v524 = vpop.f32.mrb[0].mxu0
  %v525 = vpop.f32.mrb[0].mxu0
  %v526 = vadd.f32 %v127, %v525
  %v527 = vpop.f32.mrb[0].mxu0
  %528 = vmatprep.mubr.bf16.mxu0 %v229
  %529 = vmatmul.mubr.bf16.gmra.mrb[0].mxu0 %v228
  %v530 = vpop.f32.mrb[0].mxu0
  %v531 = vadd.f32 %v132, %v530
  %v532 = vpop.f32.mrb[0].mxu0
  %v533 = vpop.f32.mrb[0].mxu0
  %v534 = vadd.f32 %v137, %v533
  %v535 = vpop.f32.mrb[0].mxu0
  %536 = vmatprep.mubr.bf16.mxu0 %v234
  %537 = vmatmul.mubr.bf16.gmra.mrb[0].mxu0 %v233
  %v538 = vpop.f32.mrb[0].mxu0
  %v539 = vadd.f32 %v142, %v538
  %v540 = vpop.f32.mrb[0].mxu0
  %v541 = vpop.f32.mrb[0].mxu0
  %v542 = vadd.f32 %v147, %v541
  %v543 = vpop.f32.mrb[0].mxu0
  %544 = vmatprep.mubr.bf16.mxu0 %v239
  %545 = vmatmul.mubr.bf16.gmra.mrb[0].mxu0 %v238
  %v546 = vpop.f32.mrb[0].mxu0
  %v547 = vadd.f32 %v152, %v546
  %v548 = vpop.f32.mrb[0].mxu0
  %v549 = vpop.f32.mrb[0].mxu0
  %v550 = vadd.f32 %v157, %v549
  %v551 = vpop.f32.mrb[0].mxu0
  %552 = vdwg.mxu0
  %553 = vmatprep.subr.bf16.mxu0 0
  %554 = vmatpush1.bf16.msra.mxu0 %v419
  %555 = vmatprep.subr.bf16.mxu0 0
  %556 = vmatpush1.bf16.msra.mxu0 %v420
  %557 = vmatprep.subr.bf16.mxu0 0
  %558 = vmatpush1.bf16.msra.mxu0 %v421
  %559 = vmatprep.subr.bf16.mxu0 0
  %560 = vmatpush1.bf16.msra.mxu0 %v422
  %561 = vmatprep.subr.bf16.mxu0 0
  %562 = vmatpush1.bf16.msra.mxu0 %v423
  %563 = vmatprep.subr.bf16.mxu0 0
  %564 = vmatpush1.bf16.msra.mxu0 %v424
  %565 = vmatprep.subr.bf16.mxu0 0
  %566 = vmatpush1.bf16.msra.mxu0 %v425
  %567 = vmatprep.subr.bf16.mxu0 0
  %568 = vmatpush1.bf16.msra.mxu0 %v426
  %569 = vmatprep.subr.bf16.mxu0 0
  %570 = vmatpush1.bf16.msra.mxu0 %v427
  %571 = vmatprep.subr.bf16.mxu0 0
  %572 = vmatpush1.bf16.msra.mxu0 %v428
  %573 = vmatprep.subr.bf16.mxu0 0
  %574 = vmatpush1.bf16.msra.mxu0 %v429
  %575 = vmatprep.subr.bf16.mxu0 0
  %576 = vmatpush1.bf16.msra.mxu0 %v430
  %577 = vmatprep.subr.bf16.mxu0 0
  %578 = vmatpush1.bf16.msra.mxu0 %v431
  %579 = vmatprep.subr.bf16.mxu0 0
  %580 = vmatpush1.bf16.msra.mxu0 %v432
  %581 = vmatprep.subr.bf16.mxu0 0
  %582 = vmatpush1.bf16.msra.mxu0 %v433
  %583 = vmatprep.subr.bf16.mxu0 0
  %584 = vmatpush1.bf16.msra.mxu0 %v434
  %585 = vmatprep.mubr.bf16.mxu0 %v226
  %586 = vmatmul.mubr.bf16.gmra.mrb[0].mxu0 %v225
  %v587 = vpop.f32.mrb[0].mxu0
  %v588 = vadd.f32 %v523, %v587
  %v589 = vpop.f32.mrb[0].mxu0
  %v590 = vpop.f32.mrb[0].mxu0
  %v591 = vadd.f32 %v526, %v590
  %v592 = vpop.f32.mrb[0].mxu0
  %593 = vmatprep.mubr.bf16.mxu0 %v231
  %594 = vmatmul.mubr.bf16.gmra.mrb[0].mxu0 %v230
  %v595 = vpop.f32.mrb[0].mxu0
  %v596 = vadd.f32 %v531, %v595
  %v597 = vpop.f32.mrb[0].mxu0
  %v598 = vpop.f32.mrb[0].mxu0
  %v599 = vadd.f32 %v534, %v598
  %v600 = vpop.f32.mrb[0].mxu0
  %601 = vmatprep.mubr.bf16.mxu0 %v236
  %602 = vmatmul.mubr.bf16.gmra.mrb[0].mxu0 %v235
  %v603 = vpop.f32.mrb[0].mxu0
  %v604 = vadd.f32 %v539, %v603
  %v605 = vpop.f32.mrb[0].mxu0
  %v606 = vpop.f32.mrb[0].mxu0
  %v607 = vadd.f32 %v542, %v606
  %v608 = vpop.f32.mrb[0].mxu0
  %609 = vmatprep.mubr.bf16.mxu0 %v241
  %610 = vmatmul.mubr.bf16.gmra.mrb[0].mxu0 %v240
  %v611 = vpop.f32.mrb[0].mxu0
  %v612 = vadd.f32 %v547, %v611
  %v613 = vpop.f32.mrb[0].mxu0
  %v614 = vpop.f32.mrb[0].mxu0
  %v615 = vadd.f32 %v550, %v614
  %v616 = vpop.f32.mrb[0].mxu0
  %617 = vdwg.mxu0
  %618 = vmatprep.subr.bf16.mxu0 0
  %619 = vmatpush1.bf16.msra.mxu0 %v435
  %620 = vmatprep.subr.bf16.mxu0 0
  %621 = vmatpush1.bf16.msra.mxu0 %v436
  %622 = vmatprep.subr.bf16.mxu0 0
  %623 = vmatpush1.bf16.msra.mxu0 %v437
  %624 = vmatprep.subr.bf16.mxu0 0
  %625 = vmatpush1.bf16.msra.mxu0 %v438
  %626 = vmatprep.subr.bf16.mxu0 0
  %627 = vmatpush1.bf16.msra.mxu0 0
  %628 = vmatprep.subr.bf16.mxu0 0
  %629 = vmatpush1.bf16.msra.mxu0 0
  %630 = vmatprep.subr.bf16.mxu0 0
  %631 = vmatpush1.bf16.msra.mxu0 0
  %632 = vmatprep.subr.bf16.mxu0 0
  %633 = vmatpush1.bf16.msra.mxu0 0
  %634 = vmatprep.subr.bf16.mxu0 0
  %635 = vmatpush1.bf16.msra.mxu0 0
  %636 = vmatprep.subr.bf16.mxu0 0
  %637 = vmatpush1.bf16.msra.mxu0 0
  %638 = vmatprep.subr.bf16.mxu0 0
  %639 = vmatpush1.bf16.msra.mxu0 0
  %640 = vmatprep.subr.bf16.mxu0 0
  %641 = vmatpush1.bf16.msra.mxu0 0
  %642 = vmatprep.subr.bf16.mxu0 0
  %643 = vmatpush1.bf16.msra.mxu0 0
  %644 = vmatprep.subr.bf16.mxu0 0
  %645 = vmatpush1.bf16.msra.mxu0 0
  %646 = vmatprep.subr.bf16.mxu0 0
  %647 = vmatpush1.bf16.msra.mxu0 0
  %648 = vmatprep.subr.bf16.mxu0 0
  %649 = vmatpush1.bf16.msra.mxu0 0
  %650 = vmatprep.mubr.bf16.mxu0 0
  %651 = vmatmul.mubr.bf16.gmra.mrb[0].mxu0 %v477
  %v652 = vpop.f32.mrb[0].mxu0
  %v653 = vadd.f32 %v588, %v652
  %v654 = vpop.f32.mrb[0].mxu0
  %v655 = vpop.f32.mrb[0].mxu0
  %v656 = vadd.f32 %v591, %v655
  %v657 = vpop.f32.mrb[0].mxu0
  %658 = vmatprep.mubr.bf16.mxu0 0
  %659 = vmatmul.mubr.bf16.gmra.mrb[0].mxu0 %v480
  %v660 = vpop.f32.mrb[0].mxu0
  %v661 = vadd.f32 %v596, %v660
  %v662 = vpop.f32.mrb[0].mxu0
  %v663 = vpop.f32.mrb[0].mxu0
  %v664 = vadd.f32 %v599, %v663
  %v665 = vpop.f32.mrb[0].mxu0
  %666 = vmatprep.mubr.bf16.mxu0 0
  %667 = vmatmul.mubr.bf16.gmra.mrb[0].mxu0 %v483
  %v668 = vpop.f32.mrb[0].mxu0
  %v669 = vadd.f32 %v604, %v668
  %v670 = vpop.f32.mrb[0].mxu0
  %v671 = vpop.f32.mrb[0].mxu0
  %v672 = vadd.f32 %v607, %v671
  %v673 = vpop.f32.mrb[0].mxu0
  %674 = vmatprep.mubr.bf16.mxu0 0
  %675 = vmatmul.mubr.bf16.gmra.mrb[0].mxu0 %v486
  %v676 = vpop.f32.mrb[0].mxu0
  %v677 = vadd.f32 %v612, %v676
  %v678 = vpop.f32.mrb[0].mxu0
  %v679 = vpop.f32.mrb[0].mxu0
  %v680 = vadd.f32 %v615, %v679
  %v681 = vpop.f32.mrb[0].mxu0
  %682 = vdwg.mxu0
  %v683 = vmax.f32 %v653, 0.0
  %v684 = vmax.f32 %v656, 0.0
  %v685 = vmax.f32 %v661, 0.0
  %v686 = vmax.f32 %v664, 0.0
  %v687 = vmax.f32 %v669, 0.0
  %v688 = vmax.f32 %v672, 0.0
  %v689 = vmax.f32 %v677, 0.0
  %v690 = vmax.f32 %v680, 0.0
  %v691 = vpack.c.bf16 %v684, %v683
  %v692 = vpack.c.bf16 %v686, %v685
  %v693 = vpack.c.bf16 %v688, %v687
  %v694 = vpack.c.bf16 %v690, %v689
  %v699 = vunpack.c.l.b16 %v691
  %v700 = vunpack.c.h.b16 %v691
  %v701 = vunpack.c.l.b16 %v692
  %v702 = vunpack.c.h.b16 %v692
  %v703 = vunpack.c.l.b16 %v693
  %v704 = vunpack.c.h.b16 %v693
  %v705 = vunpack.c.l.b16 %v694
  %v706 = vunpack.c.h.b16 %v694
  %v707 = vpack.c.b16 %v699, %v699
  %v708 = vpack.c.b16 %v700, %v700
  %v709 = vpack.c.b16 %v701, %v701
  %v710 = vpack.c.b16 %v702, %v702
  %v711 = vpack.c.b16 %v703, %v703
  %v712 = vpack.c.b16 %v704, %v704
  %v713 = vpack.c.b16 %v705, %v705
  %v714 = vpack.c.b16 %v706, %v706
  %723 = vst [vmem:[%s3] sm:$0xf] %v707
  %724 = vst [vmem:[%s3 + $0x4] sm:$0xf] %v708
  %725 = vst [vmem:[%s3 + $0x8] sm:$0xf] %v709
  %726 = vst [vmem:[%s3 + $0xc] sm:$0xf] %v710
  %727 = vst [vmem:[%s3 + $0x10] sm:$0xf] %v711
  %728 = vst [vmem:[%s3 + $0x14] sm:$0xf] %v712
  %729 = vst [vmem:[%s3 + $0x18] sm:$0xf] %v713
  %730 = vst [vmem:[%s3 + $0x1c] sm:$0xf] %v714
  // Predicated region
  $region14: #{nature_cnn_forward.6} parent=0 // pred_check
    _
  $region15: #{nature_cnn_forward.6} parent=0 // pred_check_branch
    %732 = sbr.rel (0) target = $region17
  $region16: #{nature_cnn_forward.6} parent=0 // pred_region
    _
  $region17: #{nature_cnn_forward.6} parent=0 // pred_fallthru
    _
  // Predicated region
  $region18: #{nature_cnn_forward.6} parent=0 // pred_check
    _
  $region19: #{nature_cnn_forward.6} parent=0 // pred_check_branch
    %734 = sbr.rel (0) target = $region21
  $region20: #{nature_cnn_forward.6} parent=0 // pred_region
    _
  $region21: #{nature_cnn_forward.6} parent=0 // pred_fallthru
    _

// kernel: nature_cnn_forward.7
$region0: #{nature_cnn_forward.7}
  #allocation0 [shape = 'u32[]', space=smem, size = 0x4, offset = 0x4, fixed_abs, tag = 'smem constant byte address 0x4 - core index']
  #allocation1 [shape = 'u32[144,128]{1,0:T(1,128)}', space=vmem, size = 0x12000, scoped, tag = 'internal scratch']
  %s0 = inlined_call_operand.vmem [shape: bf16[2,3136], index: 0, kind: input, shape index: {}]
  %s1 = inlined_call_operand.vmem [shape: bf16[3136,512], index: 1, kind: input, shape index: {}]
  %s2 = inlined_call_operand.vmem [shape: f32[1,512], index: 2, kind: input, shape index: {}]
  %s3 = inlined_call_operand.vmem [shape: bf16[512,7], index: 3, kind: input, shape index: {}]
  %s4 = inlined_call_operand.vmem [shape: f32[1,7], index: 4, kind: input, shape index: {}]
  %s5 = inlined_call_operand.hbm [shape: f32[2,6], index: 5, kind: output, shape index: {0}]
  %s6 = inlined_call_operand.vmem [shape: f32[2,1], index: 6, kind: output, shape index: {1}]
  %7 = xla_tuple %s5, %s6
  %s8 = sld [smem:[#allocation0]]
  $region68: #{nature_cnn_forward.7} parent=0
    _
  %s10 = ssub.s32 1, %s8
  %s11 = scalar_select 0, %s10, %s8
  $region1: #{nature_cnn_forward.7} parent=0
    #allocation2 [shape = 'u8[4096]{0}', space=vmem, size = 0x1000, scoped, tag = 'output window, operand 0, single buffered']
    #allocation3 [shape = 's32[1]{0}', space=sflag, size = 0x4, scoped, tag = 'scoped memory for nature_cnn_forward.7']
    #allocation4 [shape = 'u8[4096]{0}', space=vmem, size = 0x1000, scoped, tag = 'output window, operand 1, single buffered']
    %12 = vsyncpa [#allocation3], 0
    // Predicated region
    $region2: #{nature_cnn_forward.7} parent=1 // pred_check
      _
    $region3: #{nature_cnn_forward.7} parent=1 // pred_check_branch
      %14 = sbr.rel (0) target = $region5
    $region4: #{nature_cnn_forward.7} parent=1 // pred_region
      _
    $region5: #{nature_cnn_forward.7} parent=1 // pred_fallthru
      _
    // Predicated region
    $region6: #{nature_cnn_forward.7} parent=1 // pred_check
      _
    $region7: #{nature_cnn_forward.7} parent=1 // pred_check_branch
      %16 = sbr.rel (0) target = $region9
    $region8: #{nature_cnn_forward.7} parent=1 // pred_region
      _
    $region9: #{nature_cnn_forward.7} parent=1 // pred_fallthru
      _
    // Predicated region
    $region10: #{nature_cnn_forward.7} parent=1 // pred_check
      _
    $region11: #{nature_cnn_forward.7} parent=1 // pred_check_branch
      %18 = sbr.rel (0) target = $region13
    $region12: #{nature_cnn_forward.7} parent=1 // pred_region
      _
    $region13: #{nature_cnn_forward.7} parent=1 // pred_fallthru
      _
    // Predicated region
    $region14: #{nature_cnn_forward.7} parent=1 // pred_check
      _
    $region15: #{nature_cnn_forward.7} parent=1 // pred_check_branch
      %20 = sbr.rel (0) target = $region17
    $region16: #{nature_cnn_forward.7} parent=1 // pred_region
      _
    $region17: #{nature_cnn_forward.7} parent=1 // pred_fallthru
      _
    // Predicated region
    $region18: #{nature_cnn_forward.7} parent=1 // pred_check
      _
    $region19: #{nature_cnn_forward.7} parent=1 // pred_check_branch
      %22 = sbr.rel (0) target = $region21
    $region20: #{nature_cnn_forward.7} parent=1 // pred_region
      _
    $region21: #{nature_cnn_forward.7} parent=1 // pred_fallthru
      _
    %v24 = vld [vmem:[%s0] sm:$0xff]
    %v25 = vld [vmem:[%s0 + $0x8] sm:$0xff]
    %v26 = vld [vmem:[%s0 + $0x10] sm:$0xff]
    %v27 = vld [vmem:[%s0 + $0x18] sm:$0x1]
    %v28 = vld [vmem:[%s0 + $0x19] sm:$0xff]
    %v29 = vld [vmem:[%s0 + $0x21] sm:$0xff]
    %v30 = vld [vmem:[%s0 + $0x29] sm:$0xff]
    %v31 = vld [vmem:[%s0 + $0x31] sm:$0x1]
    %v32 = vld [vmem:[%s0 + $0x32] sm:$0xff]
    %v33 = vld [vmem:[%s0 + $0x3a] sm:$0xff]
    %v34 = vld [vmem:[%s0 + $0x42] sm:$0xff]
    %v35 = vld [vmem:[%s0 + $0x4a] sm:$0x1]
    %v36 = vld [vmem:[%s0 + $0x4b] sm:$0xff]
    %v37 = vld [vmem:[%s0 + $0x53] sm:$0xff]
    %v38 = vld [vmem:[%s0 + $0x5b] sm:$0xff]
    %v39 = vld [vmem:[%s0 + $0x63] sm:$0x1]
    %v40 = vld [vmem:[%s1] sm:$0xff]
    %v41 = vld [vmem:[%s1 + $0x8] sm:$0xff]
    %v42 = vld [vmem:[%s1 + $0x10] sm:$0xff]
    %v43 = vld [vmem:[%s1 + $0x18] sm:$0xff]
    %v44 = vld [vmem:[%s1 + $0x20] sm:$0xff]
    %v45 = vld [vmem:[%s1 + $0x28] sm:$0xff]
    %v46 = vld [vmem:[%s1 + $0x30] sm:$0xff]
    %v47 = vld [vmem:[%s1 + $0x38] sm:$0xff]
    %v48 = vld [vmem:[%s1 + $0x40] sm:$0xff]
    %v49 = vld [vmem:[%s1 + $0x48] sm:$0xff]
    %v50 = vld [vmem:[%s1 + $0x50] sm:$0xff]
    %v51 = vld [vmem:[%s1 + $0x58] sm:$0xff]
    %v52 = vld [vmem:[%s1 + $0x60] sm:$0xff]
    %v53 = vld [vmem:[%s1 + $0x68] sm:$0xff]
    %v54 = vld [vmem:[%s1 + $0x70] sm:$0xff]
    %v55 = vld [vmem:[%s1 + $0x78] sm:$0xff]
    %v56 = vld [vmem:[%s1 + $0x80] sm:$0xff]
    %v57 = vld [vmem:[%s1 + $0x88] sm:$0xff]
    %v58 = vld [vmem:[%s1 + $0x90] sm:$0xff]
    %v59 = vld [vmem:[%s1 + $0x98] sm:$0xff]
    %v60 = vld [vmem:[%s1 + $0xa0] sm:$0xff]
    %v61 = vld [vmem:[%s1 + $0xa8] sm:$0xff]
    %v62 = vld [vmem:[%s1 + $0xb0] sm:$0xff]
    %v63 = vld [vmem:[%s1 + $0xb8] sm:$0xff]
    %v64 = vld [vmem:[%s1 + $0xc0] sm:$0xff]
    %v65 = vld [vmem:[%s1 + $0xc8] sm:$0xff]
    %v66 = vld [vmem:[%s1 + $0xd0] sm:$0xff]
    %v67 = vld [vmem:[%s1 + $0xd8] sm:$0xff]
    %v68 = vld [vmem:[%s1 + $0xe0] sm:$0xff]
    %v69 = vld [vmem:[%s1 + $0xe8] sm:$0xff]
    %v70 = vld [vmem:[%s1 + $0xf0] sm:$0xff]
    %v71 = vld [vmem:[%s1 + $0xf8] sm:$0xff]
    %v72 = vld [vmem:[%s1 + $0x100] sm:$0xff]
    %v73 = vld [vmem:[%s1 + $0x108] sm:$0xff]
    %v74 = vld [vmem:[%s1 + $0x110] sm:$0xff]
    %v75 = vld [vmem:[%s1 + $0x118] sm:$0xff]
    %v76 = vld [vmem:[%s1 + $0x120] sm:$0xff]
    %v77 = vld [vmem:[%s1 + $0x128] sm:$0xff]
    %v78 = vld [vmem:[%s1 + $0x130] sm:$0xff]
    %v79 = vld [vmem:[%s1 + $0x138] sm:$0xff]
    %v80 = vld [vmem:[%s1 + $0x140] sm:$0xff]
    %v81 = vld [vmem:[%s1 + $0x148] sm:$0xff]
    %v82 = vld [vmem:[%s1 + $0x150] sm:$0xff]
    %v83 = vld [vmem:[%s1 + $0x158] sm:$0xff]
    %v84 = vld [vmem:[%s1 + $0x160] sm:$0xff]
    %v85 = vld [vmem:[%s1 + $0x168] sm:$0xff]
    %v86 = vld [vmem:[%s1 + $0x170] sm:$0xff]
    %v87 = vld [vmem:[%s1 + $0x178] sm:$0xff]
    %v88 = vld [vmem:[%s1 + $0x180] sm:$0xff]
    %v89 = vld [vmem:[%s1 + $0x188] sm:$0xff]
    %v90 = vld [vmem:[%s1 + $0x190] sm:$0xff]
    %v91 = vld [vmem:[%s1 + $0x198] sm:$0xff]
    %v92 = vld [vmem:[%s1 + $0x1a0] sm:$0xff]
    %v93 = vld [vmem:[%s1 + $0x1a8] sm:$0xff]
    %v94 = vld [vmem:[%s1 + $0x1b0] sm:$0xff]
    %v95 = vld [vmem:[%s1 + $0x1b8] sm:$0xff]
    %v96 = vld [vmem:[%s1 + $0x1c0] sm:$0xff]
    %v97 = vld [vmem:[%s1 + $0x1c8] sm:$0xff]
    %v98 = vld [vmem:[%s1 + $0x1d0] sm:$0xff]
    %v99 = vld [vmem:[%s1 + $0x1d8] sm:$0xff]
    %v100 = vld [vmem:[%s1 + $0x1e0] sm:$0xff]
    %v101 = vld [vmem:[%s1 + $0x1e8] sm:$0xff]
    %v102 = vld [vmem:[%s1 + $0x1f0] sm:$0xff]
    %v103 = vld [vmem:[%s1 + $0x1f8] sm:$0xff]
    %v104 = vld [vmem:[%s1 + $0x200] sm:$0xff]
    %v105 = vld [vmem:[%s1 + $0x208] sm:$0xff]
    %v106 = vld [vmem:[%s1 + $0x210] sm:$0xff]
    %v107 = vld [vmem:[%s1 + $0x218] sm:$0xff]
    %v108 = vld [vmem:[%s1 + $0x220] sm:$0xff]
    %v109 = vld [vmem:[%s1 + $0x228] sm:$0xff]
    %v110 = vld [vmem:[%s1 + $0x230] sm:$0xff]
    %v111 = vld [vmem:[%s1 + $0x238] sm:$0xff]
    %v112 = vld [vmem:[%s1 + $0x240] sm:$0xff]
    %v113 = vld [vmem:[%s1 + $0x248] sm:$0xff]
    %v114 = vld [vmem:[%s1 + $0x250] sm:$0xff]
    %v115 = vld [vmem:[%s1 + $0x258] sm:$0xff]
    %v116 = vld [vmem:[%s1 + $0x260] sm:$0xff]
    %v117 = vld [vmem:[%s1 + $0x268] sm:$0xff]
    %v118 = vld [vmem:[%s1 + $0x270] sm:$0xff]
    %v119 = vld [vmem:[%s1 + $0x278] sm:$0xff]
    %v120 = vld [vmem:[%s1 + $0x280] sm:$0xff]
    %v121 = vld [vmem:[%s1 + $0x288] sm:$0xff]
    %v122 = vld [vmem:[%s1 + $0x290] sm:$0xff]
    %v123 = vld [vmem:[%s1 + $0x298] sm:$0xff]
    %v124 = vld [vmem:[%s1 + $0x2a0] sm:$0xff]
    %v125 = vld [vmem:[%s1 + $0x2a8] sm:$0xff]
    %v126 = vld [vmem:[%s1 + $0x2b0] sm:$0xff]
    %v127 = vld [vmem:[%s1 + $0x2b8] sm:$0xff]
    %v128 = vld [vmem:[%s1 + $0x2c0] sm:$0xff]
    %v129 = vld [vmem:[%s1 + $0x2c8] sm:$0xff]
    %v130 = vld [vmem:[%s1 + $0x2d0] sm:$0xff]
    %v131 = vld [vmem:[%s1 + $0x2d8] sm:$0xff]
    %v132 = vld [vmem:[%s1 + $0x2e0] sm:$0xff]
    %v133 = vld [vmem:[%s1 + $0x2e8] sm:$0xff]
    %v134 = vld [vmem:[%s1 + $0x2f0] sm:$0xff]
    %v135 = vld [vmem:[%s1 + $0x2f8] sm:$0xff]
    %v136 = vld [vmem:[%s1 + $0x300] sm:$0xff]
    %v137 = vld [vmem:[%s1 + $0x308] sm:$0xff]
    %v138 = vld [vmem:[%s1 + $0x310] sm:$0xff]
    %v139 = vld [vmem:[%s1 + $0x318] sm:$0xff]
    %v140 = vld [vmem:[%s1 + $0x320] sm:$0xff]
    %v141 = vld [vmem:[%s1 + $0x328] sm:$0xff]
    %v142 = vld [vmem:[%s1 + $0x330] sm:$0xff]
    %v143 = vld [vmem:[%s1 + $0x338] sm:$0xff]
    %v144 = vld [vmem:[%s1 + $0x340] sm:$0xff]
    %v145 = vld [vmem:[%s1 + $0x348] sm:$0xff]
    %v146 = vld [vmem:[%s1 + $0x350] sm:$0xff]
    %v147 = vld [vmem:[%s1 + $0x358] sm:$0xff]
    %v148 = vld [vmem:[%s1 + $0x360] sm:$0xff]
    %v149 = vld [vmem:[%s1 + $0x368] sm:$0xff]
    %v150 = vld [vmem:[%s1 + $0x370] sm:$0xff]
    %v151 = vld [vmem:[%s1 + $0x378] sm:$0xff]
    %v152 = vld [vmem:[%s1 + $0x380] sm:$0xff]
    %v153 = vld [vmem:[%s1 + $0x388] sm:$0xff]
    %v154 = vld [vmem:[%s1 + $0x390] sm:$0xff]
    %v155 = vld [vmem:[%s1 + $0x398] sm:$0xff]
    %v156 = vld [vmem:[%s1 + $0x3a0] sm:$0xff]
    %v157 = vld [vmem:[%s1 + $0x3a8] sm:$0xff]
    %v158 = vld [vmem:[%s1 + $0x3b0] sm:$0xff]
    %v159 = vld [vmem:[%s1 + $0x3b8] sm:$0xff]
    %v160 = vld [vmem:[%s1 + $0x3c0] sm:$0xff]
    %v161 = vld [vmem:[%s1 + $0x3c8] sm:$0xff]
    %v162 = vld [vmem:[%s1 + $0x3d0] sm:$0xff]
    %v163 = vld [vmem:[%s1 + $0x3d8] sm:$0xff]
    %v164 = vld [vmem:[%s1 + $0x3e0] sm:$0xff]
    %v165 = vld [vmem:[%s1 + $0x3e8] sm:$0xff]
    %v166 = vld [vmem:[%s1 + $0x3f0] sm:$0xff]
    %v167 = vld [vmem:[%s1 + $0x3f8] sm:$0xff]
    %v168 = vld [vmem:[%s1 + $0x400] sm:$0xff]
    %v169 = vld [vmem:[%s1 + $0x408] sm:$0xff]
    %v170 = vld [vmem:[%s1 + $0x410] sm:$0xff]
    %v171 = vld [vmem:[%s1 + $0x418] sm:$0xff]
    %v172 = vld [vmem:[%s1 + $0x420] sm:$0xff]
    %v173 = vld [vmem:[%s1 + $0x428] sm:$0xff]
    %v174 = vld [vmem:[%s1 + $0x430] sm:$0xff]
    %v175 = vld [vmem:[%s1 + $0x438] sm:$0xff]
    %v176 = vld [vmem:[%s1 + $0x440] sm:$0xff]
    %v177 = vld [vmem:[%s1 + $0x448] sm:$0xff]
    %v178 = vld [vmem:[%s1 + $0x450] sm:$0xff]
    %v179 = vld [vmem:[%s1 + $0x458] sm:$0xff]
    %v180 = vld [vmem:[%s1 + $0x460] sm:$0xff]
    %v181 = vld [vmem:[%s1 + $0x468] sm:$0xff]
    %v182 = vld [vmem:[%s1 + $0x470] sm:$0xff]
    %v183 = vld [vmem:[%s1 + $0x478] sm:$0xff]
    %v184 = vld [vmem:[%s1 + $0x480] sm:$0xff]
    %v185 = vld [vmem:[%s1 + $0x488] sm:$0xff]
    %v186 = vld [vmem:[%s1 + $0x490] sm:$0xff]
    %v187 = vld [vmem:[%s1 + $0x498] sm:$0xff]
    %v188 = vld [vmem:[%s1 + $0x4a0] sm:$0xff]
    %v189 = vld [vmem:[%s1 + $0x4a8] sm:$0xff]
    %v190 = vld [vmem:[%s1 + $0x4b0] sm:$0xff]
    %v191 = vld [vmem:[%s1 + $0x4b8] sm:$0xff]
    %v192 = vld [vmem:[%s1 + $0x4c0] sm:$0xff]
    %v193 = vld [vmem:[%s1 + $0x4c8] sm:$0xff]
    %v194 = vld [vmem:[%s1 + $0x4d0] sm:$0xff]
    %v195 = vld [vmem:[%s1 + $0x4d8] sm:$0xff]
    %v196 = vld [vmem:[%s1 + $0x4e0] sm:$0xff]
    %v197 = vld [vmem:[%s1 + $0x4e8] sm:$0xff]
    %v198 = vld [vmem:[%s1 + $0x4f0] sm:$0xff]
    %v199 = vld [vmem:[%s1 + $0x4f8] sm:$0xff]
    %v200 = vld [vmem:[%s1 + $0x500] sm:$0xff]
    %v201 = vld [vmem:[%s1 + $0x508] sm:$0xff]
    %v202 = vld [vmem:[%s1 + $0x510] sm:$0xff]
    %v203 = vld [vmem:[%s1 + $0x518] sm:$0xff]
    %v204 = vld [vmem:[%s1 + $0x520] sm:$0xff]
    %v205 = vld [vmem:[%s1 + $0x528] sm:$0xff]
    %v206 = vld [vmem:[%s1 + $0x530] sm:$0xff]
    %v207 = vld [vmem:[%s1 + $0x538] sm:$0xff]
    %v208 = vld [vmem:[%s1 + $0x540] sm:$0xff]
    %v209 = vld [vmem:[%s1 + $0x548] sm:$0xff]
    %v210 = vld [vmem:[%s1 + $0x550] sm:$0xff]
    %v211 = vld [vmem:[%s1 + $0x558] sm:$0xff]
    %v212 = vld [vmem:[%s1 + $0x560] sm:$0xff]
    %v213 = vld [vmem:[%s1 + $0x568] sm:$0xff]
    %v214 = vld [vmem:[%s1 + $0x570] sm:$0xff]
    %v215 = vld [vmem:[%s1 + $0x578] sm:$0xff]
    %v216 = vld [vmem:[%s1 + $0x580] sm:$0xff]
    %v217 = vld [vmem:[%s1 + $0x588] sm:$0xff]
    %v218 = vld [vmem:[%s1 + $0x590] sm:$0xff]
    %v219 = vld [vmem:[%s1 + $0x598] sm:$0xff]
    %v220 = vld [vmem:[%s1 + $0x5a0] sm:$0xff]
    %v221 = vld [vmem:[%s1 + $0x5a8] sm:$0xff]
    %v222 = vld [vmem:[%s1 + $0x5b0] sm:$0xff]
    %v223 = vld [vmem:[%s1 + $0x5b8] sm:$0xff]
    %v224 = vld [vmem:[%s1 + $0x5c0] sm:$0xff]
    %v225 = vld [vmem:[%s1 + $0x5c8] sm:$0xff]
    %v226 = vld [vmem:[%s1 + $0x5d0] sm:$0xff]
    %v227 = vld [vmem:[%s1 + $0x5d8] sm:$0xff]
    %v228 = vld [vmem:[%s1 + $0x5e0] sm:$0xff]
    %v229 = vld [vmem:[%s1 + $0x5e8] sm:$0xff]
    %v230 = vld [vmem:[%s1 + $0x5f0] sm:$0xff]
    %v231 = vld [vmem:[%s1 + $0x5f8] sm:$0xff]
    %v232 = vld [vmem:[%s1 + $0x600] sm:$0xff]
    %v233 = vld [vmem:[%s1 + $0x608] sm:$0xff]
    %v234 = vld [vmem:[%s1 + $0x610] sm:$0xff]
    %v235 = vld [vmem:[%s1 + $0x618] sm:$0xff]
    %v236 = vld [vmem:[%s1 + $0x620] sm:$0xff]
    %v237 = vld [vmem:[%s1 + $0x628] sm:$0xff]
    %v238 = vld [vmem:[%s1 + $0x630] sm:$0xff]
    %v239 = vld [vmem:[%s1 + $0x638] sm:$0xff]
    %v240 = vld [vmem:[%s1 + $0x640] sm:$0xff]
    %v241 = vld [vmem:[%s1 + $0x648] sm:$0xff]
    %v242 = vld [vmem:[%s1 + $0x650] sm:$0xff]
    %v243 = vld [vmem:[%s1 + $0x658] sm:$0xff]
    %v244 = vld [vmem:[%s1 + $0x660] sm:$0xff]
    %v245 = vld [vmem:[%s1 + $0x668] sm:$0xff]
    %v246 = vld [vmem:[%s1 + $0x670] sm:$0xff]
    %v247 = vld [vmem:[%s1 + $0x678] sm:$0xff]
    %v248 = vld [vmem:[%s1 + $0x680] sm:$0xff]
    %v249 = vld [vmem:[%s1 + $0x688] sm:$0xff]
    %v250 = vld [vmem:[%s1 + $0x690] sm:$0xff]
    %v251 = vld [vmem:[%s1 + $0x698] sm:$0xff]
    %v252 = vld [vmem:[%s1 + $0x6a0] sm:$0xff]
    %v253 = vld [vmem:[%s1 + $0x6a8] sm:$0xff]
    %v254 = vld [vmem:[%s1 + $0x6b0] sm:$0xff]
    %v255 = vld [vmem:[%s1 + $0x6b8] sm:$0xff]
    %v256 = vld [vmem:[%s1 + $0x6c0] sm:$0xff]
    %v257 = vld [vmem:[%s1 + $0x6c8] sm:$0xff]
    %v258 = vld [vmem:[%s1 + $0x6d0] sm:$0xff]
    %v259 = vld [vmem:[%s1 + $0x6d8] sm:$0xff]
    %v260 = vld [vmem:[%s1 + $0x6e0] sm:$0xff]
    %v261 = vld [vmem:[%s1 + $0x6e8] sm:$0xff]
    %v262 = vld [vmem:[%s1 + $0x6f0] sm:$0xff]
    %v263 = vld [vmem:[%s1 + $0x6f8] sm:$0xff]
    %v264 = vld [vmem:[%s1 + $0x700] sm:$0xff]
    %v265 = vld [vmem:[%s1 + $0x708] sm:$0xff]
    %v266 = vld [vmem:[%s1 + $0x710] sm:$0xff]
    %v267 = vld [vmem:[%s1 + $0x718] sm:$0xff]
    %v268 = vld [vmem:[%s1 + $0x720] sm:$0xff]
    %v269 = vld [vmem:[%s1 + $0x728] sm:$0xff]
    %v270 = vld [vmem:[%s1 + $0x730] sm:$0xff]
    %v271 = vld [vmem:[%s1 + $0x738] sm:$0xff]
    %v272 = vld [vmem:[%s1 + $0x740] sm:$0xff]
    %v273 = vld [vmem:[%s1 + $0x748] sm:$0xff]
    %v274 = vld [vmem:[%s1 + $0x750] sm:$0xff]
    %v275 = vld [vmem:[%s1 + $0x758] sm:$0xff]
    %v276 = vld [vmem:[%s1 + $0x760] sm:$0xff]
    %v277 = vld [vmem:[%s1 + $0x768] sm:$0xff]
    %v278 = vld [vmem:[%s1 + $0x770] sm:$0xff]
    %v279 = vld [vmem:[%s1 + $0x778] sm:$0xff]
    %v280 = vld [vmem:[%s1 + $0x780] sm:$0xff]
    %v281 = vld [vmem:[%s1 + $0x788] sm:$0xff]
    %v282 = vld [vmem:[%s1 + $0x790] sm:$0xff]
    %v283 = vld [vmem:[%s1 + $0x798] sm:$0xff]
    %v284 = vld [vmem:[%s1 + $0x7a0] sm:$0xff]
    %v285 = vld [vmem:[%s1 + $0x7a8] sm:$0xff]
    %v286 = vld [vmem:[%s1 + $0x7b0] sm:$0xff]
    %v287 = vld [vmem:[%s1 + $0x7b8] sm:$0xff]
    %v288 = vld [vmem:[%s1 + $0x7c0] sm:$0xff]
    %v289 = vld [vmem:[%s1 + $0x7c8] sm:$0xff]
    %v290 = vld [vmem:[%s1 + $0x7d0] sm:$0xff]
    %v291 = vld [vmem:[%s1 + $0x7d8] sm:$0xff]
    %v292 = vld [vmem:[%s1 + $0x7e0] sm:$0xff]
    %v293 = vld [vmem:[%s1 + $0x7e8] sm:$0xff]
    %v294 = vld [vmem:[%s1 + $0x7f0] sm:$0xff]
    %v295 = vld [vmem:[%s1 + $0x7f8] sm:$0xff]
    %v296 = vld [vmem:[%s1 + $0x800] sm:$0xff]
    %v297 = vld [vmem:[%s1 + $0x808] sm:$0xff]
    %v298 = vld [vmem:[%s1 + $0x810] sm:$0xff]
    %v299 = vld [vmem:[%s1 + $0x818] sm:$0xff]
    %v300 = vld [vmem:[%s1 + $0x820] sm:$0xff]
    %v301 = vld [vmem:[%s1 + $0x828] sm:$0xff]
    %v302 = vld [vmem:[%s1 + $0x830] sm:$0xff]
    %v303 = vld [vmem:[%s1 + $0x838] sm:$0xff]
    %v304 = vld [vmem:[%s1 + $0x840] sm:$0xff]
    %v305 = vld [vmem:[%s1 + $0x848] sm:$0xff]
    %v306 = vld [vmem:[%s1 + $0x850] sm:$0xff]
    %v307 = vld [vmem:[%s1 + $0x858] sm:$0xff]
    %v308 = vld [vmem:[%s1 + $0x860] sm:$0xff]
    %v309 = vld [vmem:[%s1 + $0x868] sm:$0xff]
    %v310 = vld [vmem:[%s1 + $0x870] sm:$0xff]
    %v311 = vld [vmem:[%s1 + $0x878] sm:$0xff]
    %v312 = vld [vmem:[%s1 + $0x880] sm:$0xff]
    %v313 = vld [vmem:[%s1 + $0x888] sm:$0xff]
    %v314 = vld [vmem:[%s1 + $0x890] sm:$0xff]
    %v315 = vld [vmem:[%s1 + $0x898] sm:$0xff]
    %v316 = vld [vmem:[%s1 + $0x8a0] sm:$0xff]
    %v317 = vld [vmem:[%s1 + $0x8a8] sm:$0xff]
    %v318 = vld [vmem:[%s1 + $0x8b0] sm:$0xff]
    %v319 = vld [vmem:[%s1 + $0x8b8] sm:$0xff]
    %v320 = vld [vmem:[%s1 + $0x8c0] sm:$0xff]
    %v321 = vld [vmem:[%s1 + $0x8c8] sm:$0xff]
    %v322 = vld [vmem:[%s1 + $0x8d0] sm:$0xff]
    %v323 = vld [vmem:[%s1 + $0x8d8] sm:$0xff]
    %v324 = vld [vmem:[%s1 + $0x8e0] sm:$0xff]
    %v325 = vld [vmem:[%s1 + $0x8e8] sm:$0xff]
    %v326 = vld [vmem:[%s1 + $0x8f0] sm:$0xff]
    %v327 = vld [vmem:[%s1 + $0x8f8] sm:$0xff]
    %v328 = vld [vmem:[%s1 + $0x900] sm:$0xff]
    %v329 = vld [vmem:[%s1 + $0x908] sm:$0xff]
    %v330 = vld [vmem:[%s1 + $0x910] sm:$0xff]
    %v331 = vld [vmem:[%s1 + $0x918] sm:$0xff]
    %v332 = vld [vmem:[%s1 + $0x920] sm:$0xff]
    %v333 = vld [vmem:[%s1 + $0x928] sm:$0xff]
    %v334 = vld [vmem:[%s1 + $0x930] sm:$0xff]
    %v335 = vld [vmem:[%s1 + $0x938] sm:$0xff]
    %v336 = vld [vmem:[%s1 + $0x940] sm:$0xff]
    %v337 = vld [vmem:[%s1 + $0x948] sm:$0xff]
    %v338 = vld [vmem:[%s1 + $0x950] sm:$0xff]
    %v339 = vld [vmem:[%s1 + $0x958] sm:$0xff]
    %v340 = vld [vmem:[%s1 + $0x960] sm:$0xff]
    %v341 = vld [vmem:[%s1 + $0x968] sm:$0xff]
    %v342 = vld [vmem:[%s1 + $0x970] sm:$0xff]
    %v343 = vld [vmem:[%s1 + $0x978] sm:$0xff]
    %v344 = vld [vmem:[%s1 + $0x980] sm:$0xff]
    %v345 = vld [vmem:[%s1 + $0x988] sm:$0xff]
    %v346 = vld [vmem:[%s1 + $0x990] sm:$0xff]
    %v347 = vld [vmem:[%s1 + $0x998] sm:$0xff]
    %v348 = vld [vmem:[%s1 + $0x9a0] sm:$0xff]
    %v349 = vld [vmem:[%s1 + $0x9a8] sm:$0xff]
    %v350 = vld [vmem:[%s1 + $0x9b0] sm:$0xff]
    %v351 = vld [vmem:[%s1 + $0x9b8] sm:$0xff]
    %v352 = vld [vmem:[%s1 + $0x9c0] sm:$0xff]
    %v353 = vld [vmem:[%s1 + $0x9c8] sm:$0xff]
    %v354 = vld [vmem:[%s1 + $0x9d0] sm:$0xff]
    %v355 = vld [vmem:[%s1 + $0x9d8] sm:$0xff]
    %v356 = vld [vmem:[%s1 + $0x9e0] sm:$0xff]
    %v357 = vld [vmem:[%s1 + $0x9e8] sm:$0xff]
    %v358 = vld [vmem:[%s1 + $0x9f0] sm:$0xff]
    %v359 = vld [vmem:[%s1 + $0x9f8] sm:$0xff]
    %v360 = vld [vmem:[%s1 + $0xa00] sm:$0xff]
    %v361 = vld [vmem:[%s1 + $0xa08] sm:$0xff]
    %v362 = vld [vmem:[%s1 + $0xa10] sm:$0xff]
    %v363 = vld [vmem:[%s1 + $0xa18] sm:$0xff]
    %v364 = vld [vmem:[%s1 + $0xa20] sm:$0xff]
    %v365 = vld [vmem:[%s1 + $0xa28] sm:$0xff]
    %v366 = vld [vmem:[%s1 + $0xa30] sm:$0xff]
    %v367 = vld [vmem:[%s1 + $0xa38] sm:$0xff]
    %v368 = vld [vmem:[%s1 + $0xa40] sm:$0xff]
    %v369 = vld [vmem:[%s1 + $0xa48] sm:$0xff]
    %v370 = vld [vmem:[%s1 + $0xa50] sm:$0xff]
    %v371 = vld [vmem:[%s1 + $0xa58] sm:$0xff]
    %v372 = vld [vmem:[%s1 + $0xa60] sm:$0xff]
    %v373 = vld [vmem:[%s1 + $0xa68] sm:$0xff]
    %v374 = vld [vmem:[%s1 + $0xa70] sm:$0xff]
    %v375 = vld [vmem:[%s1 + $0xa78] sm:$0xff]
    %v376 = vld [vmem:[%s1 + $0xa80] sm:$0xff]
    %v377 = vld [vmem:[%s1 + $0xa88] sm:$0xff]
    %v378 = vld [vmem:[%s1 + $0xa90] sm:$0xff]
    %v379 = vld [vmem:[%s1 + $0xa98] sm:$0xff]
    %v380 = vld [vmem:[%s1 + $0xaa0] sm:$0xff]
    %v381 = vld [vmem:[%s1 + $0xaa8] sm:$0xff]
    %v382 = vld [vmem:[%s1 + $0xab0] sm:$0xff]
    %v383 = vld [vmem:[%s1 + $0xab8] sm:$0xff]
    %v384 = vld [vmem:[%s1 + $0xac0] sm:$0xff]
    %v385 = vld [vmem:[%s1 + $0xac8] sm:$0xff]
    %v386 = vld [vmem:[%s1 + $0xad0] sm:$0xff]
    %v387 = vld [vmem:[%s1 + $0xad8] sm:$0xff]
    %v388 = vld [vmem:[%s1 + $0xae0] sm:$0xff]
    %v389 = vld [vmem:[%s1 + $0xae8] sm:$0xff]
    %v390 = vld [vmem:[%s1 + $0xaf0] sm:$0xff]
    %v391 = vld [vmem:[%s1 + $0xaf8] sm:$0xff]
    %v392 = vld [vmem:[%s1 + $0xb00] sm:$0xff]
    %v393 = vld [vmem:[%s1 + $0xb08] sm:$0xff]
    %v394 = vld [vmem:[%s1 + $0xb10] sm:$0xff]
    %v395 = vld [vmem:[%s1 + $0xb18] sm:$0xff]
    %v396 = vld [vmem:[%s1 + $0xb20] sm:$0xff]
    %v397 = vld [vmem:[%s1 + $0xb28] sm:$0xff]
    %v398 = vld [vmem:[%s1 + $0xb30] sm:$0xff]
    %v399 = vld [vmem:[%s1 + $0xb38] sm:$0xff]
    %v400 = vld [vmem:[%s1 + $0xb40] sm:$0xff]
    %v401 = vld [vmem:[%s1 + $0xb48] sm:$0xff]
    %v402 = vld [vmem:[%s1 + $0xb50] sm:$0xff]
    %v403 = vld [vmem:[%s1 + $0xb58] sm:$0xff]
    %v404 = vld [vmem:[%s1 + $0xb60] sm:$0xff]
    %v405 = vld [vmem:[%s1 + $0xb68] sm:$0xff]
    %v406 = vld [vmem:[%s1 + $0xb70] sm:$0xff]
    %v407 = vld [vmem:[%s1 + $0xb78] sm:$0xff]
    %v408 = vld [vmem:[%s1 + $0xb80] sm:$0xff]
    %v409 = vld [vmem:[%s1 + $0xb88] sm:$0xff]
    %v410 = vld [vmem:[%s1 + $0xb90] sm:$0xff]
    %v411 = vld [vmem:[%s1 + $0xb98] sm:$0xff]
    %v412 = vld [vmem:[%s1 + $0xba0] sm:$0xff]
    %v413 = vld [vmem:[%s1 + $0xba8] sm:$0xff]
    %v414 = vld [vmem:[%s1 + $0xbb0] sm:$0xff]
    %v415 = vld [vmem:[%s1 + $0xbb8] sm:$0xff]
    %v416 = vld [vmem:[%s1 + $0xbc0] sm:$0xff]
    %v417 = vld [vmem:[%s1 + $0xbc8] sm:$0xff]
    %v418 = vld [vmem:[%s1 + $0xbd0] sm:$0xff]
    %v419 = vld [vmem:[%s1 + $0xbd8] sm:$0xff]
    %v420 = vld [vmem:[%s1 + $0xbe0] sm:$0xff]
    %v421 = vld [vmem:[%s1 + $0xbe8] sm:$0xff]
    %v422 = vld [vmem:[%s1 + $0xbf0] sm:$0xff]
    %v423 = vld [vmem:[%s1 + $0xbf8] sm:$0xff]
    %v424 = vld [vmem:[%s1 + $0xc00] sm:$0xff]
    %v425 = vld [vmem:[%s1 + $0xc08] sm:$0xff]
    %v426 = vld [vmem:[%s1 + $0xc10] sm:$0xff]
    %v427 = vld [vmem:[%s1 + $0xc18] sm:$0xff]
    %v428 = vld [vmem:[%s1 + $0xc20] sm:$0xff]
    %v429 = vld [vmem:[%s1 + $0xc28] sm:$0xff]
    %v430 = vld [vmem:[%s1 + $0xc30] sm:$0xff]
    %v431 = vld [vmem:[%s1 + $0xc38] sm:$0xff]
    %v432 = vld [vmem:[%s1 + $0xc40] sm:$0xff]
    %v433 = vld [vmem:[%s1 + $0xc48] sm:$0xff]
    %v434 = vld [vmem:[%s1 + $0xc50] sm:$0xff]
    %v435 = vld [vmem:[%s1 + $0xc58] sm:$0xff]
    %v436 = vld [vmem:[%s1 + $0xc60] sm:$0xff]
    %v437 = vld [vmem:[%s1 + $0xc68] sm:$0xff]
    %v438 = vld [vmem:[%s1 + $0xc70] sm:$0xff]
    %v439 = vld [vmem:[%s1 + $0xc78] sm:$0xff]
    %v440 = vld [vmem:[%s1 + $0xc80] sm:$0xff]
    %v441 = vld [vmem:[%s1 + $0xc88] sm:$0xff]
    %v442 = vld [vmem:[%s1 + $0xc90] sm:$0xff]
    %v443 = vld [vmem:[%s1 + $0xc98] sm:$0xff]
    %v444 = vld [vmem:[%s1 + $0xca0] sm:$0xff]
    %v445 = vld [vmem:[%s1 + $0xca8] sm:$0xff]
    %v446 = vld [vmem:[%s1 + $0xcb0] sm:$0xff]
    %v447 = vld [vmem:[%s1 + $0xcb8] sm:$0xff]
    %v448 = vld [vmem:[%s1 + $0xcc0] sm:$0xff]
    %v449 = vld [vmem:[%s1 + $0xcc8] sm:$0xff]
    %v450 = vld [vmem:[%s1 + $0xcd0] sm:$0xff]
    %v451 = vld [vmem:[%s1 + $0xcd8] sm:$0xff]
    %v452 = vld [vmem:[%s1 + $0xce0] sm:$0xff]
    %v453 = vld [vmem:[%s1 + $0xce8] sm:$0xff]
    %v454 = vld [vmem:[%s1 + $0xcf0] sm:$0xff]
    %v455 = vld [vmem:[%s1 + $0xcf8] sm:$0xff]
    %v456 = vld [vmem:[%s1 + $0xd00] sm:$0xff]
    %v457 = vld [vmem:[%s1 + $0xd08] sm:$0xff]
    %v458 = vld [vmem:[%s1 + $0xd10] sm:$0xff]
    %v459 = vld [vmem:[%s1 + $0xd18] sm:$0xff]
    %v460 = vld [vmem:[%s1 + $0xd20] sm:$0xff]
    %v461 = vld [vmem:[%s1 + $0xd28] sm:$0xff]
    %v462 = vld [vmem:[%s1 + $0xd30] sm:$0xff]
    %v463 = vld [vmem:[%s1 + $0xd38] sm:$0xff]
    %v464 = vld [vmem:[%s1 + $0xd40] sm:$0xff]
    %v465 = vld [vmem:[%s1 + $0xd48] sm:$0xff]
    %v466 = vld [vmem:[%s1 + $0xd50] sm:$0xff]
    %v467 = vld [vmem:[%s1 + $0xd58] sm:$0xff]
    %v468 = vld [vmem:[%s1 + $0xd60] sm:$0xff]
    %v469 = vld [vmem:[%s1 + $0xd68] sm:$0xff]
    %v470 = vld [vmem:[%s1 + $0xd70] sm:$0xff]
    %v471 = vld [vmem:[%s1 + $0xd78] sm:$0xff]
    %v472 = vld [vmem:[%s1 + $0xd80] sm:$0xff]
    %v473 = vld [vmem:[%s1 + $0xd88] sm:$0xff]
    %v474 = vld [vmem:[%s1 + $0xd90] sm:$0xff]
    %v475 = vld [vmem:[%s1 + $0xd98] sm:$0xff]
    %v476 = vld [vmem:[%s1 + $0xda0] sm:$0xff]
    %v477 = vld [vmem:[%s1 + $0xda8] sm:$0xff]
    %v478 = vld [vmem:[%s1 + $0xdb0] sm:$0xff]
    %v479 = vld [vmem:[%s1 + $0xdb8] sm:$0xff]
    %v480 = vld [vmem:[%s1 + $0xdc0] sm:$0xff]
    %v481 = vld [vmem:[%s1 + $0xdc8] sm:$0xff]
    %v482 = vld [vmem:[%s1 + $0xdd0] sm:$0xff]
    %v483 = vld [vmem:[%s1 + $0xdd8] sm:$0xff]
    %v484 = vld [vmem:[%s1 + $0xde0] sm:$0xff]
    %v485 = vld [vmem:[%s1 + $0xde8] sm:$0xff]
    %v486 = vld [vmem:[%s1 + $0xdf0] sm:$0xff]
    %v487 = vld [vmem:[%s1 + $0xdf8] sm:$0xff]
    %v488 = vld [vmem:[%s1 + $0xe00] sm:$0xff]
    %v489 = vld [vmem:[%s1 + $0xe08] sm:$0xff]
    %v490 = vld [vmem:[%s1 + $0xe10] sm:$0xff]
    %v491 = vld [vmem:[%s1 + $0xe18] sm:$0xff]
    %v492 = vld [vmem:[%s1 + $0xe20] sm:$0xff]
    %v493 = vld [vmem:[%s1 + $0xe28] sm:$0xff]
    %v494 = vld [vmem:[%s1 + $0xe30] sm:$0xff]
    %v495 = vld [vmem:[%s1 + $0xe38] sm:$0xff]
    %v496 = vld [vmem:[%s1 + $0xe40] sm:$0xff]
    %v497 = vld [vmem:[%s1 + $0xe48] sm:$0xff]
    %v498 = vld [vmem:[%s1 + $0xe50] sm:$0xff]
    %v499 = vld [vmem:[%s1 + $0xe58] sm:$0xff]
    %v500 = vld [vmem:[%s1 + $0xe60] sm:$0xff]
    %v501 = vld [vmem:[%s1 + $0xe68] sm:$0xff]
    %v502 = vld [vmem:[%s1 + $0xe70] sm:$0xff]
    %v503 = vld [vmem:[%s1 + $0xe78] sm:$0xff]
    %v504 = vld [vmem:[%s1 + $0xe80] sm:$0xff]
    %v505 = vld [vmem:[%s1 + $0xe88] sm:$0xff]
    %v506 = vld [vmem:[%s1 + $0xe90] sm:$0xff]
    %v507 = vld [vmem:[%s1 + $0xe98] sm:$0xff]
    %v508 = vld [vmem:[%s1 + $0xea0] sm:$0xff]
    %v509 = vld [vmem:[%s1 + $0xea8] sm:$0xff]
    %v510 = vld [vmem:[%s1 + $0xeb0] sm:$0xff]
    %v511 = vld [vmem:[%s1 + $0xeb8] sm:$0xff]
    %v512 = vld [vmem:[%s1 + $0xec0] sm:$0xff]
    %v513 = vld [vmem:[%s1 + $0xec8] sm:$0xff]
    %v514 = vld [vmem:[%s1 + $0xed0] sm:$0xff]
    %v515 = vld [vmem:[%s1 + $0xed8] sm:$0xff]
    %v516 = vld [vmem:[%s1 + $0xee0] sm:$0xff]
    %v517 = vld [vmem:[%s1 + $0xee8] sm:$0xff]
    %v518 = vld [vmem:[%s1 + $0xef0] sm:$0xff]
    %v519 = vld [vmem:[%s1 + $0xef8] sm:$0xff]
    %v520 = vld [vmem:[%s1 + $0xf00] sm:$0xff]
    %v521 = vld [vmem:[%s1 + $0xf08] sm:$0xff]
    %v522 = vld [vmem:[%s1 + $0xf10] sm:$0xff]
    %v523 = vld [vmem:[%s1 + $0xf18] sm:$0xff]
    %v524 = vld [vmem:[%s1 + $0xf20] sm:$0xff]
    %v525 = vld [vmem:[%s1 + $0xf28] sm:$0xff]
    %v526 = vld [vmem:[%s1 + $0xf30] sm:$0xff]
    %v527 = vld [vmem:[%s1 + $0xf38] sm:$0xff]
    %v528 = vld [vmem:[%s1 + $0xf40] sm:$0xff]
    %v529 = vld [vmem:[%s1 + $0xf48] sm:$0xff]
    %v530 = vld [vmem:[%s1 + $0xf50] sm:$0xff]
    %v531 = vld [vmem:[%s1 + $0xf58] sm:$0xff]
    %v532 = vld [vmem:[%s1 + $0xf60] sm:$0xff]
    %v533 = vld [vmem:[%s1 + $0xf68] sm:$0xff]
    %v534 = vld [vmem:[%s1 + $0xf70] sm:$0xff]
    %v535 = vld [vmem:[%s1 + $0xf78] sm:$0xff]
    %v536 = vld [vmem:[%s1 + $0xf80] sm:$0xff]
    %v537 = vld [vmem:[%s1 + $0xf88] sm:$0xff]
    %v538 = vld [vmem:[%s1 + $0xf90] sm:$0xff]
    %v539 = vld [vmem:[%s1 + $0xf98] sm:$0xff]
    %v540 = vld [vmem:[%s1 + $0xfa0] sm:$0xff]
    %v541 = vld [vmem:[%s1 + $0xfa8] sm:$0xff]
    %v542 = vld [vmem:[%s1 + $0xfb0] sm:$0xff]
    %v543 = vld [vmem:[%s1 + $0xfb8] sm:$0xff]
    %v544 = vld [vmem:[%s1 + $0xfc0] sm:$0xff]
    %v545 = vld [vmem:[%s1 + $0xfc8] sm:$0xff]
    %v546 = vld [vmem:[%s1 + $0xfd0] sm:$0xff]
    %v547 = vld [vmem:[%s1 + $0xfd8] sm:$0xff]
    %v548 = vld [vmem:[%s1 + $0xfe0] sm:$0xff]
    %v549 = vld [vmem:[%s1 + $0xfe8] sm:$0xff]
    %v550 = vld [vmem:[%s1 + $0xff0] sm:$0xff]
    %v551 = vld [vmem:[%s1 + $0xff8] sm:$0xff]
    %v552 = vld [vmem:[%s1 + $0x1000] sm:$0xff]
    %v553 = vld [vmem:[%s1 + $0x1008] sm:$0xff]
    %v554 = vld [vmem:[%s1 + $0x1010] sm:$0xff]
    %v555 = vld [vmem:[%s1 + $0x1018] sm:$0xff]
    %v556 = vld [vmem:[%s1 + $0x1020] sm:$0xff]
    %v557 = vld [vmem:[%s1 + $0x1028] sm:$0xff]
    %v558 = vld [vmem:[%s1 + $0x1030] sm:$0xff]
    %v559 = vld [vmem:[%s1 + $0x1038] sm:$0xff]
    %v560 = vld [vmem:[%s1 + $0x1040] sm:$0xff]
    %v561 = vld [vmem:[%s1 + $0x1048] sm:$0xff]
    %v562 = vld [vmem:[%s1 + $0x1050] sm:$0xff]
    %v563 = vld [vmem:[%s1 + $0x1058] sm:$0xff]
    %v564 = vld [vmem:[%s1 + $0x1060] sm:$0xff]
    %v565 = vld [vmem:[%s1 + $0x1068] sm:$0xff]
    %v566 = vld [vmem:[%s1 + $0x1070] sm:$0xff]
    %v567 = vld [vmem:[%s1 + $0x1078] sm:$0xff]
    %v568 = vld [vmem:[%s1 + $0x1080] sm:$0xff]
    %v569 = vld [vmem:[%s1 + $0x1088] sm:$0xff]
    %v570 = vld [vmem:[%s1 + $0x1090] sm:$0xff]
    %v571 = vld [vmem:[%s1 + $0x1098] sm:$0xff]
    %v572 = vld [vmem:[%s1 + $0x10a0] sm:$0xff]
    %v573 = vld [vmem:[%s1 + $0x10a8] sm:$0xff]
    %v574 = vld [vmem:[%s1 + $0x10b0] sm:$0xff]
    %v575 = vld [vmem:[%s1 + $0x10b8] sm:$0xff]
    %v576 = vld [vmem:[%s1 + $0x10c0] sm:$0xff]
    %v577 = vld [vmem:[%s1 + $0x10c8] sm:$0xff]
    %v578 = vld [vmem:[%s1 + $0x10d0] sm:$0xff]
    %v579 = vld [vmem:[%s1 + $0x10d8] sm:$0xff]
    %v580 = vld [vmem:[%s1 + $0x10e0] sm:$0xff]
    %v581 = vld [vmem:[%s1 + $0x10e8] sm:$0xff]
    %v582 = vld [vmem:[%s1 + $0x10f0] sm:$0xff]
    %v583 = vld [vmem:[%s1 + $0x10f8] sm:$0xff]
    %v584 = vld [vmem:[%s1 + $0x1100] sm:$0xff]
    %v585 = vld [vmem:[%s1 + $0x1108] sm:$0xff]
    %v586 = vld [vmem:[%s1 + $0x1110] sm:$0xff]
    %v587 = vld [vmem:[%s1 + $0x1118] sm:$0xff]
    %v588 = vld [vmem:[%s1 + $0x1120] sm:$0xff]
    %v589 = vld [vmem:[%s1 + $0x1128] sm:$0xff]
    %v590 = vld [vmem:[%s1 + $0x1130] sm:$0xff]
    %v591 = vld [vmem:[%s1 + $0x1138] sm:$0xff]
    %v592 = vld [vmem:[%s1 + $0x1140] sm:$0xff]
    %v593 = vld [vmem:[%s1 + $0x1148] sm:$0xff]
    %v594 = vld [vmem:[%s1 + $0x1150] sm:$0xff]
    %v595 = vld [vmem:[%s1 + $0x1158] sm:$0xff]
    %v596 = vld [vmem:[%s1 + $0x1160] sm:$0xff]
    %v597 = vld [vmem:[%s1 + $0x1168] sm:$0xff]
    %v598 = vld [vmem:[%s1 + $0x1170] sm:$0xff]
    %v599 = vld [vmem:[%s1 + $0x1178] sm:$0xff]
    %v600 = vld [vmem:[%s1 + $0x1180] sm:$0xff]
    %v601 = vld [vmem:[%s1 + $0x1188] sm:$0xff]
    %v602 = vld [vmem:[%s1 + $0x1190] sm:$0xff]
    %v603 = vld [vmem:[%s1 + $0x1198] sm:$0xff]
    %v604 = vld [vmem:[%s1 + $0x11a0] sm:$0xff]
    %v605 = vld [vmem:[%s1 + $0x11a8] sm:$0xff]
    %v606 = vld [vmem:[%s1 + $0x11b0] sm:$0xff]
    %v607 = vld [vmem:[%s1 + $0x11b8] sm:$0xff]
    %v608 = vld [vmem:[%s1 + $0x11c0] sm:$0xff]
    %v609 = vld [vmem:[%s1 + $0x11c8] sm:$0xff]
    %v610 = vld [vmem:[%s1 + $0x11d0] sm:$0xff]
    %v611 = vld [vmem:[%s1 + $0x11d8] sm:$0xff]
    %v612 = vld [vmem:[%s1 + $0x11e0] sm:$0xff]
    %v613 = vld [vmem:[%s1 + $0x11e8] sm:$0xff]
    %v614 = vld [vmem:[%s1 + $0x11f0] sm:$0xff]
    %v615 = vld [vmem:[%s1 + $0x11f8] sm:$0xff]
    %v616 = vld [vmem:[%s1 + $0x1200] sm:$0xff]
    %v617 = vld [vmem:[%s1 + $0x1208] sm:$0xff]
    %v618 = vld [vmem:[%s1 + $0x1210] sm:$0xff]
    %v619 = vld [vmem:[%s1 + $0x1218] sm:$0xff]
    %v620 = vld [vmem:[%s1 + $0x1220] sm:$0xff]
    %v621 = vld [vmem:[%s1 + $0x1228] sm:$0xff]
    %v622 = vld [vmem:[%s1 + $0x1230] sm:$0xff]
    %v623 = vld [vmem:[%s1 + $0x1238] sm:$0xff]
    %v624 = vld [vmem:[%s1 + $0x1240] sm:$0xff]
    %v625 = vld [vmem:[%s1 + $0x1248] sm:$0xff]
    %v626 = vld [vmem:[%s1 + $0x1250] sm:$0xff]
    %v627 = vld [vmem:[%s1 + $0x1258] sm:$0xff]
    %v628 = vld [vmem:[%s1 + $0x1260] sm:$0xff]
    %v629 = vld [vmem:[%s1 + $0x1268] sm:$0xff]
    %v630 = vld [vmem:[%s1 + $0x1270] sm:$0xff]
    %v631 = vld [vmem:[%s1 + $0x1278] sm:$0xff]
    %v632 = vld [vmem:[%s1 + $0x1280] sm:$0xff]
    %v633 = vld [vmem:[%s1 + $0x1288] sm:$0xff]
    %v634 = vld [vmem:[%s1 + $0x1290] sm:$0xff]
    %v635 = vld [vmem:[%s1 + $0x1298] sm:$0xff]
    %v636 = vld [vmem:[%s1 + $0x12a0] sm:$0xff]
    %v637 = vld [vmem:[%s1 + $0x12a8] sm:$0xff]
    %v638 = vld [vmem:[%s1 + $0x12b0] sm:$0xff]
    %v639 = vld [vmem:[%s1 + $0x12b8] sm:$0xff]
    %v640 = vld [vmem:[%s1 + $0x12c0] sm:$0xff]
    %v641 = vld [vmem:[%s1 + $0x12c8] sm:$0xff]
    %v642 = vld [vmem:[%s1 + $0x12d0] sm:$0xff]
    %v643 = vld [vmem:[%s1 + $0x12d8] sm:$0xff]
    %v644 = vld [vmem:[%s1 + $0x12e0] sm:$0xff]
    %v645 = vld [vmem:[%s1 + $0x12e8] sm:$0xff]
    %v646 = vld [vmem:[%s1 + $0x12f0] sm:$0xff]
    %v647 = vld [vmem:[%s1 + $0x12f8] sm:$0xff]
    %v648 = vld [vmem:[%s1 + $0x1300] sm:$0xff]
    %v649 = vld [vmem:[%s1 + $0x1308] sm:$0xff]
    %v650 = vld [vmem:[%s1 + $0x1310] sm:$0xff]
    %v651 = vld [vmem:[%s1 + $0x1318] sm:$0xff]
    %v652 = vld [vmem:[%s1 + $0x1320] sm:$0xff]
    %v653 = vld [vmem:[%s1 + $0x1328] sm:$0xff]
    %v654 = vld [vmem:[%s1 + $0x1330] sm:$0xff]
    %v655 = vld [vmem:[%s1 + $0x1338] sm:$0xff]
    %v656 = vld [vmem:[%s1 + $0x1340] sm:$0xff]
    %v657 = vld [vmem:[%s1 + $0x1348] sm:$0xff]
    %v658 = vld [vmem:[%s1 + $0x1350] sm:$0xff]
    %v659 = vld [vmem:[%s1 + $0x1358] sm:$0xff]
    %v660 = vld [vmem:[%s1 + $0x1360] sm:$0xff]
    %v661 = vld [vmem:[%s1 + $0x1368] sm:$0xff]
    %v662 = vld [vmem:[%s1 + $0x1370] sm:$0xff]
    %v663 = vld [vmem:[%s1 + $0x1378] sm:$0xff]
    %v664 = vld [vmem:[%s1 + $0x1380] sm:$0xff]
    %v665 = vld [vmem:[%s1 + $0x1388] sm:$0xff]
    %v666 = vld [vmem:[%s1 + $0x1390] sm:$0xff]
    %v667 = vld [vmem:[%s1 + $0x1398] sm:$0xff]
    %v668 = vld [vmem:[%s1 + $0x13a0] sm:$0xff]
    %v669 = vld [vmem:[%s1 + $0x13a8] sm:$0xff]
    %v670 = vld [vmem:[%s1 + $0x13b0] sm:$0xff]
    %v671 = vld [vmem:[%s1 + $0x13b8] sm:$0xff]
    %v672 = vld [vmem:[%s1 + $0x13c0] sm:$0xff]
    %v673 = vld [vmem:[%s1 + $0x13c8] sm:$0xff]
    %v674 = vld [vmem:[%s1 + $0x13d0] sm:$0xff]
    %v675 = vld [vmem:[%s1 + $0x13d8] sm:$0xff]
    %v676 = vld [vmem:[%s1 + $0x13e0] sm:$0xff]
    %v677 = vld [vmem:[%s1 + $0x13e8] sm:$0xff]
    %v678 = vld [vmem:[%s1 + $0x13f0] sm:$0xff]
    %v679 = vld [vmem:[%s1 + $0x13f8] sm:$0xff]
    %v680 = vld [vmem:[%s1 + $0x1400] sm:$0xff]
    %v681 = vld [vmem:[%s1 + $0x1408] sm:$0xff]
    %v682 = vld [vmem:[%s1 + $0x1410] sm:$0xff]
    %v683 = vld [vmem:[%s1 + $0x1418] sm:$0xff]
    %v684 = vld [vmem:[%s1 + $0x1420] sm:$0xff]
    %v685 = vld [vmem:[%s1 + $0x1428] sm:$0xff]
    %v686 = vld [vmem:[%s1 + $0x1430] sm:$0xff]
    %v687 = vld [vmem:[%s1 + $0x1438] sm:$0xff]
    %v688 = vld [vmem:[%s1 + $0x1440] sm:$0xff]
    %v689 = vld [vmem:[%s1 + $0x1448] sm:$0xff]
    %v690 = vld [vmem:[%s1 + $0x1450] sm:$0xff]
    %v691 = vld [vmem:[%s1 + $0x1458] sm:$0xff]
    %v692 = vld [vmem:[%s1 + $0x1460] sm:$0xff]
    %v693 = vld [vmem:[%s1 + $0x1468] sm:$0xff]
    %v694 = vld [vmem:[%s1 + $0x1470] sm:$0xff]
    %v695 = vld [vmem:[%s1 + $0x1478] sm:$0xff]
    %v696 = vld [vmem:[%s1 + $0x1480] sm:$0xff]
    %v697 = vld [vmem:[%s1 + $0x1488] sm:$0xff]
    %v698 = vld [vmem:[%s1 + $0x1490] sm:$0xff]
    %v699 = vld [vmem:[%s1 + $0x1498] sm:$0xff]
    %v700 = vld [vmem:[%s1 + $0x14a0] sm:$0xff]
    %v701 = vld [vmem:[%s1 + $0x14a8] sm:$0xff]
    %v702 = vld [vmem:[%s1 + $0x14b0] sm:$0xff]
    %v703 = vld [vmem:[%s1 + $0x14b8] sm:$0xff]
    %v704 = vld [vmem:[%s1 + $0x14c0] sm:$0xff]
    %v705 = vld [vmem:[%s1 + $0x14c8] sm:$0xff]
    %v706 = vld [vmem:[%s1 + $0x14d0] sm:$0xff]
    %v707 = vld [vmem:[%s1 + $0x14d8] sm:$0xff]
    %v708 = vld [vmem:[%s1 + $0x14e0] sm:$0xff]
    %v709 = vld [vmem:[%s1 + $0x14e8] sm:$0xff]
    %v710 = vld [vmem:[%s1 + $0x14f0] sm:$0xff]
    %v711 = vld [vmem:[%s1 + $0x14f8] sm:$0xff]
    %v712 = vld [vmem:[%s1 + $0x1500] sm:$0xff]
    %v713 = vld [vmem:[%s1 + $0x1508] sm:$0xff]
    %v714 = vld [vmem:[%s1 + $0x1510] sm:$0xff]
    %v715 = vld [vmem:[%s1 + $0x1518] sm:$0xff]
    %v716 = vld [vmem:[%s1 + $0x1520] sm:$0xff]
    %v717 = vld [vmem:[%s1 + $0x1528] sm:$0xff]
    %v718 = vld [vmem:[%s1 + $0x1530] sm:$0xff]
    %v719 = vld [vmem:[%s1 + $0x1538] sm:$0xff]
    %v720 = vld [vmem:[%s1 + $0x1540] sm:$0xff]
    %v721 = vld [vmem:[%s1 + $0x1548] sm:$0xff]
    %v722 = vld [vmem:[%s1 + $0x1550] sm:$0xff]
    %v723 = vld [vmem:[%s1 + $0x1558] sm:$0xff]
    %v724 = vld [vmem:[%s1 + $0x1560] sm:$0xff]
    %v725 = vld [vmem:[%s1 + $0x1568] sm:$0xff]
    %v726 = vld [vmem:[%s1 + $0x1570] sm:$0xff]
    %v727 = vld [vmem:[%s1 + $0x1578] sm:$0xff]
    %v728 = vld [vmem:[%s1 + $0x1580] sm:$0xff]
    %v729 = vld [vmem:[%s1 + $0x1588] sm:$0xff]
    %v730 = vld [vmem:[%s1 + $0x1590] sm:$0xff]
    %v731 = vld [vmem:[%s1 + $0x1598] sm:$0xff]
    %v732 = vld [vmem:[%s1 + $0x15a0] sm:$0xff]
    %v733 = vld [vmem:[%s1 + $0x15a8] sm:$0xff]
    %v734 = vld [vmem:[%s1 + $0x15b0] sm:$0xff]
    %v735 = vld [vmem:[%s1 + $0x15b8] sm:$0xff]
    %v736 = vld [vmem:[%s1 + $0x15c0] sm:$0xff]
    %v737 = vld [vmem:[%s1 + $0x15c8] sm:$0xff]
    %v738 = vld [vmem:[%s1 + $0x15d0] sm:$0xff]
    %v739 = vld [vmem:[%s1 + $0x15d8] sm:$0xff]
    %v740 = vld [vmem:[%s1 + $0x15e0] sm:$0xff]
    %v741 = vld [vmem:[%s1 + $0x15e8] sm:$0xff]
    %v742 = vld [vmem:[%s1 + $0x15f0] sm:$0xff]
    %v743 = vld [vmem:[%s1 + $0x15f8] sm:$0xff]
    %v744 = vld [vmem:[%s1 + $0x1600] sm:$0xff]
    %v745 = vld [vmem:[%s1 + $0x1608] sm:$0xff]
    %v746 = vld [vmem:[%s1 + $0x1610] sm:$0xff]
    %v747 = vld [vmem:[%s1 + $0x1618] sm:$0xff]
    %v748 = vld [vmem:[%s1 + $0x1620] sm:$0xff]
    %v749 = vld [vmem:[%s1 + $0x1628] sm:$0xff]
    %v750 = vld [vmem:[%s1 + $0x1630] sm:$0xff]
    %v751 = vld [vmem:[%s1 + $0x1638] sm:$0xff]
    %v752 = vld [vmem:[%s1 + $0x1640] sm:$0xff]
    %v753 = vld [vmem:[%s1 + $0x1648] sm:$0xff]
    %v754 = vld [vmem:[%s1 + $0x1650] sm:$0xff]
    %v755 = vld [vmem:[%s1 + $0x1658] sm:$0xff]
    %v756 = vld [vmem:[%s1 + $0x1660] sm:$0xff]
    %v757 = vld [vmem:[%s1 + $0x1668] sm:$0xff]
    %v758 = vld [vmem:[%s1 + $0x1670] sm:$0xff]
    %v759 = vld [vmem:[%s1 + $0x1678] sm:$0xff]
    %v760 = vld [vmem:[%s1 + $0x1680] sm:$0xff]
    %v761 = vld [vmem:[%s1 + $0x1688] sm:$0xff]
    %v762 = vld [vmem:[%s1 + $0x1690] sm:$0xff]
    %v763 = vld [vmem:[%s1 + $0x1698] sm:$0xff]
    %v764 = vld [vmem:[%s1 + $0x16a0] sm:$0xff]
    %v765 = vld [vmem:[%s1 + $0x16a8] sm:$0xff]
    %v766 = vld [vmem:[%s1 + $0x16b0] sm:$0xff]
    %v767 = vld [vmem:[%s1 + $0x16b8] sm:$0xff]
    %v768 = vld [vmem:[%s1 + $0x16c0] sm:$0xff]
    %v769 = vld [vmem:[%s1 + $0x16c8] sm:$0xff]
    %v770 = vld [vmem:[%s1 + $0x16d0] sm:$0xff]
    %v771 = vld [vmem:[%s1 + $0x16d8] sm:$0xff]
    %v772 = vld [vmem:[%s1 + $0x16e0] sm:$0xff]
    %v773 = vld [vmem:[%s1 + $0x16e8] sm:$0xff]
    %v774 = vld [vmem:[%s1 + $0x16f0] sm:$0xff]
    %v775 = vld [vmem:[%s1 + $0x16f8] sm:$0xff]
    %v776 = vld [vmem:[%s1 + $0x1700] sm:$0xff]
    %v777 = vld [vmem:[%s1 + $0x1708] sm:$0xff]
    %v778 = vld [vmem:[%s1 + $0x1710] sm:$0xff]
    %v779 = vld [vmem:[%s1 + $0x1718] sm:$0xff]
    %v780 = vld [vmem:[%s1 + $0x1720] sm:$0xff]
    %v781 = vld [vmem:[%s1 + $0x1728] sm:$0xff]
    %v782 = vld [vmem:[%s1 + $0x1730] sm:$0xff]
    %v783 = vld [vmem:[%s1 + $0x1738] sm:$0xff]
    %v784 = vld [vmem:[%s1 + $0x1740] sm:$0xff]
    %v785 = vld [vmem:[%s1 + $0x1748] sm:$0xff]
    %v786 = vld [vmem:[%s1 + $0x1750] sm:$0xff]
    %v787 = vld [vmem:[%s1 + $0x1758] sm:$0xff]
    %v788 = vld [vmem:[%s1 + $0x1760] sm:$0xff]
    %v789 = vld [vmem:[%s1 + $0x1768] sm:$0xff]
    %v790 = vld [vmem:[%s1 + $0x1770] sm:$0xff]
    %v791 = vld [vmem:[%s1 + $0x1778] sm:$0xff]
    %v792 = vld [vmem:[%s1 + $0x1780] sm:$0xff]
    %v793 = vld [vmem:[%s1 + $0x1788] sm:$0xff]
    %v794 = vld [vmem:[%s1 + $0x1790] sm:$0xff]
    %v795 = vld [vmem:[%s1 + $0x1798] sm:$0xff]
    %v796 = vld [vmem:[%s1 + $0x17a0] sm:$0xff]
    %v797 = vld [vmem:[%s1 + $0x17a8] sm:$0xff]
    %v798 = vld [vmem:[%s1 + $0x17b0] sm:$0xff]
    %v799 = vld [vmem:[%s1 + $0x17b8] sm:$0xff]
    %v800 = vld [vmem:[%s1 + $0x17c0] sm:$0xff]
    %v801 = vld [vmem:[%s1 + $0x17c8] sm:$0xff]
    %v802 = vld [vmem:[%s1 + $0x17d0] sm:$0xff]
    %v803 = vld [vmem:[%s1 + $0x17d8] sm:$0xff]
    %v804 = vld [vmem:[%s1 + $0x17e0] sm:$0xff]
    %v805 = vld [vmem:[%s1 + $0x17e8] sm:$0xff]
    %v806 = vld [vmem:[%s1 + $0x17f0] sm:$0xff]
    %v807 = vld [vmem:[%s1 + $0x17f8] sm:$0xff]
    %v808 = vld [vmem:[%s1 + $0x1800] sm:$0xff]
    %v809 = vld [vmem:[%s1 + $0x1808] sm:$0xff]
    %v810 = vld [vmem:[%s1 + $0x1810] sm:$0xff]
    %v811 = vld [vmem:[%s1 + $0x1818] sm:$0xff]
    %v812 = vld [vmem:[%s1 + $0x1820] sm:$0xff]
    %v813 = vld [vmem:[%s1 + $0x1828] sm:$0xff]
    %v814 = vld [vmem:[%s1 + $0x1830] sm:$0xff]
    %v815 = vld [vmem:[%s1 + $0x1838] sm:$0xff]
    %v816 = vld [vmem:[%s1 + $0x1840] sm:$0xff]
    %v817 = vld [vmem:[%s1 + $0x1848] sm:$0xff]
    %v818 = vld [vmem:[%s1 + $0x1850] sm:$0xff]
    %v819 = vld [vmem:[%s1 + $0x1858] sm:$0xff]
    %v820 = vld [vmem:[%s1 + $0x1860] sm:$0xff]
    %v821 = vld [vmem:[%s1 + $0x1868] sm:$0xff]
    %v822 = vld [vmem:[%s1 + $0x1870] sm:$0xff]
    %v823 = vld [vmem:[%s1 + $0x1878] sm:$0xff]
    %v824 = vld [vmem:[%s2] sm:$0xf]
    %v826 = vlaneseq
    %v827 = vshrl.u32 %v826, 7
    %v828 = vsub.s32 0, %v827
    %v829 = vrot.slane %v824, %v828
    %v830 = vlaneseq
    %v831 = vshrl.u32 %v830, 7
    %v832 = vsub.s32 1, %v831
    %v833 = vrot.slane %v824, %v832
    %v834 = vlaneseq
    %v835 = vshrl.u32 %v834, 7
    %v836 = vsub.s32 2, %v835
    %v837 = vrot.slane %v824, %v836
    %v838 = vlaneseq
    %v839 = vshrl.u32 %v838, 7
    %v840 = vsub.s32 3, %v839
    %v841 = vrot.slane %v824, %v840
    %v862 = vcombine.low %v24, %v28
    %v863 = vcombine.high %v24, %v28
    %v864 = vcombine.low %v32, %v36
    %v865 = vcombine.high %v32, %v36
    %v867 = vunpack.c.l.s4 1966171168
    %v868 = vunpack.c.0.s8 %v867
    %v869 = vlaneseq
    %v870 = vshrl.u32 %v869, 7
    %v871 = vsub.s32 %v868, %v870
    %v872 = vrot.slane %v862, %v871
    %v874 = vunpack.c.l.s4 1966171168
    %v875 = vunpack.c.0.s8 %v874
    %v876 = vlaneseq
    %v877 = vshrl.u32 %v876, 7
    %v878 = vsub.s32 %v875, %v877
    %v879 = vrot.slane %v863, %v878
    %v881 = vunpack.c.l.s4 1966171168
    %v882 = vunpack.c.0.s8 %v881
    %v883 = vlaneseq
    %v884 = vshrl.u32 %v883, 7
    %v885 = vsub.s32 %v882, %v884
    %v886 = vrot.slane %v864, %v885
    %v888 = vunpack.c.l.s4 1966171168
    %v889 = vunpack.c.0.s8 %v888
    %v890 = vlaneseq
    %v891 = vshrl.u32 %v890, 7
    %v892 = vsub.s32 %v889, %v891
    %v893 = vrot.slane %v865, %v892
    %v894 = vcombine.low %v872, %v886
    %v895 = vcombine.high %v872, %v886
    %v896 = vcombine.low %v879, %v893
    %v897 = vcombine.high %v879, %v893
    %v899 = vunpack.c.l.s4 1966171168
    %v900 = vunpack.c.0.s8 %v899
    %v901 = vlaneseq
    %v902 = vshrl.u32 %v901, 7
    %v903 = vsub.s32 %v900, %v902
    %v904 = vrot.slane %v894, %v903
    %v906 = vunpack.c.l.s4 1966171168
    %v907 = vunpack.c.0.s8 %v906
    %v908 = vlaneseq
    %v909 = vshrl.u32 %v908, 7
    %v910 = vsub.s32 %v907, %v909
    %v911 = vrot.slane %v896, %v910
    %v913 = vunpack.c.l.s4 1966171168
    %v914 = vunpack.c.0.s8 %v913
    %v915 = vlaneseq
    %v916 = vshrl.u32 %v915, 7
    %v917 = vsub.s32 %v914, %v916
    %v918 = vrot.slane %v895, %v917
    %v920 = vunpack.c.l.s4 1966171168
    %v921 = vunpack.c.0.s8 %v920
    %v922 = vlaneseq
    %v923 = vshrl.u32 %v922, 7
    %v924 = vsub.s32 %v921, %v923
    %v925 = vrot.slane %v897, %v924
    %v926 = vcombine.high %v904, %v904
    %v927 = vcombine.high %v911, %v911
    %v928 = vcombine.high %v918, %v918
    %v929 = vcombine.high %v925, %v925
    %v930 = vcombine.low %v25, %v29
    %v931 = vcombine.high %v25, %v29
    %v932 = vcombine.low %v33, %v37
    %v933 = vcombine.high %v33, %v37
    %v935 = vunpack.c.l.s4 1966171168
    %v936 = vunpack.c.0.s8 %v935
    %v937 = vlaneseq
    %v938 = vshrl.u32 %v937, 7
    %v939 = vsub.s32 %v936, %v938
    %v940 = vrot.slane %v930, %v939
    %v942 = vunpack.c.l.s4 1966171168
    %v943 = vunpack.c.0.s8 %v942
    %v944 = vlaneseq
    %v945 = vshrl.u32 %v944, 7
    %v946 = vsub.s32 %v943, %v945
    %v947 = vrot.slane %v931, %v946
    %v949 = vunpack.c.l.s4 1966171168
    %v950 = vunpack.c.0.s8 %v949
    %v951 = vlaneseq
    %v952 = vshrl.u32 %v951, 7
    %v953 = vsub.s32 %v950, %v952
    %v954 = vrot.slane %v932, %v953
    %v956 = vunpack.c.l.s4 1966171168
    %v957 = vunpack.c.0.s8 %v956
    %v958 = vlaneseq
    %v959 = vshrl.u32 %v958, 7
    %v960 = vsub.s32 %v957, %v959
    %v961 = vrot.slane %v933, %v960
    %v962 = vcombine.low %v940, %v954
    %v963 = vcombine.high %v940, %v954
    %v964 = vcombine.low %v947, %v961
    %v965 = vcombine.high %v947, %v961
    %v967 = vunpack.c.l.s4 1966171168
    %v968 = vunpack.c.0.s8 %v967
    %v969 = vlaneseq
    %v970 = vshrl.u32 %v969, 7
    %v971 = vsub.s32 %v968, %v970
    %v972 = vrot.slane %v962, %v971
    %v974 = vunpack.c.l.s4 1966171168
    %v975 = vunpack.c.0.s8 %v974
    %v976 = vlaneseq
    %v977 = vshrl.u32 %v976, 7
    %v978 = vsub.s32 %v975, %v977
    %v979 = vrot.slane %v964, %v978
    %v981 = vunpack.c.l.s4 1966171168
    %v982 = vunpack.c.0.s8 %v981
    %v983 = vlaneseq
    %v984 = vshrl.u32 %v983, 7
    %v985 = vsub.s32 %v982, %v984
    %v986 = vrot.slane %v963, %v985
    %v988 = vunpack.c.l.s4 1966171168
    %v989 = vunpack.c.0.s8 %v988
    %v990 = vlaneseq
    %v991 = vshrl.u32 %v990, 7
    %v992 = vsub.s32 %v989, %v991
    %v993 = vrot.slane %v965, %v992
    %v994 = vcombine.high %v972, %v972
    %v995 = vcombine.high %v979, %v979
    %v996 = vcombine.high %v986, %v986
    %v997 = vcombine.high %v993, %v993
    %v998 = vcombine.low %v26, %v30
    %v999 = vcombine.high %v26, %v30
    %v1000 = vcombine.low %v34, %v38
    %v1001 = vcombine.high %v34, %v38
    %v1003 = vunpack.c.l.s4 1966171168
    %v1004 = vunpack.c.0.s8 %v1003
    %v1005 = vlaneseq
    %v1006 = vshrl.u32 %v1005, 7
    %v1007 = vsub.s32 %v1004, %v1006
    %v1008 = vrot.slane %v998, %v1007
    %v1010 = vunpack.c.l.s4 1966171168
    %v1011 = vunpack.c.0.s8 %v1010
    %v1012 = vlaneseq
    %v1013 = vshrl.u32 %v1012, 7
    %v1014 = vsub.s32 %v1011, %v1013
    %v1015 = vrot.slane %v999, %v1014
    %v1017 = vunpack.c.l.s4 1966171168
    %v1018 = vunpack.c.0.s8 %v1017
    %v1019 = vlaneseq
    %v1020 = vshrl.u32 %v1019, 7
    %v1021 = vsub.s32 %v1018, %v1020
    %v1022 = vrot.slane %v1000, %v1021
    %v1024 = vunpack.c.l.s4 1966171168
    %v1025 = vunpack.c.0.s8 %v1024
    %v1026 = vlaneseq
    %v1027 = vshrl.u32 %v1026, 7
    %v1028 = vsub.s32 %v1025, %v1027
    %v1029 = vrot.slane %v1001, %v1028
    %v1030 = vcombine.low %v1008, %v1022
    %v1031 = vcombine.high %v1008, %v1022
    %v1032 = vcombine.low %v1015, %v1029
    %v1033 = vcombine.high %v1015, %v1029
    %v1035 = vunpack.c.l.s4 1966171168
    %v1036 = vunpack.c.0.s8 %v1035
    %v1037 = vlaneseq
    %v1038 = vshrl.u32 %v1037, 7
    %v1039 = vsub.s32 %v1036, %v1038
    %v1040 = vrot.slane %v1030, %v1039
    %v1042 = vunpack.c.l.s4 1966171168
    %v1043 = vunpack.c.0.s8 %v1042
    %v1044 = vlaneseq
    %v1045 = vshrl.u32 %v1044, 7
    %v1046 = vsub.s32 %v1043, %v1045
    %v1047 = vrot.slane %v1032, %v1046
    %v1049 = vunpack.c.l.s4 1966171168
    %v1050 = vunpack.c.0.s8 %v1049
    %v1051 = vlaneseq
    %v1052 = vshrl.u32 %v1051, 7
    %v1053 = vsub.s32 %v1050, %v1052
    %v1054 = vrot.slane %v1031, %v1053
    %v1056 = vunpack.c.l.s4 1966171168
    %v1057 = vunpack.c.0.s8 %v1056
    %v1058 = vlaneseq
    %v1059 = vshrl.u32 %v1058, 7
    %v1060 = vsub.s32 %v1057, %v1059
    %v1061 = vrot.slane %v1033, %v1060
    %v1062 = vcombine.high %v1040, %v1040
    %v1063 = vcombine.high %v1047, %v1047
    %v1064 = vcombine.high %v1054, %v1054
    %v1065 = vcombine.high %v1061, %v1061
    %v1066 = vcombine.low %v27, %v31
    %v1067 = vcombine.low %v35, %v39
    %v1069 = vunpack.c.l.s4 1966171168
    %v1070 = vunpack.c.0.s8 %v1069
    %v1071 = vlaneseq
    %v1072 = vshrl.u32 %v1071, 7
    %v1073 = vsub.s32 %v1070, %v1072
    %v1074 = vrot.slane %v1066, %v1073
    %v1076 = vunpack.c.l.s4 1966171168
    %v1077 = vunpack.c.0.s8 %v1076
    %v1078 = vlaneseq
    %v1079 = vshrl.u32 %v1078, 7
    %v1080 = vsub.s32 %v1077, %v1079
    %v1081 = vrot.slane %v1067, %v1080
    %v1082 = vcombine.low %v1074, %v1081
    %v1084 = vunpack.c.l.s4 1966171168
    %v1085 = vunpack.c.0.s8 %v1084
    %v1086 = vlaneseq
    %v1087 = vshrl.u32 %v1086, 7
    %v1088 = vsub.s32 %v1085, %v1087
    %v1089 = vrot.slane %v1082, %v1088
    %v1898 = vunpack.c.l.b16 %v40
    %v1899 = vunpack.c.h.b16 %v40
    %v1900 = vunpack.c.l.b16 %v41
    %v1901 = vunpack.c.h.b16 %v41
    %v1902 = vunpack.c.l.b16 %v42
    %v1903 = vunpack.c.h.b16 %v42
    %v1904 = vunpack.c.l.b16 %v43
    %v1905 = vunpack.c.h.b16 %v43
    %v1906 = vunpack.c.l.b16 %v44
    %v1907 = vunpack.c.h.b16 %v44
    %v1908 = vunpack.c.l.b16 %v45
    %v1909 = vunpack.c.h.b16 %v45
    %v1910 = vunpack.c.l.b16 %v46
    %v1911 = vunpack.c.h.b16 %v46
    %v1912 = vunpack.c.l.b16 %v47
    %v1913 = vunpack.c.h.b16 %v47
    %v1914 = vunpack.c.l.b16 %v48
    %v1915 = vunpack.c.h.b16 %v48
    %v1916 = vunpack.c.l.b16 %v49
    %v1917 = vunpack.c.h.b16 %v49
    %v1918 = vunpack.c.l.b16 %v50
    %v1919 = vunpack.c.h.b16 %v50
    %v1920 = vunpack.c.l.b16 %v51
    %v1921 = vunpack.c.h.b16 %v51
    %v1922 = vunpack.c.l.b16 %v52
    %v1923 = vunpack.c.h.b16 %v52
    %v1924 = vunpack.c.l.b16 %v53
    %v1925 = vunpack.c.h.b16 %v53
    %v1926 = vunpack.c.l.b16 %v54
    %v1927 = vunpack.c.h.b16 %v54
    %v1928 = vunpack.c.l.b16 %v55
    %v1929 = vunpack.c.h.b16 %v55
    %v1930 = vunpack.c.l.b16 %v56
    %v1931 = vunpack.c.h.b16 %v56
    %v1932 = vunpack.c.l.b16 %v57
    %v1933 = vunpack.c.h.b16 %v57
    %v1934 = vunpack.c.l.b16 %v58
    %v1935 = vunpack.c.h.b16 %v58
    %v1936 = vunpack.c.l.b16 %v59
    %v1937 = vunpack.c.h.b16 %v59
    %v1938 = vunpack.c.l.b16 %v60
    %v1939 = vunpack.c.h.b16 %v60
    %v1940 = vunpack.c.l.b16 %v61
    %v1941 = vunpack.c.h.b16 %v61
    %v1942 = vunpack.c.l.b16 %v62
    %v1943 = vunpack.c.h.b16 %v62
    %v1944 = vunpack.c.l.b16 %v63
    %v1945 = vunpack.c.h.b16 %v63
    %v1946 = vunpack.c.l.b16 %v64
    %v1947 = vunpack.c.h.b16 %v64
    %v1948 = vunpack.c.l.b16 %v65
    %v1949 = vunpack.c.h.b16 %v65
    %v1950 = vunpack.c.l.b16 %v66
    %v1951 = vunpack.c.h.b16 %v66
    %v1952 = vunpack.c.l.b16 %v67
    %v1953 = vunpack.c.h.b16 %v67
    %v1954 = vunpack.c.l.b16 %v68
    %v1955 = vunpack.c.h.b16 %v68
    %v1956 = vunpack.c.l.b16 %v69
    %v1957 = vunpack.c.h.b16 %v69
    %v1958 = vunpack.c.l.b16 %v70
    %v1959 = vunpack.c.h.b16 %v70
    %v1960 = vunpack.c.l.b16 %v71
    %v1961 = vunpack.c.h.b16 %v71
    %v1962 = vunpack.c.l.b16 %v72
    %v1963 = vunpack.c.h.b16 %v72
    %v1964 = vunpack.c.l.b16 %v73
    %v1965 = vunpack.c.h.b16 %v73
    %v1966 = vunpack.c.l.b16 %v74
    %v1967 = vunpack.c.h.b16 %v74
    %v1968 = vunpack.c.l.b16 %v75
    %v1969 = vunpack.c.h.b16 %v75
    %v1970 = vunpack.c.l.b16 %v76
    %v1971 = vunpack.c.h.b16 %v76
    %v1972 = vunpack.c.l.b16 %v77
    %v1973 = vunpack.c.h.b16 %v77
    %v1974 = vunpack.c.l.b16 %v78
    %v1975 = vunpack.c.h.b16 %v78
    %v1976 = vunpack.c.l.b16 %v79
    %v1977 = vunpack.c.h.b16 %v79
    %v1978 = vunpack.c.l.b16 %v80
    %v1979 = vunpack.c.h.b16 %v80
    %v1980 = vunpack.c.l.b16 %v81
    %v1981 = vunpack.c.h.b16 %v81
    %v1982 = vunpack.c.l.b16 %v82
    %v1983 = vunpack.c.h.b16 %v82
    %v1984 = vunpack.c.l.b16 %v83
    %v1985 = vunpack.c.h.b16 %v83
    %v1986 = vunpack.c.l.b16 %v84
    %v1987 = vunpack.c.h.b16 %v84
    %v1988 = vunpack.c.l.b16 %v85
    %v1989 = vunpack.c.h.b16 %v85
    %v1990 = vunpack.c.l.b16 %v86
    %v1991 = vunpack.c.h.b16 %v86
    %v1992 = vunpack.c.l.b16 %v87
    %v1993 = vunpack.c.h.b16 %v87
    %v1994 = vunpack.c.l.b16 %v88
    %v1995 = vunpack.c.h.b16 %v88
    %v1996 = vunpack.c.l.b16 %v89
    %v1997 = vunpack.c.h.b16 %v89
    %v1998 = vunpack.c.l.b16 %v90
    %v1999 = vunpack.c.h.b16 %v90
    %v2000 = vunpack.c.l.b16 %v91
    %v2001 = vunpack.c.h.b16 %v91
    %v2002 = vunpack.c.l.b16 %v92
    %v2003 = vunpack.c.h.b16 %v92
    %v2004 = vunpack.c.l.b16 %v93
    %v2005 = vunpack.c.h.b16 %v93
    %v2006 = vunpack.c.l.b16 %v94
    %v2007 = vunpack.c.h.b16 %v94
    %v2008 = vunpack.c.l.b16 %v95
    %v2009 = vunpack.c.h.b16 %v95
    %v2010 = vunpack.c.l.b16 %v96
    %v2011 = vunpack.c.h.b16 %v96
    %v2012 = vunpack.c.l.b16 %v97
    %v2013 = vunpack.c.h.b16 %v97
    %v2014 = vunpack.c.l.b16 %v98
    %v2015 = vunpack.c.h.b16 %v98
    %v2016 = vunpack.c.l.b16 %v99
    %v2017 = vunpack.c.h.b16 %v99
    %v2018 = vunpack.c.l.b16 %v100
    %v2019 = vunpack.c.h.b16 %v100
    %v2020 = vunpack.c.l.b16 %v101
    %v2021 = vunpack.c.h.b16 %v101
    %v2022 = vunpack.c.l.b16 %v102
    %v2023 = vunpack.c.h.b16 %v102
    %v2024 = vunpack.c.l.b16 %v103
    %v2025 = vunpack.c.h.b16 %v103
    %v2026 = vunpack.c.l.b16 %v104
    %v2027 = vunpack.c.h.b16 %v104
    %v2028 = vunpack.c.l.b16 %v105
    %v2029 = vunpack.c.h.b16 %v105
    %v2030 = vunpack.c.l.b16 %v106
    %v2031 = vunpack.c.h.b16 %v106
    %v2032 = vunpack.c.l.b16 %v107
    %v2033 = vunpack.c.h.b16 %v107
    %v2034 = vunpack.c.l.b16 %v108
    %v2035 = vunpack.c.h.b16 %v108
    %v2036 = vunpack.c.l.b16 %v109
    %v2037 = vunpack.c.h.b16 %v109
    %v2038 = vunpack.c.l.b16 %v110
    %v2039 = vunpack.c.h.b16 %v110
    %v2040 = vunpack.c.l.b16 %v111
    %v2041 = vunpack.c.h.b16 %v111
    %v2042 = vunpack.c.l.b16 %v112
    %v2043 = vunpack.c.h.b16 %v112
    %v2044 = vunpack.c.l.b16 %v113
    %v2045 = vunpack.c.h.b16 %v113
    %v2046 = vunpack.c.l.b16 %v114
    %v2047 = vunpack.c.h.b16 %v114
    %v2048 = vunpack.c.l.b16 %v115
    %v2049 = vunpack.c.h.b16 %v115
    %v2050 = vunpack.c.l.b16 %v116
    %v2051 = vunpack.c.h.b16 %v116
    %v2052 = vunpack.c.l.b16 %v117
    %v2053 = vunpack.c.h.b16 %v117
    %v2054 = vunpack.c.l.b16 %v118
    %v2055 = vunpack.c.h.b16 %v118
    %v2056 = vunpack.c.l.b16 %v119
    %v2057 = vunpack.c.h.b16 %v119
    %v2058 = vunpack.c.l.b16 %v120
    %v2059 = vunpack.c.h.b16 %v120
    %v2060 = vunpack.c.l.b16 %v121
    %v2061 = vunpack.c.h.b16 %v121
    %v2062 = vunpack.c.l.b16 %v122
    %v2063 = vunpack.c.h.b16 %v122
    %v2064 = vunpack.c.l.b16 %v123
    %v2065 = vunpack.c.h.b16 %v123
    %v2066 = vunpack.c.l.b16 %v124
    %v2067 = vunpack.c.h.b16 %v124
    %v2068 = vunpack.c.l.b16 %v125
    %v2069 = vunpack.c.h.b16 %v125
    %v2070 = vunpack.c.l.b16 %v126
    %v2071 = vunpack.c.h.b16 %v126
    %v2072 = vunpack.c.l.b16 %v127
    %v2073 = vunpack.c.h.b16 %v127
    %v2074 = vunpack.c.l.b16 %v128
    %v2075 = vunpack.c.h.b16 %v128
    %v2076 = vunpack.c.l.b16 %v129
    %v2077 = vunpack.c.h.b16 %v129
    %v2078 = vunpack.c.l.b16 %v130
    %v2079 = vunpack.c.h.b16 %v130
    %v2080 = vunpack.c.l.b16 %v131
    %v2081 = vunpack.c.h.b16 %v131
    %v2082 = vunpack.c.l.b16 %v132
    %v2083 = vunpack.c.h.b16 %v132
    %v2084 = vunpack.c.l.b16 %v133
    %v2085 = vunpack.c.h.b16 %v133
    %v2086 = vunpack.c.l.b16 %v134
    %v2087 = vunpack.c.h.b16 %v134
    %v2088 = vunpack.c.l.b16 %v135
    %v2089 = vunpack.c.h.b16 %v135
    %v2090 = vunpack.c.l.b16 %v136
    %v2091 = vunpack.c.h.b16 %v136
    %v2092 = vunpack.c.l.b16 %v137
    %v2093 = vunpack.c.h.b16 %v137
    %v2094 = vunpack.c.l.b16 %v138
    %v2095 = vunpack.c.h.b16 %v138
    %v2096 = vunpack.c.l.b16 %v139
    %v2097 = vunpack.c.h.b16 %v139
    %v2098 = vunpack.c.l.b16 %v140
    %v2099 = vunpack.c.h.b16 %v140
    %v2100 = vunpack.c.l.b16 %v141
    %v2101 = vunpack.c.h.b16 %v141
    %v2102 = vunpack.c.l.b16 %v142
    %v2103 = vunpack.c.h.b16 %v142
    %v2104 = vunpack.c.l.b16 %v143
    %v2105 = vunpack.c.h.b16 %v143
    %v2106 = vunpack.c.l.b16 %v144
    %v2107 = vunpack.c.h.b16 %v144
    %v2108 = vunpack.c.l.b16 %v145
    %v2109 = vunpack.c.h.b16 %v145
    %v2110 = vunpack.c.l.b16 %v146
    %v2111 = vunpack.c.h.b16 %v146
    %v2112 = vunpack.c.l.b16 %v147
    %v2113 = vunpack.c.h.b16 %v147
    %v2114 = vunpack.c.l.b16 %v148
    %v2115 = vunpack.c.h.b16 %v148
    %v2116 = vunpack.c.l.b16 %v149
    %v2117 = vunpack.c.h.b16 %v149
    %v2118 = vunpack.c.l.b16 %v150
    %v2119 = vunpack.c.h.b16 %v150
    %v2120 = vunpack.c.l.b16 %v151
    %v2121 = vunpack.c.h.b16 %v151
    %v2122 = vunpack.c.l.b16 %v152
    %v2123 = vunpack.c.h.b16 %v152
    %v2124 = vunpack.c.l.b16 %v153
    %v2125 = vunpack.c.h.b16 %v153
    %v2126 = vunpack.c.l.b16 %v154
    %v2127 = vunpack.c.h.b16 %v154
    %v2128 = vunpack.c.l.b16 %v155
    %v2129 = vunpack.c.h.b16 %v155
    %v2130 = vunpack.c.l.b16 %v156
    %v2131 = vunpack.c.h.b16 %v156
    %v2132 = vunpack.c.l.b16 %v157
    %v2133 = vunpack.c.h.b16 %v157
    %v2134 = vunpack.c.l.b16 %v158
    %v2135 = vunpack.c.h.b16 %v158
    %v2136 = vunpack.c.l.b16 %v159
    %v2137 = vunpack.c.h.b16 %v159
    %v2138 = vunpack.c.l.b16 %v160
    %v2139 = vunpack.c.h.b16 %v160
    %v2140 = vunpack.c.l.b16 %v161
    %v2141 = vunpack.c.h.b16 %v161
    %v2142 = vunpack.c.l.b16 %v162
    %v2143 = vunpack.c.h.b16 %v162
    %v2144 = vunpack.c.l.b16 %v163
    %v2145 = vunpack.c.h.b16 %v163
    %v2146 = vunpack.c.l.b16 %v164
    %v2147 = vunpack.c.h.b16 %v164
    %v2148 = vunpack.c.l.b16 %v165
    %v2149 = vunpack.c.h.b16 %v165
    %v2150 = vunpack.c.l.b16 %v166
    %v2151 = vunpack.c.h.b16 %v166
    %v2152 = vunpack.c.l.b16 %v167
    %v2153 = vunpack.c.h.b16 %v167
    %v2154 = vunpack.c.l.b16 %v168
    %v2155 = vunpack.c.h.b16 %v168
    %v2156 = vunpack.c.l.b16 %v169
    %v2157 = vunpack.c.h.b16 %v169
    %v2158 = vunpack.c.l.b16 %v170
    %v2159 = vunpack.c.h.b16 %v170
    %v2160 = vunpack.c.l.b16 %v171
    %v2161 = vunpack.c.h.b16 %v171
    %v2162 = vunpack.c.l.b16 %v172
    %v2163 = vunpack.c.h.b16 %v172
    %v2164 = vunpack.c.l.b16 %v173
    %v2165 = vunpack.c.h.b16 %v173
    %v2166 = vunpack.c.l.b16 %v174
    %v2167 = vunpack.c.h.b16 %v174
    %v2168 = vunpack.c.l.b16 %v175
    %v2169 = vunpack.c.h.b16 %v175
    %v2170 = vunpack.c.l.b16 %v176
    %v2171 = vunpack.c.h.b16 %v176
    %v2172 = vunpack.c.l.b16 %v177
    %v2173 = vunpack.c.h.b16 %v177
    %v2174 = vunpack.c.l.b16 %v178
    %v2175 = vunpack.c.h.b16 %v178
    %v2176 = vunpack.c.l.b16 %v179
    %v2177 = vunpack.c.h.b16 %v179
    %v2178 = vunpack.c.l.b16 %v180
    %v2179 = vunpack.c.h.b16 %v180
    %v2180 = vunpack.c.l.b16 %v181
    %v2181 = vunpack.c.h.b16 %v181
    %v2182 = vunpack.c.l.b16 %v182
    %v2183 = vunpack.c.h.b16 %v182
    %v2184 = vunpack.c.l.b16 %v183
    %v2185 = vunpack.c.h.b16 %v183
    %v2186 = vunpack.c.l.b16 %v184
    %v2187 = vunpack.c.h.b16 %v184
    %v2188 = vunpack.c.l.b16 %v185
    %v2189 = vunpack.c.h.b16 %v185
    %v2190 = vunpack.c.l.b16 %v186
    %v2191 = vunpack.c.h.b16 %v186
    %v2192 = vunpack.c.l.b16 %v187
    %v2193 = vunpack.c.h.b16 %v187
    %v2194 = vunpack.c.l.b16 %v188
    %v2195 = vunpack.c.h.b16 %v188
    %v2196 = vunpack.c.l.b16 %v189
    %v2197 = vunpack.c.h.b16 %v189
    %v2198 = vunpack.c.l.b16 %v190
    %v2199 = vunpack.c.h.b16 %v190
    %v2200 = vunpack.c.l.b16 %v191
    %v2201 = vunpack.c.h.b16 %v191
    %v2202 = vunpack.c.l.b16 %v192
    %v2203 = vunpack.c.h.b16 %v192
    %v2204 = vunpack.c.l.b16 %v193
    %v2205 = vunpack.c.h.b16 %v193
    %v2206 = vunpack.c.l.b16 %v194
    %v2207 = vunpack.c.h.b16 %v194
    %v2208 = vunpack.c.l.b16 %v195
    %v2209 = vunpack.c.h.b16 %v195
    %v2210 = vunpack.c.l.b16 %v196
    %v2211 = vunpack.c.h.b16 %v196
    %v2212 = vunpack.c.l.b16 %v197
    %v2213 = vunpack.c.h.b16 %v197
    %v2214 = vunpack.c.l.b16 %v198
    %v2215 = vunpack.c.h.b16 %v198
    %v2216 = vunpack.c.l.b16 %v199
    %v2217 = vunpack.c.h.b16 %v199
    %v2218 = vunpack.c.l.b16 %v200
    %v2219 = vunpack.c.h.b16 %v200
    %v2220 = vunpack.c.l.b16 %v201
    %v2221 = vunpack.c.h.b16 %v201
    %v2222 = vunpack.c.l.b16 %v202
    %v2223 = vunpack.c.h.b16 %v202
    %v2224 = vunpack.c.l.b16 %v203
    %v2225 = vunpack.c.h.b16 %v203
    %v2226 = vunpack.c.l.b16 %v204
    %v2227 = vunpack.c.h.b16 %v204
    %v2228 = vunpack.c.l.b16 %v205
    %v2229 = vunpack.c.h.b16 %v205
    %v2230 = vunpack.c.l.b16 %v206
    %v2231 = vunpack.c.h.b16 %v206
    %v2232 = vunpack.c.l.b16 %v207
    %v2233 = vunpack.c.h.b16 %v207
    %v2234 = vunpack.c.l.b16 %v208
    %v2235 = vunpack.c.h.b16 %v208
    %v2236 = vunpack.c.l.b16 %v209
    %v2237 = vunpack.c.h.b16 %v209
    %v2238 = vunpack.c.l.b16 %v210
    %v2239 = vunpack.c.h.b16 %v210
    %v2240 = vunpack.c.l.b16 %v211
    %v2241 = vunpack.c.h.b16 %v211
    %v2242 = vunpack.c.l.b16 %v212
    %v2243 = vunpack.c.h.b16 %v212
    %v2244 = vunpack.c.l.b16 %v213
    %v2245 = vunpack.c.h.b16 %v213
    %v2246 = vunpack.c.l.b16 %v214
    %v2247 = vunpack.c.h.b16 %v214
    %v2248 = vunpack.c.l.b16 %v215
    %v2249 = vunpack.c.h.b16 %v215
    %v2250 = vunpack.c.l.b16 %v216
    %v2251 = vunpack.c.h.b16 %v216
    %v2252 = vunpack.c.l.b16 %v217
    %v2253 = vunpack.c.h.b16 %v217
    %v2254 = vunpack.c.l.b16 %v218
    %v2255 = vunpack.c.h.b16 %v218
    %v2256 = vunpack.c.l.b16 %v219
    %v2257 = vunpack.c.h.b16 %v219
    %v2258 = vunpack.c.l.b16 %v220
    %v2259 = vunpack.c.h.b16 %v220
    %v2260 = vunpack.c.l.b16 %v221
    %v2261 = vunpack.c.h.b16 %v221
    %v2262 = vunpack.c.l.b16 %v222
    %v2263 = vunpack.c.h.b16 %v222
    %v2264 = vunpack.c.l.b16 %v223
    %v2265 = vunpack.c.h.b16 %v223
    %v2266 = vunpack.c.l.b16 %v224
    %v2267 = vunpack.c.h.b16 %v224
    %v2268 = vunpack.c.l.b16 %v225
    %v2269 = vunpack.c.h.b16 %v225
    %v2270 = vunpack.c.l.b16 %v226
    %v2271 = vunpack.c.h.b16 %v226
    %v2272 = vunpack.c.l.b16 %v227
    %v2273 = vunpack.c.h.b16 %v227
    %v2274 = vunpack.c.l.b16 %v228
    %v2275 = vunpack.c.h.b16 %v228
    %v2276 = vunpack.c.l.b16 %v229
    %v2277 = vunpack.c.h.b16 %v229
    %v2278 = vunpack.c.l.b16 %v230
    %v2279 = vunpack.c.h.b16 %v230
    %v2280 = vunpack.c.l.b16 %v231
    %v2281 = vunpack.c.h.b16 %v231
    %v2282 = vunpack.c.l.b16 %v232
    %v2283 = vunpack.c.h.b16 %v232
    %v2284 = vunpack.c.l.b16 %v233
    %v2285 = vunpack.c.h.b16 %v233
    %v2286 = vunpack.c.l.b16 %v234
    %v2287 = vunpack.c.h.b16 %v234
    %v2288 = vunpack.c.l.b16 %v235
    %v2289 = vunpack.c.h.b16 %v235
    %v2290 = vunpack.c.l.b16 %v236
    %v2291 = vunpack.c.h.b16 %v236
    %v2292 = vunpack.c.l.b16 %v237
    %v2293 = vunpack.c.h.b16 %v237
    %v2294 = vunpack.c.l.b16 %v238
    %v2295 = vunpack.c.h.b16 %v238
    %v2296 = vunpack.c.l.b16 %v239
    %v2297 = vunpack.c.h.b16 %v239
    %v2298 = vunpack.c.l.b16 %v240
    %v2299 = vunpack.c.h.b16 %v240
    %v2300 = vunpack.c.l.b16 %v241
    %v2301 = vunpack.c.h.b16 %v241
    %v2302 = vunpack.c.l.b16 %v242
    %v2303 = vunpack.c.h.b16 %v242
    %v2304 = vunpack.c.l.b16 %v243
    %v2305 = vunpack.c.h.b16 %v243
    %v2306 = vunpack.c.l.b16 %v244
    %v2307 = vunpack.c.h.b16 %v244
    %v2308 = vunpack.c.l.b16 %v245
    %v2309 = vunpack.c.h.b16 %v245
    %v2310 = vunpack.c.l.b16 %v246
    %v2311 = vunpack.c.h.b16 %v246
    %v2312 = vunpack.c.l.b16 %v247
    %v2313 = vunpack.c.h.b16 %v247
    %v2314 = vunpack.c.l.b16 %v248
    %v2315 = vunpack.c.h.b16 %v248
    %v2316 = vunpack.c.l.b16 %v249
    %v2317 = vunpack.c.h.b16 %v249
    %v2318 = vunpack.c.l.b16 %v250
    %v2319 = vunpack.c.h.b16 %v250
    %v2320 = vunpack.c.l.b16 %v251
    %v2321 = vunpack.c.h.b16 %v251
    %v2322 = vunpack.c.l.b16 %v252
    %v2323 = vunpack.c.h.b16 %v252
    %v2324 = vunpack.c.l.b16 %v253
    %v2325 = vunpack.c.h.b16 %v253
    %v2326 = vunpack.c.l.b16 %v254
    %v2327 = vunpack.c.h.b16 %v254
    %v2328 = vunpack.c.l.b16 %v255
    %v2329 = vunpack.c.h.b16 %v255
    %v2330 = vunpack.c.l.b16 %v256
    %v2331 = vunpack.c.h.b16 %v256
    %v2332 = vunpack.c.l.b16 %v257
    %v2333 = vunpack.c.h.b16 %v257
    %v2334 = vunpack.c.l.b16 %v258
    %v2335 = vunpack.c.h.b16 %v258
    %v2336 = vunpack.c.l.b16 %v259
    %v2337 = vunpack.c.h.b16 %v259
    %v2338 = vunpack.c.l.b16 %v260
    %v2339 = vunpack.c.h.b16 %v260
    %v2340 = vunpack.c.l.b16 %v261
    %v2341 = vunpack.c.h.b16 %v261
    %v2342 = vunpack.c.l.b16 %v262
    %v2343 = vunpack.c.h.b16 %v262
    %v2344 = vunpack.c.l.b16 %v263
    %v2345 = vunpack.c.h.b16 %v263
    %v2346 = vunpack.c.l.b16 %v264
    %v2347 = vunpack.c.h.b16 %v264
    %v2348 = vunpack.c.l.b16 %v265
    %v2349 = vunpack.c.h.b16 %v265
    %v2350 = vunpack.c.l.b16 %v266
    %v2351 = vunpack.c.h.b16 %v266
    %v2352 = vunpack.c.l.b16 %v267
    %v2353 = vunpack.c.h.b16 %v267
    %v2354 = vunpack.c.l.b16 %v268
    %v2355 = vunpack.c.h.b16 %v268
    %v2356 = vunpack.c.l.b16 %v269
    %v2357 = vunpack.c.h.b16 %v269
    %v2358 = vunpack.c.l.b16 %v270
    %v2359 = vunpack.c.h.b16 %v270
    %v2360 = vunpack.c.l.b16 %v271
    %v2361 = vunpack.c.h.b16 %v271
    %v2362 = vunpack.c.l.b16 %v272
    %v2363 = vunpack.c.h.b16 %v272
    %v2364 = vunpack.c.l.b16 %v273
    %v2365 = vunpack.c.h.b16 %v273
    %v2366 = vunpack.c.l.b16 %v274
    %v2367 = vunpack.c.h.b16 %v274
    %v2368 = vunpack.c.l.b16 %v275
    %v2369 = vunpack.c.h.b16 %v275
    %v2370 = vunpack.c.l.b16 %v276
    %v2371 = vunpack.c.h.b16 %v276
    %v2372 = vunpack.c.l.b16 %v277
    %v2373 = vunpack.c.h.b16 %v277
    %v2374 = vunpack.c.l.b16 %v278
    %v2375 = vunpack.c.h.b16 %v278
    %v2376 = vunpack.c.l.b16 %v279
    %v2377 = vunpack.c.h.b16 %v279
    %v2378 = vunpack.c.l.b16 %v280
    %v2379 = vunpack.c.h.b16 %v280
    %v2380 = vunpack.c.l.b16 %v281
    %v2381 = vunpack.c.h.b16 %v281
    %v2382 = vunpack.c.l.b16 %v282
    %v2383 = vunpack.c.h.b16 %v282
    %v2384 = vunpack.c.l.b16 %v283
    %v2385 = vunpack.c.h.b16 %v283
    %v2386 = vunpack.c.l.b16 %v284
    %v2387 = vunpack.c.h.b16 %v284
    %v2388 = vunpack.c.l.b16 %v285
    %v2389 = vunpack.c.h.b16 %v285
    %v2390 = vunpack.c.l.b16 %v286
    %v2391 = vunpack.c.h.b16 %v286
    %v2392 = vunpack.c.l.b16 %v287
    %v2393 = vunpack.c.h.b16 %v287
    %v2394 = vunpack.c.l.b16 %v288
    %v2395 = vunpack.c.h.b16 %v288
    %v2396 = vunpack.c.l.b16 %v289
    %v2397 = vunpack.c.h.b16 %v289
    %v2398 = vunpack.c.l.b16 %v290
    %v2399 = vunpack.c.h.b16 %v290
    %v2400 = vunpack.c.l.b16 %v291
    %v2401 = vunpack.c.h.b16 %v291
    %v2402 = vunpack.c.l.b16 %v292
    %v2403 = vunpack.c.h.b16 %v292
    %v2404 = vunpack.c.l.b16 %v293
    %v2405 = vunpack.c.h.b16 %v293
    %v2406 = vunpack.c.l.b16 %v294
    %v2407 = vunpack.c.h.b16 %v294
    %v2408 = vunpack.c.l.b16 %v295
    %v2409 = vunpack.c.h.b16 %v295
    %v2410 = vunpack.c.l.b16 %v296
    %v2411 = vunpack.c.h.b16 %v296
    %v2412 = vunpack.c.l.b16 %v297
    %v2413 = vunpack.c.h.b16 %v297
    %v2414 = vunpack.c.l.b16 %v298
    %v2415 = vunpack.c.h.b16 %v298
    %v2416 = vunpack.c.l.b16 %v299
    %v2417 = vunpack.c.h.b16 %v299
    %v2418 = vunpack.c.l.b16 %v300
    %v2419 = vunpack.c.h.b16 %v300
    %v2420 = vunpack.c.l.b16 %v301
    %v2421 = vunpack.c.h.b16 %v301
    %v2422 = vunpack.c.l.b16 %v302
    %v2423 = vunpack.c.h.b16 %v302
    %v2424 = vunpack.c.l.b16 %v303
    %v2425 = vunpack.c.h.b16 %v303
    %v2426 = vunpack.c.l.b16 %v304
    %v2427 = vunpack.c.h.b16 %v304
    %v2428 = vunpack.c.l.b16 %v305
    %v2429 = vunpack.c.h.b16 %v305
    %v2430 = vunpack.c.l.b16 %v306
    %v2431 = vunpack.c.h.b16 %v306
    %v2432 = vunpack.c.l.b16 %v307
    %v2433 = vunpack.c.h.b16 %v307
    %v2434 = vunpack.c.l.b16 %v308
    %v2435 = vunpack.c.h.b16 %v308
    %v2436 = vunpack.c.l.b16 %v309
    %v2437 = vunpack.c.h.b16 %v309
    %v2438 = vunpack.c.l.b16 %v310
    %v2439 = vunpack.c.h.b16 %v310
    %v2440 = vunpack.c.l.b16 %v311
    %v2441 = vunpack.c.h.b16 %v311
    %v2442 = vunpack.c.l.b16 %v312
    %v2443 = vunpack.c.h.b16 %v312
    %v2444 = vunpack.c.l.b16 %v313
    %v2445 = vunpack.c.h.b16 %v313
    %v2446 = vunpack.c.l.b16 %v314
    %v2447 = vunpack.c.h.b16 %v314
    %v2448 = vunpack.c.l.b16 %v315
    %v2449 = vunpack.c.h.b16 %v315
    %v2450 = vunpack.c.l.b16 %v316
    %v2451 = vunpack.c.h.b16 %v316
    %v2452 = vunpack.c.l.b16 %v317
    %v2453 = vunpack.c.h.b16 %v317
    %v2454 = vunpack.c.l.b16 %v318
    %v2455 = vunpack.c.h.b16 %v318
    %v2456 = vunpack.c.l.b16 %v319
    %v2457 = vunpack.c.h.b16 %v319
    %v2458 = vunpack.c.l.b16 %v320
    %v2459 = vunpack.c.h.b16 %v320
    %v2460 = vunpack.c.l.b16 %v321
    %v2461 = vunpack.c.h.b16 %v321
    %v2462 = vunpack.c.l.b16 %v322
    %v2463 = vunpack.c.h.b16 %v322
    %v2464 = vunpack.c.l.b16 %v323
    %v2465 = vunpack.c.h.b16 %v323
    %v2466 = vunpack.c.l.b16 %v324
    %v2467 = vunpack.c.h.b16 %v324
    %v2468 = vunpack.c.l.b16 %v325
    %v2469 = vunpack.c.h.b16 %v325
    %v2470 = vunpack.c.l.b16 %v326
    %v2471 = vunpack.c.h.b16 %v326
    %v2472 = vunpack.c.l.b16 %v327
    %v2473 = vunpack.c.h.b16 %v327
    %v2474 = vunpack.c.l.b16 %v328
    %v2475 = vunpack.c.h.b16 %v328
    %v2476 = vunpack.c.l.b16 %v329
    %v2477 = vunpack.c.h.b16 %v329
    %v2478 = vunpack.c.l.b16 %v330
    %v2479 = vunpack.c.h.b16 %v330
    %v2480 = vunpack.c.l.b16 %v331
    %v2481 = vunpack.c.h.b16 %v331
    %v2482 = vunpack.c.l.b16 %v332
    %v2483 = vunpack.c.h.b16 %v332
    %v2484 = vunpack.c.l.b16 %v333
    %v2485 = vunpack.c.h.b16 %v333
    %v2486 = vunpack.c.l.b16 %v334
    %v2487 = vunpack.c.h.b16 %v334
    %v2488 = vunpack.c.l.b16 %v335
    %v2489 = vunpack.c.h.b16 %v335
    %v2490 = vunpack.c.l.b16 %v336
    %v2491 = vunpack.c.h.b16 %v336
    %v2492 = vunpack.c.l.b16 %v337
    %v2493 = vunpack.c.h.b16 %v337
    %v2494 = vunpack.c.l.b16 %v338
    %v2495 = vunpack.c.h.b16 %v338
    %v2496 = vunpack.c.l.b16 %v339
    %v2497 = vunpack.c.h.b16 %v339
    %v2498 = vunpack.c.l.b16 %v340
    %v2499 = vunpack.c.h.b16 %v340
    %v2500 = vunpack.c.l.b16 %v341
    %v2501 = vunpack.c.h.b16 %v341
    %v2502 = vunpack.c.l.b16 %v342
    %v2503 = vunpack.c.h.b16 %v342
    %v2504 = vunpack.c.l.b16 %v343
    %v2505 = vunpack.c.h.b16 %v343
    %v2506 = vunpack.c.l.b16 %v344
    %v2507 = vunpack.c.h.b16 %v344
    %v2508 = vunpack.c.l.b16 %v345
    %v2509 = vunpack.c.h.b16 %v345
    %v2510 = vunpack.c.l.b16 %v346
    %v2511 = vunpack.c.h.b16 %v346
    %v2512 = vunpack.c.l.b16 %v347
    %v2513 = vunpack.c.h.b16 %v347
    %v2514 = vunpack.c.l.b16 %v348
    %v2515 = vunpack.c.h.b16 %v348
    %v2516 = vunpack.c.l.b16 %v349
    %v2517 = vunpack.c.h.b16 %v349
    %v2518 = vunpack.c.l.b16 %v350
    %v2519 = vunpack.c.h.b16 %v350
    %v2520 = vunpack.c.l.b16 %v351
    %v2521 = vunpack.c.h.b16 %v351
    %v2522 = vunpack.c.l.b16 %v352
    %v2523 = vunpack.c.h.b16 %v352
    %v2524 = vunpack.c.l.b16 %v353
    %v2525 = vunpack.c.h.b16 %v353
    %v2526 = vunpack.c.l.b16 %v354
    %v2527 = vunpack.c.h.b16 %v354
    %v2528 = vunpack.c.l.b16 %v355
    %v2529 = vunpack.c.h.b16 %v355
    %v2530 = vunpack.c.l.b16 %v356
    %v2531 = vunpack.c.h.b16 %v356
    %v2532 = vunpack.c.l.b16 %v357
    %v2533 = vunpack.c.h.b16 %v357
    %v2534 = vunpack.c.l.b16 %v358
    %v2535 = vunpack.c.h.b16 %v358
    %v2536 = vunpack.c.l.b16 %v359
    %v2537 = vunpack.c.h.b16 %v359
    %v2538 = vunpack.c.l.b16 %v360
    %v2539 = vunpack.c.h.b16 %v360
    %v2540 = vunpack.c.l.b16 %v361
    %v2541 = vunpack.c.h.b16 %v361
    %v2542 = vunpack.c.l.b16 %v362
    %v2543 = vunpack.c.h.b16 %v362
    %v2544 = vunpack.c.l.b16 %v363
    %v2545 = vunpack.c.h.b16 %v363
    %v2546 = vunpack.c.l.b16 %v364
    %v2547 = vunpack.c.h.b16 %v364
    %v2548 = vunpack.c.l.b16 %v365
    %v2549 = vunpack.c.h.b16 %v365
    %v2550 = vunpack.c.l.b16 %v366
    %v2551 = vunpack.c.h.b16 %v366
    %v2552 = vunpack.c.l.b16 %v367
    %v2553 = vunpack.c.h.b16 %v367
    %v2554 = vunpack.c.l.b16 %v368
    %v2555 = vunpack.c.h.b16 %v368
    %v2556 = vunpack.c.l.b16 %v369
    %v2557 = vunpack.c.h.b16 %v369
    %v2558 = vunpack.c.l.b16 %v370
    %v2559 = vunpack.c.h.b16 %v370
    %v2560 = vunpack.c.l.b16 %v371
    %v2561 = vunpack.c.h.b16 %v371
    %v2562 = vunpack.c.l.b16 %v372
    %v2563 = vunpack.c.h.b16 %v372
    %v2564 = vunpack.c.l.b16 %v373
    %v2565 = vunpack.c.h.b16 %v373
    %v2566 = vunpack.c.l.b16 %v374
    %v2567 = vunpack.c.h.b16 %v374
    %v2568 = vunpack.c.l.b16 %v375
    %v2569 = vunpack.c.h.b16 %v375
    %v2570 = vunpack.c.l.b16 %v376
    %v2571 = vunpack.c.h.b16 %v376
    %v2572 = vunpack.c.l.b16 %v377
    %v2573 = vunpack.c.h.b16 %v377
    %v2574 = vunpack.c.l.b16 %v378
    %v2575 = vunpack.c.h.b16 %v378
    %v2576 = vunpack.c.l.b16 %v379
    %v2577 = vunpack.c.h.b16 %v379
    %v2578 = vunpack.c.l.b16 %v380
    %v2579 = vunpack.c.h.b16 %v380
    %v2580 = vunpack.c.l.b16 %v381
    %v2581 = vunpack.c.h.b16 %v381
    %v2582 = vunpack.c.l.b16 %v382
    %v2583 = vunpack.c.h.b16 %v382
    %v2584 = vunpack.c.l.b16 %v383
    %v2585 = vunpack.c.h.b16 %v383
    %v2586 = vunpack.c.l.b16 %v384
    %v2587 = vunpack.c.h.b16 %v384
    %v2588 = vunpack.c.l.b16 %v385
    %v2589 = vunpack.c.h.b16 %v385
    %v2590 = vunpack.c.l.b16 %v386
    %v2591 = vunpack.c.h.b16 %v386
    %v2592 = vunpack.c.l.b16 %v387
    %v2593 = vunpack.c.h.b16 %v387
    %v2594 = vunpack.c.l.b16 %v388
    %v2595 = vunpack.c.h.b16 %v388
    %v2596 = vunpack.c.l.b16 %v389
    %v2597 = vunpack.c.h.b16 %v389
    %v2598 = vunpack.c.l.b16 %v390
    %v2599 = vunpack.c.h.b16 %v390
    %v2600 = vunpack.c.l.b16 %v391
    %v2601 = vunpack.c.h.b16 %v391
    %v2602 = vunpack.c.l.b16 %v392
    %v2603 = vunpack.c.h.b16 %v392
    %v2604 = vunpack.c.l.b16 %v393
    %v2605 = vunpack.c.h.b16 %v393
    %v2606 = vunpack.c.l.b16 %v394
    %v2607 = vunpack.c.h.b16 %v394
    %v2608 = vunpack.c.l.b16 %v395
    %v2609 = vunpack.c.h.b16 %v395
    %v2610 = vunpack.c.l.b16 %v396
    %v2611 = vunpack.c.h.b16 %v396
    %v2612 = vunpack.c.l.b16 %v397
    %v2613 = vunpack.c.h.b16 %v397
    %v2614 = vunpack.c.l.b16 %v398
    %v2615 = vunpack.c.h.b16 %v398
    %v2616 = vunpack.c.l.b16 %v399
    %v2617 = vunpack.c.h.b16 %v399
    %v2618 = vunpack.c.l.b16 %v400
    %v2619 = vunpack.c.h.b16 %v400
    %v2620 = vunpack.c.l.b16 %v401
    %v2621 = vunpack.c.h.b16 %v401
    %v2622 = vunpack.c.l.b16 %v402
    %v2623 = vunpack.c.h.b16 %v402
    %v2624 = vunpack.c.l.b16 %v403
    %v2625 = vunpack.c.h.b16 %v403
    %v2626 = vunpack.c.l.b16 %v404
    %v2627 = vunpack.c.h.b16 %v404
    %v2628 = vunpack.c.l.b16 %v405
    %v2629 = vunpack.c.h.b16 %v405
    %v2630 = vunpack.c.l.b16 %v406
    %v2631 = vunpack.c.h.b16 %v406
    %v2632 = vunpack.c.l.b16 %v407
    %v2633 = vunpack.c.h.b16 %v407
    %v2634 = vunpack.c.l.b16 %v408
    %v2635 = vunpack.c.h.b16 %v408
    %v2636 = vunpack.c.l.b16 %v409
    %v2637 = vunpack.c.h.b16 %v409
    %v2638 = vunpack.c.l.b16 %v410
    %v2639 = vunpack.c.h.b16 %v410
    %v2640 = vunpack.c.l.b16 %v411
    %v2641 = vunpack.c.h.b16 %v411
    %v2642 = vunpack.c.l.b16 %v412
    %v2643 = vunpack.c.h.b16 %v412
    %v2644 = vunpack.c.l.b16 %v413
    %v2645 = vunpack.c.h.b16 %v413
    %v2646 = vunpack.c.l.b16 %v414
    %v2647 = vunpack.c.h.b16 %v414
    %v2648 = vunpack.c.l.b16 %v415
    %v2649 = vunpack.c.h.b16 %v415
    %v2650 = vunpack.c.l.b16 %v416
    %v2651 = vunpack.c.h.b16 %v416
    %v2652 = vunpack.c.l.b16 %v417
    %v2653 = vunpack.c.h.b16 %v417
    %v2654 = vunpack.c.l.b16 %v418
    %v2655 = vunpack.c.h.b16 %v418
    %v2656 = vunpack.c.l.b16 %v419
    %v2657 = vunpack.c.h.b16 %v419
    %v2658 = vunpack.c.l.b16 %v420
    %v2659 = vunpack.c.h.b16 %v420
    %v2660 = vunpack.c.l.b16 %v421
    %v2661 = vunpack.c.h.b16 %v421
    %v2662 = vunpack.c.l.b16 %v422
    %v2663 = vunpack.c.h.b16 %v422
    %v2664 = vunpack.c.l.b16 %v423
    %v2665 = vunpack.c.h.b16 %v423
    %v2666 = vunpack.c.l.b16 %v424
    %v2667 = vunpack.c.h.b16 %v424
    %v2668 = vunpack.c.l.b16 %v425
    %v2669 = vunpack.c.h.b16 %v425
    %v2670 = vunpack.c.l.b16 %v426
    %v2671 = vunpack.c.h.b16 %v426
    %v2672 = vunpack.c.l.b16 %v427
    %v2673 = vunpack.c.h.b16 %v427
    %v2674 = vunpack.c.l.b16 %v428
    %v2675 = vunpack.c.h.b16 %v428
    %v2676 = vunpack.c.l.b16 %v429
    %v2677 = vunpack.c.h.b16 %v429
    %v2678 = vunpack.c.l.b16 %v430
    %v2679 = vunpack.c.h.b16 %v430
    %v2680 = vunpack.c.l.b16 %v431
    %v2681 = vunpack.c.h.b16 %v431
    %v2682 = vunpack.c.l.b16 %v432
    %v2683 = vunpack.c.h.b16 %v432
    %v2684 = vunpack.c.l.b16 %v433
    %v2685 = vunpack.c.h.b16 %v433
    %v2686 = vunpack.c.l.b16 %v434
    %v2687 = vunpack.c.h.b16 %v434
    %v2688 = vunpack.c.l.b16 %v435
    %v2689 = vunpack.c.h.b16 %v435
    %v2690 = vunpack.c.l.b16 %v436
    %v2691 = vunpack.c.h.b16 %v436
    %v2692 = vunpack.c.l.b16 %v437
    %v2693 = vunpack.c.h.b16 %v437
    %v2694 = vunpack.c.l.b16 %v438
    %v2695 = vunpack.c.h.b16 %v438
    %v2696 = vunpack.c.l.b16 %v439
    %v2697 = vunpack.c.h.b16 %v439
    %v2698 = vunpack.c.l.b16 %v440
    %v2699 = vunpack.c.h.b16 %v440
    %v2700 = vunpack.c.l.b16 %v441
    %v2701 = vunpack.c.h.b16 %v441
    %v2702 = vunpack.c.l.b16 %v442
    %v2703 = vunpack.c.h.b16 %v442
    %v2704 = vunpack.c.l.b16 %v443
    %v2705 = vunpack.c.h.b16 %v443
    %v2706 = vunpack.c.l.b16 %v444
    %v2707 = vunpack.c.h.b16 %v444
    %v2708 = vunpack.c.l.b16 %v445
    %v2709 = vunpack.c.h.b16 %v445
    %v2710 = vunpack.c.l.b16 %v446
    %v2711 = vunpack.c.h.b16 %v446
    %v2712 = vunpack.c.l.b16 %v447
    %v2713 = vunpack.c.h.b16 %v447
    %v2714 = vunpack.c.l.b16 %v448
    %v2715 = vunpack.c.h.b16 %v448
    %v2716 = vunpack.c.l.b16 %v449
    %v2717 = vunpack.c.h.b16 %v449
    %v2718 = vunpack.c.l.b16 %v450
    %v2719 = vunpack.c.h.b16 %v450
    %v2720 = vunpack.c.l.b16 %v451
    %v2721 = vunpack.c.h.b16 %v451
    %v2722 = vunpack.c.l.b16 %v452
    %v2723 = vunpack.c.h.b16 %v452
    %v2724 = vunpack.c.l.b16 %v453
    %v2725 = vunpack.c.h.b16 %v453
    %v2726 = vunpack.c.l.b16 %v454
    %v2727 = vunpack.c.h.b16 %v454
    %v2728 = vunpack.c.l.b16 %v455
    %v2729 = vunpack.c.h.b16 %v455
    %v2730 = vunpack.c.l.b16 %v456
    %v2731 = vunpack.c.h.b16 %v456
    %v2732 = vunpack.c.l.b16 %v457
    %v2733 = vunpack.c.h.b16 %v457
    %v2734 = vunpack.c.l.b16 %v458
    %v2735 = vunpack.c.h.b16 %v458
    %v2736 = vunpack.c.l.b16 %v459
    %v2737 = vunpack.c.h.b16 %v459
    %v2738 = vunpack.c.l.b16 %v460
    %v2739 = vunpack.c.h.b16 %v460
    %v2740 = vunpack.c.l.b16 %v461
    %v2741 = vunpack.c.h.b16 %v461
    %v2742 = vunpack.c.l.b16 %v462
    %v2743 = vunpack.c.h.b16 %v462
    %v2744 = vunpack.c.l.b16 %v463
    %v2745 = vunpack.c.h.b16 %v463
    %v2746 = vunpack.c.l.b16 %v464
    %v2747 = vunpack.c.h.b16 %v464
    %v2748 = vunpack.c.l.b16 %v465
    %v2749 = vunpack.c.h.b16 %v465
    %v2750 = vunpack.c.l.b16 %v466
    %v2751 = vunpack.c.h.b16 %v466
    %v2752 = vunpack.c.l.b16 %v467
    %v2753 = vunpack.c.h.b16 %v467
    %v2754 = vunpack.c.l.b16 %v468
    %v2755 = vunpack.c.h.b16 %v468
    %v2756 = vunpack.c.l.b16 %v469
    %v2757 = vunpack.c.h.b16 %v469
    %v2758 = vunpack.c.l.b16 %v470
    %v2759 = vunpack.c.h.b16 %v470
    %v2760 = vunpack.c.l.b16 %v471
    %v2761 = vunpack.c.h.b16 %v471
    %v2762 = vunpack.c.l.b16 %v472
    %v2763 = vunpack.c.h.b16 %v472
    %v2764 = vunpack.c.l.b16 %v473
    %v2765 = vunpack.c.h.b16 %v473
    %v2766 = vunpack.c.l.b16 %v474
    %v2767 = vunpack.c.h.b16 %v474
    %v2768 = vunpack.c.l.b16 %v475
    %v2769 = vunpack.c.h.b16 %v475
    %v2770 = vunpack.c.l.b16 %v476
    %v2771 = vunpack.c.h.b16 %v476
    %v2772 = vunpack.c.l.b16 %v477
    %v2773 = vunpack.c.h.b16 %v477
    %v2774 = vunpack.c.l.b16 %v478
    %v2775 = vunpack.c.h.b16 %v478
    %v2776 = vunpack.c.l.b16 %v479
    %v2777 = vunpack.c.h.b16 %v479
    %v2778 = vunpack.c.l.b16 %v480
    %v2779 = vunpack.c.h.b16 %v480
    %v2780 = vunpack.c.l.b16 %v481
    %v2781 = vunpack.c.h.b16 %v481
    %v2782 = vunpack.c.l.b16 %v482
    %v2783 = vunpack.c.h.b16 %v482
    %v2784 = vunpack.c.l.b16 %v483
    %v2785 = vunpack.c.h.b16 %v483
    %v2786 = vunpack.c.l.b16 %v484
    %v2787 = vunpack.c.h.b16 %v484
    %v2788 = vunpack.c.l.b16 %v485
    %v2789 = vunpack.c.h.b16 %v485
    %v2790 = vunpack.c.l.b16 %v486
    %v2791 = vunpack.c.h.b16 %v486
    %v2792 = vunpack.c.l.b16 %v487
    %v2793 = vunpack.c.h.b16 %v487
    %v2794 = vunpack.c.l.b16 %v488
    %v2795 = vunpack.c.h.b16 %v488
    %v2796 = vunpack.c.l.b16 %v489
    %v2797 = vunpack.c.h.b16 %v489
    %v2798 = vunpack.c.l.b16 %v490
    %v2799 = vunpack.c.h.b16 %v490
    %v2800 = vunpack.c.l.b16 %v491
    %v2801 = vunpack.c.h.b16 %v491
    %v2802 = vunpack.c.l.b16 %v492
    %v2803 = vunpack.c.h.b16 %v492
    %v2804 = vunpack.c.l.b16 %v493
    %v2805 = vunpack.c.h.b16 %v493
    %v2806 = vunpack.c.l.b16 %v494
    %v2807 = vunpack.c.h.b16 %v494
    %v2808 = vunpack.c.l.b16 %v495
    %v2809 = vunpack.c.h.b16 %v495
    %v2810 = vunpack.c.l.b16 %v496
    %v2811 = vunpack.c.h.b16 %v496
    %v2812 = vunpack.c.l.b16 %v497
    %v2813 = vunpack.c.h.b16 %v497
    %v2814 = vunpack.c.l.b16 %v498
    %v2815 = vunpack.c.h.b16 %v498
    %v2816 = vunpack.c.l.b16 %v499
    %v2817 = vunpack.c.h.b16 %v499
    %v2818 = vunpack.c.l.b16 %v500
    %v2819 = vunpack.c.h.b16 %v500
    %v2820 = vunpack.c.l.b16 %v501
    %v2821 = vunpack.c.h.b16 %v501
    %v2822 = vunpack.c.l.b16 %v502
    %v2823 = vunpack.c.h.b16 %v502
    %v2824 = vunpack.c.l.b16 %v503
    %v2825 = vunpack.c.h.b16 %v503
    %v2826 = vunpack.c.l.b16 %v504
    %v2827 = vunpack.c.h.b16 %v504
    %v2828 = vunpack.c.l.b16 %v505
    %v2829 = vunpack.c.h.b16 %v505
    %v2830 = vunpack.c.l.b16 %v506
    %v2831 = vunpack.c.h.b16 %v506
    %v2832 = vunpack.c.l.b16 %v507
    %v2833 = vunpack.c.h.b16 %v507
    %v2834 = vunpack.c.l.b16 %v508
    %v2835 = vunpack.c.h.b16 %v508
    %v2836 = vunpack.c.l.b16 %v509
    %v2837 = vunpack.c.h.b16 %v509
    %v2838 = vunpack.c.l.b16 %v510
    %v2839 = vunpack.c.h.b16 %v510
    %v2840 = vunpack.c.l.b16 %v511
    %v2841 = vunpack.c.h.b16 %v511
    %v2842 = vunpack.c.l.b16 %v512
    %v2843 = vunpack.c.h.b16 %v512
    %v2844 = vunpack.c.l.b16 %v513
    %v2845 = vunpack.c.h.b16 %v513
    %v2846 = vunpack.c.l.b16 %v514
    %v2847 = vunpack.c.h.b16 %v514
    %v2848 = vunpack.c.l.b16 %v515
    %v2849 = vunpack.c.h.b16 %v515
    %v2850 = vunpack.c.l.b16 %v516
    %v2851 = vunpack.c.h.b16 %v516
    %v2852 = vunpack.c.l.b16 %v517
    %v2853 = vunpack.c.h.b16 %v517
    %v2854 = vunpack.c.l.b16 %v518
    %v2855 = vunpack.c.h.b16 %v518
    %v2856 = vunpack.c.l.b16 %v519
    %v2857 = vunpack.c.h.b16 %v519
    %v2858 = vunpack.c.l.b16 %v520
    %v2859 = vunpack.c.h.b16 %v520
    %v2860 = vunpack.c.l.b16 %v521
    %v2861 = vunpack.c.h.b16 %v521
    %v2862 = vunpack.c.l.b16 %v522
    %v2863 = vunpack.c.h.b16 %v522
    %v2864 = vunpack.c.l.b16 %v523
    %v2865 = vunpack.c.h.b16 %v523
    %v2866 = vunpack.c.l.b16 %v524
    %v2867 = vunpack.c.h.b16 %v524
    %v2868 = vunpack.c.l.b16 %v525
    %v2869 = vunpack.c.h.b16 %v525
    %v2870 = vunpack.c.l.b16 %v526
    %v2871 = vunpack.c.h.b16 %v526
    %v2872 = vunpack.c.l.b16 %v527
    %v2873 = vunpack.c.h.b16 %v527
    %v2874 = vunpack.c.l.b16 %v528
    %v2875 = vunpack.c.h.b16 %v528
    %v2876 = vunpack.c.l.b16 %v529
    %v2877 = vunpack.c.h.b16 %v529
    %v2878 = vunpack.c.l.b16 %v530
    %v2879 = vunpack.c.h.b16 %v530
    %v2880 = vunpack.c.l.b16 %v531
    %v2881 = vunpack.c.h.b16 %v531
    %v2882 = vunpack.c.l.b16 %v532
    %v2883 = vunpack.c.h.b16 %v532
    %v2884 = vunpack.c.l.b16 %v533
    %v2885 = vunpack.c.h.b16 %v533
    %v2886 = vunpack.c.l.b16 %v534
    %v2887 = vunpack.c.h.b16 %v534
    %v2888 = vunpack.c.l.b16 %v535
    %v2889 = vunpack.c.h.b16 %v535
    %v2890 = vunpack.c.l.b16 %v536
    %v2891 = vunpack.c.h.b16 %v536
    %v2892 = vunpack.c.l.b16 %v537
    %v2893 = vunpack.c.h.b16 %v537
    %v2894 = vunpack.c.l.b16 %v538
    %v2895 = vunpack.c.h.b16 %v538
    %v2896 = vunpack.c.l.b16 %v539
    %v2897 = vunpack.c.h.b16 %v539
    %v2898 = vunpack.c.l.b16 %v540
    %v2899 = vunpack.c.h.b16 %v540
    %v2900 = vunpack.c.l.b16 %v541
    %v2901 = vunpack.c.h.b16 %v541
    %v2902 = vunpack.c.l.b16 %v542
    %v2903 = vunpack.c.h.b16 %v542
    %v2904 = vunpack.c.l.b16 %v543
    %v2905 = vunpack.c.h.b16 %v543
    %v2906 = vunpack.c.l.b16 %v544
    %v2907 = vunpack.c.h.b16 %v544
    %v2908 = vunpack.c.l.b16 %v545
    %v2909 = vunpack.c.h.b16 %v545
    %v2910 = vunpack.c.l.b16 %v546
    %v2911 = vunpack.c.h.b16 %v546
    %v2912 = vunpack.c.l.b16 %v547
    %v2913 = vunpack.c.h.b16 %v547
    %v2914 = vunpack.c.l.b16 %v548
    %v2915 = vunpack.c.h.b16 %v548
    %v2916 = vunpack.c.l.b16 %v549
    %v2917 = vunpack.c.h.b16 %v549
    %v2918 = vunpack.c.l.b16 %v550
    %v2919 = vunpack.c.h.b16 %v550
    %v2920 = vunpack.c.l.b16 %v551
    %v2921 = vunpack.c.h.b16 %v551
    %v2922 = vunpack.c.l.b16 %v552
    %v2923 = vunpack.c.h.b16 %v552
    %v2924 = vunpack.c.l.b16 %v553
    %v2925 = vunpack.c.h.b16 %v553
    %v2926 = vunpack.c.l.b16 %v554
    %v2927 = vunpack.c.h.b16 %v554
    %v2928 = vunpack.c.l.b16 %v555
    %v2929 = vunpack.c.h.b16 %v555
    %v2930 = vunpack.c.l.b16 %v556
    %v2931 = vunpack.c.h.b16 %v556
    %v2932 = vunpack.c.l.b16 %v557
    %v2933 = vunpack.c.h.b16 %v557
    %v2934 = vunpack.c.l.b16 %v558
    %v2935 = vunpack.c.h.b16 %v558
    %v2936 = vunpack.c.l.b16 %v559
    %v2937 = vunpack.c.h.b16 %v559
    %v2938 = vunpack.c.l.b16 %v560
    %v2939 = vunpack.c.h.b16 %v560
    %v2940 = vunpack.c.l.b16 %v561
    %v2941 = vunpack.c.h.b16 %v561
    %v2942 = vunpack.c.l.b16 %v562
    %v2943 = vunpack.c.h.b16 %v562
    %v2944 = vunpack.c.l.b16 %v563
    %v2945 = vunpack.c.h.b16 %v563
    %v2946 = vunpack.c.l.b16 %v564
    %v2947 = vunpack.c.h.b16 %v564
    %v2948 = vunpack.c.l.b16 %v565
    %v2949 = vunpack.c.h.b16 %v565
    %v2950 = vunpack.c.l.b16 %v566
    %v2951 = vunpack.c.h.b16 %v566
    %v2952 = vunpack.c.l.b16 %v567
    %v2953 = vunpack.c.h.b16 %v567
    %v2954 = vunpack.c.l.b16 %v568
    %v2955 = vunpack.c.h.b16 %v568
    %v2956 = vunpack.c.l.b16 %v569
    %v2957 = vunpack.c.h.b16 %v569
    %v2958 = vunpack.c.l.b16 %v570
    %v2959 = vunpack.c.h.b16 %v570
    %v2960 = vunpack.c.l.b16 %v571
    %v2961 = vunpack.c.h.b16 %v571
    %v2962 = vunpack.c.l.b16 %v572
    %v2963 = vunpack.c.h.b16 %v572
    %v2964 = vunpack.c.l.b16 %v573
    %v2965 = vunpack.c.h.b16 %v573
    %v2966 = vunpack.c.l.b16 %v574
    %v2967 = vunpack.c.h.b16 %v574
    %v2968 = vunpack.c.l.b16 %v575
    %v2969 = vunpack.c.h.b16 %v575
    %v2970 = vunpack.c.l.b16 %v576
    %v2971 = vunpack.c.h.b16 %v576
    %v2972 = vunpack.c.l.b16 %v577
    %v2973 = vunpack.c.h.b16 %v577
    %v2974 = vunpack.c.l.b16 %v578
    %v2975 = vunpack.c.h.b16 %v578
    %v2976 = vunpack.c.l.b16 %v579
    %v2977 = vunpack.c.h.b16 %v579
    %v2978 = vunpack.c.l.b16 %v580
    %v2979 = vunpack.c.h.b16 %v580
    %v2980 = vunpack.c.l.b16 %v581
    %v2981 = vunpack.c.h.b16 %v581
    %v2982 = vunpack.c.l.b16 %v582
    %v2983 = vunpack.c.h.b16 %v582
    %v2984 = vunpack.c.l.b16 %v583
    %v2985 = vunpack.c.h.b16 %v583
    %v2986 = vunpack.c.l.b16 %v584
    %v2987 = vunpack.c.h.b16 %v584
    %v2988 = vunpack.c.l.b16 %v585
    %v2989 = vunpack.c.h.b16 %v585
    %v2990 = vunpack.c.l.b16 %v586
    %v2991 = vunpack.c.h.b16 %v586
    %v2992 = vunpack.c.l.b16 %v587
    %v2993 = vunpack.c.h.b16 %v587
    %v2994 = vunpack.c.l.b16 %v588
    %v2995 = vunpack.c.h.b16 %v588
    %v2996 = vunpack.c.l.b16 %v589
    %v2997 = vunpack.c.h.b16 %v589
    %v2998 = vunpack.c.l.b16 %v590
    %v2999 = vunpack.c.h.b16 %v590
    %v3000 = vunpack.c.l.b16 %v591
    %v3001 = vunpack.c.h.b16 %v591
    %v3002 = vunpack.c.l.b16 %v592
    %v3003 = vunpack.c.h.b16 %v592
    %v3004 = vunpack.c.l.b16 %v593
    %v3005 = vunpack.c.h.b16 %v593
    %v3006 = vunpack.c.l.b16 %v594
    %v3007 = vunpack.c.h.b16 %v594
    %v3008 = vunpack.c.l.b16 %v595
    %v3009 = vunpack.c.h.b16 %v595
    %v3010 = vunpack.c.l.b16 %v596
    %v3011 = vunpack.c.h.b16 %v596
    %v3012 = vunpack.c.l.b16 %v597
    %v3013 = vunpack.c.h.b16 %v597
    %v3014 = vunpack.c.l.b16 %v598
    %v3015 = vunpack.c.h.b16 %v598
    %v3016 = vunpack.c.l.b16 %v599
    %v3017 = vunpack.c.h.b16 %v599
    %v3018 = vunpack.c.l.b16 %v600
    %v3019 = vunpack.c.h.b16 %v600
    %v3020 = vunpack.c.l.b16 %v601
    %v3021 = vunpack.c.h.b16 %v601
    %v3022 = vunpack.c.l.b16 %v602
    %v3023 = vunpack.c.h.b16 %v602
    %v3024 = vunpack.c.l.b16 %v603
    %v3025 = vunpack.c.h.b16 %v603
    %v3026 = vunpack.c.l.b16 %v604
    %v3027 = vunpack.c.h.b16 %v604
    %v3028 = vunpack.c.l.b16 %v605
    %v3029 = vunpack.c.h.b16 %v605
    %v3030 = vunpack.c.l.b16 %v606
    %v3031 = vunpack.c.h.b16 %v606
    %v3032 = vunpack.c.l.b16 %v607
    %v3033 = vunpack.c.h.b16 %v607
    %v3034 = vunpack.c.l.b16 %v608
    %v3035 = vunpack.c.h.b16 %v608
    %v3036 = vunpack.c.l.b16 %v609
    %v3037 = vunpack.c.h.b16 %v609
    %v3038 = vunpack.c.l.b16 %v610
    %v3039 = vunpack.c.h.b16 %v610
    %v3040 = vunpack.c.l.b16 %v611
    %v3041 = vunpack.c.h.b16 %v611
    %v3042 = vunpack.c.l.b16 %v612
    %v3043 = vunpack.c.h.b16 %v612
    %v3044 = vunpack.c.l.b16 %v613
    %v3045 = vunpack.c.h.b16 %v613
    %v3046 = vunpack.c.l.b16 %v614
    %v3047 = vunpack.c.h.b16 %v614
    %v3048 = vunpack.c.l.b16 %v615
    %v3049 = vunpack.c.h.b16 %v615
    %v3050 = vunpack.c.l.b16 %v616
    %v3051 = vunpack.c.h.b16 %v616
    %v3052 = vunpack.c.l.b16 %v617
    %v3053 = vunpack.c.h.b16 %v617
    %v3054 = vunpack.c.l.b16 %v618
    %v3055 = vunpack.c.h.b16 %v618
    %v3056 = vunpack.c.l.b16 %v619
    %v3057 = vunpack.c.h.b16 %v619
    %v3058 = vunpack.c.l.b16 %v620
    %v3059 = vunpack.c.h.b16 %v620
    %v3060 = vunpack.c.l.b16 %v621
    %v3061 = vunpack.c.h.b16 %v621
    %v3062 = vunpack.c.l.b16 %v622
    %v3063 = vunpack.c.h.b16 %v622
    %v3064 = vunpack.c.l.b16 %v623
    %v3065 = vunpack.c.h.b16 %v623
    %v3066 = vunpack.c.l.b16 %v624
    %v3067 = vunpack.c.h.b16 %v624
    %v3068 = vunpack.c.l.b16 %v625
    %v3069 = vunpack.c.h.b16 %v625
    %v3070 = vunpack.c.l.b16 %v626
    %v3071 = vunpack.c.h.b16 %v626
    %v3072 = vunpack.c.l.b16 %v627
    %v3073 = vunpack.c.h.b16 %v627
    %v3074 = vunpack.c.l.b16 %v628
    %v3075 = vunpack.c.h.b16 %v628
    %v3076 = vunpack.c.l.b16 %v629
    %v3077 = vunpack.c.h.b16 %v629
    %v3078 = vunpack.c.l.b16 %v630
    %v3079 = vunpack.c.h.b16 %v630
    %v3080 = vunpack.c.l.b16 %v631
    %v3081 = vunpack.c.h.b16 %v631
    %v3082 = vunpack.c.l.b16 %v632
    %v3083 = vunpack.c.h.b16 %v632
    %v3084 = vunpack.c.l.b16 %v633
    %v3085 = vunpack.c.h.b16 %v633
    %v3086 = vunpack.c.l.b16 %v634
    %v3087 = vunpack.c.h.b16 %v634
    %v3088 = vunpack.c.l.b16 %v635
    %v3089 = vunpack.c.h.b16 %v635
    %v3090 = vunpack.c.l.b16 %v636
    %v3091 = vunpack.c.h.b16 %v636
    %v3092 = vunpack.c.l.b16 %v637
    %v3093 = vunpack.c.h.b16 %v637
    %v3094 = vunpack.c.l.b16 %v638
    %v3095 = vunpack.c.h.b16 %v638
    %v3096 = vunpack.c.l.b16 %v639
    %v3097 = vunpack.c.h.b16 %v639
    %v3098 = vunpack.c.l.b16 %v640
    %v3099 = vunpack.c.h.b16 %v640
    %v3100 = vunpack.c.l.b16 %v641
    %v3101 = vunpack.c.h.b16 %v641
    %v3102 = vunpack.c.l.b16 %v642
    %v3103 = vunpack.c.h.b16 %v642
    %v3104 = vunpack.c.l.b16 %v643
    %v3105 = vunpack.c.h.b16 %v643
    %v3106 = vunpack.c.l.b16 %v644
    %v3107 = vunpack.c.h.b16 %v644
    %v3108 = vunpack.c.l.b16 %v645
    %v3109 = vunpack.c.h.b16 %v645
    %v3110 = vunpack.c.l.b16 %v646
    %v3111 = vunpack.c.h.b16 %v646
    %v3112 = vunpack.c.l.b16 %v647
    %v3113 = vunpack.c.h.b16 %v647
    %v3114 = vunpack.c.l.b16 %v648
    %v3115 = vunpack.c.h.b16 %v648
    %v3116 = vunpack.c.l.b16 %v649
    %v3117 = vunpack.c.h.b16 %v649
    %v3118 = vunpack.c.l.b16 %v650
    %v3119 = vunpack.c.h.b16 %v650
    %v3120 = vunpack.c.l.b16 %v651
    %v3121 = vunpack.c.h.b16 %v651
    %v3122 = vunpack.c.l.b16 %v652
    %v3123 = vunpack.c.h.b16 %v652
    %v3124 = vunpack.c.l.b16 %v653
    %v3125 = vunpack.c.h.b16 %v653
    %v3126 = vunpack.c.l.b16 %v654
    %v3127 = vunpack.c.h.b16 %v654
    %v3128 = vunpack.c.l.b16 %v655
    %v3129 = vunpack.c.h.b16 %v655
    %v3130 = vunpack.c.l.b16 %v656
    %v3131 = vunpack.c.h.b16 %v656
    %v3132 = vunpack.c.l.b16 %v657
    %v3133 = vunpack.c.h.b16 %v657
    %v3134 = vunpack.c.l.b16 %v658
    %v3135 = vunpack.c.h.b16 %v658
    %v3136 = vunpack.c.l.b16 %v659
    %v3137 = vunpack.c.h.b16 %v659
    %v3138 = vunpack.c.l.b16 %v660
    %v3139 = vunpack.c.h.b16 %v660
    %v3140 = vunpack.c.l.b16 %v661
    %v3141 = vunpack.c.h.b16 %v661
    %v3142 = vunpack.c.l.b16 %v662
    %v3143 = vunpack.c.h.b16 %v662
    %v3144 = vunpack.c.l.b16 %v663
    %v3145 = vunpack.c.h.b16 %v663
    %v3146 = vunpack.c.l.b16 %v664
    %v3147 = vunpack.c.h.b16 %v664
    %v3148 = vunpack.c.l.b16 %v665
    %v3149 = vunpack.c.h.b16 %v665
    %v3150 = vunpack.c.l.b16 %v666
    %v3151 = vunpack.c.h.b16 %v666
    %v3152 = vunpack.c.l.b16 %v667
    %v3153 = vunpack.c.h.b16 %v667
    %v3154 = vunpack.c.l.b16 %v668
    %v3155 = vunpack.c.h.b16 %v668
    %v3156 = vunpack.c.l.b16 %v669
    %v3157 = vunpack.c.h.b16 %v669
    %v3158 = vunpack.c.l.b16 %v670
    %v3159 = vunpack.c.h.b16 %v670
    %v3160 = vunpack.c.l.b16 %v671
    %v3161 = vunpack.c.h.b16 %v671
    %v3162 = vunpack.c.l.b16 %v672
    %v3163 = vunpack.c.h.b16 %v672
    %v3164 = vunpack.c.l.b16 %v673
    %v3165 = vunpack.c.h.b16 %v673
    %v3166 = vunpack.c.l.b16 %v674
    %v3167 = vunpack.c.h.b16 %v674
    %v3168 = vunpack.c.l.b16 %v675
    %v3169 = vunpack.c.h.b16 %v675
    %v3170 = vunpack.c.l.b16 %v676
    %v3171 = vunpack.c.h.b16 %v676
    %v3172 = vunpack.c.l.b16 %v677
    %v3173 = vunpack.c.h.b16 %v677
    %v3174 = vunpack.c.l.b16 %v678
    %v3175 = vunpack.c.h.b16 %v678
    %v3176 = vunpack.c.l.b16 %v679
    %v3177 = vunpack.c.h.b16 %v679
    %v3178 = vunpack.c.l.b16 %v680
    %v3179 = vunpack.c.h.b16 %v680
    %v3180 = vunpack.c.l.b16 %v681
    %v3181 = vunpack.c.h.b16 %v681
    %v3182 = vunpack.c.l.b16 %v682
    %v3183 = vunpack.c.h.b16 %v682
    %v3184 = vunpack.c.l.b16 %v683
    %v3185 = vunpack.c.h.b16 %v683
    %v3186 = vunpack.c.l.b16 %v684
    %v3187 = vunpack.c.h.b16 %v684
    %v3188 = vunpack.c.l.b16 %v685
    %v3189 = vunpack.c.h.b16 %v685
    %v3190 = vunpack.c.l.b16 %v686
    %v3191 = vunpack.c.h.b16 %v686
    %v3192 = vunpack.c.l.b16 %v687
    %v3193 = vunpack.c.h.b16 %v687
    %v3194 = vunpack.c.l.b16 %v688
    %v3195 = vunpack.c.h.b16 %v688
    %v3196 = vunpack.c.l.b16 %v689
    %v3197 = vunpack.c.h.b16 %v689
    %v3198 = vunpack.c.l.b16 %v690
    %v3199 = vunpack.c.h.b16 %v690
    %v3200 = vunpack.c.l.b16 %v691
    %v3201 = vunpack.c.h.b16 %v691
    %v3202 = vunpack.c.l.b16 %v692
    %v3203 = vunpack.c.h.b16 %v692
    %v3204 = vunpack.c.l.b16 %v693
    %v3205 = vunpack.c.h.b16 %v693
    %v3206 = vunpack.c.l.b16 %v694
    %v3207 = vunpack.c.h.b16 %v694
    %v3208 = vunpack.c.l.b16 %v695
    %v3209 = vunpack.c.h.b16 %v695
    %v3210 = vunpack.c.l.b16 %v696
    %v3211 = vunpack.c.h.b16 %v696
    %v3212 = vunpack.c.l.b16 %v697
    %v3213 = vunpack.c.h.b16 %v697
    %v3214 = vunpack.c.l.b16 %v698
    %v3215 = vunpack.c.h.b16 %v698
    %v3216 = vunpack.c.l.b16 %v699
    %v3217 = vunpack.c.h.b16 %v699
    %v3218 = vunpack.c.l.b16 %v700
    %v3219 = vunpack.c.h.b16 %v700
    %v3220 = vunpack.c.l.b16 %v701
    %v3221 = vunpack.c.h.b16 %v701
    %v3222 = vunpack.c.l.b16 %v702
    %v3223 = vunpack.c.h.b16 %v702
    %v3224 = vunpack.c.l.b16 %v703
    %v3225 = vunpack.c.h.b16 %v703
    %v3226 = vunpack.c.l.b16 %v704
    %v3227 = vunpack.c.h.b16 %v704
    %v3228 = vunpack.c.l.b16 %v705
    %v3229 = vunpack.c.h.b16 %v705
    %v3230 = vunpack.c.l.b16 %v706
    %v3231 = vunpack.c.h.b16 %v706
    %v3232 = vunpack.c.l.b16 %v707
    %v3233 = vunpack.c.h.b16 %v707
    %v3234 = vunpack.c.l.b16 %v708
    %v3235 = vunpack.c.h.b16 %v708
    %v3236 = vunpack.c.l.b16 %v709
    %v3237 = vunpack.c.h.b16 %v709
    %v3238 = vunpack.c.l.b16 %v710
    %v3239 = vunpack.c.h.b16 %v710
    %v3240 = vunpack.c.l.b16 %v711
    %v3241 = vunpack.c.h.b16 %v711
    %v3242 = vunpack.c.l.b16 %v712
    %v3243 = vunpack.c.h.b16 %v712
    %v3244 = vunpack.c.l.b16 %v713
    %v3245 = vunpack.c.h.b16 %v713
    %v3246 = vunpack.c.l.b16 %v714
    %v3247 = vunpack.c.h.b16 %v714
    %v3248 = vunpack.c.l.b16 %v715
    %v3249 = vunpack.c.h.b16 %v715
    %v3250 = vunpack.c.l.b16 %v716
    %v3251 = vunpack.c.h.b16 %v716
    %v3252 = vunpack.c.l.b16 %v717
    %v3253 = vunpack.c.h.b16 %v717
    %v3254 = vunpack.c.l.b16 %v718
    %v3255 = vunpack.c.h.b16 %v718
    %v3256 = vunpack.c.l.b16 %v719
    %v3257 = vunpack.c.h.b16 %v719
    %v3258 = vunpack.c.l.b16 %v720
    %v3259 = vunpack.c.h.b16 %v720
    %v3260 = vunpack.c.l.b16 %v721
    %v3261 = vunpack.c.h.b16 %v721
    %v3262 = vunpack.c.l.b16 %v722
    %v3263 = vunpack.c.h.b16 %v722
    %v3264 = vunpack.c.l.b16 %v723
    %v3265 = vunpack.c.h.b16 %v723
    %v3266 = vunpack.c.l.b16 %v724
    %v3267 = vunpack.c.h.b16 %v724
    %v3268 = vunpack.c.l.b16 %v725
    %v3269 = vunpack.c.h.b16 %v725
    %v3270 = vunpack.c.l.b16 %v726
    %v3271 = vunpack.c.h.b16 %v726
    %v3272 = vunpack.c.l.b16 %v727
    %v3273 = vunpack.c.h.b16 %v727
    %v3274 = vunpack.c.l.b16 %v728
    %v3275 = vunpack.c.h.b16 %v728
    %v3276 = vunpack.c.l.b16 %v729
    %v3277 = vunpack.c.h.b16 %v729
    %v3278 = vunpack.c.l.b16 %v730
    %v3279 = vunpack.c.h.b16 %v730
    %v3280 = vunpack.c.l.b16 %v731
    %v3281 = vunpack.c.h.b16 %v731
    %v3282 = vunpack.c.l.b16 %v732
    %v3283 = vunpack.c.h.b16 %v732
    %v3284 = vunpack.c.l.b16 %v733
    %v3285 = vunpack.c.h.b16 %v733
    %v3286 = vunpack.c.l.b16 %v734
    %v3287 = vunpack.c.h.b16 %v734
    %v3288 = vunpack.c.l.b16 %v735
    %v3289 = vunpack.c.h.b16 %v735
    %v3290 = vunpack.c.l.b16 %v736
    %v3291 = vunpack.c.h.b16 %v736
    %v3292 = vunpack.c.l.b16 %v737
    %v3293 = vunpack.c.h.b16 %v737
    %v3294 = vunpack.c.l.b16 %v738
    %v3295 = vunpack.c.h.b16 %v738
    %v3296 = vunpack.c.l.b16 %v739
    %v3297 = vunpack.c.h.b16 %v739
    %v3298 = vunpack.c.l.b16 %v740
    %v3299 = vunpack.c.h.b16 %v740
    %v3300 = vunpack.c.l.b16 %v741
    %v3301 = vunpack.c.h.b16 %v741
    %v3302 = vunpack.c.l.b16 %v742
    %v3303 = vunpack.c.h.b16 %v742
    %v3304 = vunpack.c.l.b16 %v743
    %v3305 = vunpack.c.h.b16 %v743
    %v3306 = vunpack.c.l.b16 %v744
    %v3307 = vunpack.c.h.b16 %v744
    %v3308 = vunpack.c.l.b16 %v745
    %v3309 = vunpack.c.h.b16 %v745
    %v3310 = vunpack.c.l.b16 %v746
    %v3311 = vunpack.c.h.b16 %v746
    %v3312 = vunpack.c.l.b16 %v747
    %v3313 = vunpack.c.h.b16 %v747
    %v3314 = vunpack.c.l.b16 %v748
    %v3315 = vunpack.c.h.b16 %v748
    %v3316 = vunpack.c.l.b16 %v749
    %v3317 = vunpack.c.h.b16 %v749
    %v3318 = vunpack.c.l.b16 %v750
    %v3319 = vunpack.c.h.b16 %v750
    %v3320 = vunpack.c.l.b16 %v751
    %v3321 = vunpack.c.h.b16 %v751
    %v3322 = vunpack.c.l.b16 %v752
    %v3323 = vunpack.c.h.b16 %v752
    %v3324 = vunpack.c.l.b16 %v753
    %v3325 = vunpack.c.h.b16 %v753
    %v3326 = vunpack.c.l.b16 %v754
    %v3327 = vunpack.c.h.b16 %v754
    %v3328 = vunpack.c.l.b16 %v755
    %v3329 = vunpack.c.h.b16 %v755
    %v3330 = vunpack.c.l.b16 %v756
    %v3331 = vunpack.c.h.b16 %v756
    %v3332 = vunpack.c.l.b16 %v757
    %v3333 = vunpack.c.h.b16 %v757
    %v3334 = vunpack.c.l.b16 %v758
    %v3335 = vunpack.c.h.b16 %v758
    %v3336 = vunpack.c.l.b16 %v759
    %v3337 = vunpack.c.h.b16 %v759
    %v3338 = vunpack.c.l.b16 %v760
    %v3339 = vunpack.c.h.b16 %v760
    %v3340 = vunpack.c.l.b16 %v761
    %v3341 = vunpack.c.h.b16 %v761
    %v3342 = vunpack.c.l.b16 %v762
    %v3343 = vunpack.c.h.b16 %v762
    %v3344 = vunpack.c.l.b16 %v763
    %v3345 = vunpack.c.h.b16 %v763
    %v3346 = vunpack.c.l.b16 %v764
    %v3347 = vunpack.c.h.b16 %v764
    %v3348 = vunpack.c.l.b16 %v765
    %v3349 = vunpack.c.h.b16 %v765
    %v3350 = vunpack.c.l.b16 %v766
    %v3351 = vunpack.c.h.b16 %v766
    %v3352 = vunpack.c.l.b16 %v767
    %v3353 = vunpack.c.h.b16 %v767
    %v3354 = vunpack.c.l.b16 %v768
    %v3355 = vunpack.c.h.b16 %v768
    %v3356 = vunpack.c.l.b16 %v769
    %v3357 = vunpack.c.h.b16 %v769
    %v3358 = vunpack.c.l.b16 %v770
    %v3359 = vunpack.c.h.b16 %v770
    %v3360 = vunpack.c.l.b16 %v771
    %v3361 = vunpack.c.h.b16 %v771
    %v3362 = vunpack.c.l.b16 %v772
    %v3363 = vunpack.c.h.b16 %v772
    %v3364 = vunpack.c.l.b16 %v773
    %v3365 = vunpack.c.h.b16 %v773
    %v3366 = vunpack.c.l.b16 %v774
    %v3367 = vunpack.c.h.b16 %v774
    %v3368 = vunpack.c.l.b16 %v775
    %v3369 = vunpack.c.h.b16 %v775
    %v3370 = vunpack.c.l.b16 %v776
    %v3371 = vunpack.c.h.b16 %v776
    %v3372 = vunpack.c.l.b16 %v777
    %v3373 = vunpack.c.h.b16 %v777
    %v3374 = vunpack.c.l.b16 %v778
    %v3375 = vunpack.c.h.b16 %v778
    %v3376 = vunpack.c.l.b16 %v779
    %v3377 = vunpack.c.h.b16 %v779
    %v3378 = vunpack.c.l.b16 %v780
    %v3379 = vunpack.c.h.b16 %v780
    %v3380 = vunpack.c.l.b16 %v781
    %v3381 = vunpack.c.h.b16 %v781
    %v3382 = vunpack.c.l.b16 %v782
    %v3383 = vunpack.c.h.b16 %v782
    %v3384 = vunpack.c.l.b16 %v783
    %v3385 = vunpack.c.h.b16 %v783
    %v3386 = vunpack.c.l.b16 %v784
    %v3387 = vunpack.c.h.b16 %v784
    %v3388 = vunpack.c.l.b16 %v785
    %v3389 = vunpack.c.h.b16 %v785
    %v3390 = vunpack.c.l.b16 %v786
    %v3391 = vunpack.c.h.b16 %v786
    %v3392 = vunpack.c.l.b16 %v787
    %v3393 = vunpack.c.h.b16 %v787
    %v3394 = vunpack.c.l.b16 %v788
    %v3395 = vunpack.c.h.b16 %v788
    %v3396 = vunpack.c.l.b16 %v789
    %v3397 = vunpack.c.h.b16 %v789
    %v3398 = vunpack.c.l.b16 %v790
    %v3399 = vunpack.c.h.b16 %v790
    %v3400 = vunpack.c.l.b16 %v791
    %v3401 = vunpack.c.h.b16 %v791
    %v3402 = vunpack.c.l.b16 %v792
    %v3403 = vunpack.c.h.b16 %v792
    %v3404 = vunpack.c.l.b16 %v793
    %v3405 = vunpack.c.h.b16 %v793
    %v3406 = vunpack.c.l.b16 %v794
    %v3407 = vunpack.c.h.b16 %v794
    %v3408 = vunpack.c.l.b16 %v795
    %v3409 = vunpack.c.h.b16 %v795
    %v3410 = vunpack.c.l.b16 %v796
    %v3411 = vunpack.c.h.b16 %v796
    %v3412 = vunpack.c.l.b16 %v797
    %v3413 = vunpack.c.h.b16 %v797
    %v3414 = vunpack.c.l.b16 %v798
    %v3415 = vunpack.c.h.b16 %v798
    %v3416 = vunpack.c.l.b16 %v799
    %v3417 = vunpack.c.h.b16 %v799
    %v3418 = vunpack.c.l.b16 %v800
    %v3419 = vunpack.c.h.b16 %v800
    %v3420 = vunpack.c.l.b16 %v801
    %v3421 = vunpack.c.h.b16 %v801
    %v3422 = vunpack.c.l.b16 %v802
    %v3423 = vunpack.c.h.b16 %v802
    %v3424 = vunpack.c.l.b16 %v803
    %v3425 = vunpack.c.h.b16 %v803
    %v3426 = vunpack.c.l.b16 %v804
    %v3427 = vunpack.c.h.b16 %v804
    %v3428 = vunpack.c.l.b16 %v805
    %v3429 = vunpack.c.h.b16 %v805
    %v3430 = vunpack.c.l.b16 %v806
    %v3431 = vunpack.c.h.b16 %v806
    %v3432 = vunpack.c.l.b16 %v807
    %v3433 = vunpack.c.h.b16 %v807
    %v3434 = vunpack.c.l.b16 %v808
    %v3435 = vunpack.c.h.b16 %v808
    %v3436 = vunpack.c.l.b16 %v809
    %v3437 = vunpack.c.h.b16 %v809
    %v3438 = vunpack.c.l.b16 %v810
    %v3439 = vunpack.c.h.b16 %v810
    %v3440 = vunpack.c.l.b16 %v811
    %v3441 = vunpack.c.h.b16 %v811
    %v3442 = vunpack.c.l.b16 %v812
    %v3443 = vunpack.c.h.b16 %v812
    %v3444 = vunpack.c.l.b16 %v813
    %v3445 = vunpack.c.h.b16 %v813
    %v3446 = vunpack.c.l.b16 %v814
    %v3447 = vunpack.c.h.b16 %v814
    %v3448 = vunpack.c.l.b16 %v815
    %v3449 = vunpack.c.h.b16 %v815
    %v3450 = vunpack.c.l.b16 %v816
    %v3451 = vunpack.c.h.b16 %v816
    %v3452 = vunpack.c.l.b16 %v817
    %v3453 = vunpack.c.h.b16 %v817
    %v3454 = vunpack.c.l.b16 %v818
    %v3455 = vunpack.c.h.b16 %v818
    %v3456 = vunpack.c.l.b16 %v819
    %v3457 = vunpack.c.h.b16 %v819
    %v3458 = vunpack.c.l.b16 %v820
    %v3459 = vunpack.c.h.b16 %v820
    %v3460 = vunpack.c.l.b16 %v821
    %v3461 = vunpack.c.h.b16 %v821
    %v3462 = vunpack.c.l.b16 %v822
    %v3463 = vunpack.c.h.b16 %v822
    %v3464 = vunpack.c.l.b16 %v823
    %v3465 = vunpack.c.h.b16 %v823
    %v3466 = vpack.c.b16 %v1902, %v1898
    %v3467 = vpack.c.b16 %v1903, %v1899
    %v3468 = vpack.c.b16 %v1904, %v1900
    %v3469 = vpack.c.b16 %v1905, %v1901
    %v3470 = vpack.c.b16 %v1910, %v1906
    %v3471 = vpack.c.b16 %v1911, %v1907
    %v3472 = vpack.c.b16 %v1912, %v1908
    %v3473 = vpack.c.b16 %v1913, %v1909
    %v3474 = vpack.c.b16 %v1918, %v1914
    %v3475 = vpack.c.b16 %v1919, %v1915
    %v3476 = vpack.c.b16 %v1920, %v1916
    %v3477 = vpack.c.b16 %v1921, %v1917
    %v3478 = vpack.c.b16 %v1926, %v1922
    %v3479 = vpack.c.b16 %v1927, %v1923
    %v3480 = vpack.c.b16 %v1928, %v1924
    %v3481 = vpack.c.b16 %v1929, %v1925
    %v3482 = vpack.c.b16 %v1934, %v1930
    %v3483 = vpack.c.b16 %v1935, %v1931
    %v3484 = vpack.c.b16 %v1936, %v1932
    %v3485 = vpack.c.b16 %v1937, %v1933
    %v3486 = vpack.c.b16 %v1942, %v1938
    %v3487 = vpack.c.b16 %v1943, %v1939
    %v3488 = vpack.c.b16 %v1944, %v1940
    %v3489 = vpack.c.b16 %v1945, %v1941
    %v3490 = vpack.c.b16 %v1950, %v1946
    %v3491 = vpack.c.b16 %v1951, %v1947
    %v3492 = vpack.c.b16 %v1952, %v1948
    %v3493 = vpack.c.b16 %v1953, %v1949
    %v3494 = vpack.c.b16 %v1958, %v1954
    %v3495 = vpack.c.b16 %v1959, %v1955
    %v3496 = vpack.c.b16 %v1960, %v1956
    %v3497 = vpack.c.b16 %v1961, %v1957
    %v3498 = vpack.c.b16 %v1966, %v1962
    %v3499 = vpack.c.b16 %v1967, %v1963
    %v3500 = vpack.c.b16 %v1968, %v1964
    %v3501 = vpack.c.b16 %v1969, %v1965
    %v3502 = vpack.c.b16 %v1974, %v1970
    %v3503 = vpack.c.b16 %v1975, %v1971
    %v3504 = vpack.c.b16 %v1976, %v1972
    %v3505 = vpack.c.b16 %v1977, %v1973
    %v3506 = vpack.c.b16 %v1982, %v1978
    %v3507 = vpack.c.b16 %v1983, %v1979
    %v3508 = vpack.c.b16 %v1984, %v1980
    %v3509 = vpack.c.b16 %v1985, %v1981
    %v3510 = vpack.c.b16 %v1990, %v1986
    %v3511 = vpack.c.b16 %v1991, %v1987
    %v3512 = vpack.c.b16 %v1992, %v1988
    %v3513 = vpack.c.b16 %v1993, %v1989
    %v3514 = vpack.c.b16 %v1998, %v1994
    %v3515 = vpack.c.b16 %v1999, %v1995
    %v3516 = vpack.c.b16 %v2000, %v1996
    %v3517 = vpack.c.b16 %v2001, %v1997
    %v3518 = vpack.c.b16 %v2006, %v2002
    %v3519 = vpack.c.b16 %v2007, %v2003
    %v3520 = vpack.c.b16 %v2008, %v2004
    %v3521 = vpack.c.b16 %v2009, %v2005
    %v3522 = vpack.c.b16 %v2014, %v2010
    %v3523 = vpack.c.b16 %v2015, %v2011
    %v3524 = vpack.c.b16 %v2016, %v2012
    %v3525 = vpack.c.b16 %v2017, %v2013
    %v3526 = vpack.c.b16 %v2022, %v2018
    %v3527 = vpack.c.b16 %v2023, %v2019
    %v3528 = vpack.c.b16 %v2024, %v2020
    %v3529 = vpack.c.b16 %v2025, %v2021
    %v3530 = vpack.c.b16 %v2030, %v2026
    %v3531 = vpack.c.b16 %v2031, %v2027
    %v3532 = vpack.c.b16 %v2032, %v2028
    %v3533 = vpack.c.b16 %v2033, %v2029
    %v3534 = vpack.c.b16 %v2038, %v2034
    %v3535 = vpack.c.b16 %v2039, %v2035
    %v3536 = vpack.c.b16 %v2040, %v2036
    %v3537 = vpack.c.b16 %v2041, %v2037
    %v3538 = vpack.c.b16 %v2046, %v2042
    %v3539 = vpack.c.b16 %v2047, %v2043
    %v3540 = vpack.c.b16 %v2048, %v2044
    %v3541 = vpack.c.b16 %v2049, %v2045
    %v3542 = vpack.c.b16 %v2054, %v2050
    %v3543 = vpack.c.b16 %v2055, %v2051
    %v3544 = vpack.c.b16 %v2056, %v2052
    %v3545 = vpack.c.b16 %v2057, %v2053
    %v3546 = vpack.c.b16 %v2062, %v2058
    %v3547 = vpack.c.b16 %v2063, %v2059
    %v3548 = vpack.c.b16 %v2064, %v2060
    %v3549 = vpack.c.b16 %v2065, %v2061
    %v3550 = vpack.c.b16 %v2070, %v2066
    %v3551 = vpack.c.b16 %v2071, %v2067
    %v3552 = vpack.c.b16 %v2072, %v2068
    %v3553 = vpack.c.b16 %v2073, %v2069
    %v3554 = vpack.c.b16 %v2078, %v2074
    %v3555 = vpack.c.b16 %v2079, %v2075
    %v3556 = vpack.c.b16 %v2080, %v2076
    %v3557 = vpack.c.b16 %v2081, %v2077
    %v3558 = vpack.c.b16 %v2086, %v2082
    %v3559 = vpack.c.b16 %v2087, %v2083
    %v3560 = vpack.c.b16 %v2088, %v2084
    %v3561 = vpack.c.b16 %v2089, %v2085
    %v3562 = vpack.c.b16 %v2094, %v2090
    %v3563 = vpack.c.b16 %v2095, %v2091
    %v3564 = vpack.c.b16 %v2096, %v2092
    %v3565 = vpack.c.b16 %v2097, %v2093
    %v3566 = vpack.c.b16 %v2102, %v2098
    %v3567 = vpack.c.b16 %v2103, %v2099
    %v3568 = vpack.c.b16 %v2104, %v2100
    %v3569 = vpack.c.b16 %v2105, %v2101
    %v3570 = vpack.c.b16 %v2110, %v2106
    %v3571 = vpack.c.b16 %v2111, %v2107
    %v3572 = vpack.c.b16 %v2112, %v2108
    %v3573 = vpack.c.b16 %v2113, %v2109
    %v3574 = vpack.c.b16 %v2118, %v2114
    %v3575 = vpack.c.b16 %v2119, %v2115
    %v3576 = vpack.c.b16 %v2120, %v2116
    %v3577 = vpack.c.b16 %v2121, %v2117
    %v3578 = vpack.c.b16 %v2126, %v2122
    %v3579 = vpack.c.b16 %v2127, %v2123
    %v3580 = vpack.c.b16 %v2128, %v2124
    %v3581 = vpack.c.b16 %v2129, %v2125
    %v3582 = vpack.c.b16 %v2134, %v2130
    %v3583 = vpack.c.b16 %v2135, %v2131
    %v3584 = vpack.c.b16 %v2136, %v2132
    %v3585 = vpack.c.b16 %v2137, %v2133
    %v3586 = vpack.c.b16 %v2142, %v2138
    %v3587 = vpack.c.b16 %v2143, %v2139
    %v3588 = vpack.c.b16 %v2144, %v2140
    %v3589 = vpack.c.b16 %v2145, %v2141
    %v3590 = vpack.c.b16 %v2150, %v2146
    %v3591 = vpack.c.b16 %v2151, %v2147
    %v3592 = vpack.c.b16 %v2152, %v2148
    %v3593 = vpack.c.b16 %v2153, %v2149
    %v3594 = vpack.c.b16 %v2158, %v2154
    %v3595 = vpack.c.b16 %v2159, %v2155
    %v3596 = vpack.c.b16 %v2160, %v2156
    %v3597 = vpack.c.b16 %v2161, %v2157
    %v3598 = vpack.c.b16 %v2166, %v2162
    %v3599 = vpack.c.b16 %v2167, %v2163
    %v3600 = vpack.c.b16 %v2168, %v2164
    %v3601 = vpack.c.b16 %v2169, %v2165
    %v3602 = vpack.c.b16 %v2174, %v2170
    %v3603 = vpack.c.b16 %v2175, %v2171
    %v3604 = vpack.c.b16 %v2176, %v2172
    %v3605 = vpack.c.b16 %v2177, %v2173
    %v3606 = vpack.c.b16 %v2182, %v2178
    %v3607 = vpack.c.b16 %v2183, %v2179
    %v3608 = vpack.c.b16 %v2184, %v2180
    %v3609 = vpack.c.b16 %v2185, %v2181
    %v3610 = vpack.c.b16 %v2190, %v2186
    %v3611 = vpack.c.b16 %v2191, %v2187
    %v3612 = vpack.c.b16 %v2192, %v2188
    %v3613 = vpack.c.b16 %v2193, %v2189
    %v3614 = vpack.c.b16 %v2198, %v2194
    %v3615 = vpack.c.b16 %v2199, %v2195
    %v3616 = vpack.c.b16 %v2200, %v2196
    %v3617 = vpack.c.b16 %v2201, %v2197
    %v3618 = vpack.c.b16 %v2206, %v2202
    %v3619 = vpack.c.b16 %v2207, %v2203
    %v3620 = vpack.c.b16 %v2208, %v2204
    %v3621 = vpack.c.b16 %v2209, %v2205
    %v3622 = vpack.c.b16 %v2214, %v2210
    %v3623 = vpack.c.b16 %v2215, %v2211
    %v3624 = vpack.c.b16 %v2216, %v2212
    %v3625 = vpack.c.b16 %v2217, %v2213
    %v3626 = vpack.c.b16 %v2222, %v2218
    %v3627 = vpack.c.b16 %v2223, %v2219
    %v3628 = vpack.c.b16 %v2224, %v2220
    %v3629 = vpack.c.b16 %v2225, %v2221
    %v3630 = vpack.c.b16 %v2230, %v2226
    %v3631 = vpack.c.b16 %v2231, %v2227
    %v3632 = vpack.c.b16 %v2232, %v2228
    %v3633 = vpack.c.b16 %v2233, %v2229
    %v3634 = vpack.c.b16 %v2238, %v2234
    %v3635 = vpack.c.b16 %v2239, %v2235
    %v3636 = vpack.c.b16 %v2240, %v2236
    %v3637 = vpack.c.b16 %v2241, %v2237
    %v3638 = vpack.c.b16 %v2246, %v2242
    %v3639 = vpack.c.b16 %v2247, %v2243
    %v3640 = vpack.c.b16 %v2248, %v2244
    %v3641 = vpack.c.b16 %v2249, %v2245
    %v3642 = vpack.c.b16 %v2254, %v2250
    %v3643 = vpack.c.b16 %v2255, %v2251
    %v3644 = vpack.c.b16 %v2256, %v2252
    %v3645 = vpack.c.b16 %v2257, %v2253
    %v3646 = vpack.c.b16 %v2262, %v2258
    %v3647 = vpack.c.b16 %v2263, %v2259
    %v3648 = vpack.c.b16 %v2264, %v2260
    %v3649 = vpack.c.b16 %v2265, %v2261
    %v3650 = vpack.c.b16 %v2270, %v2266
    %v3651 = vpack.c.b16 %v2271, %v2267
    %v3652 = vpack.c.b16 %v2272, %v2268
    %v3653 = vpack.c.b16 %v2273, %v2269
    %v3654 = vpack.c.b16 %v2278, %v2274
    %v3655 = vpack.c.b16 %v2279, %v2275
    %v3656 = vpack.c.b16 %v2280, %v2276
    %v3657 = vpack.c.b16 %v2281, %v2277
    %v3658 = vpack.c.b16 %v2286, %v2282
    %v3659 = vpack.c.b16 %v2287, %v2283
    %v3660 = vpack.c.b16 %v2288, %v2284
    %v3661 = vpack.c.b16 %v2289, %v2285
    %v3662 = vpack.c.b16 %v2294, %v2290
    %v3663 = vpack.c.b16 %v2295, %v2291
    %v3664 = vpack.c.b16 %v2296, %v2292
    %v3665 = vpack.c.b16 %v2297, %v2293
    %v3666 = vpack.c.b16 %v2302, %v2298
    %v3667 = vpack.c.b16 %v2303, %v2299
    %v3668 = vpack.c.b16 %v2304, %v2300
    %v3669 = vpack.c.b16 %v2305, %v2301
    %v3670 = vpack.c.b16 %v2310, %v2306
    %v3671 = vpack.c.b16 %v2311, %v2307
    %v3672 = vpack.c.b16 %v2312, %v2308
    %v3673 = vpack.c.b16 %v2313, %v2309
    %v3674 = vpack.c.b16 %v2318, %v2314
    %v3675 = vpack.c.b16 %v2319, %v2315
    %v3676 = vpack.c.b16 %v2320, %v2316
    %v3677 = vpack.c.b16 %v2321, %v2317
    %v3678 = vpack.c.b16 %v2326, %v2322
    %v3679 = vpack.c.b16 %v2327, %v2323
    %v3680 = vpack.c.b16 %v2328, %v2324
    %v3681 = vpack.c.b16 %v2329, %v2325
    %v3682 = vpack.c.b16 %v2334, %v2330
    %v3683 = vpack.c.b16 %v2335, %v2331
    %v3684 = vpack.c.b16 %v2336, %v2332
    %v3685 = vpack.c.b16 %v2337, %v2333
    %v3686 = vpack.c.b16 %v2342, %v2338
    %v3687 = vpack.c.b16 %v2343, %v2339
    %v3688 = vpack.c.b16 %v2344, %v2340
    %v3689 = vpack.c.b16 %v2345, %v2341
    %v3690 = vpack.c.b16 %v2350, %v2346
    %v3691 = vpack.c.b16 %v2351, %v2347
    %v3692 = vpack.c.b16 %v2352, %v2348
    %v3693 = vpack.c.b16 %v2353, %v2349
    %v3694 = vpack.c.b16 %v2358, %v2354
    %v3695 = vpack.c.b16 %v2359, %v2355
    %v3696 = vpack.c.b16 %v2360, %v2356
    %v3697 = vpack.c.b16 %v2361, %v2357
    %v3698 = vpack.c.b16 %v2366, %v2362
    %v3699 = vpack.c.b16 %v2367, %v2363
    %v3700 = vpack.c.b16 %v2368, %v2364
    %v3701 = vpack.c.b16 %v2369, %v2365
    %v3702 = vpack.c.b16 %v2374, %v2370
    %v3703 = vpack.c.b16 %v2375, %v2371
    %v3704 = vpack.c.b16 %v2376, %v2372
    %v3705 = vpack.c.b16 %v2377, %v2373
    %v3706 = vpack.c.b16 %v2382, %v2378
    %v3707 = vpack.c.b16 %v2383, %v2379
    %v3708 = vpack.c.b16 %v2384, %v2380
    %v3709 = vpack.c.b16 %v2385, %v2381
    %v3710 = vpack.c.b16 %v2390, %v2386
    %v3711 = vpack.c.b16 %v2391, %v2387
    %v3712 = vpack.c.b16 %v2392, %v2388
    %v3713 = vpack.c.b16 %v2393, %v2389
    %v3714 = vpack.c.b16 %v2398, %v2394
    %v3715 = vpack.c.b16 %v2399, %v2395
    %v3716 = vpack.c.b16 %v2400, %v2396
    %v3717 = vpack.c.b16 %v2401, %v2397
    %v3718 = vpack.c.b16 %v2406, %v2402
    %v3719 = vpack.c.b16 %v2407, %v2403
    %v3720 = vpack.c.b16 %v2408, %v2404
    %v3721 = vpack.c.b16 %v2409, %v2405
    %v3722 = vpack.c.b16 %v2414, %v2410
    %v3723 = vpack.c.b16 %v2415, %v2411
    %v3724 = vpack.c.b16 %v2416, %v2412
    %v3725 = vpack.c.b16 %v2417, %v2413
    %v3726 = vpack.c.b16 %v2422, %v2418
    %v3727 = vpack.c.b16 %v2423, %v2419
    %v3728 = vpack.c.b16 %v2424, %v2420
    %v3729 = vpack.c.b16 %v2425, %v2421
    %v3730 = vpack.c.b16 %v2430, %v2426
    %v3731 = vpack.c.b16 %v2431, %v2427
    %v3732 = vpack.c.b16 %v2432, %v2428
    %v3733 = vpack.c.b16 %v2433, %v2429
    %v3734 = vpack.c.b16 %v2438, %v2434
    %v3735 = vpack.c.b16 %v2439, %v2435
    %v3736 = vpack.c.b16 %v2440, %v2436
    %v3737 = vpack.c.b16 %v2441, %v2437
    %v3738 = vpack.c.b16 %v2446, %v2442
    %v3739 = vpack.c.b16 %v2447, %v2443
    %v3740 = vpack.c.b16 %v2448, %v2444
    %v3741 = vpack.c.b16 %v2449, %v2445
    %v3742 = vpack.c.b16 %v2454, %v2450
    %v3743 = vpack.c.b16 %v2455, %v2451
    %v3744 = vpack.c.b16 %v2456, %v2452
    %v3745 = vpack.c.b16 %v2457, %v2453
    %v3746 = vpack.c.b16 %v2462, %v2458
    %v3747 = vpack.c.b16 %v2463, %v2459
    %v3748 = vpack.c.b16 %v2464, %v2460
    %v3749 = vpack.c.b16 %v2465, %v2461
    %v3750 = vpack.c.b16 %v2470, %v2466
    %v3751 = vpack.c.b16 %v2471, %v2467
    %v3752 = vpack.c.b16 %v2472, %v2468
    %v3753 = vpack.c.b16 %v2473, %v2469
    %v3754 = vpack.c.b16 %v2478, %v2474
    %v3755 = vpack.c.b16 %v2479, %v2475
    %v3756 = vpack.c.b16 %v2480, %v2476
    %v3757 = vpack.c.b16 %v2481, %v2477
    %v3758 = vpack.c.b16 %v2486, %v2482
    %v3759 = vpack.c.b16 %v2487, %v2483
    %v3760 = vpack.c.b16 %v2488, %v2484
    %v3761 = vpack.c.b16 %v2489, %v2485
    %v3762 = vpack.c.b16 %v2494, %v2490
    %v3763 = vpack.c.b16 %v2495, %v2491
    %v3764 = vpack.c.b16 %v2496, %v2492
    %v3765 = vpack.c.b16 %v2497, %v2493
    %v3766 = vpack.c.b16 %v2502, %v2498
    %v3767 = vpack.c.b16 %v2503, %v2499
    %v3768 = vpack.c.b16 %v2504, %v2500
    %v3769 = vpack.c.b16 %v2505, %v2501
    %v3770 = vpack.c.b16 %v2510, %v2506
    %v3771 = vpack.c.b16 %v2511, %v2507
    %v3772 = vpack.c.b16 %v2512, %v2508
    %v3773 = vpack.c.b16 %v2513, %v2509
    %v3774 = vpack.c.b16 %v2518, %v2514
    %v3775 = vpack.c.b16 %v2519, %v2515
    %v3776 = vpack.c.b16 %v2520, %v2516
    %v3777 = vpack.c.b16 %v2521, %v2517
    %v3778 = vpack.c.b16 %v2526, %v2522
    %v3779 = vpack.c.b16 %v2527, %v2523
    %v3780 = vpack.c.b16 %v2528, %v2524
    %v3781 = vpack.c.b16 %v2529, %v2525
    %v3782 = vpack.c.b16 %v2534, %v2530
    %v3783 = vpack.c.b16 %v2535, %v2531
    %v3784 = vpack.c.b16 %v2536, %v2532
    %v3785 = vpack.c.b16 %v2537, %v2533
    %v3786 = vpack.c.b16 %v2542, %v2538
    %v3787 = vpack.c.b16 %v2543, %v2539
    %v3788 = vpack.c.b16 %v2544, %v2540
    %v3789 = vpack.c.b16 %v2545, %v2541
    %v3790 = vpack.c.b16 %v2550, %v2546
    %v3791 = vpack.c.b16 %v2551, %v2547
    %v3792 = vpack.c.b16 %v2552, %v2548
    %v3793 = vpack.c.b16 %v2553, %v2549
    %v3794 = vpack.c.b16 %v2558, %v2554
    %v3795 = vpack.c.b16 %v2559, %v2555
    %v3796 = vpack.c.b16 %v2560, %v2556
    %v3797 = vpack.c.b16 %v2561, %v2557
    %v3798 = vpack.c.b16 %v2566, %v2562
    %v3799 = vpack.c.b16 %v2567, %v2563
    %v3800 = vpack.c.b16 %v2568, %v2564
    %v3801 = vpack.c.b16 %v2569, %v2565
    %v3802 = vpack.c.b16 %v2574, %v2570
    %v3803 = vpack.c.b16 %v2575, %v2571
    %v3804 = vpack.c.b16 %v2576, %v2572
    %v3805 = vpack.c.b16 %v2577, %v2573
    %v3806 = vpack.c.b16 %v2582, %v2578
    %v3807 = vpack.c.b16 %v2583, %v2579
    %v3808 = vpack.c.b16 %v2584, %v2580
    %v3809 = vpack.c.b16 %v2585, %v2581
    %v3810 = vpack.c.b16 %v2590, %v2586
    %v3811 = vpack.c.b16 %v2591, %v2587
    %v3812 = vpack.c.b16 %v2592, %v2588
    %v3813 = vpack.c.b16 %v2593, %v2589
    %v3814 = vpack.c.b16 %v2598, %v2594
    %v3815 = vpack.c.b16 %v2599, %v2595
    %v3816 = vpack.c.b16 %v2600, %v2596
    %v3817 = vpack.c.b16 %v2601, %v2597
    %v3818 = vpack.c.b16 %v2606, %v2602
    %v3819 = vpack.c.b16 %v2607, %v2603
    %v3820 = vpack.c.b16 %v2608, %v2604
    %v3821 = vpack.c.b16 %v2609, %v2605
    %v3822 = vpack.c.b16 %v2614, %v2610
    %v3823 = vpack.c.b16 %v2615, %v2611
    %v3824 = vpack.c.b16 %v2616, %v2612
    %v3825 = vpack.c.b16 %v2617, %v2613
    %v3826 = vpack.c.b16 %v2622, %v2618
    %v3827 = vpack.c.b16 %v2623, %v2619
    %v3828 = vpack.c.b16 %v2624, %v2620
    %v3829 = vpack.c.b16 %v2625, %v2621
    %v3830 = vpack.c.b16 %v2630, %v2626
    %v3831 = vpack.c.b16 %v2631, %v2627
    %v3832 = vpack.c.b16 %v2632, %v2628
    %v3833 = vpack.c.b16 %v2633, %v2629
    %v3834 = vpack.c.b16 %v2638, %v2634
    %v3835 = vpack.c.b16 %v2639, %v2635
    %v3836 = vpack.c.b16 %v2640, %v2636
    %v3837 = vpack.c.b16 %v2641, %v2637
    %v3838 = vpack.c.b16 %v2646, %v2642
    %v3839 = vpack.c.b16 %v2647, %v2643
    %v3840 = vpack.c.b16 %v2648, %v2644
    %v3841 = vpack.c.b16 %v2649, %v2645
    %v3842 = vpack.c.b16 %v2654, %v2650
    %v3843 = vpack.c.b16 %v2655, %v2651
    %v3844 = vpack.c.b16 %v2656, %v2652
    %v3845 = vpack.c.b16 %v2657, %v2653
    %v3846 = vpack.c.b16 %v2662, %v2658
    %v3847 = vpack.c.b16 %v2663, %v2659
    %v3848 = vpack.c.b16 %v2664, %v2660
    %v3849 = vpack.c.b16 %v2665, %v2661
    %v3850 = vpack.c.b16 %v2670, %v2666
    %v3851 = vpack.c.b16 %v2671, %v2667
    %v3852 = vpack.c.b16 %v2672, %v2668
    %v3853 = vpack.c.b16 %v2673, %v2669
    %v3854 = vpack.c.b16 %v2678, %v2674
    %v3855 = vpack.c.b16 %v2679, %v2675
    %v3856 = vpack.c.b16 %v2680, %v2676
    %v3857 = vpack.c.b16 %v2681, %v2677
    %v3858 = vpack.c.b16 %v2686, %v2682
    %v3859 = vpack.c.b16 %v2687, %v2683
    %v3860 = vpack.c.b16 %v2688, %v2684
    %v3861 = vpack.c.b16 %v2689, %v2685
    %v3862 = vpack.c.b16 %v2694, %v2690
    %v3863 = vpack.c.b16 %v2695, %v2691
    %v3864 = vpack.c.b16 %v2696, %v2692
    %v3865 = vpack.c.b16 %v2697, %v2693
    %v3866 = vpack.c.b16 %v2702, %v2698
    %v3867 = vpack.c.b16 %v2703, %v2699
    %v3868 = vpack.c.b16 %v2704, %v2700
    %v3869 = vpack.c.b16 %v2705, %v2701
    %v3870 = vpack.c.b16 %v2710, %v2706
    %v3871 = vpack.c.b16 %v2711, %v2707
    %v3872 = vpack.c.b16 %v2712, %v2708
    %v3873 = vpack.c.b16 %v2713, %v2709
    %v3874 = vpack.c.b16 %v2718, %v2714
    %v3875 = vpack.c.b16 %v2719, %v2715
    %v3876 = vpack.c.b16 %v2720, %v2716
    %v3877 = vpack.c.b16 %v2721, %v2717
    %v3878 = vpack.c.b16 %v2726, %v2722
    %v3879 = vpack.c.b16 %v2727, %v2723
    %v3880 = vpack.c.b16 %v2728, %v2724
    %v3881 = vpack.c.b16 %v2729, %v2725
    %v3882 = vpack.c.b16 %v2734, %v2730
    %v3883 = vpack.c.b16 %v2735, %v2731
    %v3884 = vpack.c.b16 %v2736, %v2732
    %v3885 = vpack.c.b16 %v2737, %v2733
    %v3886 = vpack.c.b16 %v2742, %v2738
    %v3887 = vpack.c.b16 %v2743, %v2739
    %v3888 = vpack.c.b16 %v2744, %v2740
    %v3889 = vpack.c.b16 %v2745, %v2741
    %v3890 = vpack.c.b16 %v2750, %v2746
    %v3891 = vpack.c.b16 %v2751, %v2747
    %v3892 = vpack.c.b16 %v2752, %v2748
    %v3893 = vpack.c.b16 %v2753, %v2749
    %v3894 = vpack.c.b16 %v2758, %v2754
    %v3895 = vpack.c.b16 %v2759, %v2755
    %v3896 = vpack.c.b16 %v2760, %v2756
    %v3897 = vpack.c.b16 %v2761, %v2757
    %v3898 = vpack.c.b16 %v2766, %v2762
    %v3899 = vpack.c.b16 %v2767, %v2763
    %v3900 = vpack.c.b16 %v2768, %v2764
    %v3901 = vpack.c.b16 %v2769, %v2765
    %v3902 = vpack.c.b16 %v2774, %v2770
    %v3903 = vpack.c.b16 %v2775, %v2771
    %v3904 = vpack.c.b16 %v2776, %v2772
    %v3905 = vpack.c.b16 %v2777, %v2773
    %v3906 = vpack.c.b16 %v2782, %v2778
    %v3907 = vpack.c.b16 %v2783, %v2779
    %v3908 = vpack.c.b16 %v2784, %v2780
    %v3909 = vpack.c.b16 %v2785, %v2781
    %v3910 = vpack.c.b16 %v2790, %v2786
    %v3911 = vpack.c.b16 %v2791, %v2787
    %v3912 = vpack.c.b16 %v2792, %v2788
    %v3913 = vpack.c.b16 %v2793, %v2789
    %v3914 = vpack.c.b16 %v2798, %v2794
    %v3915 = vpack.c.b16 %v2799, %v2795
    %v3916 = vpack.c.b16 %v2800, %v2796
    %v3917 = vpack.c.b16 %v2801, %v2797
    %v3918 = vpack.c.b16 %v2806, %v2802
    %v3919 = vpack.c.b16 %v2807, %v2803
    %v3920 = vpack.c.b16 %v2808, %v2804
    %v3921 = vpack.c.b16 %v2809, %v2805
    %v3922 = vpack.c.b16 %v2814, %v2810
    %v3923 = vpack.c.b16 %v2815, %v2811
    %v3924 = vpack.c.b16 %v2816, %v2812
    %v3925 = vpack.c.b16 %v2817, %v2813
    %v3926 = vpack.c.b16 %v2822, %v2818
    %v3927 = vpack.c.b16 %v2823, %v2819
    %v3928 = vpack.c.b16 %v2824, %v2820
    %v3929 = vpack.c.b16 %v2825, %v2821
    %v3930 = vpack.c.b16 %v2830, %v2826
    %v3931 = vpack.c.b16 %v2831, %v2827
    %v3932 = vpack.c.b16 %v2832, %v2828
    %v3933 = vpack.c.b16 %v2833, %v2829
    %v3934 = vpack.c.b16 %v2838, %v2834
    %v3935 = vpack.c.b16 %v2839, %v2835
    %v3936 = vpack.c.b16 %v2840, %v2836
    %v3937 = vpack.c.b16 %v2841, %v2837
    %v3938 = vpack.c.b16 %v2846, %v2842
    %v3939 = vpack.c.b16 %v2847, %v2843
    %v3940 = vpack.c.b16 %v2848, %v2844
    %v3941 = vpack.c.b16 %v2849, %v2845
    %v3942 = vpack.c.b16 %v2854, %v2850
    %v3943 = vpack.c.b16 %v2855, %v2851
    %v3944 = vpack.c.b16 %v2856, %v2852
    %v3945 = vpack.c.b16 %v2857, %v2853
    %v3946 = vpack.c.b16 %v2862, %v2858
    %v3947 = vpack.c.b16 %v2863, %v2859
    %v3948 = vpack.c.b16 %v2864, %v2860
    %v3949 = vpack.c.b16 %v2865, %v2861
    %v3950 = vpack.c.b16 %v2870, %v2866
    %v3951 = vpack.c.b16 %v2871, %v2867
    %v3952 = vpack.c.b16 %v2872, %v2868
    %v3953 = vpack.c.b16 %v2873, %v2869
    %v3954 = vpack.c.b16 %v2878, %v2874
    %v3955 = vpack.c.b16 %v2879, %v2875
    %v3956 = vpack.c.b16 %v2880, %v2876
    %v3957 = vpack.c.b16 %v2881, %v2877
    %v3958 = vpack.c.b16 %v2886, %v2882
    %v3959 = vpack.c.b16 %v2887, %v2883
    %v3960 = vpack.c.b16 %v2888, %v2884
    %v3961 = vpack.c.b16 %v2889, %v2885
    %v3962 = vpack.c.b16 %v2894, %v2890
    %v3963 = vpack.c.b16 %v2895, %v2891
    %v3964 = vpack.c.b16 %v2896, %v2892
    %v3965 = vpack.c.b16 %v2897, %v2893
    %v3966 = vpack.c.b16 %v2902, %v2898
    %v3967 = vpack.c.b16 %v2903, %v2899
    %v3968 = vpack.c.b16 %v2904, %v2900
    %v3969 = vpack.c.b16 %v2905, %v2901
    %v3970 = vpack.c.b16 %v2910, %v2906
    %v3971 = vpack.c.b16 %v2911, %v2907
    %v3972 = vpack.c.b16 %v2912, %v2908
    %v3973 = vpack.c.b16 %v2913, %v2909
    %v3974 = vpack.c.b16 %v2918, %v2914
    %v3975 = vpack.c.b16 %v2919, %v2915
    %v3976 = vpack.c.b16 %v2920, %v2916
    %v3977 = vpack.c.b16 %v2921, %v2917
    %v3978 = vpack.c.b16 %v2926, %v2922
    %v3979 = vpack.c.b16 %v2927, %v2923
    %v3980 = vpack.c.b16 %v2928, %v2924
    %v3981 = vpack.c.b16 %v2929, %v2925
    %v3982 = vpack.c.b16 %v2934, %v2930
    %v3983 = vpack.c.b16 %v2935, %v2931
    %v3984 = vpack.c.b16 %v2936, %v2932
    %v3985 = vpack.c.b16 %v2937, %v2933
    %v3986 = vpack.c.b16 %v2942, %v2938
    %v3987 = vpack.c.b16 %v2943, %v2939
    %v3988 = vpack.c.b16 %v2944, %v2940
    %v3989 = vpack.c.b16 %v2945, %v2941
    %v3990 = vpack.c.b16 %v2950, %v2946
    %v3991 = vpack.c.b16 %v2951, %v2947
    %v3992 = vpack.c.b16 %v2952, %v2948
    %v3993 = vpack.c.b16 %v2953, %v2949
    %v3994 = vpack.c.b16 %v2958, %v2954
    %v3995 = vpack.c.b16 %v2959, %v2955
    %v3996 = vpack.c.b16 %v2960, %v2956
    %v3997 = vpack.c.b16 %v2961, %v2957
    %v3998 = vpack.c.b16 %v2966, %v2962
    %v3999 = vpack.c.b16 %v2967, %v2963
    %v4000 = vpack.c.b16 %v2968, %v2964
    %v4001 = vpack.c.b16 %v2969, %v2965
    %v4002 = vpack.c.b16 %v2974, %v2970
    %v4003 = vpack.c.b16 %v2975, %v2971
    %v4004 = vpack.c.b16 %v2976, %v2972
    %v4005 = vpack.c.b16 %v2977, %v2973
    %v4006 = vpack.c.b16 %v2982, %v2978
    %v4007 = vpack.c.b16 %v2983, %v2979
    %v4008 = vpack.c.b16 %v2984, %v2980
    %v4009 = vpack.c.b16 %v2985, %v2981
    %v4010 = vpack.c.b16 %v2990, %v2986
    %v4011 = vpack.c.b16 %v2991, %v2987
    %v4012 = vpack.c.b16 %v2992, %v2988
    %v4013 = vpack.c.b16 %v2993, %v2989
    %v4014 = vpack.c.b16 %v2998, %v2994
    %v4015 = vpack.c.b16 %v2999, %v2995
    %v4016 = vpack.c.b16 %v3000, %v2996
    %v4017 = vpack.c.b16 %v3001, %v2997
    %v4018 = vpack.c.b16 %v3006, %v3002
    %v4019 = vpack.c.b16 %v3007, %v3003
    %v4020 = vpack.c.b16 %v3008, %v3004
    %v4021 = vpack.c.b16 %v3009, %v3005
    %v4022 = vpack.c.b16 %v3014, %v3010
    %v4023 = vpack.c.b16 %v3015, %v3011
    %v4024 = vpack.c.b16 %v3016, %v3012
    %v4025 = vpack.c.b16 %v3017, %v3013
    %v4026 = vpack.c.b16 %v3022, %v3018
    %v4027 = vpack.c.b16 %v3023, %v3019
    %v4028 = vpack.c.b16 %v3024, %v3020
    %v4029 = vpack.c.b16 %v3025, %v3021
    %v4030 = vpack.c.b16 %v3030, %v3026
    %v4031 = vpack.c.b16 %v3031, %v3027
    %v4032 = vpack.c.b16 %v3032, %v3028
    %v4033 = vpack.c.b16 %v3033, %v3029
    %v4034 = vpack.c.b16 %v3038, %v3034
    %v4035 = vpack.c.b16 %v3039, %v3035
    %v4036 = vpack.c.b16 %v3040, %v3036
    %v4037 = vpack.c.b16 %v3041, %v3037
    %v4038 = vpack.c.b16 %v3046, %v3042
    %v4039 = vpack.c.b16 %v3047, %v3043
    %v4040 = vpack.c.b16 %v3048, %v3044
    %v4041 = vpack.c.b16 %v3049, %v3045
    %v4042 = vpack.c.b16 %v3054, %v3050
    %v4043 = vpack.c.b16 %v3055, %v3051
    %v4044 = vpack.c.b16 %v3056, %v3052
    %v4045 = vpack.c.b16 %v3057, %v3053
    %v4046 = vpack.c.b16 %v3062, %v3058
    %v4047 = vpack.c.b16 %v3063, %v3059
    %v4048 = vpack.c.b16 %v3064, %v3060
    %v4049 = vpack.c.b16 %v3065, %v3061
    %v4050 = vpack.c.b16 %v3070, %v3066
    %v4051 = vpack.c.b16 %v3071, %v3067
    %v4052 = vpack.c.b16 %v3072, %v3068
    %v4053 = vpack.c.b16 %v3073, %v3069
    %v4054 = vpack.c.b16 %v3078, %v3074
    %v4055 = vpack.c.b16 %v3079, %v3075
    %v4056 = vpack.c.b16 %v3080, %v3076
    %v4057 = vpack.c.b16 %v3081, %v3077
    %v4058 = vpack.c.b16 %v3086, %v3082
    %v4059 = vpack.c.b16 %v3087, %v3083
    %v4060 = vpack.c.b16 %v3088, %v3084
    %v4061 = vpack.c.b16 %v3089, %v3085
    %v4062 = vpack.c.b16 %v3094, %v3090
    %v4063 = vpack.c.b16 %v3095, %v3091
    %v4064 = vpack.c.b16 %v3096, %v3092
    %v4065 = vpack.c.b16 %v3097, %v3093
    %v4066 = vpack.c.b16 %v3102, %v3098
    %v4067 = vpack.c.b16 %v3103, %v3099
    %v4068 = vpack.c.b16 %v3104, %v3100
    %v4069 = vpack.c.b16 %v3105, %v3101
    %v4070 = vpack.c.b16 %v3110, %v3106
    %v4071 = vpack.c.b16 %v3111, %v3107
    %v4072 = vpack.c.b16 %v3112, %v3108
    %v4073 = vpack.c.b16 %v3113, %v3109
    %v4074 = vpack.c.b16 %v3118, %v3114
    %v4075 = vpack.c.b16 %v3119, %v3115
    %v4076 = vpack.c.b16 %v3120, %v3116
    %v4077 = vpack.c.b16 %v3121, %v3117
    %v4078 = vpack.c.b16 %v3126, %v3122
    %v4079 = vpack.c.b16 %v3127, %v3123
    %v4080 = vpack.c.b16 %v3128, %v3124
    %v4081 = vpack.c.b16 %v3129, %v3125
    %v4082 = vpack.c.b16 %v3134, %v3130
    %v4083 = vpack.c.b16 %v3135, %v3131
    %v4084 = vpack.c.b16 %v3136, %v3132
    %v4085 = vpack.c.b16 %v3137, %v3133
    %v4086 = vpack.c.b16 %v3142, %v3138
    %v4087 = vpack.c.b16 %v3143, %v3139
    %v4088 = vpack.c.b16 %v3144, %v3140
    %v4089 = vpack.c.b16 %v3145, %v3141
    %v4090 = vpack.c.b16 %v3150, %v3146
    %v4091 = vpack.c.b16 %v3151, %v3147
    %v4092 = vpack.c.b16 %v3152, %v3148
    %v4093 = vpack.c.b16 %v3153, %v3149
    %v4094 = vpack.c.b16 %v3158, %v3154
    %v4095 = vpack.c.b16 %v3159, %v3155
    %v4096 = vpack.c.b16 %v3160, %v3156
    %v4097 = vpack.c.b16 %v3161, %v3157
    %v4098 = vpack.c.b16 %v3166, %v3162
    %v4099 = vpack.c.b16 %v3167, %v3163
    %v4100 = vpack.c.b16 %v3168, %v3164
    %v4101 = vpack.c.b16 %v3169, %v3165
    %v4102 = vpack.c.b16 %v3174, %v3170
    %v4103 = vpack.c.b16 %v3175, %v3171
    %v4104 = vpack.c.b16 %v3176, %v3172
    %v4105 = vpack.c.b16 %v3177, %v3173
    %v4106 = vpack.c.b16 %v3182, %v3178
    %v4107 = vpack.c.b16 %v3183, %v3179
    %v4108 = vpack.c.b16 %v3184, %v3180
    %v4109 = vpack.c.b16 %v3185, %v3181
    %v4110 = vpack.c.b16 %v3190, %v3186
    %v4111 = vpack.c.b16 %v3191, %v3187
    %v4112 = vpack.c.b16 %v3192, %v3188
    %v4113 = vpack.c.b16 %v3193, %v3189
    %v4114 = vpack.c.b16 %v3198, %v3194
    %v4115 = vpack.c.b16 %v3199, %v3195
    %v4116 = vpack.c.b16 %v3200, %v3196
    %v4117 = vpack.c.b16 %v3201, %v3197
    %v4118 = vpack.c.b16 %v3206, %v3202
    %v4119 = vpack.c.b16 %v3207, %v3203
    %v4120 = vpack.c.b16 %v3208, %v3204
    %v4121 = vpack.c.b16 %v3209, %v3205
    %v4122 = vpack.c.b16 %v3214, %v3210
    %v4123 = vpack.c.b16 %v3215, %v3211
    %v4124 = vpack.c.b16 %v3216, %v3212
    %v4125 = vpack.c.b16 %v3217, %v3213
    %v4126 = vpack.c.b16 %v3222, %v3218
    %v4127 = vpack.c.b16 %v3223, %v3219
    %v4128 = vpack.c.b16 %v3224, %v3220
    %v4129 = vpack.c.b16 %v3225, %v3221
    %v4130 = vpack.c.b16 %v3230, %v3226
    %v4131 = vpack.c.b16 %v3231, %v3227
    %v4132 = vpack.c.b16 %v3232, %v3228
    %v4133 = vpack.c.b16 %v3233, %v3229
    %v4134 = vpack.c.b16 %v3238, %v3234
    %v4135 = vpack.c.b16 %v3239, %v3235
    %v4136 = vpack.c.b16 %v3240, %v3236
    %v4137 = vpack.c.b16 %v3241, %v3237
    %v4138 = vpack.c.b16 %v3246, %v3242
    %v4139 = vpack.c.b16 %v3247, %v3243
    %v4140 = vpack.c.b16 %v3248, %v3244
    %v4141 = vpack.c.b16 %v3249, %v3245
    %v4142 = vpack.c.b16 %v3254, %v3250
    %v4143 = vpack.c.b16 %v3255, %v3251
    %v4144 = vpack.c.b16 %v3256, %v3252
    %v4145 = vpack.c.b16 %v3257, %v3253
    %v4146 = vpack.c.b16 %v3262, %v3258
    %v4147 = vpack.c.b16 %v3263, %v3259
    %v4148 = vpack.c.b16 %v3264, %v3260
    %v4149 = vpack.c.b16 %v3265, %v3261
    %v4150 = vpack.c.b16 %v3270, %v3266
    %v4151 = vpack.c.b16 %v3271, %v3267
    %v4152 = vpack.c.b16 %v3272, %v3268
    %v4153 = vpack.c.b16 %v3273, %v3269
    %v4154 = vpack.c.b16 %v3278, %v3274
    %v4155 = vpack.c.b16 %v3279, %v3275
    %v4156 = vpack.c.b16 %v3280, %v3276
    %v4157 = vpack.c.b16 %v3281, %v3277
    %v4158 = vpack.c.b16 %v3286, %v3282
    %v4159 = vpack.c.b16 %v3287, %v3283
    %v4160 = vpack.c.b16 %v3288, %v3284
    %v4161 = vpack.c.b16 %v3289, %v3285
    %v4162 = vpack.c.b16 %v3294, %v3290
    %v4163 = vpack.c.b16 %v3295, %v3291
    %v4164 = vpack.c.b16 %v3296, %v3292
    %v4165 = vpack.c.b16 %v3297, %v3293
    %v4166 = vpack.c.b16 %v3302, %v3298
    %v4167 = vpack.c.b16 %v3303, %v3299
    %v4168 = vpack.c.b16 %v3304, %v3300
    %v4169 = vpack.c.b16 %v3305, %v3301
    %v4170 = vpack.c.b16 %v3310, %v3306
    %v4171 = vpack.c.b16 %v3311, %v3307
    %v4172 = vpack.c.b16 %v3312, %v3308
    %v4173 = vpack.c.b16 %v3313, %v3309
    %v4174 = vpack.c.b16 %v3318, %v3314
    %v4175 = vpack.c.b16 %v3319, %v3315
    %v4176 = vpack.c.b16 %v3320, %v3316
    %v4177 = vpack.c.b16 %v3321, %v3317
    %v4178 = vpack.c.b16 %v3326, %v3322
    %v4179 = vpack.c.b16 %v3327, %v3323
    %v4180 = vpack.c.b16 %v3328, %v3324
    %v4181 = vpack.c.b16 %v3329, %v3325
    %v4182 = vpack.c.b16 %v3334, %v3330
    %v4183 = vpack.c.b16 %v3335, %v3331
    %v4184 = vpack.c.b16 %v3336, %v3332
    %v4185 = vpack.c.b16 %v3337, %v3333
    %v4186 = vpack.c.b16 %v3342, %v3338
    %v4187 = vpack.c.b16 %v3343, %v3339
    %v4188 = vpack.c.b16 %v3344, %v3340
    %v4189 = vpack.c.b16 %v3345, %v3341
    %v4190 = vpack.c.b16 %v3350, %v3346
    %v4191 = vpack.c.b16 %v3351, %v3347
    %v4192 = vpack.c.b16 %v3352, %v3348
    %v4193 = vpack.c.b16 %v3353, %v3349
    %v4194 = vpack.c.b16 %v3358, %v3354
    %v4195 = vpack.c.b16 %v3359, %v3355
    %v4196 = vpack.c.b16 %v3360, %v3356
    %v4197 = vpack.c.b16 %v3361, %v3357
    %v4198 = vpack.c.b16 %v3366, %v3362
    %v4199 = vpack.c.b16 %v3367, %v3363
    %v4200 = vpack.c.b16 %v3368, %v3364
    %v4201 = vpack.c.b16 %v3369, %v3365
    %v4202 = vpack.c.b16 %v3374, %v3370
    %v4203 = vpack.c.b16 %v3375, %v3371
    %v4204 = vpack.c.b16 %v3376, %v3372
    %v4205 = vpack.c.b16 %v3377, %v3373
    %v4206 = vpack.c.b16 %v3382, %v3378
    %v4207 = vpack.c.b16 %v3383, %v3379
    %v4208 = vpack.c.b16 %v3384, %v3380
    %v4209 = vpack.c.b16 %v3385, %v3381
    %v4210 = vpack.c.b16 %v3390, %v3386
    %v4211 = vpack.c.b16 %v3391, %v3387
    %v4212 = vpack.c.b16 %v3392, %v3388
    %v4213 = vpack.c.b16 %v3393, %v3389
    %v4214 = vpack.c.b16 %v3398, %v3394
    %v4215 = vpack.c.b16 %v3399, %v3395
    %v4216 = vpack.c.b16 %v3400, %v3396
    %v4217 = vpack.c.b16 %v3401, %v3397
    %v4218 = vpack.c.b16 %v3406, %v3402
    %v4219 = vpack.c.b16 %v3407, %v3403
    %v4220 = vpack.c.b16 %v3408, %v3404
    %v4221 = vpack.c.b16 %v3409, %v3405
    %v4222 = vpack.c.b16 %v3414, %v3410
    %v4223 = vpack.c.b16 %v3415, %v3411
    %v4224 = vpack.c.b16 %v3416, %v3412
    %v4225 = vpack.c.b16 %v3417, %v3413
    %v4226 = vpack.c.b16 %v3422, %v3418
    %v4227 = vpack.c.b16 %v3423, %v3419
    %v4228 = vpack.c.b16 %v3424, %v3420
    %v4229 = vpack.c.b16 %v3425, %v3421
    %v4230 = vpack.c.b16 %v3430, %v3426
    %v4231 = vpack.c.b16 %v3431, %v3427
    %v4232 = vpack.c.b16 %v3432, %v3428
    %v4233 = vpack.c.b16 %v3433, %v3429
    %v4234 = vpack.c.b16 %v3438, %v3434
    %v4235 = vpack.c.b16 %v3439, %v3435
    %v4236 = vpack.c.b16 %v3440, %v3436
    %v4237 = vpack.c.b16 %v3441, %v3437
    %v4238 = vpack.c.b16 %v3446, %v3442
    %v4239 = vpack.c.b16 %v3447, %v3443
    %v4240 = vpack.c.b16 %v3448, %v3444
    %v4241 = vpack.c.b16 %v3449, %v3445
    %v4242 = vpack.c.b16 %v3454, %v3450
    %v4243 = vpack.c.b16 %v3455, %v3451
    %v4244 = vpack.c.b16 %v3456, %v3452
    %v4245 = vpack.c.b16 %v3457, %v3453
    %v4246 = vpack.c.b16 %v3462, %v3458
    %v4247 = vpack.c.b16 %v3463, %v3459
    %v4248 = vpack.c.b16 %v3464, %v3460
    %v4249 = vpack.c.b16 %v3465, %v3461
    %vm5034 = vcmask 523264
    %v5036 = vsel %vm5034, %v1089, 0
    %5038 = vmatprep.subr.bf16.mxu0 %v3467
    %5039 = vmatpush1.bf16.msra.mxu0 %v3466
    %5040 = vmatprep.subr.bf16.mxu0 %v3471
    %5041 = vmatpush1.bf16.msra.mxu0 %v3470
    %5042 = vmatprep.subr.bf16.mxu0 %v3475
    %5043 = vmatpush1.bf16.msra.mxu0 %v3474
    %5044 = vmatprep.subr.bf16.mxu0 %v3479
    %5045 = vmatpush1.bf16.msra.mxu0 %v3478
    %5046 = vmatprep.subr.bf16.mxu0 %v3483
    %5047 = vmatpush1.bf16.msra.mxu0 %v3482
    %5048 = vmatprep.subr.bf16.mxu0 %v3487
    %5049 = vmatpush1.bf16.msra.mxu0 %v3486
    %5050 = vmatprep.subr.bf16.mxu0 %v3491
    %5051 = vmatpush1.bf16.msra.mxu0 %v3490
    %5052 = vmatprep.subr.bf16.mxu0 %v3495
    %5053 = vmatpush1.bf16.msra.mxu0 %v3494
    %5054 = vmatprep.subr.bf16.mxu0 %v3499
    %5055 = vmatpush1.bf16.msra.mxu0 %v3498
    %5056 = vmatprep.subr.bf16.mxu0 %v3503
    %5057 = vmatpush1.bf16.msra.mxu0 %v3502
    %5058 = vmatprep.subr.bf16.mxu0 %v3507
    %5059 = vmatpush1.bf16.msra.mxu0 %v3506
    %5060 = vmatprep.subr.bf16.mxu0 %v3511
    %5061 = vmatpush1.bf16.msra.mxu0 %v3510
    %5062 = vmatprep.subr.bf16.mxu0 %v3515
    %5063 = vmatpush1.bf16.msra.mxu0 %v3514
    %5064 = vmatprep.subr.bf16.mxu0 %v3519
    %5065 = vmatpush1.bf16.msra.mxu0 %v3518
    %5066 = vmatprep.subr.bf16.mxu0 %v3523
    %5067 = vmatpush1.bf16.msra.mxu0 %v3522
    %5068 = vmatprep.subr.bf16.mxu0 %v3527
    %5069 = vmatpush1.bf16.msra.mxu0 %v3526
    %5070 = vmatprep.mubr.bf16.mxu0 %v918
    %5071 = vmatmul.mubr.bf16.gmra.mrb[0].mxu0 %v904
    %v5072 = vpop.f32.mrb[0].mxu0
    %v5073 = vadd.f32 %v829, %v5072
    %v5074 = vpop.f32.mrb[0].mxu0
    %v5075 = vadd.f32 %v833, %v5074
    %v5076 = vpop.f32.mrb[0].mxu0
    %v5077 = vpop.f32.mrb[0].mxu0
    %5078 = vdwg.mxu0
    %5079 = vmatprep.subr.bf16.mxu0 %v3531
    %5080 = vmatpush1.bf16.msra.mxu0 %v3530
    %5081 = vmatprep.subr.bf16.mxu0 %v3535
    %5082 = vmatpush1.bf16.msra.mxu0 %v3534
    %5083 = vmatprep.subr.bf16.mxu0 %v3539
    %5084 = vmatpush1.bf16.msra.mxu0 %v3538
    %5085 = vmatprep.subr.bf16.mxu0 %v3543
    %5086 = vmatpush1.bf16.msra.mxu0 %v3542
    %5087 = vmatprep.subr.bf16.mxu0 %v3547
    %5088 = vmatpush1.bf16.msra.mxu0 %v3546
    %5089 = vmatprep.subr.bf16.mxu0 %v3551
    %5090 = vmatpush1.bf16.msra.mxu0 %v3550
    %5091 = vmatprep.subr.bf16.mxu0 %v3555
    %5092 = vmatpush1.bf16.msra.mxu0 %v3554
    %5093 = vmatprep.subr.bf16.mxu0 %v3559
    %5094 = vmatpush1.bf16.msra.mxu0 %v3558
    %5095 = vmatprep.subr.bf16.mxu0 %v3563
    %5096 = vmatpush1.bf16.msra.mxu0 %v3562
    %5097 = vmatprep.subr.bf16.mxu0 %v3567
    %5098 = vmatpush1.bf16.msra.mxu0 %v3566
    %5099 = vmatprep.subr.bf16.mxu0 %v3571
    %5100 = vmatpush1.bf16.msra.mxu0 %v3570
    %5101 = vmatprep.subr.bf16.mxu0 %v3575
    %5102 = vmatpush1.bf16.msra.mxu0 %v3574
    %5103 = vmatprep.subr.bf16.mxu0 %v3579
    %5104 = vmatpush1.bf16.msra.mxu0 %v3578
    %5105 = vmatprep.subr.bf16.mxu0 %v3583
    %5106 = vmatpush1.bf16.msra.mxu0 %v3582
    %5107 = vmatprep.subr.bf16.mxu0 %v3587
    %5108 = vmatpush1.bf16.msra.mxu0 %v3586
    %5109 = vmatprep.subr.bf16.mxu0 %v3591
    %5110 = vmatpush1.bf16.msra.mxu0 %v3590
    %5111 = vmatprep.mubr.bf16.mxu0 %v928
    %5112 = vmatmul.mubr.bf16.gmra.mrb[0].mxu0 %v926
    %v5113 = vpop.f32.mrb[0].mxu0
    %v5114 = vadd.f32 %v5073, %v5113
    %v5115 = vpop.f32.mrb[0].mxu0
    %v5116 = vadd.f32 %v5075, %v5115
    %v5117 = vpop.f32.mrb[0].mxu0
    %v5118 = vpop.f32.mrb[0].mxu0
    %5119 = vdwg.mxu0
    %5120 = vmatprep.subr.bf16.mxu0 %v3595
    %5121 = vmatpush1.bf16.msra.mxu0 %v3594
    %5122 = vmatprep.subr.bf16.mxu0 %v3599
    %5123 = vmatpush1.bf16.msra.mxu0 %v3598
    %5124 = vmatprep.subr.bf16.mxu0 %v3603
    %5125 = vmatpush1.bf16.msra.mxu0 %v3602
    %5126 = vmatprep.subr.bf16.mxu0 %v3607
    %5127 = vmatpush1.bf16.msra.mxu0 %v3606
    %5128 = vmatprep.subr.bf16.mxu0 %v3611
    %5129 = vmatpush1.bf16.msra.mxu0 %v3610
    %5130 = vmatprep.subr.bf16.mxu0 %v3615
    %5131 = vmatpush1.bf16.msra.mxu0 %v3614
    %5132 = vmatprep.subr.bf16.mxu0 %v3619
    %5133 = vmatpush1.bf16.msra.mxu0 %v3618
    %5134 = vmatprep.subr.bf16.mxu0 %v3623
    %5135 = vmatpush1.bf16.msra.mxu0 %v3622
    %5136 = vmatprep.subr.bf16.mxu0 %v3627
    %5137 = vmatpush1.bf16.msra.mxu0 %v3626
    %5138 = vmatprep.subr.bf16.mxu0 %v3631
    %5139 = vmatpush1.bf16.msra.mxu0 %v3630
    %5140 = vmatprep.subr.bf16.mxu0 %v3635
    %5141 = vmatpush1.bf16.msra.mxu0 %v3634
    %5142 = vmatprep.subr.bf16.mxu0 %v3639
    %5143 = vmatpush1.bf16.msra.mxu0 %v3638
    %5144 = vmatprep.subr.bf16.mxu0 %v3643
    %5145 = vmatpush1.bf16.msra.mxu0 %v3642
    %5146 = vmatprep.subr.bf16.mxu0 %v3647
    %5147 = vmatpush1.bf16.msra.mxu0 %v3646
    %5148 = vmatprep.subr.bf16.mxu0 %v3651
    %5149 = vmatpush1.bf16.msra.mxu0 %v3650
    %5150 = vmatprep.subr.bf16.mxu0 %v3655
    %5151 = vmatpush1.bf16.msra.mxu0 %v3654
    %5152 = vmatprep.mubr.bf16.mxu0 %v925
    %5153 = vmatmul.mubr.bf16.gmra.mrb[0].mxu0 %v911
    %v5154 = vpop.f32.mrb[0].mxu0
    %v5155 = vadd.f32 %v5114, %v5154
    %v5156 = vpop.f32.mrb[0].mxu0
    %v5157 = vadd.f32 %v5116, %v5156
    %v5158 = vpop.f32.mrb[0].mxu0
    %v5159 = vpop.f32.mrb[0].mxu0
    %5160 = vdwg.mxu0
    %5161 = vmatprep.subr.bf16.mxu0 %v3659
    %5162 = vmatpush1.bf16.msra.mxu0 %v3658
    %5163 = vmatprep.subr.bf16.mxu0 %v3663
    %5164 = vmatpush1.bf16.msra.mxu0 %v3662
    %5165 = vmatprep.subr.bf16.mxu0 %v3667
    %5166 = vmatpush1.bf16.msra.mxu0 %v3666
    %5167 = vmatprep.subr.bf16.mxu0 %v3671
    %5168 = vmatpush1.bf16.msra.mxu0 %v3670
    %5169 = vmatprep.subr.bf16.mxu0 %v3675
    %5170 = vmatpush1.bf16.msra.mxu0 %v3674
    %5171 = vmatprep.subr.bf16.mxu0 %v3679
    %5172 = vmatpush1.bf16.msra.mxu0 %v3678
    %5173 = vmatprep.subr.bf16.mxu0 %v3683
    %5174 = vmatpush1.bf16.msra.mxu0 %v3682
    %5175 = vmatprep.subr.bf16.mxu0 %v3687
    %5176 = vmatpush1.bf16.msra.mxu0 %v3686
    %5177 = vmatprep.subr.bf16.mxu0 %v3691
    %5178 = vmatpush1.bf16.msra.mxu0 %v3690
    %5179 = vmatprep.subr.bf16.mxu0 %v3695
    %5180 = vmatpush1.bf16.msra.mxu0 %v3694
    %5181 = vmatprep.subr.bf16.mxu0 %v3699
    %5182 = vmatpush1.bf16.msra.mxu0 %v3698
    %5183 = vmatprep.subr.bf16.mxu0 %v3703
    %5184 = vmatpush1.bf16.msra.mxu0 %v3702
    %5185 = vmatprep.subr.bf16.mxu0 %v3707
    %5186 = vmatpush1.bf16.msra.mxu0 %v3706
    %5187 = vmatprep.subr.bf16.mxu0 %v3711
    %5188 = vmatpush1.bf16.msra.mxu0 %v3710
    %5189 = vmatprep.subr.bf16.mxu0 %v3715
    %5190 = vmatpush1.bf16.msra.mxu0 %v3714
    %5191 = vmatprep.subr.bf16.mxu0 %v3719
    %5192 = vmatpush1.bf16.msra.mxu0 %v3718
    %5193 = vmatprep.mubr.bf16.mxu0 %v929
    %5194 = vmatmul.mubr.bf16.gmra.mrb[0].mxu0 %v927
    %v5195 = vpop.f32.mrb[0].mxu0
    %v5196 = vadd.f32 %v5155, %v5195
    %v5197 = vpop.f32.mrb[0].mxu0
    %v5198 = vadd.f32 %v5157, %v5197
    %v5199 = vpop.f32.mrb[0].mxu0
    %v5200 = vpop.f32.mrb[0].mxu0
    %5201 = vdwg.mxu0
    %5202 = vmatprep.subr.bf16.mxu0 %v3723
    %5203 = vmatpush1.bf16.msra.mxu0 %v3722
    %5204 = vmatprep.subr.bf16.mxu0 %v3727
    %5205 = vmatpush1.bf16.msra.mxu0 %v3726
    %5206 = vmatprep.subr.bf16.mxu0 %v3731
    %5207 = vmatpush1.bf16.msra.mxu0 %v3730
    %5208 = vmatprep.subr.bf16.mxu0 %v3735
    %5209 = vmatpush1.bf16.msra.mxu0 %v3734
    %5210 = vmatprep.subr.bf16.mxu0 %v3739
    %5211 = vmatpush1.bf16.msra.mxu0 %v3738
    %5212 = vmatprep.subr.bf16.mxu0 %v3743
    %5213 = vmatpush1.bf16.msra.mxu0 %v3742
    %5214 = vmatprep.subr.bf16.mxu0 %v3747
    %5215 = vmatpush1.bf16.msra.mxu0 %v3746
    %5216 = vmatprep.subr.bf16.mxu0 %v3751
    %5217 = vmatpush1.bf16.msra.mxu0 %v3750
    %5218 = vmatprep.subr.bf16.mxu0 %v3755
    %5219 = vmatpush1.bf16.msra.mxu0 %v3754
    %5220 = vmatprep.subr.bf16.mxu0 %v3759
    %5221 = vmatpush1.bf16.msra.mxu0 %v3758
    %5222 = vmatprep.subr.bf16.mxu0 %v3763
    %5223 = vmatpush1.bf16.msra.mxu0 %v3762
    %5224 = vmatprep.subr.bf16.mxu0 %v3767
    %5225 = vmatpush1.bf16.msra.mxu0 %v3766
    %5226 = vmatprep.subr.bf16.mxu0 %v3771
    %5227 = vmatpush1.bf16.msra.mxu0 %v3770
    %5228 = vmatprep.subr.bf16.mxu0 %v3775
    %5229 = vmatpush1.bf16.msra.mxu0 %v3774
    %5230 = vmatprep.subr.bf16.mxu0 %v3779
    %5231 = vmatpush1.bf16.msra.mxu0 %v3778
    %5232 = vmatprep.subr.bf16.mxu0 %v3783
    %5233 = vmatpush1.bf16.msra.mxu0 %v3782
    %5234 = vmatprep.mubr.bf16.mxu0 %v986
    %5235 = vmatmul.mubr.bf16.gmra.mrb[0].mxu0 %v972
    %v5236 = vpop.f32.mrb[0].mxu0
    %v5237 = vadd.f32 %v5196, %v5236
    %v5238 = vpop.f32.mrb[0].mxu0
    %v5239 = vadd.f32 %v5198, %v5238
    %v5240 = vpop.f32.mrb[0].mxu0
    %v5241 = vpop.f32.mrb[0].mxu0
    %5242 = vdwg.mxu0
    %5243 = vmatprep.subr.bf16.mxu0 %v3787
    %5244 = vmatpush1.bf16.msra.mxu0 %v3786
    %5245 = vmatprep.subr.bf16.mxu0 %v3791
    %5246 = vmatpush1.bf16.msra.mxu0 %v3790
    %5247 = vmatprep.subr.bf16.mxu0 %v3795
    %5248 = vmatpush1.bf16.msra.mxu0 %v3794
    %5249 = vmatprep.subr.bf16.mxu0 %v3799
    %5250 = vmatpush1.bf16.msra.mxu0 %v3798
    %5251 = vmatprep.subr.bf16.mxu0 %v3803
    %5252 = vmatpush1.bf16.msra.mxu0 %v3802
    %5253 = vmatprep.subr.bf16.mxu0 %v3807
    %5254 = vmatpush1.bf16.msra.mxu0 %v3806
    %5255 = vmatprep.subr.bf16.mxu0 %v3811
    %5256 = vmatpush1.bf16.msra.mxu0 %v3810
    %5257 = vmatprep.subr.bf16.mxu0 %v3815
    %5258 = vmatpush1.bf16.msra.mxu0 %v3814
    %5259 = vmatprep.subr.bf16.mxu0 %v3819
    %5260 = vmatpush1.bf16.msra.mxu0 %v3818
    %5261 = vmatprep.subr.bf16.mxu0 %v3823
    %5262 = vmatpush1.bf16.msra.mxu0 %v3822
    %5263 = vmatprep.subr.bf16.mxu0 %v3827
    %5264 = vmatpush1.bf16.msra.mxu0 %v3826
    %5265 = vmatprep.subr.bf16.mxu0 %v3831
    %5266 = vmatpush1.bf16.msra.mxu0 %v3830
    %5267 = vmatprep.subr.bf16.mxu0 %v3835
    %5268 = vmatpush1.bf16.msra.mxu0 %v3834
    %5269 = vmatprep.subr.bf16.mxu0 %v3839
    %5270 = vmatpush1.bf16.msra.mxu0 %v3838
    %5271 = vmatprep.subr.bf16.mxu0 %v3843
    %5272 = vmatpush1.bf16.msra.mxu0 %v3842
    %5273 = vmatprep.subr.bf16.mxu0 %v3847
    %5274 = vmatpush1.bf16.msra.mxu0 %v3846
    %5275 = vmatprep.mubr.bf16.mxu0 %v996
    %5276 = vmatmul.mubr.bf16.gmra.mrb[0].mxu0 %v994
    %v5277 = vpop.f32.mrb[0].mxu0
    %v5278 = vadd.f32 %v5237, %v5277
    %v5279 = vpop.f32.mrb[0].mxu0
    %v5280 = vadd.f32 %v5239, %v5279
    %v5281 = vpop.f32.mrb[0].mxu0
    %v5282 = vpop.f32.mrb[0].mxu0
    %5283 = vdwg.mxu0
    %5284 = vmatprep.subr.bf16.mxu0 %v3851
    %5285 = vmatpush1.bf16.msra.mxu0 %v3850
    %5286 = vmatprep.subr.bf16.mxu0 %v3855
    %5287 = vmatpush1.bf16.msra.mxu0 %v3854
    %5288 = vmatprep.subr.bf16.mxu0 %v3859
    %5289 = vmatpush1.bf16.msra.mxu0 %v3858
    %5290 = vmatprep.subr.bf16.mxu0 %v3863
    %5291 = vmatpush1.bf16.msra.mxu0 %v3862
    %5292 = vmatprep.subr.bf16.mxu0 %v3867
    %5293 = vmatpush1.bf16.msra.mxu0 %v3866
    %5294 = vmatprep.subr.bf16.mxu0 %v3871
    %5295 = vmatpush1.bf16.msra.mxu0 %v3870
    %5296 = vmatprep.subr.bf16.mxu0 %v3875
    %5297 = vmatpush1.bf16.msra.mxu0 %v3874
    %5298 = vmatprep.subr.bf16.mxu0 %v3879
    %5299 = vmatpush1.bf16.msra.mxu0 %v3878
    %5300 = vmatprep.subr.bf16.mxu0 %v3883
    %5301 = vmatpush1.bf16.msra.mxu0 %v3882
    %5302 = vmatprep.subr.bf16.mxu0 %v3887
    %5303 = vmatpush1.bf16.msra.mxu0 %v3886
    %5304 = vmatprep.subr.bf16.mxu0 %v3891
    %5305 = vmatpush1.bf16.msra.mxu0 %v3890
    %5306 = vmatprep.subr.bf16.mxu0 %v3895
    %5307 = vmatpush1.bf16.msra.mxu0 %v3894
    %5308 = vmatprep.subr.bf16.mxu0 %v3899
    %5309 = vmatpush1.bf16.msra.mxu0 %v3898
    %5310 = vmatprep.subr.bf16.mxu0 %v3903
    %5311 = vmatpush1.bf16.msra.mxu0 %v3902
    %5312 = vmatprep.subr.bf16.mxu0 %v3907
    %5313 = vmatpush1.bf16.msra.mxu0 %v3906
    %5314 = vmatprep.subr.bf16.mxu0 %v3911
    %5315 = vmatpush1.bf16.msra.mxu0 %v3910
    %5316 = vmatprep.mubr.bf16.mxu0 %v993
    %5317 = vmatmul.mubr.bf16.gmra.mrb[0].mxu0 %v979
    %v5318 = vpop.f32.mrb[0].mxu0
    %v5319 = vadd.f32 %v5278, %v5318
    %v5320 = vpop.f32.mrb[0].mxu0
    %v5321 = vadd.f32 %v5280, %v5320
    %v5322 = vpop.f32.mrb[0].mxu0
    %v5323 = vpop.f32.mrb[0].mxu0
    %5324 = vdwg.mxu0
    %5325 = vmatprep.subr.bf16.mxu0 %v3915
    %5326 = vmatpush1.bf16.msra.mxu0 %v3914
    %5327 = vmatprep.subr.bf16.mxu0 %v3919
    %5328 = vmatpush1.bf16.msra.mxu0 %v3918
    %5329 = vmatprep.subr.bf16.mxu0 %v3923
    %5330 = vmatpush1.bf16.msra.mxu0 %v3922
    %5331 = vmatprep.subr.bf16.mxu0 %v3927
    %5332 = vmatpush1.bf16.msra.mxu0 %v3926
    %5333 = vmatprep.subr.bf16.mxu0 %v3931
    %5334 = vmatpush1.bf16.msra.mxu0 %v3930
    %5335 = vmatprep.subr.bf16.mxu0 %v3935
    %5336 = vmatpush1.bf16.msra.mxu0 %v3934
    %5337 = vmatprep.subr.bf16.mxu0 %v3939
    %5338 = vmatpush1.bf16.msra.mxu0 %v3938
    %5339 = vmatprep.subr.bf16.mxu0 %v3943
    %5340 = vmatpush1.bf16.msra.mxu0 %v3942
    %5341 = vmatprep.subr.bf16.mxu0 %v3947
    %5342 = vmatpush1.bf16.msra.mxu0 %v3946
    %5343 = vmatprep.subr.bf16.mxu0 %v3951
    %5344 = vmatpush1.bf16.msra.mxu0 %v3950
    %5345 = vmatprep.subr.bf16.mxu0 %v3955
    %5346 = vmatpush1.bf16.msra.mxu0 %v3954
    %5347 = vmatprep.subr.bf16.mxu0 %v3959
    %5348 = vmatpush1.bf16.msra.mxu0 %v3958
    %5349 = vmatprep.subr.bf16.mxu0 %v3963
    %5350 = vmatpush1.bf16.msra.mxu0 %v3962
    %5351 = vmatprep.subr.bf16.mxu0 %v3967
    %5352 = vmatpush1.bf16.msra.mxu0 %v3966
    %5353 = vmatprep.subr.bf16.mxu0 %v3971
    %5354 = vmatpush1.bf16.msra.mxu0 %v3970
    %5355 = vmatprep.subr.bf16.mxu0 %v3975
    %5356 = vmatpush1.bf16.msra.mxu0 %v3974
    %5357 = vmatprep.mubr.bf16.mxu0 %v997
    %5358 = vmatmul.mubr.bf16.gmra.mrb[0].mxu0 %v995
    %v5359 = vpop.f32.mrb[0].mxu0
    %v5360 = vadd.f32 %v5319, %v5359
    %v5361 = vpop.f32.mrb[0].mxu0
    %v5362 = vadd.f32 %v5321, %v5361
    %v5363 = vpop.f32.mrb[0].mxu0
    %v5364 = vpop.f32.mrb[0].mxu0
    %5365 = vdwg.mxu0
    %5366 = vmatprep.subr.bf16.mxu0 %v3979
    %5367 = vmatpush1.bf16.msra.mxu0 %v3978
    %5368 = vmatprep.subr.bf16.mxu0 %v3983
    %5369 = vmatpush1.bf16.msra.mxu0 %v3982
    %5370 = vmatprep.subr.bf16.mxu0 %v3987
    %5371 = vmatpush1.bf16.msra.mxu0 %v3986
    %5372 = vmatprep.subr.bf16.mxu0 %v3991
    %5373 = vmatpush1.bf16.msra.mxu0 %v3990
    %5374 = vmatprep.subr.bf16.mxu0 %v3995
    %5375 = vmatpush1.bf16.msra.mxu0 %v3994
    %5376 = vmatprep.subr.bf16.mxu0 %v3999
    %5377 = vmatpush1.bf16.msra.mxu0 %v3998
    %5378 = vmatprep.subr.bf16.mxu0 %v4003
    %5379 = vmatpush1.bf16.msra.mxu0 %v4002
    %5380 = vmatprep.subr.bf16.mxu0 %v4007
    %5381 = vmatpush1.bf16.msra.mxu0 %v4006
    %5382 = vmatprep.subr.bf16.mxu0 %v4011
    %5383 = vmatpush1.bf16.msra.mxu0 %v4010
    %5384 = vmatprep.subr.bf16.mxu0 %v4015
    %5385 = vmatpush1.bf16.msra.mxu0 %v4014
    %5386 = vmatprep.subr.bf16.mxu0 %v4019
    %5387 = vmatpush1.bf16.msra.mxu0 %v4018
    %5388 = vmatprep.subr.bf16.mxu0 %v4023
    %5389 = vmatpush1.bf16.msra.mxu0 %v4022
    %5390 = vmatprep.subr.bf16.mxu0 %v4027
    %5391 = vmatpush1.bf16.msra.mxu0 %v4026
    %5392 = vmatprep.subr.bf16.mxu0 %v4031
    %5393 = vmatpush1.bf16.msra.mxu0 %v4030
    %5394 = vmatprep.subr.bf16.mxu0 %v4035
    %5395 = vmatpush1.bf16.msra.mxu0 %v4034
    %5396 = vmatprep.subr.bf16.mxu0 %v4039
    %5397 = vmatpush1.bf16.msra.mxu0 %v4038
    %5398 = vmatprep.mubr.bf16.mxu0 %v1054
    %5399 = vmatmul.mubr.bf16.gmra.mrb[0].mxu0 %v1040
    %v5400 = vpop.f32.mrb[0].mxu0
    %v5401 = vadd.f32 %v5360, %v5400
    %v5402 = vpop.f32.mrb[0].mxu0
    %v5403 = vadd.f32 %v5362, %v5402
    %v5404 = vpop.f32.mrb[0].mxu0
    %v5405 = vpop.f32.mrb[0].mxu0
    %5406 = vdwg.mxu0
    %5407 = vmatprep.subr.bf16.mxu0 %v4043
    %5408 = vmatpush1.bf16.msra.mxu0 %v4042
    %5409 = vmatprep.subr.bf16.mxu0 %v4047
    %5410 = vmatpush1.bf16.msra.mxu0 %v4046
    %5411 = vmatprep.subr.bf16.mxu0 %v4051
    %5412 = vmatpush1.bf16.msra.mxu0 %v4050
    %5413 = vmatprep.subr.bf16.mxu0 %v4055
    %5414 = vmatpush1.bf16.msra.mxu0 %v4054
    %5415 = vmatprep.subr.bf16.mxu0 %v4059
    %5416 = vmatpush1.bf16.msra.mxu0 %v4058
    %5417 = vmatprep.subr.bf16.mxu0 %v4063
    %5418 = vmatpush1.bf16.msra.mxu0 %v4062
    %5419 = vmatprep.subr.bf16.mxu0 %v4067
    %5420 = vmatpush1.bf16.msra.mxu0 %v4066
    %5421 = vmatprep.subr.bf16.mxu0 %v4071
    %5422 = vmatpush1.bf16.msra.mxu0 %v4070
    %5423 = vmatprep.subr.bf16.mxu0 %v4075
    %5424 = vmatpush1.bf16.msra.mxu0 %v4074
    %5425 = vmatprep.subr.bf16.mxu0 %v4079
    %5426 = vmatpush1.bf16.msra.mxu0 %v4078
    %5427 = vmatprep.subr.bf16.mxu0 %v4083
    %5428 = vmatpush1.bf16.msra.mxu0 %v4082
    %5429 = vmatprep.subr.bf16.mxu0 %v4087
    %5430 = vmatpush1.bf16.msra.mxu0 %v4086
    %5431 = vmatprep.subr.bf16.mxu0 %v4091
    %5432 = vmatpush1.bf16.msra.mxu0 %v4090
    %5433 = vmatprep.subr.bf16.mxu0 %v4095
    %5434 = vmatpush1.bf16.msra.mxu0 %v4094
    %5435 = vmatprep.subr.bf16.mxu0 %v4099
    %5436 = vmatpush1.bf16.msra.mxu0 %v4098
    %5437 = vmatprep.subr.bf16.mxu0 %v4103
    %5438 = vmatpush1.bf16.msra.mxu0 %v4102
    %5439 = vmatprep.mubr.bf16.mxu0 %v1064
    %5440 = vmatmul.mubr.bf16.gmra.mrb[0].mxu0 %v1062
    %v5441 = vpop.f32.mrb[0].mxu0
    %v5442 = vadd.f32 %v5401, %v5441
    %v5443 = vpop.f32.mrb[0].mxu0
    %v5444 = vadd.f32 %v5403, %v5443
    %v5445 = vpop.f32.mrb[0].mxu0
    %v5446 = vpop.f32.mrb[0].mxu0
    %5447 = vdwg.mxu0
    %5448 = vmatprep.subr.bf16.mxu0 %v4107
    %5449 = vmatpush1.bf16.msra.mxu0 %v4106
    %5450 = vmatprep.subr.bf16.mxu0 %v4111
    %5451 = vmatpush1.bf16.msra.mxu0 %v4110
    %5452 = vmatprep.subr.bf16.mxu0 %v4115
    %5453 = vmatpush1.bf16.msra.mxu0 %v4114
    %5454 = vmatprep.subr.bf16.mxu0 %v4119
    %5455 = vmatpush1.bf16.msra.mxu0 %v4118
    %5456 = vmatprep.subr.bf16.mxu0 %v4123
    %5457 = vmatpush1.bf16.msra.mxu0 %v4122
    %5458 = vmatprep.subr.bf16.mxu0 %v4127
    %5459 = vmatpush1.bf16.msra.mxu0 %v4126
    %5460 = vmatprep.subr.bf16.mxu0 %v4131
    %5461 = vmatpush1.bf16.msra.mxu0 %v4130
    %5462 = vmatprep.subr.bf16.mxu0 %v4135
    %5463 = vmatpush1.bf16.msra.mxu0 %v4134
    %5464 = vmatprep.subr.bf16.mxu0 %v4139
    %5465 = vmatpush1.bf16.msra.mxu0 %v4138
    %5466 = vmatprep.subr.bf16.mxu0 %v4143
    %5467 = vmatpush1.bf16.msra.mxu0 %v4142
    %5468 = vmatprep.subr.bf16.mxu0 %v4147
    %5469 = vmatpush1.bf16.msra.mxu0 %v4146
    %5470 = vmatprep.subr.bf16.mxu0 %v4151
    %5471 = vmatpush1.bf16.msra.mxu0 %v4150
    %5472 = vmatprep.subr.bf16.mxu0 %v4155
    %5473 = vmatpush1.bf16.msra.mxu0 %v4154
    %5474 = vmatprep.subr.bf16.mxu0 %v4159
    %5475 = vmatpush1.bf16.msra.mxu0 %v4158
    %5476 = vmatprep.subr.bf16.mxu0 %v4163
    %5477 = vmatpush1.bf16.msra.mxu0 %v4162
    %5478 = vmatprep.subr.bf16.mxu0 %v4167
    %5479 = vmatpush1.bf16.msra.mxu0 %v4166
    %5480 = vmatprep.mubr.bf16.mxu0 %v1061
    %5481 = vmatmul.mubr.bf16.gmra.mrb[0].mxu0 %v1047
    %v5482 = vpop.f32.mrb[0].mxu0
    %v5483 = vadd.f32 %v5442, %v5482
    %v5484 = vpop.f32.mrb[0].mxu0
    %v5485 = vadd.f32 %v5444, %v5484
    %v5486 = vpop.f32.mrb[0].mxu0
    %v5487 = vpop.f32.mrb[0].mxu0
    %5488 = vdwg.mxu0
    %5489 = vmatprep.subr.bf16.mxu0 %v4171
    %5490 = vmatpush1.bf16.msra.mxu0 %v4170
    %5491 = vmatprep.subr.bf16.mxu0 %v4175
    %5492 = vmatpush1.bf16.msra.mxu0 %v4174
    %5493 = vmatprep.subr.bf16.mxu0 %v4179
    %5494 = vmatpush1.bf16.msra.mxu0 %v4178
    %5495 = vmatprep.subr.bf16.mxu0 %v4183
    %5496 = vmatpush1.bf16.msra.mxu0 %v4182
    %5497 = vmatprep.subr.bf16.mxu0 %v4187
    %5498 = vmatpush1.bf16.msra.mxu0 %v4186
    %5499 = vmatprep.subr.bf16.mxu0 %v4191
    %5500 = vmatpush1.bf16.msra.mxu0 %v4190
    %5501 = vmatprep.subr.bf16.mxu0 %v4195
    %5502 = vmatpush1.bf16.msra.mxu0 %v4194
    %5503 = vmatprep.subr.bf16.mxu0 %v4199
    %5504 = vmatpush1.bf16.msra.mxu0 %v4198
    %5505 = vmatprep.subr.bf16.mxu0 %v4203
    %5506 = vmatpush1.bf16.msra.mxu0 %v4202
    %5507 = vmatprep.subr.bf16.mxu0 %v4207
    %5508 = vmatpush1.bf16.msra.mxu0 %v4206
    %5509 = vmatprep.subr.bf16.mxu0 %v4211
    %5510 = vmatpush1.bf16.msra.mxu0 %v4210
    %5511 = vmatprep.subr.bf16.mxu0 %v4215
    %5512 = vmatpush1.bf16.msra.mxu0 %v4214
    %5513 = vmatprep.subr.bf16.mxu0 %v4219
    %5514 = vmatpush1.bf16.msra.mxu0 %v4218
    %5515 = vmatprep.subr.bf16.mxu0 %v4223
    %5516 = vmatpush1.bf16.msra.mxu0 %v4222
    %5517 = vmatprep.subr.bf16.mxu0 %v4227
    %5518 = vmatpush1.bf16.msra.mxu0 %v4226
    %5519 = vmatprep.subr.bf16.mxu0 %v4231
    %5520 = vmatpush1.bf16.msra.mxu0 %v4230
    %5521 = vmatprep.mubr.bf16.mxu0 %v1065
    %5522 = vmatmul.mubr.bf16.gmra.mrb[0].mxu0 %v1063
    %v5523 = vpop.f32.mrb[0].mxu0
    %v5524 = vadd.f32 %v5483, %v5523
    %v5525 = vpop.f32.mrb[0].mxu0
    %v5526 = vadd.f32 %v5485, %v5525
    %v5527 = vpop.f32.mrb[0].mxu0
    %v5528 = vpop.f32.mrb[0].mxu0
    %5529 = vdwg.mxu0
    %5530 = vmatprep.subr.bf16.mxu0 %v4235
    %5531 = vmatpush1.bf16.msra.mxu0 %v4234
    %5532 = vmatprep.subr.bf16.mxu0 %v4239
    %5533 = vmatpush1.bf16.msra.mxu0 %v4238
    %5534 = vmatprep.subr.bf16.mxu0 %v4243
    %5535 = vmatpush1.bf16.msra.mxu0 %v4242
    %5536 = vmatprep.subr.bf16.mxu0 %v4247
    %5537 = vmatpush1.bf16.msra.mxu0 %v4246
    %5538 = vmatprep.subr.bf16.mxu0 0
    %5539 = vmatpush1.bf16.msra.mxu0 0
    %5540 = vmatprep.subr.bf16.mxu0 0
    %5541 = vmatpush1.bf16.msra.mxu0 0
    %5542 = vmatprep.subr.bf16.mxu0 0
    %5543 = vmatpush1.bf16.msra.mxu0 0
    %5544 = vmatprep.subr.bf16.mxu0 0
    %5545 = vmatpush1.bf16.msra.mxu0 0
    %5546 = vmatprep.subr.bf16.mxu0 0
    %5547 = vmatpush1.bf16.msra.mxu0 0
    %5548 = vmatprep.subr.bf16.mxu0 0
    %5549 = vmatpush1.bf16.msra.mxu0 0
    %5550 = vmatprep.subr.bf16.mxu0 0
    %5551 = vmatpush1.bf16.msra.mxu0 0
    %5552 = vmatprep.subr.bf16.mxu0 0
    %5553 = vmatpush1.bf16.msra.mxu0 0
    %5554 = vmatprep.subr.bf16.mxu0 0
    %5555 = vmatpush1.bf16.msra.mxu0 0
    %5556 = vmatprep.subr.bf16.mxu0 0
    %5557 = vmatpush1.bf16.msra.mxu0 0
    %5558 = vmatprep.subr.bf16.mxu0 0
    %5559 = vmatpush1.bf16.msra.mxu0 0
    %5560 = vmatprep.subr.bf16.mxu0 0
    %5561 = vmatpush1.bf16.msra.mxu0 0
    %5562 = vmatprep.mubr.bf16.mxu0 0
    %5563 = vmatmul.mubr.bf16.gmra.mrb[0].mxu0 %v5036
    %v5564 = vpop.f32.mrb[0].mxu0
    %v5565 = vadd.f32 %v5524, %v5564
    %v5566 = vpop.f32.mrb[0].mxu0
    %v5567 = vadd.f32 %v5526, %v5566
    %v5568 = vpop.f32.mrb[0].mxu0
    %v5569 = vpop.f32.mrb[0].mxu0
    %5570 = vdwg.mxu0
    %5571 = vmatprep.subr.bf16.mxu0 %v3469
    %5572 = vmatpush1.bf16.msra.mxu0 %v3468
    %5573 = vmatprep.subr.bf16.mxu0 %v3473
    %5574 = vmatpush1.bf16.msra.mxu0 %v3472
    %5575 = vmatprep.subr.bf16.mxu0 %v3477
    %5576 = vmatpush1.bf16.msra.mxu0 %v3476
    %5577 = vmatprep.subr.bf16.mxu0 %v3481
    %5578 = vmatpush1.bf16.msra.mxu0 %v3480
    %5579 = vmatprep.subr.bf16.mxu0 %v3485
    %5580 = vmatpush1.bf16.msra.mxu0 %v3484
    %5581 = vmatprep.subr.bf16.mxu0 %v3489
    %5582 = vmatpush1.bf16.msra.mxu0 %v3488
    %5583 = vmatprep.subr.bf16.mxu0 %v3493
    %5584 = vmatpush1.bf16.msra.mxu0 %v3492
    %5585 = vmatprep.subr.bf16.mxu0 %v3497
    %5586 = vmatpush1.bf16.msra.mxu0 %v3496
    %5587 = vmatprep.subr.bf16.mxu0 %v3501
    %5588 = vmatpush1.bf16.msra.mxu0 %v3500
    %5589 = vmatprep.subr.bf16.mxu0 %v3505
    %5590 = vmatpush1.bf16.msra.mxu0 %v3504
    %5591 = vmatprep.subr.bf16.mxu0 %v3509
    %5592 = vmatpush1.bf16.msra.mxu0 %v3508
    %5593 = vmatprep.subr.bf16.mxu0 %v3513
    %5594 = vmatpush1.bf16.msra.mxu0 %v3512
    %5595 = vmatprep.subr.bf16.mxu0 %v3517
    %5596 = vmatpush1.bf16.msra.mxu0 %v3516
    %5597 = vmatprep.subr.bf16.mxu0 %v3521
    %5598 = vmatpush1.bf16.msra.mxu0 %v3520
    %5599 = vmatprep.subr.bf16.mxu0 %v3525
    %5600 = vmatpush1.bf16.msra.mxu0 %v3524
    %5601 = vmatprep.subr.bf16.mxu0 %v3529
    %5602 = vmatpush1.bf16.msra.mxu0 %v3528
    %5603 = vmatprep.mubr.bf16.mxu0 %v918
    %5604 = vmatmul.mubr.bf16.gmra.mrb[0].mxu0 %v904
    %v5605 = vpop.f32.mrb[0].mxu0
    %v5606 = vadd.f32 %v837, %v5605
    %v5607 = vpop.f32.mrb[0].mxu0
    %v5608 = vadd.f32 %v841, %v5607
    %v5609 = vpop.f32.mrb[0].mxu0
    %v5610 = vpop.f32.mrb[0].mxu0
    %5611 = vdwg.mxu0
    %5612 = vmatprep.subr.bf16.mxu0 %v3533
    %5613 = vmatpush1.bf16.msra.mxu0 %v3532
    %5614 = vmatprep.subr.bf16.mxu0 %v3537
    %5615 = vmatpush1.bf16.msra.mxu0 %v3536
    %5616 = vmatprep.subr.bf16.mxu0 %v3541
    %5617 = vmatpush1.bf16.msra.mxu0 %v3540
    %5618 = vmatprep.subr.bf16.mxu0 %v3545
    %5619 = vmatpush1.bf16.msra.mxu0 %v3544
    %5620 = vmatprep.subr.bf16.mxu0 %v3549
    %5621 = vmatpush1.bf16.msra.mxu0 %v3548
    %5622 = vmatprep.subr.bf16.mxu0 %v3553
    %5623 = vmatpush1.bf16.msra.mxu0 %v3552
    %5624 = vmatprep.subr.bf16.mxu0 %v3557
    %5625 = vmatpush1.bf16.msra.mxu0 %v3556
    %5626 = vmatprep.subr.bf16.mxu0 %v3561
    %5627 = vmatpush1.bf16.msra.mxu0 %v3560
    %5628 = vmatprep.subr.bf16.mxu0 %v3565
    %5629 = vmatpush1.bf16.msra.mxu0 %v3564
    %5630 = vmatprep.subr.bf16.mxu0 %v3569
    %5631 = vmatpush1.bf16.msra.mxu0 %v3568
    %5632 = vmatprep.subr.bf16.mxu0 %v3573
    %5633 = vmatpush1.bf16.msra.mxu0 %v3572
    %5634 = vmatprep.subr.bf16.mxu0 %v3577
    %5635 = vmatpush1.bf16.msra.mxu0 %v3576
    %5636 = vmatprep.subr.bf16.mxu0 %v3581
    %5637 = vmatpush1.bf16.msra.mxu0 %v3580
    %5638 = vmatprep.subr.bf16.mxu0 %v3585
    %5639 = vmatpush1.bf16.msra.mxu0 %v3584
    %5640 = vmatprep.subr.bf16.mxu0 %v3589
    %5641 = vmatpush1.bf16.msra.mxu0 %v3588
    %5642 = vmatprep.subr.bf16.mxu0 %v3593
    %5643 = vmatpush1.bf16.msra.mxu0 %v3592
    %5644 = vmatprep.mubr.bf16.mxu0 %v928
    %5645 = vmatmul.mubr.bf16.gmra.mrb[0].mxu0 %v926
    %v5646 = vpop.f32.mrb[0].mxu0
    %v5647 = vadd.f32 %v5606, %v5646
    %v5648 = vpop.f32.mrb[0].mxu0
    %v5649 = vadd.f32 %v5608, %v5648
    %v5650 = vpop.f32.mrb[0].mxu0
    %v5651 = vpop.f32.mrb[0].mxu0
    %5652 = vdwg.mxu0
    %5653 = vmatprep.subr.bf16.mxu0 %v3597
    %5654 = vmatpush1.bf16.msra.mxu0 %v3596
    %5655 = vmatprep.subr.bf16.mxu0 %v3601
    %5656 = vmatpush1.bf16.msra.mxu0 %v3600
    %5657 = vmatprep.subr.bf16.mxu0 %v3605
    %5658 = vmatpush1.bf16.msra.mxu0 %v3604
    %5659 = vmatprep.subr.bf16.mxu0 %v3609
    %5660 = vmatpush1.bf16.msra.mxu0 %v3608
    %5661 = vmatprep.subr.bf16.mxu0 %v3613
    %5662 = vmatpush1.bf16.msra.mxu0 %v3612
    %5663 = vmatprep.subr.bf16.mxu0 %v3617
    %5664 = vmatpush1.bf16.msra.mxu0 %v3616
    %5665 = vmatprep.subr.bf16.mxu0 %v3621
    %5666 = vmatpush1.bf16.msra.mxu0 %v3620
    %5667 = vmatprep.subr.bf16.mxu0 %v3625
    %5668 = vmatpush1.bf16.msra.mxu0 %v3624
    %5669 = vmatprep.subr.bf16.mxu0 %v3629
    %5670 = vmatpush1.bf16.msra.mxu0 %v3628
    %5671 = vmatprep.subr.bf16.mxu0 %v3633
    %5672 = vmatpush1.bf16.msra.mxu0 %v3632
    %5673 = vmatprep.subr.bf16.mxu0 %v3637
    %5674 = vmatpush1.bf16.msra.mxu0 %v3636
    %5675 = vmatprep.subr.bf16.mxu0 %v3641
    %5676 = vmatpush1.bf16.msra.mxu0 %v3640
    %5677 = vmatprep.subr.bf16.mxu0 %v3645
    %5678 = vmatpush1.bf16.msra.mxu0 %v3644
    %5679 = vmatprep.subr.bf16.mxu0 %v3649
    %5680 = vmatpush1.bf16.msra.mxu0 %v3648
    %5681 = vmatprep.subr.bf16.mxu0 %v3653
    %5682 = vmatpush1.bf16.msra.mxu0 %v3652
    %5683 = vmatprep.subr.bf16.mxu0 %v3657
    %5684 = vmatpush1.bf16.msra.mxu0 %v3656
    %5685 = vmatprep.mubr.bf16.mxu0 %v925
    %5686 = vmatmul.mubr.bf16.gmra.mrb[0].mxu0 %v911
    %v5687 = vpop.f32.mrb[0].mxu0
    %v5688 = vadd.f32 %v5647, %v5687
    %v5689 = vpop.f32.mrb[0].mxu0
    %v5690 = vadd.f32 %v5649, %v5689
    %v5691 = vpop.f32.mrb[0].mxu0
    %v5692 = vpop.f32.mrb[0].mxu0
    %5693 = vdwg.mxu0
    %5694 = vmatprep.subr.bf16.mxu0 %v3661
    %5695 = vmatpush1.bf16.msra.mxu0 %v3660
    %5696 = vmatprep.subr.bf16.mxu0 %v3665
    %5697 = vmatpush1.bf16.msra.mxu0 %v3664
    %5698 = vmatprep.subr.bf16.mxu0 %v3669
    %5699 = vmatpush1.bf16.msra.mxu0 %v3668
    %5700 = vmatprep.subr.bf16.mxu0 %v3673
    %5701 = vmatpush1.bf16.msra.mxu0 %v3672
    %5702 = vmatprep.subr.bf16.mxu0 %v3677
    %5703 = vmatpush1.bf16.msra.mxu0 %v3676
    %5704 = vmatprep.subr.bf16.mxu0 %v3681
    %5705 = vmatpush1.bf16.msra.mxu0 %v3680
    %5706 = vmatprep.subr.bf16.mxu0 %v3685
    %5707 = vmatpush1.bf16.msra.mxu0 %v3684
    %5708 = vmatprep.subr.bf16.mxu0 %v3689
    %5709 = vmatpush1.bf16.msra.mxu0 %v3688
    %5710 = vmatprep.subr.bf16.mxu0 %v3693
    %5711 = vmatpush1.bf16.msra.mxu0 %v3692
    %5712 = vmatprep.subr.bf16.mxu0 %v3697
    %5713 = vmatpush1.bf16.msra.mxu0 %v3696
    %5714 = vmatprep.subr.bf16.mxu0 %v3701
    %5715 = vmatpush1.bf16.msra.mxu0 %v3700
    %5716 = vmatprep.subr.bf16.mxu0 %v3705
    %5717 = vmatpush1.bf16.msra.mxu0 %v3704
    %5718 = vmatprep.subr.bf16.mxu0 %v3709
    %5719 = vmatpush1.bf16.msra.mxu0 %v3708
    %5720 = vmatprep.subr.bf16.mxu0 %v3713
    %5721 = vmatpush1.bf16.msra.mxu0 %v3712
    %5722 = vmatprep.subr.bf16.mxu0 %v3717
    %5723 = vmatpush1.bf16.msra.mxu0 %v3716
    %5724 = vmatprep.subr.bf16.mxu0 %v3721
    %5725 = vmatpush1.bf16.msra.mxu0 %v3720
    %5726 = vmatprep.mubr.bf16.mxu0 %v929
    %5727 = vmatmul.mubr.bf16.gmra.mrb[0].mxu0 %v927
    %v5728 = vpop.f32.mrb[0].mxu0
    %v5729 = vadd.f32 %v5688, %v5728
    %v5730 = vpop.f32.mrb[0].mxu0
    %v5731 = vadd.f32 %v5690, %v5730
    %v5732 = vpop.f32.mrb[0].mxu0
    %v5733 = vpop.f32.mrb[0].mxu0
    %5734 = vdwg.mxu0
    %5735 = vmatprep.subr.bf16.mxu0 %v3725
    %5736 = vmatpush1.bf16.msra.mxu0 %v3724
    %5737 = vmatprep.subr.bf16.mxu0 %v3729
    %5738 = vmatpush1.bf16.msra.mxu0 %v3728
    %5739 = vmatprep.subr.bf16.mxu0 %v3733
    %5740 = vmatpush1.bf16.msra.mxu0 %v3732
    %5741 = vmatprep.subr.bf16.mxu0 %v3737
    %5742 = vmatpush1.bf16.msra.mxu0 %v3736
    %5743 = vmatprep.subr.bf16.mxu0 %v3741
    %5744 = vmatpush1.bf16.msra.mxu0 %v3740
    %5745 = vmatprep.subr.bf16.mxu0 %v3745
    %5746 = vmatpush1.bf16.msra.mxu0 %v3744
    %5747 = vmatprep.subr.bf16.mxu0 %v3749
    %5748 = vmatpush1.bf16.msra.mxu0 %v3748
    %5749 = vmatprep.subr.bf16.mxu0 %v3753
    %5750 = vmatpush1.bf16.msra.mxu0 %v3752
    %5751 = vmatprep.subr.bf16.mxu0 %v3757
    %5752 = vmatpush1.bf16.msra.mxu0 %v3756
    %5753 = vmatprep.subr.bf16.mxu0 %v3761
    %5754 = vmatpush1.bf16.msra.mxu0 %v3760
    %5755 = vmatprep.subr.bf16.mxu0 %v3765
    %5756 = vmatpush1.bf16.msra.mxu0 %v3764
    %5757 = vmatprep.subr.bf16.mxu0 %v3769
    %5758 = vmatpush1.bf16.msra.mxu0 %v3768
    %5759 = vmatprep.subr.bf16.mxu0 %v3773
    %5760 = vmatpush1.bf16.msra.mxu0 %v3772
    %5761 = vmatprep.subr.bf16.mxu0 %v3777
    %5762 = vmatpush1.bf16.msra.mxu0 %v3776
    %5763 = vmatprep.subr.bf16.mxu0 %v3781
    %5764 = vmatpush1.bf16.msra.mxu0 %v3780
    %5765 = vmatprep.subr.bf16.mxu0 %v3785
    %5766 = vmatpush1.bf16.msra.mxu0 %v3784
    %5767 = vmatprep.mubr.bf16.mxu0 %v986
    %5768 = vmatmul.mubr.bf16.gmra.mrb[0].mxu0 %v972
    %v5769 = vpop.f32.mrb[0].mxu0
    %v5770 = vadd.f32 %v5729, %v5769
    %v5771 = vpop.f32.mrb[0].mxu0
    %v5772 = vadd.f32 %v5731, %v5771
    %v5773 = vpop.f32.mrb[0].mxu0
    %v5774 = vpop.f32.mrb[0].mxu0
    %5775 = vdwg.mxu0
    %5776 = vmatprep.subr.bf16.mxu0 %v3789
    %5777 = vmatpush1.bf16.msra.mxu0 %v3788
    %5778 = vmatprep.subr.bf16.mxu0 %v3793
    %5779 = vmatpush1.bf16.msra.mxu0 %v3792
    %5780 = vmatprep.subr.bf16.mxu0 %v3797
    %5781 = vmatpush1.bf16.msra.mxu0 %v3796
    %5782 = vmatprep.subr.bf16.mxu0 %v3801
    %5783 = vmatpush1.bf16.msra.mxu0 %v3800
    %5784 = vmatprep.subr.bf16.mxu0 %v3805
    %5785 = vmatpush1.bf16.msra.mxu0 %v3804
    %5786 = vmatprep.subr.bf16.mxu0 %v3809
    %5787 = vmatpush1.bf16.msra.mxu0 %v3808
    %5788 = vmatprep.subr.bf16.mxu0 %v3813
    %5789 = vmatpush1.bf16.msra.mxu0 %v3812
    %5790 = vmatprep.subr.bf16.mxu0 %v3817
    %5791 = vmatpush1.bf16.msra.mxu0 %v3816
    %5792 = vmatprep.subr.bf16.mxu0 %v3821
    %5793 = vmatpush1.bf16.msra.mxu0 %v3820
    %5794 = vmatprep.subr.bf16.mxu0 %v3825
    %5795 = vmatpush1.bf16.msra.mxu0 %v3824
    %5796 = vmatprep.subr.bf16.mxu0 %v3829
    %5797 = vmatpush1.bf16.msra.mxu0 %v3828
    %5798 = vmatprep.subr.bf16.mxu0 %v3833
    %5799 = vmatpush1.bf16.msra.mxu0 %v3832
    %5800 = vmatprep.subr.bf16.mxu0 %v3837
    %5801 = vmatpush1.bf16.msra.mxu0 %v3836
    %5802 = vmatprep.subr.bf16.mxu0 %v3841
    %5803 = vmatpush1.bf16.msra.mxu0 %v3840
    %5804 = vmatprep.subr.bf16.mxu0 %v3845
    %5805 = vmatpush1.bf16.msra.mxu0 %v3844
    %5806 = vmatprep.subr.bf16.mxu0 %v3849
    %5807 = vmatpush1.bf16.msra.mxu0 %v3848
    %5808 = vmatprep.mubr.bf16.mxu0 %v996
    %5809 = vmatmul.mubr.bf16.gmra.mrb[0].mxu0 %v994
    %v5810 = vpop.f32.mrb[0].mxu0
    %v5811 = vadd.f32 %v5770, %v5810
    %v5812 = vpop.f32.mrb[0].mxu0
    %v5813 = vadd.f32 %v5772, %v5812
    %v5814 = vpop.f32.mrb[0].mxu0
    %v5815 = vpop.f32.mrb[0].mxu0
    %5816 = vdwg.mxu0
    %5817 = vmatprep.subr.bf16.mxu0 %v3853
    %5818 = vmatpush1.bf16.msra.mxu0 %v3852
    %5819 = vmatprep.subr.bf16.mxu0 %v3857
    %5820 = vmatpush1.bf16.msra.mxu0 %v3856
    %5821 = vmatprep.subr.bf16.mxu0 %v3861
    %5822 = vmatpush1.bf16.msra.mxu0 %v3860
    %5823 = vmatprep.subr.bf16.mxu0 %v3865
    %5824 = vmatpush1.bf16.msra.mxu0 %v3864
    %5825 = vmatprep.subr.bf16.mxu0 %v3869
    %5826 = vmatpush1.bf16.msra.mxu0 %v3868
    %5827 = vmatprep.subr.bf16.mxu0 %v3873
    %5828 = vmatpush1.bf16.msra.mxu0 %v3872
    %5829 = vmatprep.subr.bf16.mxu0 %v3877
    %5830 = vmatpush1.bf16.msra.mxu0 %v3876
    %5831 = vmatprep.subr.bf16.mxu0 %v3881
    %5832 = vmatpush1.bf16.msra.mxu0 %v3880
    %5833 = vmatprep.subr.bf16.mxu0 %v3885
    %5834 = vmatpush1.bf16.msra.mxu0 %v3884
    %5835 = vmatprep.subr.bf16.mxu0 %v3889
    %5836 = vmatpush1.bf16.msra.mxu0 %v3888
    %5837 = vmatprep.subr.bf16.mxu0 %v3893
    %5838 = vmatpush1.bf16.msra.mxu0 %v3892
    %5839 = vmatprep.subr.bf16.mxu0 %v3897
    %5840 = vmatpush1.bf16.msra.mxu0 %v3896
    %5841 = vmatprep.subr.bf16.mxu0 %v3901
    %5842 = vmatpush1.bf16.msra.mxu0 %v3900
    %5843 = vmatprep.subr.bf16.mxu0 %v3905
    %5844 = vmatpush1.bf16.msra.mxu0 %v3904
    %5845 = vmatprep.subr.bf16.mxu0 %v3909
    %5846 = vmatpush1.bf16.msra.mxu0 %v3908
    %5847 = vmatprep.subr.bf16.mxu0 %v3913
    %5848 = vmatpush1.bf16.msra.mxu0 %v3912
    %5849 = vmatprep.mubr.bf16.mxu0 %v993
    %5850 = vmatmul.mubr.bf16.gmra.mrb[0].mxu0 %v979
    %v5851 = vpop.f32.mrb[0].mxu0
    %v5852 = vadd.f32 %v5811, %v5851
    %v5853 = vpop.f32.mrb[0].mxu0
    %v5854 = vadd.f32 %v5813, %v5853
    %v5855 = vpop.f32.mrb[0].mxu0
    %v5856 = vpop.f32.mrb[0].mxu0
    %5857 = vdwg.mxu0
    %5858 = vmatprep.subr.bf16.mxu0 %v3917
    %5859 = vmatpush1.bf16.msra.mxu0 %v3916
    %5860 = vmatprep.subr.bf16.mxu0 %v3921
    %5861 = vmatpush1.bf16.msra.mxu0 %v3920
    %5862 = vmatprep.subr.bf16.mxu0 %v3925
    %5863 = vmatpush1.bf16.msra.mxu0 %v3924
    %5864 = vmatprep.subr.bf16.mxu0 %v3929
    %5865 = vmatpush1.bf16.msra.mxu0 %v3928
    %5866 = vmatprep.subr.bf16.mxu0 %v3933
    %5867 = vmatpush1.bf16.msra.mxu0 %v3932
    %5868 = vmatprep.subr.bf16.mxu0 %v3937
    %5869 = vmatpush1.bf16.msra.mxu0 %v3936
    %5870 = vmatprep.subr.bf16.mxu0 %v3941
    %5871 = vmatpush1.bf16.msra.mxu0 %v3940
    %5872 = vmatprep.subr.bf16.mxu0 %v3945
    %5873 = vmatpush1.bf16.msra.mxu0 %v3944
    %5874 = vmatprep.subr.bf16.mxu0 %v3949
    %5875 = vmatpush1.bf16.msra.mxu0 %v3948
    %5876 = vmatprep.subr.bf16.mxu0 %v3953
    %5877 = vmatpush1.bf16.msra.mxu0 %v3952
    %5878 = vmatprep.subr.bf16.mxu0 %v3957
    %5879 = vmatpush1.bf16.msra.mxu0 %v3956
    %5880 = vmatprep.subr.bf16.mxu0 %v3961
    %5881 = vmatpush1.bf16.msra.mxu0 %v3960
    %5882 = vmatprep.subr.bf16.mxu0 %v3965
    %5883 = vmatpush1.bf16.msra.mxu0 %v3964
    %5884 = vmatprep.subr.bf16.mxu0 %v3969
    %5885 = vmatpush1.bf16.msra.mxu0 %v3968
    %5886 = vmatprep.subr.bf16.mxu0 %v3973
    %5887 = vmatpush1.bf16.msra.mxu0 %v3972
    %5888 = vmatprep.subr.bf16.mxu0 %v3977
    %5889 = vmatpush1.bf16.msra.mxu0 %v3976
    %5890 = vmatprep.mubr.bf16.mxu0 %v997
    %5891 = vmatmul.mubr.bf16.gmra.mrb[0].mxu0 %v995
    %v5892 = vpop.f32.mrb[0].mxu0
    %v5893 = vadd.f32 %v5852, %v5892
    %v5894 = vpop.f32.mrb[0].mxu0
    %v5895 = vadd.f32 %v5854, %v5894
    %v5896 = vpop.f32.mrb[0].mxu0
    %v5897 = vpop.f32.mrb[0].mxu0
    %5898 = vdwg.mxu0
    %5899 = vmatprep.subr.bf16.mxu0 %v3981
    %5900 = vmatpush1.bf16.msra.mxu0 %v3980
    %5901 = vmatprep.subr.bf16.mxu0 %v3985
    %5902 = vmatpush1.bf16.msra.mxu0 %v3984
    %5903 = vmatprep.subr.bf16.mxu0 %v3989
    %5904 = vmatpush1.bf16.msra.mxu0 %v3988
    %5905 = vmatprep.subr.bf16.mxu0 %v3993
    %5906 = vmatpush1.bf16.msra.mxu0 %v3992
    %5907 = vmatprep.subr.bf16.mxu0 %v3997
    %5908 = vmatpush1.bf16.msra.mxu0 %v3996
    %5909 = vmatprep.subr.bf16.mxu0 %v4001
    %5910 = vmatpush1.bf16.msra.mxu0 %v4000
    %5911 = vmatprep.subr.bf16.mxu0 %v4005
    %5912 = vmatpush1.bf16.msra.mxu0 %v4004
    %5913 = vmatprep.subr.bf16.mxu0 %v4009
    %5914 = vmatpush1.bf16.msra.mxu0 %v4008
    %5915 = vmatprep.subr.bf16.mxu0 %v4013
    %5916 = vmatpush1.bf16.msra.mxu0 %v4012
    %5917 = vmatprep.subr.bf16.mxu0 %v4017
    %5918 = vmatpush1.bf16.msra.mxu0 %v4016
    %5919 = vmatprep.subr.bf16.mxu0 %v4021
    %5920 = vmatpush1.bf16.msra.mxu0 %v4020
    %5921 = vmatprep.subr.bf16.mxu0 %v4025
    %5922 = vmatpush1.bf16.msra.mxu0 %v4024
    %5923 = vmatprep.subr.bf16.mxu0 %v4029
    %5924 = vmatpush1.bf16.msra.mxu0 %v4028
    %5925 = vmatprep.subr.bf16.mxu0 %v4033
    %5926 = vmatpush1.bf16.msra.mxu0 %v4032
    %5927 = vmatprep.subr.bf16.mxu0 %v4037
    %5928 = vmatpush1.bf16.msra.mxu0 %v4036
    %5929 = vmatprep.subr.bf16.mxu0 %v4041
    %5930 = vmatpush1.bf16.msra.mxu0 %v4040
    %5931 = vmatprep.mubr.bf16.mxu0 %v1054
    %5932 = vmatmul.mubr.bf16.gmra.mrb[0].mxu0 %v1040
    %v5933 = vpop.f32.mrb[0].mxu0
    %v5934 = vadd.f32 %v5893, %v5933
    %v5935 = vpop.f32.mrb[0].mxu0
    %v5936 = vadd.f32 %v5895, %v5935
    %v5937 = vpop.f32.mrb[0].mxu0
    %v5938 = vpop.f32.mrb[0].mxu0
    %5939 = vdwg.mxu0
    %5940 = vmatprep.subr.bf16.mxu0 %v4045
    %5941 = vmatpush1.bf16.msra.mxu0 %v4044
    %5942 = vmatprep.subr.bf16.mxu0 %v4049
    %5943 = vmatpush1.bf16.msra.mxu0 %v4048
    %5944 = vmatprep.subr.bf16.mxu0 %v4053
    %5945 = vmatpush1.bf16.msra.mxu0 %v4052
    %5946 = vmatprep.subr.bf16.mxu0 %v4057
    %5947 = vmatpush1.bf16.msra.mxu0 %v4056
    %5948 = vmatprep.subr.bf16.mxu0 %v4061
    %5949 = vmatpush1.bf16.msra.mxu0 %v4060
    %5950 = vmatprep.subr.bf16.mxu0 %v4065
    %5951 = vmatpush1.bf16.msra.mxu0 %v4064
    %5952 = vmatprep.subr.bf16.mxu0 %v4069
    %5953 = vmatpush1.bf16.msra.mxu0 %v4068
    %5954 = vmatprep.subr.bf16.mxu0 %v4073
    %5955 = vmatpush1.bf16.msra.mxu0 %v4072
    %5956 = vmatprep.subr.bf16.mxu0 %v4077
    %5957 = vmatpush1.bf16.msra.mxu0 %v4076
    %5958 = vmatprep.subr.bf16.mxu0 %v4081
    %5959 = vmatpush1.bf16.msra.mxu0 %v4080
    %5960 = vmatprep.subr.bf16.mxu0 %v4085
    %5961 = vmatpush1.bf16.msra.mxu0 %v4084
    %5962 = vmatprep.subr.bf16.mxu0 %v4089
    %5963 = vmatpush1.bf16.msra.mxu0 %v4088
    %5964 = vmatprep.subr.bf16.mxu0 %v4093
    %5965 = vmatpush1.bf16.msra.mxu0 %v4092
    %5966 = vmatprep.subr.bf16.mxu0 %v4097
    %5967 = vmatpush1.bf16.msra.mxu0 %v4096
    %5968 = vmatprep.subr.bf16.mxu0 %v4101
    %5969 = vmatpush1.bf16.msra.mxu0 %v4100
    %5970 = vmatprep.subr.bf16.mxu0 %v4105
    %5971 = vmatpush1.bf16.msra.mxu0 %v4104
    %5972 = vmatprep.mubr.bf16.mxu0 %v1064
    %5973 = vmatmul.mubr.bf16.gmra.mrb[0].mxu0 %v1062
    %v5974 = vpop.f32.mrb[0].mxu0
    %v5975 = vadd.f32 %v5934, %v5974
    %v5976 = vpop.f32.mrb[0].mxu0
    %v5977 = vadd.f32 %v5936, %v5976
    %v5978 = vpop.f32.mrb[0].mxu0
    %v5979 = vpop.f32.mrb[0].mxu0
    %5980 = vdwg.mxu0
    %5981 = vmatprep.subr.bf16.mxu0 %v4109
    %5982 = vmatpush1.bf16.msra.mxu0 %v4108
    %5983 = vmatprep.subr.bf16.mxu0 %v4113
    %5984 = vmatpush1.bf16.msra.mxu0 %v4112
    %5985 = vmatprep.subr.bf16.mxu0 %v4117
    %5986 = vmatpush1.bf16.msra.mxu0 %v4116
    %5987 = vmatprep.subr.bf16.mxu0 %v4121
    %5988 = vmatpush1.bf16.msra.mxu0 %v4120
    %5989 = vmatprep.subr.bf16.mxu0 %v4125
    %5990 = vmatpush1.bf16.msra.mxu0 %v4124
    %5991 = vmatprep.subr.bf16.mxu0 %v4129
    %5992 = vmatpush1.bf16.msra.mxu0 %v4128
    %5993 = vmatprep.subr.bf16.mxu0 %v4133
    %5994 = vmatpush1.bf16.msra.mxu0 %v4132
    %5995 = vmatprep.subr.bf16.mxu0 %v4137
    %5996 = vmatpush1.bf16.msra.mxu0 %v4136
    %5997 = vmatprep.subr.bf16.mxu0 %v4141
    %5998 = vmatpush1.bf16.msra.mxu0 %v4140
    %5999 = vmatprep.subr.bf16.mxu0 %v4145
    %6000 = vmatpush1.bf16.msra.mxu0 %v4144
    %6001 = vmatprep.subr.bf16.mxu0 %v4149
    %6002 = vmatpush1.bf16.msra.mxu0 %v4148
    %6003 = vmatprep.subr.bf16.mxu0 %v4153
    %6004 = vmatpush1.bf16.msra.mxu0 %v4152
    %6005 = vmatprep.subr.bf16.mxu0 %v4157
    %6006 = vmatpush1.bf16.msra.mxu0 %v4156
    %6007 = vmatprep.subr.bf16.mxu0 %v4161
    %6008 = vmatpush1.bf16.msra.mxu0 %v4160
    %6009 = vmatprep.subr.bf16.mxu0 %v4165
    %6010 = vmatpush1.bf16.msra.mxu0 %v4164
    %6011 = vmatprep.subr.bf16.mxu0 %v4169
    %6012 = vmatpush1.bf16.msra.mxu0 %v4168
    %6013 = vmatprep.mubr.bf16.mxu0 %v1061
    %6014 = vmatmul.mubr.bf16.gmra.mrb[0].mxu0 %v1047
    %v6015 = vpop.f32.mrb[0].mxu0
    %v6016 = vadd.f32 %v5975, %v6015
    %v6017 = vpop.f32.mrb[0].mxu0
    %v6018 = vadd.f32 %v5977, %v6017
    %v6019 = vpop.f32.mrb[0].mxu0
    %v6020 = vpop.f32.mrb[0].mxu0
    %6021 = vdwg.mxu0
    %6022 = vmatprep.subr.bf16.mxu0 %v4173
    %6023 = vmatpush1.bf16.msra.mxu0 %v4172
    %6024 = vmatprep.subr.bf16.mxu0 %v4177
    %6025 = vmatpush1.bf16.msra.mxu0 %v4176
    %6026 = vmatprep.subr.bf16.mxu0 %v4181
    %6027 = vmatpush1.bf16.msra.mxu0 %v4180
    %6028 = vmatprep.subr.bf16.mxu0 %v4185
    %6029 = vmatpush1.bf16.msra.mxu0 %v4184
    %6030 = vmatprep.subr.bf16.mxu0 %v4189
    %6031 = vmatpush1.bf16.msra.mxu0 %v4188
    %6032 = vmatprep.subr.bf16.mxu0 %v4193
    %6033 = vmatpush1.bf16.msra.mxu0 %v4192
    %6034 = vmatprep.subr.bf16.mxu0 %v4197
    %6035 = vmatpush1.bf16.msra.mxu0 %v4196
    %6036 = vmatprep.subr.bf16.mxu0 %v4201
    %6037 = vmatpush1.bf16.msra.mxu0 %v4200
    %6038 = vmatprep.subr.bf16.mxu0 %v4205
    %6039 = vmatpush1.bf16.msra.mxu0 %v4204
    %6040 = vmatprep.subr.bf16.mxu0 %v4209
    %6041 = vmatpush1.bf16.msra.mxu0 %v4208
    %6042 = vmatprep.subr.bf16.mxu0 %v4213
    %6043 = vmatpush1.bf16.msra.mxu0 %v4212
    %6044 = vmatprep.subr.bf16.mxu0 %v4217
    %6045 = vmatpush1.bf16.msra.mxu0 %v4216
    %6046 = vmatprep.subr.bf16.mxu0 %v4221
    %6047 = vmatpush1.bf16.msra.mxu0 %v4220
    %6048 = vmatprep.subr.bf16.mxu0 %v4225
    %6049 = vmatpush1.bf16.msra.mxu0 %v4224
    %6050 = vmatprep.subr.bf16.mxu0 %v4229
    %6051 = vmatpush1.bf16.msra.mxu0 %v4228
    %6052 = vmatprep.subr.bf16.mxu0 %v4233
    %6053 = vmatpush1.bf16.msra.mxu0 %v4232
    %6054 = vmatprep.mubr.bf16.mxu0 %v1065
    %6055 = vmatmul.mubr.bf16.gmra.mrb[0].mxu0 %v1063
    %v6056 = vpop.f32.mrb[0].mxu0
    %v6057 = vadd.f32 %v6016, %v6056
    %v6058 = vpop.f32.mrb[0].mxu0
    %v6059 = vadd.f32 %v6018, %v6058
    %v6060 = vpop.f32.mrb[0].mxu0
    %v6061 = vpop.f32.mrb[0].mxu0
    %6062 = vdwg.mxu0
    %6063 = vmatprep.subr.bf16.mxu0 %v4237
    %6064 = vmatpush1.bf16.msra.mxu0 %v4236
    %6065 = vmatprep.subr.bf16.mxu0 %v4241
    %6066 = vmatpush1.bf16.msra.mxu0 %v4240
    %6067 = vmatprep.subr.bf16.mxu0 %v4245
    %6068 = vmatpush1.bf16.msra.mxu0 %v4244
    %6069 = vmatprep.subr.bf16.mxu0 %v4249
    %6070 = vmatpush1.bf16.msra.mxu0 %v4248
    %6071 = vmatprep.subr.bf16.mxu0 0
    %6072 = vmatpush1.bf16.msra.mxu0 0
    %6073 = vmatprep.subr.bf16.mxu0 0
    %6074 = vmatpush1.bf16.msra.mxu0 0
    %6075 = vmatprep.subr.bf16.mxu0 0
    %6076 = vmatpush1.bf16.msra.mxu0 0
    %6077 = vmatprep.subr.bf16.mxu0 0
    %6078 = vmatpush1.bf16.msra.mxu0 0
    %6079 = vmatprep.subr.bf16.mxu0 0
    %6080 = vmatpush1.bf16.msra.mxu0 0
    %6081 = vmatprep.subr.bf16.mxu0 0
    %6082 = vmatpush1.bf16.msra.mxu0 0
    %6083 = vmatprep.subr.bf16.mxu0 0
    %6084 = vmatpush1.bf16.msra.mxu0 0
    %6085 = vmatprep.subr.bf16.mxu0 0
    %6086 = vmatpush1.bf16.msra.mxu0 0
    %6087 = vmatprep.subr.bf16.mxu0 0
    %6088 = vmatpush1.bf16.msra.mxu0 0
    %6089 = vmatprep.subr.bf16.mxu0 0
    %6090 = vmatpush1.bf16.msra.mxu0 0
    %6091 = vmatprep.subr.bf16.mxu0 0
    %6092 = vmatpush1.bf16.msra.mxu0 0
    %6093 = vmatprep.subr.bf16.mxu0 0
    %6094 = vmatpush1.bf16.msra.mxu0 0
    %6095 = vmatprep.mubr.bf16.mxu0 0
    %6096 = vmatmul.mubr.bf16.gmra.mrb[0].mxu0 %v5036
    %v6097 = vpop.f32.mrb[0].mxu0
    %v6098 = vadd.f32 %v6057, %v6097
    %v6099 = vpop.f32.mrb[0].mxu0
    %v6100 = vadd.f32 %v6059, %v6099
    %v6101 = vpop.f32.mrb[0].mxu0
    %v6102 = vpop.f32.mrb[0].mxu0
    %6103 = vdwg.mxu0
    %v6104 = vmax.f32 %v5565, 0.0
    %v6105 = vmax.f32 %v5567, 0.0
    %v6106 = vmax.f32 %v6098, 0.0
    %v6107 = vmax.f32 %v6100, 0.0
    %v6108 = vpack.c.bf16 %v6104, %v6104
    %v6109 = vpack.c.bf16 %v6105, %v6105
    %v6110 = vpack.c.bf16 %v6106, %v6106
    %v6111 = vpack.c.bf16 %v6107, %v6107
    %v6112 = vld [vmem:[%s3] sm:$0xf]
    %v6113 = vld [vmem:[%s3 + $0x4] sm:$0xf]
    %v6114 = vld [vmem:[%s3 + $0x8] sm:$0xf]
    %v6115 = vld [vmem:[%s3 + $0xc] sm:$0xf]
    %v6116 = vld [vmem:[%s3 + $0x10] sm:$0xf]
    %v6117 = vld [vmem:[%s3 + $0x14] sm:$0xf]
    %v6118 = vld [vmem:[%s3 + $0x18] sm:$0xf]
    %v6119 = vld [vmem:[%s3 + $0x1c] sm:$0xf]
    %v6120 = vld [vmem:[%s3 + $0x20] sm:$0xf]
    %v6121 = vld [vmem:[%s3 + $0x24] sm:$0xf]
    %v6122 = vld [vmem:[%s3 + $0x28] sm:$0xf]
    %v6123 = vld [vmem:[%s3 + $0x2c] sm:$0xf]
    %v6124 = vld [vmem:[%s3 + $0x30] sm:$0xf]
    %v6125 = vld [vmem:[%s3 + $0x34] sm:$0xf]
    %v6126 = vld [vmem:[%s3 + $0x38] sm:$0xf]
    %v6127 = vld [vmem:[%s3 + $0x3c] sm:$0xf]
    %v6128 = vld [vmem:[%s3 + $0x40] sm:$0xf]
    %v6129 = vld [vmem:[%s3 + $0x44] sm:$0xf]
    %v6130 = vld [vmem:[%s3 + $0x48] sm:$0xf]
    %v6131 = vld [vmem:[%s3 + $0x4c] sm:$0xf]
    %v6132 = vld [vmem:[%s3 + $0x50] sm:$0xf]
    %v6133 = vld [vmem:[%s3 + $0x54] sm:$0xf]
    %v6134 = vld [vmem:[%s3 + $0x58] sm:$0xf]
    %v6135 = vld [vmem:[%s3 + $0x5c] sm:$0xf]
    %v6136 = vld [vmem:[%s3 + $0x60] sm:$0xf]
    %v6137 = vld [vmem:[%s3 + $0x64] sm:$0xf]
    %v6138 = vld [vmem:[%s3 + $0x68] sm:$0xf]
    %v6139 = vld [vmem:[%s3 + $0x6c] sm:$0xf]
    %v6140 = vld [vmem:[%s3 + $0x70] sm:$0xf]
    %v6141 = vld [vmem:[%s3 + $0x74] sm:$0xf]
    %v6142 = vld [vmem:[%s3 + $0x78] sm:$0xf]
    %v6143 = vld [vmem:[%s3 + $0x7c] sm:$0xf]
    %v6144 = vld [vmem:[%s3 + $0x80] sm:$0xf]
    %v6145 = vld [vmem:[%s3 + $0x84] sm:$0xf]
    %v6146 = vld [vmem:[%s3 + $0x88] sm:$0xf]
    %v6147 = vld [vmem:[%s3 + $0x8c] sm:$0xf]
    %v6148 = vld [vmem:[%s3 + $0x90] sm:$0xf]
    %v6149 = vld [vmem:[%s3 + $0x94] sm:$0xf]
    %v6150 = vld [vmem:[%s3 + $0x98] sm:$0xf]
    %v6151 = vld [vmem:[%s3 + $0x9c] sm:$0xf]
    %v6152 = vld [vmem:[%s3 + $0xa0] sm:$0xf]
    %v6153 = vld [vmem:[%s3 + $0xa4] sm:$0xf]
    %v6154 = vld [vmem:[%s3 + $0xa8] sm:$0xf]
    %v6155 = vld [vmem:[%s3 + $0xac] sm:$0xf]
    %v6156 = vld [vmem:[%s3 + $0xb0] sm:$0xf]
    %v6157 = vld [vmem:[%s3 + $0xb4] sm:$0xf]
    %v6158 = vld [vmem:[%s3 + $0xb8] sm:$0xf]
    %v6159 = vld [vmem:[%s3 + $0xbc] sm:$0xf]
    %v6160 = vld [vmem:[%s3 + $0xc0] sm:$0xf]
    %v6161 = vld [vmem:[%s3 + $0xc4] sm:$0xf]
    %v6162 = vld [vmem:[%s3 + $0xc8] sm:$0xf]
    %v6163 = vld [vmem:[%s3 + $0xcc] sm:$0xf]
    %v6164 = vld [vmem:[%s3 + $0xd0] sm:$0xf]
    %v6165 = vld [vmem:[%s3 + $0xd4] sm:$0xf]
    %v6166 = vld [vmem:[%s3 + $0xd8] sm:$0xf]
    %v6167 = vld [vmem:[%s3 + $0xdc] sm:$0xf]
    %v6168 = vld [vmem:[%s3 + $0xe0] sm:$0xf]
    %v6169 = vld [vmem:[%s3 + $0xe4] sm:$0xf]
    %v6170 = vld [vmem:[%s3 + $0xe8] sm:$0xf]
    %v6171 = vld [vmem:[%s3 + $0xec] sm:$0xf]
    %v6172 = vld [vmem:[%s3 + $0xf0] sm:$0xf]
    %v6173 = vld [vmem:[%s3 + $0xf4] sm:$0xf]
    %v6174 = vld [vmem:[%s3 + $0xf8] sm:$0xf]
    %v6175 = vld [vmem:[%s3 + $0xfc] sm:$0xf]
    %v6176 = vld [vmem:[%s4] sm:$0x1]
    %v6178 = vlaneseq
    %v6179 = vshrl.u32 %v6178, 7
    %v6180 = vsub.s32 0, %v6179
    %v6181 = vrot.slane %v6176, %v6180
    %v6247 = vunpack.c.l.b16 %v6112
    %v6248 = vunpack.c.l.b16 %v6113
    %v6249 = vunpack.c.l.b16 %v6114
    %v6250 = vunpack.c.l.b16 %v6115
    %v6251 = vunpack.c.l.b16 %v6116
    %v6252 = vunpack.c.l.b16 %v6117
    %v6253 = vunpack.c.l.b16 %v6118
    %v6254 = vunpack.c.l.b16 %v6119
    %v6255 = vunpack.c.l.b16 %v6120
    %v6256 = vunpack.c.l.b16 %v6121
    %v6257 = vunpack.c.l.b16 %v6122
    %v6258 = vunpack.c.l.b16 %v6123
    %v6259 = vunpack.c.l.b16 %v6124
    %v6260 = vunpack.c.l.b16 %v6125
    %v6261 = vunpack.c.l.b16 %v6126
    %v6262 = vunpack.c.l.b16 %v6127
    %v6263 = vunpack.c.l.b16 %v6128
    %v6264 = vunpack.c.l.b16 %v6129
    %v6265 = vunpack.c.l.b16 %v6130
    %v6266 = vunpack.c.l.b16 %v6131
    %v6267 = vunpack.c.l.b16 %v6132
    %v6268 = vunpack.c.l.b16 %v6133
    %v6269 = vunpack.c.l.b16 %v6134
    %v6270 = vunpack.c.l.b16 %v6135
    %v6271 = vunpack.c.l.b16 %v6136
    %v6272 = vunpack.c.l.b16 %v6137
    %v6273 = vunpack.c.l.b16 %v6138
    %v6274 = vunpack.c.l.b16 %v6139
    %v6275 = vunpack.c.l.b16 %v6140
    %v6276 = vunpack.c.l.b16 %v6141
    %v6277 = vunpack.c.l.b16 %v6142
    %v6278 = vunpack.c.l.b16 %v6143
    %v6279 = vunpack.c.l.b16 %v6144
    %v6280 = vunpack.c.l.b16 %v6145
    %v6281 = vunpack.c.l.b16 %v6146
    %v6282 = vunpack.c.l.b16 %v6147
    %v6283 = vunpack.c.l.b16 %v6148
    %v6284 = vunpack.c.l.b16 %v6149
    %v6285 = vunpack.c.l.b16 %v6150
    %v6286 = vunpack.c.l.b16 %v6151
    %v6287 = vunpack.c.l.b16 %v6152
    %v6288 = vunpack.c.l.b16 %v6153
    %v6289 = vunpack.c.l.b16 %v6154
    %v6290 = vunpack.c.l.b16 %v6155
    %v6291 = vunpack.c.l.b16 %v6156
    %v6292 = vunpack.c.l.b16 %v6157
    %v6293 = vunpack.c.l.b16 %v6158
    %v6294 = vunpack.c.l.b16 %v6159
    %v6295 = vunpack.c.l.b16 %v6160
    %v6296 = vunpack.c.l.b16 %v6161
    %v6297 = vunpack.c.l.b16 %v6162
    %v6298 = vunpack.c.l.b16 %v6163
    %v6299 = vunpack.c.l.b16 %v6164
    %v6300 = vunpack.c.l.b16 %v6165
    %v6301 = vunpack.c.l.b16 %v6166
    %v6302 = vunpack.c.l.b16 %v6167
    %v6303 = vunpack.c.l.b16 %v6168
    %v6304 = vunpack.c.l.b16 %v6169
    %v6305 = vunpack.c.l.b16 %v6170
    %v6306 = vunpack.c.l.b16 %v6171
    %v6307 = vunpack.c.l.b16 %v6172
    %v6308 = vunpack.c.l.b16 %v6173
    %v6309 = vunpack.c.l.b16 %v6174
    %v6310 = vunpack.c.l.b16 %v6175
    %v6311 = vpack.c.b16 %v6248, %v6247
    %v6312 = vpack.c.b16 %v6250, %v6249
    %v6313 = vpack.c.b16 %v6252, %v6251
    %v6314 = vpack.c.b16 %v6254, %v6253
    %v6315 = vpack.c.b16 %v6256, %v6255
    %v6316 = vpack.c.b16 %v6258, %v6257
    %v6317 = vpack.c.b16 %v6260, %v6259
    %v6318 = vpack.c.b16 %v6262, %v6261
    %v6319 = vpack.c.b16 %v6264, %v6263
    %v6320 = vpack.c.b16 %v6266, %v6265
    %v6321 = vpack.c.b16 %v6268, %v6267
    %v6322 = vpack.c.b16 %v6270, %v6269
    %v6323 = vpack.c.b16 %v6272, %v6271
    %v6324 = vpack.c.b16 %v6274, %v6273
    %v6325 = vpack.c.b16 %v6276, %v6275
    %v6326 = vpack.c.b16 %v6278, %v6277
    %v6327 = vpack.c.b16 %v6280, %v6279
    %v6328 = vpack.c.b16 %v6282, %v6281
    %v6329 = vpack.c.b16 %v6284, %v6283
    %v6330 = vpack.c.b16 %v6286, %v6285
    %v6331 = vpack.c.b16 %v6288, %v6287
    %v6332 = vpack.c.b16 %v6290, %v6289
    %v6333 = vpack.c.b16 %v6292, %v6291
    %v6334 = vpack.c.b16 %v6294, %v6293
    %v6335 = vpack.c.b16 %v6296, %v6295
    %v6336 = vpack.c.b16 %v6298, %v6297
    %v6337 = vpack.c.b16 %v6300, %v6299
    %v6338 = vpack.c.b16 %v6302, %v6301
    %v6339 = vpack.c.b16 %v6304, %v6303
    %v6340 = vpack.c.b16 %v6306, %v6305
    %v6341 = vpack.c.b16 %v6308, %v6307
    %v6342 = vpack.c.b16 %v6310, %v6309
    %6375 = vmatprep.subr.bf16.mxu0 0
    %6376 = vmatpush1.bf16.msra.mxu0 %v6311
    %6377 = vmatprep.subr.bf16.mxu0 0
    %6378 = vmatpush1.bf16.msra.mxu0 %v6312
    %6379 = vmatprep.subr.bf16.mxu0 0
    %6380 = vmatpush1.bf16.msra.mxu0 %v6313
    %6381 = vmatprep.subr.bf16.mxu0 0
    %6382 = vmatpush1.bf16.msra.mxu0 %v6314
    %6383 = vmatprep.subr.bf16.mxu0 0
    %6384 = vmatpush1.bf16.msra.mxu0 %v6315
    %6385 = vmatprep.subr.bf16.mxu0 0
    %6386 = vmatpush1.bf16.msra.mxu0 %v6316
    %6387 = vmatprep.subr.bf16.mxu0 0
    %6388 = vmatpush1.bf16.msra.mxu0 %v6317
    %6389 = vmatprep.subr.bf16.mxu0 0
    %6390 = vmatpush1.bf16.msra.mxu0 %v6318
    %6391 = vmatprep.subr.bf16.mxu0 0
    %6392 = vmatpush1.bf16.msra.mxu0 %v6319
    %6393 = vmatprep.subr.bf16.mxu0 0
    %6394 = vmatpush1.bf16.msra.mxu0 %v6320
    %6395 = vmatprep.subr.bf16.mxu0 0
    %6396 = vmatpush1.bf16.msra.mxu0 %v6321
    %6397 = vmatprep.subr.bf16.mxu0 0
    %6398 = vmatpush1.bf16.msra.mxu0 %v6322
    %6399 = vmatprep.subr.bf16.mxu0 0
    %6400 = vmatpush1.bf16.msra.mxu0 %v6323
    %6401 = vmatprep.subr.bf16.mxu0 0
    %6402 = vmatpush1.bf16.msra.mxu0 %v6324
    %6403 = vmatprep.subr.bf16.mxu0 0
    %6404 = vmatpush1.bf16.msra.mxu0 %v6325
    %6405 = vmatprep.subr.bf16.mxu0 0
    %6406 = vmatpush1.bf16.msra.mxu0 %v6326
    %6407 = vmatprep.mubr.bf16.mxu0 %v6109
    %6408 = vmatmul.mubr.bf16.gmra.mrb[0].mxu0 %v6108
    %v6409 = vpop.f32.mrb[0].mxu0
    %v6410 = vadd.f32 %v6181, %v6409
    %v6411 = vpop.f32.mrb[0].mxu0
    %v6412 = vpop.f32.mrb[0].mxu0
    %v6413 = vpop.f32.mrb[0].mxu0
    %6414 = vdwg.mxu0
    %6415 = vmatprep.subr.bf16.mxu0 0
    %6416 = vmatpush1.bf16.msra.mxu0 %v6327
    %6417 = vmatprep.subr.bf16.mxu0 0
    %6418 = vmatpush1.bf16.msra.mxu0 %v6328
    %6419 = vmatprep.subr.bf16.mxu0 0
    %6420 = vmatpush1.bf16.msra.mxu0 %v6329
    %6421 = vmatprep.subr.bf16.mxu0 0
    %6422 = vmatpush1.bf16.msra.mxu0 %v6330
    %6423 = vmatprep.subr.bf16.mxu0 0
    %6424 = vmatpush1.bf16.msra.mxu0 %v6331
    %6425 = vmatprep.subr.bf16.mxu0 0
    %6426 = vmatpush1.bf16.msra.mxu0 %v6332
    %6427 = vmatprep.subr.bf16.mxu0 0
    %6428 = vmatpush1.bf16.msra.mxu0 %v6333
    %6429 = vmatprep.subr.bf16.mxu0 0
    %6430 = vmatpush1.bf16.msra.mxu0 %v6334
    %6431 = vmatprep.subr.bf16.mxu0 0
    %6432 = vmatpush1.bf16.msra.mxu0 %v6335
    %6433 = vmatprep.subr.bf16.mxu0 0
    %6434 = vmatpush1.bf16.msra.mxu0 %v6336
    %6435 = vmatprep.subr.bf16.mxu0 0
    %6436 = vmatpush1.bf16.msra.mxu0 %v6337
    %6437 = vmatprep.subr.bf16.mxu0 0
    %6438 = vmatpush1.bf16.msra.mxu0 %v6338
    %6439 = vmatprep.subr.bf16.mxu0 0
    %6440 = vmatpush1.bf16.msra.mxu0 %v6339
    %6441 = vmatprep.subr.bf16.mxu0 0
    %6442 = vmatpush1.bf16.msra.mxu0 %v6340
    %6443 = vmatprep.subr.bf16.mxu0 0
    %6444 = vmatpush1.bf16.msra.mxu0 %v6341
    %6445 = vmatprep.subr.bf16.mxu0 0
    %6446 = vmatpush1.bf16.msra.mxu0 %v6342
    %6447 = vmatprep.mubr.bf16.mxu0 %v6111
    %6448 = vmatmul.mubr.bf16.gmra.mrb[0].mxu0 %v6110
    %v6449 = vpop.f32.mrb[0].mxu0
    %v6450 = vadd.f32 %v6410, %v6449
    %v6451 = vpop.f32.mrb[0].mxu0
    %v6452 = vpop.f32.mrb[0].mxu0
    %v6453 = vpop.f32.mrb[0].mxu0
    %6454 = vdwg.mxu0
    %vm6455 = vcmask 48128
    %v6456 = vsel %vm6455, %v6450, -inf
    %6457 = vmax.xlane.f32.xlu0 %v6456
    %v6458 = vpop.xlane.xlu0 %6457
    %v6459 = vsub.f32 %v6450, %v6458
    %v6460 = vmul.f32 %v6459, 1.442695
    %v6461 = vpow.pop %v6460
    %v6462 = vsel %vm6455, %v6461, 0.0
    %6463 = vadd.xlane.f32.xlu0 %v6462
    %v6464 = vpop.xlane.xlu0 %6463
    %v6465 = vrcp.pop %v6464
    %v6466 = vmul.f32 %v6461, %v6465
    %6467 = vst.msk [vmem:[#allocation2] sm:$0xff] %vm6455, %v6466
    %6469 = vrot.lane.b32.xlu0 %v6450, 122
    %v6470 = vpop.permute.xlu0 %6469
    %vm6472 = vcmask 7168
    %6473 = vst.msk [vmem:[#allocation4] sm:$0xff] %vm6472, %v6470
    // Predicated region
    $region22: #{nature_cnn_forward.7} parent=1 // pred_check
      _
    $region23: #{nature_cnn_forward.7} parent=1 // pred_check_branch
      %6475 = sbr.rel (0) target = $region25
    $region24: #{nature_cnn_forward.7} parent=1 // pred_region
      %s6477 = ssub.s32 128, 32
      %6478 = vsyncadd [#allocation3], %s6477
      %s6479 = sshll.u32 [#allocation2], 4
      %s6480 = int_to_ptr.vmem [resolvable:$true] %s6479
      %6485 = dma.vmem_to_hbm [thread:$0]  %s6480, 32, %s5, [#allocation3], 32, 32, 2
    $region25: #{nature_cnn_forward.7} parent=1 // pred_fallthru
      _
    // Predicated region
    $region26: #{nature_cnn_forward.7} parent=1 // pred_check
      _
    $region27: #{nature_cnn_forward.7} parent=1 // pred_check_branch
      %6487 = sbr.rel (0) target = $region29
    $region28: #{nature_cnn_forward.7} parent=1 // pred_region
      // Predicated region
      $region30: #{nature_cnn_forward.7} parent=28 // pred_check
        _
      $region31: #{nature_cnn_forward.7} parent=28 // pred_check_branch
        %6489 = sbr.rel (0) target = $region33
      $region32: #{nature_cnn_forward.7} parent=28 // pred_region
        // Predicated region
        $region34: #{nature_cnn_forward.7} parent=32 // pred_check
          _
        $region35: #{nature_cnn_forward.7} parent=32 // pred_check_branch
          %6491 = sbr.rel target = $region37
        $region36: #{nature_cnn_forward.7} parent=32 // pred_region
          // Predicated region
          $region49: #{nature_cnn_forward.7} parent=36 // pred_check
            _
          $region50: #{nature_cnn_forward.7} parent=36 // pred_check_branch
            %6506 = sbr.rel (0) target = $region52
          $region51: #{nature_cnn_forward.7} parent=36 // pred_region
            loop: start=0, step=1, limit=1
            $region53: #{nature_cnn_forward.7} parent=51 // loop_pre_header
              _
            $region54: #{nature_cnn_forward.7} parent=51 // loop_header
              %s6509 = sphi 0, %s6513
              %p6510 = scmp.ge.s32.totalorder %s6509, 1
              %s6514 = sphi [#allocation4], [#allocation4]
              %s6515 = sphi %s6, %s6
            $region55: #{nature_cnn_forward.7} parent=51 // loop_header_branch
              %6512 = sbr.rel (%p6510) target = $region59
            $region56: #{nature_cnn_forward.7} parent=51 // loop_body
              %v6516 = vld [vmem:[%s6514] sm:$0x3]
              %6517 = vst [vmem:[%s6515] sm:$0x3] %v6516
            $region57: #{nature_cnn_forward.7} parent=51 // loop_footer
              %s6513 = sadd.s32 1, %s6509
            $region58: #{nature_cnn_forward.7} parent=51 // loop_footer_branch
              %6508 = sbr.rel target = $region54
            $region59: #{nature_cnn_forward.7} parent=51 // loop_exit
              _
          $region52: #{nature_cnn_forward.7} parent=36 // pred_fallthru
            _
        $region37: #{nature_cnn_forward.7} parent=32 // pred_fallthru
          _
        // Predicated region
        $region38: #{nature_cnn_forward.7} parent=32 // pred_check
          _
        $region39: #{nature_cnn_forward.7} parent=32 // pred_check_branch
          %6493 = sbr.rel (0) target = $region41
        $region40: #{nature_cnn_forward.7} parent=32 // pred_region
          loop: start=0, step=1, limit=1
          $region42: #{nature_cnn_forward.7} parent=40 // loop_pre_header
            _
          $region43: #{nature_cnn_forward.7} parent=40 // loop_header
            %s6496 = sphi 0, %s6500
            %p6497 = scmp.ge.s32.totalorder %s6496, 1
            %s6501 = sphi [#allocation4], [#allocation4]
            %s6502 = sphi %s6, %s6
          $region44: #{nature_cnn_forward.7} parent=40 // loop_header_branch
            %6499 = sbr.rel (%p6497) target = $region48
          $region45: #{nature_cnn_forward.7} parent=40 // loop_body
            %v6503 = vld [vmem:[%s6501] sm:$0x3]
            %6504 = vst [vmem:[%s6502] sm:$0x3] %v6503
          $region46: #{nature_cnn_forward.7} parent=40 // loop_footer
            %s6500 = sadd.s32 1, %s6496
          $region47: #{nature_cnn_forward.7} parent=40 // loop_footer_branch
            %6495 = sbr.rel target = $region43
          $region48: #{nature_cnn_forward.7} parent=40 // loop_exit
            _
        $region41: #{nature_cnn_forward.7} parent=32 // pred_fallthru
          _
      $region33: #{nature_cnn_forward.7} parent=28 // pred_fallthru
        _
      %6518 = vnop
    $region29: #{nature_cnn_forward.7} parent=1 // pred_fallthru
      _
    // Predicated region
    $region60: #{nature_cnn_forward.7} parent=1 // pred_check
      _
    $region61: #{nature_cnn_forward.7} parent=1 // pred_check_branch
      %6520 = sbr.rel (0) target = $region63
    $region62: #{nature_cnn_forward.7} parent=1 // pred_region
      %6521 = dma.done [#allocation3], 128
    $region63: #{nature_cnn_forward.7} parent=1 // pred_fallthru
      _
    // Predicated region
    $region64: #{nature_cnn_forward.7} parent=1 // pred_check
      _
    $region65: #{nature_cnn_forward.7} parent=1 // pred_check_branch
      %6523 = sbr.rel (0) target = $region67
    $region66: #{nature_cnn_forward.7} parent=1 // pred_region
      _
    $region67: #{nature_cnn_forward.7} parent=1 // pred_fallthru
      _
    %6524 = vsyncpa [#allocation3], 1

</llo_original>
